<compile_context>
chip_gen: v6e
topology: v6e:2x2x1
jax: 0.10.0
libtpu: 0.0.40
codegen_flags: <defaults>
</compile_context>

<pallas_src>
import functools

import jax
import jax.numpy as jnp
from jax.experimental import pallas as pl

CPAD = 128  # conv output channels padded to one full lane width -> unmasked stores


# ----------------------------- Pallas kernels ------------------------------

def _sim_kernel(q_ref, k_ref, o_ref):
    # q: [2B, Lq, D] bf16, k: [2B, Ln+Lb, D] bf16 -> o: [2B, Lq, Ln+Lb] f32
    o_ref[...] = jnp.einsum('bld,brd->blr', q_ref[...], k_ref[...],
                            preferred_element_type=jnp.float32)


def batched_sim(q, k):
    """einsum('bld,brd->blr') for the whole (good+bad) batch in one call."""
    B, Lq, _ = q.shape
    Lk = k.shape[1]
    return pl.pallas_call(
        _sim_kernel,
        out_shape=jax.ShapeDtypeStruct((B, Lq, Lk), jnp.float32),
    )(q.astype(jnp.bfloat16), k.astype(jnp.bfloat16))


def _linear_kernel(x_ref, w_ref, b_ref, o_ref, *, relu):
    # bf16 operands, f32 accumulate (+bias, +relu), cast to output dtype.
    y = jnp.dot(x_ref[...], w_ref[...], preferred_element_type=jnp.float32)
    y = y + b_ref[...]
    if relu:
        y = jnp.maximum(y, 0.0)
    o_ref[...] = y.astype(o_ref.dtype)


def linear(x, w, b, *, relu, out_dtype=jnp.float32):
    """y = act(x @ w + b); x:[M,K] bf16, w:[K,N] bf16, b:[1,N] f32."""
    M = x.shape[0]
    N = w.shape[1]
    return pl.pallas_call(
        functools.partial(_linear_kernel, relu=relu),
        out_shape=jax.ShapeDtypeStruct((M, N), out_dtype),
    )(x.astype(jnp.bfloat16), w.astype(jnp.bfloat16),
      b.reshape(1, N).astype(jnp.float32))


def _head_kernel(fn_ref, fb_ref, wfn_ref, bfn_ref, wfb_ref, bfb_ref,
                 w1_ref, b1_ref, w2_ref, b2_ref, w3_ref, b3_ref,
                 o_ref, *, margin, batch):
    # Fused: flatten->hidden (both towers) + add + 3-layer combine MLP + hinge loss.
    def dense(x, w_ref, b_ref, relu):
        y = jnp.dot(x, w_ref[...], preferred_element_type=jnp.float32) + b_ref[...]
        return jnp.maximum(y, 0.0) if relu else y

    h = dense(fn_ref[...], wfn_ref, bfn_ref, True) + dense(fb_ref[...], wfb_ref, bfb_ref, True)
    h = dense(h.astype(jnp.bfloat16), w1_ref, b1_ref, True)
    h = dense(h.astype(jnp.bfloat16), w2_ref, b2_ref, True)
    s = dense(h.astype(jnp.bfloat16), w3_ref, b3_ref, False)          # [2B, 1]
    good = s[:batch]
    bad = s[batch:]
    d = jnp.maximum(margin - good + bad, 1e-6)                        # clamp(min=1e-6)
    o_ref[...] = jnp.mean(d, keepdims=True)                           # mean over B rows


def fused_head(flat_n, flat_b, fc_n, fc_b, comb, margin, batch):
    out = pl.pallas_call(
        functools.partial(_head_kernel, margin=margin, batch=batch),
        out_shape=jax.ShapeDtypeStruct((1, 1), jnp.float32),
    )(flat_n, flat_b, fc_n['w'], fc_n['b'], fc_b['w'], fc_b['b'],
      comb['w1'], comb['b1'], comb['w2'], comb['b2'], comb['w3'], comb['b3'])
    return out[0, 0]


# --------------------------------- Glue -------------------------------------

def im2col_3x3_nhwc(x):
    """x: [N, H, W, C] -> [N*H*W, 9*C] patches (pad=1, (di,dj,c) column order)."""
    N, H, W, C = x.shape
    xp = jnp.pad(x, ((0, 0), (1, 1), (1, 1), (0, 0)))
    cols = [xp[:, di:di + H, dj:dj + W, :] for di in range(3) for dj in range(3)]
    return jnp.concatenate(cols, axis=-1).reshape(N * H * W, 9 * C)


def maxpool2x2_nhwc(x):
    """x: [N, H, W, C] -> MaxPool2d(2,2) with floor semantics, channels last."""
    N, H, W, C = x.shape
    H2, W2 = H // 2, W // 2
    x = x[:, :H2 * 2, :W2 * 2, :].reshape(N, H2, 2, W2, 2, C)
    return jnp.max(x, axis=(2, 4))


def conv_tower(x, p):
    """pad+conv(2->16)+relu+pool, pad+conv(16->32)+relu+pool, flatten.
    x: [N, H, W, 2] bf16 (NHWC).  Output channels are lane-padded to CPAD
    (padded channels are identically zero)."""
    N, H, W, _ = x.shape
    y = linear(im2col_3x3_nhwc(x), p['w1'], p['b1'],
               relu=True, out_dtype=jnp.bfloat16)                     # [N*H*W, CPAD]
    y = maxpool2x2_nhwc(y.reshape(N, H, W, CPAD))
    H2, W2 = y.shape[1], y.shape[2]
    y = linear(im2col_3x3_nhwc(y), p['w2'], p['b2'],
               relu=True, out_dtype=jnp.bfloat16)                     # [N*H2*W2, CPAD]
    y = maxpool2x2_nhwc(y.reshape(N, H2, W2, CPAD))
    return y.reshape(N, -1)                                           # [N, H4*W4*CPAD]


def cqil_forward(prep, margin, query, good_name, good_body, bad_name, bad_body,
                 good_name_lex, good_body_lex, bad_name_lex, bad_body_lex):
    B = query.shape[0]
    # Fuse good/bad paths into a single 2B batch (good rows first).
    q2 = jnp.concatenate([query, query], axis=0)
    name2 = jnp.concatenate([good_name, bad_name], axis=0)
    body2 = jnp.concatenate([good_body, bad_body], axis=0)
    name_lex2 = jnp.concatenate([good_name_lex, bad_name_lex], axis=0)
    body_lex2 = jnp.concatenate([good_body_lex, bad_body_lex], axis=0)

    # TODO(synk): dropout layers are treated as identity (eval/inference mode).
    eq = jnp.take(prep['query_emb'], q2, axis=0)                      # [2B, Lq, D]
    en = jnp.take(prep['name_emb'], name2, axis=0)                    # [2B, Ln, D]
    eb = jnp.take(prep['body_emb'], body2, axis=0)                    # [2B, Lb, D]

    Ln = en.shape[1]
    sim = batched_sim(eq, jnp.concatenate([en, eb], axis=1))          # [2B, Lq, Ln+Lb]
    name_sem, body_sem = sim[:, :, :Ln], sim[:, :, Ln:]

    # Channels-last [sem, lex] stack (channel 0 = sem, 1 = lex, as in torch.cat).
    x_name = jnp.stack([name_sem, name_lex2], axis=-1).astype(jnp.bfloat16)
    x_body = jnp.stack([body_sem, body_lex2], axis=-1).astype(jnp.bfloat16)

    flat_n = conv_tower(x_name, prep['name_conv'])
    flat_b = conv_tower(x_body, prep['body_conv'])

    return fused_head(flat_n, flat_b,
                      prep['name_conv']['fc'], prep['body_conv']['fc'],
                      prep['combine'], margin, B)


# ------------------------------ Parameters ----------------------------------

def init_params(key, cfg):
    # Deterministic synthetic parameters in PyTorch layout (the original loads
    # fasttext vectors + nn.Conv2d / nn.Linear weights).
    D, H = cfg['emb_size'], cfg['hidden_layer']
    keys = iter(jax.random.split(key, 32))

    def nrm(shape, scale=0.1):
        return scale * jax.random.normal(next(keys), shape, jnp.float32)

    def emb(vocab):
        t = nrm((vocab, D), 0.5)
        return t.at[0].set(0.0)   # index 0 stays zero, as in the torch init loop

    def conv_params(flatten_size):
        return {
            'conv1_w': nrm((16, 2, 3, 3)), 'conv1_b': nrm((16,)),
            'conv2_w': nrm((32, 16, 3, 3)), 'conv2_b': nrm((32,)),
            'fc_w': nrm((H, flatten_size)), 'fc_b': nrm((H,)),
        }

    return {
        'query_emb': emb(cfg['query_vocab_size']),
        'name_emb': emb(cfg['name_vocab_size']),
        'body_emb': emb(cfg['body_vocab_size']),
        'name_conv': conv_params(32 * (cfg['Lq'] // 4) * (cfg['Ln'] // 4)),
        'body_conv': conv_params(32 * (cfg['Lq'] // 4) * (cfg['Lb'] // 4)),
        'combine': {
            'w1': nrm((H, H)), 'b1': nrm((H,)),
            'w2': nrm((H, H)), 'b2': nrm((H,)),
            'w3': nrm((1, H)), 'b3': nrm((1,)),
        },
    }


def prepare_params(params, cfg):
    """One-time weight prep: NHWC-ordered, K-major, lane-padded, bf16 MXU operands."""
    H = cfg['hidden_layer']

    def prep_conv(p, h4, w4):
        c_in = p['conv1_w'].shape[1]     # 2
        c1 = p['conv1_w'].shape[0]       # 16
        c2 = p['conv2_w'].shape[0]       # 32
        # conv1: [16,2,3,3] -> [3,3,2,16] -> [18,16] -> pad Cout to CPAD.
        w1 = jnp.transpose(p['conv1_w'], (2, 3, 1, 0)).reshape(9 * c_in, c1)
        w1 = jnp.pad(w1, ((0, 0), (0, CPAD - c1)))
        b1 = jnp.pad(p['conv1_b'], (0, CPAD - c1)).reshape(1, CPAD)
        # conv2: [32,16,3,3] -> [3,3,16,32] -> pad Cin 16->CPAD -> [9*CPAD,32] -> pad Cout.
        w2 = jnp.transpose(p['conv2_w'], (2, 3, 1, 0))
        w2 = jnp.pad(w2, ((0, 0), (0, 0), (0, CPAD - c1), (0, 0))).reshape(9 * CPAD, c2)
        w2 = jnp.pad(w2, ((0, 0), (0, CPAD - c2)))
        b2 = jnp.pad(p['conv2_b'], (0, CPAD - c2)).reshape(1, CPAD)
        # fc: PyTorch channel-major flatten [H, c2*h4*w4] -> NHWC order + Cin pad -> [h4*w4*CPAD, H].
        fw = p['fc_w'].reshape(H, c2, h4, w4)
        fw = jnp.transpose(fw, (0, 2, 3, 1))                         # [H, h4, w4, c2]
        fw = jnp.pad(fw, ((0, 0), (0, 0), (0, 0), (0, CPAD - c2)))
        fw = fw.reshape(H, h4 * w4 * CPAD).T
        return {
            'w1': w1.astype(jnp.bfloat16), 'b1': b1.astype(jnp.float32),
            'w2': w2.astype(jnp.bfloat16), 'b2': b2.astype(jnp.float32),
            'fc': {'w': fw.astype(jnp.bfloat16),
                   'b': p['fc_b'].reshape(1, H).astype(jnp.float32)},
        }

    comb = params['combine']
    return {
        'query_emb': params['query_emb'].astype(jnp.bfloat16),
        'name_emb': params['name_emb'].astype(jnp.bfloat16),
        'body_emb': params['body_emb'].astype(jnp.bfloat16),
        'name_conv': prep_conv(params['name_conv'], cfg['Lq'] // 4, cfg['Ln'] // 4),
        'body_conv': prep_conv(params['body_conv'], cfg['Lq'] // 4, cfg['Lb'] // 4),
        'combine': {
            'w1': comb['w1'].T.astype(jnp.bfloat16), 'b1': comb['b1'].reshape(1, H).astype(jnp.float32),
            'w2': comb['w2'].T.astype(jnp.bfloat16), 'b2': comb['b2'].reshape(1, H).astype(jnp.float32),
            'w3': comb['w3'].T.astype(jnp.bfloat16), 'b3': comb['b3'].reshape(1, 1).astype(jnp.float32),
        },
    }


# --------------------------------- Main --------------------------------------

if __name__ == "__main__":
    cfg = dict(emb_size=16, hidden_layer=32, Lq=12, Ln=8, Lb=16,
               query_vocab_size=50, name_vocab_size=60, body_vocab_size=80,
               margin=0.5)
    B = 2

    key = jax.random.PRNGKey(0)
    pkey, dkey = jax.random.split(key)
    params = init_params(pkey, cfg)
    prep = prepare_params(params, cfg)     # one-time weight reshape/transpose/pad/bf16

    ks = jax.random.split(dkey, 9)
    query      = jax.random.randint(ks[0], (B, cfg['Lq']), 0, cfg['query_vocab_size'], jnp.int32)
    good_name  = jax.random.randint(ks[1], (B, cfg['Ln']), 0, cfg['name_vocab_size'], jnp.int32)
    good_body  = jax.random.randint(ks[2], (B, cfg['Lb']), 0, cfg['body_vocab_size'], jnp.int32)
    bad_name   = jax.random.randint(ks[3], (B, cfg['Ln']), 0, cfg['name_vocab_size'], jnp.int32)
    bad_body   = jax.random.randint(ks[4], (B, cfg['Lb']), 0, cfg['body_vocab_size'], jnp.int32)
    good_name_lex = jax.random.normal(ks[5], (B, cfg['Lq'], cfg['Ln']), jnp.float32)
    good_body_lex = jax.random.normal(ks[6], (B, cfg['Lq'], cfg['Lb']), jnp.float32)
    bad_name_lex  = jax.random.normal(ks[7], (B, cfg['Lq'], cfg['Ln']), jnp.float32)
    bad_body_lex  = jax.random.normal(ks[8], (B, cfg['Lq'], cfg['Lb']), jnp.float32)

    fwd = jax.jit(functools.partial(cqil_forward, prep, cfg['margin']))
    loss = fwd(query, good_name, good_body, bad_name, bad_body,
               good_name_lex, good_body_lex, bad_name_lex, bad_body_lex)
    loss = jax.block_until_ready(loss)
    assert loss.shape == () and bool(jnp.isfinite(loss))
    print("KERNEL_OK")
</pallas_src>

<mosaic_0001>
module attributes {stable_mosaic.version = 11 : i64} {
  func.func @_sim_kernel(%arg0: memref<4x12x16xbf16, #tpu.memory_space<vmem>>, %arg1: memref<4x24x16xbf16, #tpu.memory_space<vmem>>, %arg2: memref<4x12x24xf32, #tpu.memory_space<vmem>>) attributes {dimension_semantics = [], scalar_prefetch = 0 : i64, scratch_operands = 0 : i64, tpu.core_type = #tpu.core_type<tc>} {
    %c0 = arith.constant 0 : index
    %c0_0 = arith.constant 0 : index
    %c0_1 = arith.constant 0 : index
    %0 = vector.load %arg0[%c0, %c0_0, %c0_1] : memref<4x12x16xbf16, #tpu.memory_space<vmem>>, vector<4x12x16xbf16>
    %c0_2 = arith.constant 0 : index
    %c0_3 = arith.constant 0 : index
    %c0_4 = arith.constant 0 : index
    %1 = vector.load %arg1[%c0_2, %c0_3, %c0_4] : memref<4x24x16xbf16, #tpu.memory_space<vmem>>, vector<4x24x16xbf16>
    "tpu.trace_start"() <{level = 10 : i32, message = "bld,brd->blr"}> : () -> ()
    %cst = arith.constant dense<0.000000e+00> : vector<4x12x24xf32>
    %2 = tpu.matmul %0, %1, %cst {dimension_numbers = #tpu.dot_dimension_numbers<[2], [2], [1], [1], [0, 0, 0, 1, 1, 1], [0], [0]>} : vector<4x12x16xbf16>, vector<4x24x16xbf16>, vector<4x12x24xf32> -> vector<4x12x24xf32>
    "tpu.trace_stop"() : () -> ()
    %c0_5 = arith.constant 0 : index
    %c0_6 = arith.constant 0 : index
    %c0_7 = arith.constant 0 : index
    %3 = vector.load %arg2[%c0_5, %c0_6, %c0_7] : memref<4x12x24xf32, #tpu.memory_space<vmem>>, vector<4x12x24xf32>
    tpu.vector_store %arg2[%c0_5, %c0_6, %c0_7], %2 {strides = array<i32>} : memref<4x12x24xf32, #tpu.memory_space<vmem>>, vector<4x12x24xf32>,
    return
  }
}

module attributes {stable_mosaic.version = 11 : i64} {
  func.func @_linear_kernel(%arg0: memref<768x18xbf16, #tpu.memory_space<vmem>>, %arg1: memref<18x128xbf16, #tpu.memory_space<vmem>>, %arg2: memref<1x128xf32, #tpu.memory_space<vmem>>, %arg3: memref<768x128xbf16, #tpu.memory_space<vmem>>) attributes {dimension_semantics = [], scalar_prefetch = 0 : i64, scratch_operands = 0 : i64, tpu.core_type = #tpu.core_type<tc>} {
    %c0 = arith.constant 0 : index
    %c0_0 = arith.constant 0 : index
    %0 = vector.load %arg0[%c0, %c0_0] : memref<768x18xbf16, #tpu.memory_space<vmem>>, vector<768x18xbf16>
    %c0_1 = arith.constant 0 : index
    %c0_2 = arith.constant 0 : index
    %1 = vector.load %arg1[%c0_1, %c0_2] : memref<18x128xbf16, #tpu.memory_space<vmem>>, vector<18x128xbf16>
    %cst = arith.constant dense<0.000000e+00> : vector<768x128xf32>
    %2 = tpu.matmul %0, %1, %cst {dimension_numbers = #tpu.dot_dimension_numbers<[1], [0], [0], [1], [0, 0, 1, 1], [], []>} : vector<768x18xbf16>, vector<18x128xbf16>, vector<768x128xf32> -> vector<768x128xf32>
    %c0_3 = arith.constant 0 : index
    %c0_4 = arith.constant 0 : index
    %3 = vector.load %arg2[%c0_3, %c0_4] : memref<1x128xf32, #tpu.memory_space<vmem>>, vector<1x128xf32>
    %4 = vector.broadcast %3 : vector<1x128xf32> to vector<768x128xf32>
    %5 = arith.addf %2, %4 : vector<768x128xf32>
    %cst_5 = arith.constant 0.000000e+00 : f32
    %6 = vector.broadcast %cst_5 : f32 to vector<768x128xf32>
    %7 = arith.maximumf %5, %6 : vector<768x128xf32>
    %8 = arith.truncf %7 : vector<768x128xf32> to vector<768x128xbf16>
    %c0_6 = arith.constant 0 : index
    %c0_7 = arith.constant 0 : index
    %9 = vector.load %arg3[%c0_6, %c0_7] : memref<768x128xbf16, #tpu.memory_space<vmem>>, vector<768x128xbf16>
    tpu.vector_store %arg3[%c0_6, %c0_7], %8 {strides = array<i32>} : memref<768x128xbf16, #tpu.memory_space<vmem>>, vector<768x128xbf16>,
    return
  }
}

module attributes {stable_mosaic.version = 11 : i64} {
  func.func @_linear_kernel(%arg0: memref<192x1152xbf16, #tpu.memory_space<vmem>>, %arg1: memref<1152x128xbf16, #tpu.memory_space<vmem>>, %arg2: memref<1x128xf32, #tpu.memory_space<vmem>>, %arg3: memref<192x128xbf16, #tpu.memory_space<vmem>>) attributes {dimension_semantics = [], scalar_prefetch = 0 : i64, scratch_operands = 0 : i64, tpu.core_type = #tpu.core_type<tc>} {
    %c0 = arith.constant 0 : index
    %c0_0 = arith.constant 0 : index
    %0 = vector.load %arg0[%c0, %c0_0] : memref<192x1152xbf16, #tpu.memory_space<vmem>>, vector<192x1152xbf16>
    %c0_1 = arith.constant 0 : index
    %c0_2 = arith.constant 0 : index
    %1 = vector.load %arg1[%c0_1, %c0_2] : memref<1152x128xbf16, #tpu.memory_space<vmem>>, vector<1152x128xbf16>
    %cst = arith.constant dense<0.000000e+00> : vector<192x128xf32>
    %2 = tpu.matmul %0, %1, %cst {dimension_numbers = #tpu.dot_dimension_numbers<[1], [0], [0], [1], [0, 0, 1, 1], [], []>} : vector<192x1152xbf16>, vector<1152x128xbf16>, vector<192x128xf32> -> vector<192x128xf32>
    %c0_3 = arith.constant 0 : index
    %c0_4 = arith.constant 0 : index
    %3 = vector.load %arg2[%c0_3, %c0_4] : memref<1x128xf32, #tpu.memory_space<vmem>>, vector<1x128xf32>
    %4 = vector.broadcast %3 : vector<1x128xf32> to vector<192x128xf32>
    %5 = arith.addf %2, %4 : vector<192x128xf32>
    %cst_5 = arith.constant 0.000000e+00 : f32
    %6 = vector.broadcast %cst_5 : f32 to vector<192x128xf32>
    %7 = arith.maximumf %5, %6 : vector<192x128xf32>
    %8 = arith.truncf %7 : vector<192x128xf32> to vector<192x128xbf16>
    %c0_6 = arith.constant 0 : index
    %c0_7 = arith.constant 0 : index
    %9 = vector.load %arg3[%c0_6, %c0_7] : memref<192x128xbf16, #tpu.memory_space<vmem>>, vector<192x128xbf16>
    tpu.vector_store %arg3[%c0_6, %c0_7], %8 {strides = array<i32>} : memref<192x128xbf16, #tpu.memory_space<vmem>>, vector<192x128xbf16>,
    return
  }
}

module attributes {stable_mosaic.version = 11 : i64} {
  func.func @_linear_kernel(%arg0: memref<384x18xbf16, #tpu.memory_space<vmem>>, %arg1: memref<18x128xbf16, #tpu.memory_space<vmem>>, %arg2: memref<1x128xf32, #tpu.memory_space<vmem>>, %arg3: memref<384x128xbf16, #tpu.memory_space<vmem>>) attributes {dimension_semantics = [], scalar_prefetch = 0 : i64, scratch_operands = 0 : i64, tpu.core_type = #tpu.core_type<tc>} {
    %c0 = arith.constant 0 : index
    %c0_0 = arith.constant 0 : index
    %0 = vector.load %arg0[%c0, %c0_0] : memref<384x18xbf16, #tpu.memory_space<vmem>>, vector<384x18xbf16>
    %c0_1 = arith.constant 0 : index
    %c0_2 = arith.constant 0 : index
    %1 = vector.load %arg1[%c0_1, %c0_2] : memref<18x128xbf16, #tpu.memory_space<vmem>>, vector<18x128xbf16>
    %cst = arith.constant dense<0.000000e+00> : vector<384x128xf32>
    %2 = tpu.matmul %0, %1, %cst {dimension_numbers = #tpu.dot_dimension_numbers<[1], [0], [0], [1], [0, 0, 1, 1], [], []>} : vector<384x18xbf16>, vector<18x128xbf16>, vector<384x128xf32> -> vector<384x128xf32>
    %c0_3 = arith.constant 0 : index
    %c0_4 = arith.constant 0 : index
    %3 = vector.load %arg2[%c0_3, %c0_4] : memref<1x128xf32, #tpu.memory_space<vmem>>, vector<1x128xf32>
    %4 = vector.broadcast %3 : vector<1x128xf32> to vector<384x128xf32>
    %5 = arith.addf %2, %4 : vector<384x128xf32>
    %cst_5 = arith.constant 0.000000e+00 : f32
    %6 = vector.broadcast %cst_5 : f32 to vector<384x128xf32>
    %7 = arith.maximumf %5, %6 : vector<384x128xf32>
    %8 = arith.truncf %7 : vector<384x128xf32> to vector<384x128xbf16>
    %c0_6 = arith.constant 0 : index
    %c0_7 = arith.constant 0 : index
    %9 = vector.load %arg3[%c0_6, %c0_7] : memref<384x128xbf16, #tpu.memory_space<vmem>>, vector<384x128xbf16>
    tpu.vector_store %arg3[%c0_6, %c0_7], %8 {strides = array<i32>} : memref<384x128xbf16, #tpu.memory_space<vmem>>, vector<384x128xbf16>,
    return
  }
}

module attributes {stable_mosaic.version = 11 : i64} {
  func.func @_linear_kernel(%arg0: memref<96x1152xbf16, #tpu.memory_space<vmem>>, %arg1: memref<1152x128xbf16, #tpu.memory_space<vmem>>, %arg2: memref<1x128xf32, #tpu.memory_space<vmem>>, %arg3: memref<96x128xbf16, #tpu.memory_space<vmem>>) attributes {dimension_semantics = [], scalar_prefetch = 0 : i64, scratch_operands = 0 : i64, tpu.core_type = #tpu.core_type<tc>} {
    %c0 = arith.constant 0 : index
    %c0_0 = arith.constant 0 : index
    %0 = vector.load %arg0[%c0, %c0_0] : memref<96x1152xbf16, #tpu.memory_space<vmem>>, vector<96x1152xbf16>
    %c0_1 = arith.constant 0 : index
    %c0_2 = arith.constant 0 : index
    %1 = vector.load %arg1[%c0_1, %c0_2] : memref<1152x128xbf16, #tpu.memory_space<vmem>>, vector<1152x128xbf16>
    %cst = arith.constant dense<0.000000e+00> : vector<96x128xf32>
    %2 = tpu.matmul %0, %1, %cst {dimension_numbers = #tpu.dot_dimension_numbers<[1], [0], [0], [1], [0, 0, 1, 1], [], []>} : vector<96x1152xbf16>, vector<1152x128xbf16>, vector<96x128xf32> -> vector<96x128xf32>
    %c0_3 = arith.constant 0 : index
    %c0_4 = arith.constant 0 : index
    %3 = vector.load %arg2[%c0_3, %c0_4] : memref<1x128xf32, #tpu.memory_space<vmem>>, vector<1x128xf32>
    %4 = vector.broadcast %3 : vector<1x128xf32> to vector<96x128xf32>
    %5 = arith.addf %2, %4 : vector<96x128xf32>
    %cst_5 = arith.constant 0.000000e+00 : f32
    %6 = vector.broadcast %cst_5 : f32 to vector<96x128xf32>
    %7 = arith.maximumf %5, %6 : vector<96x128xf32>
    %8 = arith.truncf %7 : vector<96x128xf32> to vector<96x128xbf16>
    %c0_6 = arith.constant 0 : index
    %c0_7 = arith.constant 0 : index
    %9 = vector.load %arg3[%c0_6, %c0_7] : memref<96x128xbf16, #tpu.memory_space<vmem>>, vector<96x128xbf16>
    tpu.vector_store %arg3[%c0_6, %c0_7], %8 {strides = array<i32>} : memref<96x128xbf16, #tpu.memory_space<vmem>>, vector<96x128xbf16>,
    return
  }
}

module attributes {stable_mosaic.version = 11 : i64} {
  func.func @_head_kernel(%arg0: memref<4x768xbf16, #tpu.memory_space<vmem>>, %arg1: memref<4x1536xbf16, #tpu.memory_space<vmem>>, %arg2: memref<768x32xbf16, #tpu.memory_space<vmem>>, %arg3: memref<1x32xf32, #tpu.memory_space<vmem>>, %arg4: memref<1536x32xbf16, #tpu.memory_space<vmem>>, %arg5: memref<1x32xf32, #tpu.memory_space<vmem>>, %arg6: memref<32x32xbf16, #tpu.memory_space<vmem>>, %arg7: memref<1x32xf32, #tpu.memory_space<vmem>>, %arg8: memref<32x32xbf16, #tpu.memory_space<vmem>>, %arg9: memref<1x32xf32, #tpu.memory_space<vmem>>, %arg10: memref<32x1xbf16, #tpu.memory_space<vmem>>, %arg11: memref<1x1xf32, #tpu.memory_space<vmem>>, %arg12: memref<1x1xf32, #tpu.memory_space<vmem>>) attributes {dimension_semantics = [], scalar_prefetch = 0 : i64, scratch_operands = 0 : i64, tpu.core_type = #tpu.core_type<tc>} {
    %c0 = arith.constant 0 : index
    %c0_0 = arith.constant 0 : index
    %0 = vector.load %arg0[%c0, %c0_0] : memref<4x768xbf16, #tpu.memory_space<vmem>>, vector<4x768xbf16>
    %c0_1 = arith.constant 0 : index
    %c0_2 = arith.constant 0 : index
    %1 = vector.load %arg2[%c0_1, %c0_2] : memref<768x32xbf16, #tpu.memory_space<vmem>>, vector<768x32xbf16>
    %cst = arith.constant dense<0.000000e+00> : vector<4x32xf32>
    %2 = tpu.matmul %0, %1, %cst {dimension_numbers = #tpu.dot_dimension_numbers<[1], [0], [0], [1], [0, 0, 1, 1], [], []>} : vector<4x768xbf16>, vector<768x32xbf16>, vector<4x32xf32> -> vector<4x32xf32>
    %c0_3 = arith.constant 0 : index
    %c0_4 = arith.constant 0 : index
    %3 = vector.load %arg3[%c0_3, %c0_4] : memref<1x32xf32, #tpu.memory_space<vmem>>, vector<1x32xf32>
    %4 = vector.broadcast %3 : vector<1x32xf32> to vector<4x32xf32>
    %5 = arith.addf %2, %4 : vector<4x32xf32>
    %cst_5 = arith.constant 0.000000e+00 : f32
    %6 = vector.broadcast %cst_5 : f32 to vector<4x32xf32>
    %7 = arith.maximumf %5, %6 : vector<4x32xf32>
    %c0_6 = arith.constant 0 : index
    %c0_7 = arith.constant 0 : index
    %8 = vector.load %arg1[%c0_6, %c0_7] : memref<4x1536xbf16, #tpu.memory_space<vmem>>, vector<4x1536xbf16>
    %c0_8 = arith.constant 0 : index
    %c0_9 = arith.constant 0 : index
    %9 = vector.load %arg4[%c0_8, %c0_9] : memref<1536x32xbf16, #tpu.memory_space<vmem>>, vector<1536x32xbf16>
    %cst_10 = arith.constant dense<0.000000e+00> : vector<4x32xf32>
    %10 = tpu.matmul %8, %9, %cst_10 {dimension_numbers = #tpu.dot_dimension_numbers<[1], [0], [0], [1], [0, 0, 1, 1], [], []>} : vector<4x1536xbf16>, vector<1536x32xbf16>, vector<4x32xf32> -> vector<4x32xf32>
    %c0_11 = arith.constant 0 : index
    %c0_12 = arith.constant 0 : index
    %11 = vector.load %arg5[%c0_11, %c0_12] : memref<1x32xf32, #tpu.memory_space<vmem>>, vector<1x32xf32>
    %12 = vector.broadcast %11 : vector<1x32xf32> to vector<4x32xf32>
    %13 = arith.addf %10, %12 : vector<4x32xf32>
    %cst_13 = arith.constant 0.000000e+00 : f32
    %14 = vector.broadcast %cst_13 : f32 to vector<4x32xf32>
    %15 = arith.maximumf %13, %14 : vector<4x32xf32>
    %16 = arith.addf %7, %15 : vector<4x32xf32>
    %17 = arith.truncf %16 : vector<4x32xf32> to vector<4x32xbf16>
    %c0_14 = arith.constant 0 : index
    %c0_15 = arith.constant 0 : index
    %18 = vector.load %arg6[%c0_14, %c0_15] : memref<32x32xbf16, #tpu.memory_space<vmem>>, vector<32x32xbf16>
    %cst_16 = arith.constant dense<0.000000e+00> : vector<4x32xf32>
    %19 = tpu.matmul %17, %18, %cst_16 {dimension_numbers = #tpu.dot_dimension_numbers<[1], [0], [0], [1], [0, 0, 1, 1], [], []>} : vector<4x32xbf16>, vector<32x32xbf16>, vector<4x32xf32> -> vector<4x32xf32>
    %c0_17 = arith.constant 0 : index
    %c0_18 = arith.constant 0 : index
    %20 = vector.load %arg7[%c0_17, %c0_18] : memref<1x32xf32, #tpu.memory_space<vmem>>, vector<1x32xf32>
    %21 = vector.broadcast %20 : vector<1x32xf32> to vector<4x32xf32>
    %22 = arith.addf %19, %21 : vector<4x32xf32>
    %cst_19 = arith.constant 0.000000e+00 : f32
    %23 = vector.broadcast %cst_19 : f32 to vector<4x32xf32>
    %24 = arith.maximumf %22, %23 : vector<4x32xf32>
    %25 = arith.truncf %24 : vector<4x32xf32> to vector<4x32xbf16>
    %c0_20 = arith.constant 0 : index
    %c0_21 = arith.constant 0 : index
    %26 = vector.load %arg8[%c0_20, %c0_21] : memref<32x32xbf16, #tpu.memory_space<vmem>>, vector<32x32xbf16>
    %cst_22 = arith.constant dense<0.000000e+00> : vector<4x32xf32>
    %27 = tpu.matmul %25, %26, %cst_22 {dimension_numbers = #tpu.dot_dimension_numbers<[1], [0], [0], [1], [0, 0, 1, 1], [], []>} : vector<4x32xbf16>, vector<32x32xbf16>, vector<4x32xf32> -> vector<4x32xf32>
    %c0_23 = arith.constant 0 : index
    %c0_24 = arith.constant 0 : index
    %28 = vector.load %arg9[%c0_23, %c0_24] : memref<1x32xf32, #tpu.memory_space<vmem>>, vector<1x32xf32>
    %29 = vector.broadcast %28 : vector<1x32xf32> to vector<4x32xf32>
    %30 = arith.addf %27, %29 : vector<4x32xf32>
    %cst_25 = arith.constant 0.000000e+00 : f32
    %31 = vector.broadcast %cst_25 : f32 to vector<4x32xf32>
    %32 = arith.maximumf %30, %31 : vector<4x32xf32>
    %33 = arith.truncf %32 : vector<4x32xf32> to vector<4x32xbf16>
    %c0_26 = arith.constant 0 : index
    %c0_27 = arith.constant 0 : index
    %34 = vector.load %arg10[%c0_26, %c0_27] : memref<32x1xbf16, #tpu.memory_space<vmem>>, vector<32x1xbf16>
    %cst_28 = arith.constant dense<0.000000e+00> : vector<4x1xf32>
    %35 = tpu.matmul %33, %34, %cst_28 {dimension_numbers = #tpu.dot_dimension_numbers<[1], [0], [0], [1], [0, 0, 1, 1], [], []>} : vector<4x32xbf16>, vector<32x1xbf16>, vector<4x1xf32> -> vector<4x1xf32>
    %c0_29 = arith.constant 0 : index
    %c0_30 = arith.constant 0 : index
    %36 = vector.load %arg11[%c0_29, %c0_30] : memref<1x1xf32, #tpu.memory_space<vmem>>, vector<1x1xf32>
    %37 = vector.broadcast %36 : vector<1x1xf32> to vector<4x1xf32>
    %38 = arith.addf %35, %37 : vector<4x1xf32>
    %39 = vector.extract_strided_slice %38 {offsets = [0, 0], sizes = [2, 1], strides = [1, 1]} : vector<4x1xf32> to vector<2x1xf32>
    %40 = vector.extract_strided_slice %38 {offsets = [2, 0], sizes = [2, 1], strides = [1, 1]} : vector<4x1xf32> to vector<2x1xf32>
    %cst_31 = arith.constant 5.000000e-01 : f32
    %41 = vector.broadcast %cst_31 : f32 to vector<2x1xf32>
    %42 = arith.subf %41, %39 : vector<2x1xf32>
    %43 = arith.addf %42, %40 : vector<2x1xf32>
    %cst_32 = arith.constant 9.99999997E-7 : f32
    %44 = vector.broadcast %cst_32 : f32 to vector<2x1xf32>
    %45 = arith.maximumf %43, %44 : vector<2x1xf32>
    %46 = vector.shape_cast %45 : vector<2x1xf32> to vector<1x2x1xf32>
    %cst_33 = arith.constant dense<0.000000e+00> : vector<1xf32>
    %47 = vector.multi_reduction <add>, %46, %cst_33 [1, 2] : vector<1x2x1xf32> to vector<1xf32>
    %48 = vector.shape_cast %47 : vector<1xf32> to vector<1x1x1xf32>
    %49 = vector.extract %48[0, 0, 0] : f32 from vector<1x1x1xf32>
    %50 = vector.broadcast %49 : f32 to vector<1x1xf32>
    %cst_34 = arith.constant 2.000000e+00 : f32
    %51 = vector.broadcast %cst_34 : f32 to vector<1x1xf32>
    %52 = arith.divf %50, %51 : vector<1x1xf32>
    %c0_35 = arith.constant 0 : index
    %c0_36 = arith.constant 0 : index
    %53 = vector.load %arg12[%c0_35, %c0_36] : memref<1x1xf32, #tpu.memory_space<vmem>>, vector<1x1xf32>
    tpu.vector_store %arg12[%c0_35, %c0_36], %52 {strides = array<i32>} : memref<1x1xf32, #tpu.memory_space<vmem>>, vector<1x1xf32>,
    return
  }
}

</mosaic_0001>

<llo_original>
// kernel: cqil_forward.6
$region0: #{cqil_forward.6}
  #allocation0 [shape = 'u32[]', space=smem, size = 0x4, offset = 0x4, fixed_abs, tag = 'smem constant byte address 0x4 - core index']
  #allocation1 [shape = 'u32[144,128]{1,0:T(1,128)}', space=vmem, size = 0x12000, scoped, tag = 'internal scratch']
  %s0 = inlined_call_operand.vmem [shape: bf16[4,12,16], index: 0, kind: input, shape index: {}]
  %s1 = inlined_call_operand.vmem [shape: bf16[4,24,16], index: 1, kind: input, shape index: {}]
  %s2 = inlined_call_operand.vmem [shape: f32[4,12,24], index: 2, kind: output, shape index: {}]
  %s3 = sld [smem:[#allocation0]]
  $region18: #{cqil_forward.6} parent=0
    _
  %s5 = ssub.s32 1, %s3
  %s6 = scalar_select 0, %s5, %s3
  // Predicated region
  $region2: #{cqil_forward.6} parent=0 // pred_check
    _
  $region3: #{cqil_forward.6} parent=0 // pred_check_branch
    %8 = sbr.rel (0) target = $region5
  $region4: #{cqil_forward.6} parent=0 // pred_region
    _
  $region5: #{cqil_forward.6} parent=0 // pred_fallthru
    _
  // Predicated region
  $region6: #{cqil_forward.6} parent=0 // pred_check
    _
  $region7: #{cqil_forward.6} parent=0 // pred_check_branch
    %10 = sbr.rel (0) target = $region9
  $region8: #{cqil_forward.6} parent=0 // pred_region
    _
  $region9: #{cqil_forward.6} parent=0 // pred_fallthru
    _
  %v12 = vld [vmem:[%s0] sm:$0xf]
  %v13 = vld [vmem:[%s0 + $0x4] sm:$0x3]
  %v14 = vld [vmem:[%s0 + $0x8] sm:$0xf]
  %v15 = vld [vmem:[%s0 + $0xc] sm:$0x3]
  %v16 = vld [vmem:[%s0 + $0x10] sm:$0xf]
  %v17 = vld [vmem:[%s0 + $0x14] sm:$0x3]
  %v18 = vld [vmem:[%s0 + $0x18] sm:$0xf]
  %v19 = vld [vmem:[%s0 + $0x1c] sm:$0x3]
  %v20 = vld [vmem:[%s1] sm:$0xf]
  %v21 = vld [vmem:[%s1 + $0x4] sm:$0xf]
  %v22 = vld [vmem:[%s1 + $0x8] sm:$0xf]
  %v23 = vld [vmem:[%s1 + $0xc] sm:$0xf]
  %v24 = vld [vmem:[%s1 + $0x10] sm:$0xf]
  %v25 = vld [vmem:[%s1 + $0x14] sm:$0xf]
  %v26 = vld [vmem:[%s1 + $0x18] sm:$0xf]
  %v27 = vld [vmem:[%s1 + $0x1c] sm:$0xf]
  %v28 = vld [vmem:[%s1 + $0x20] sm:$0xf]
  %v29 = vld [vmem:[%s1 + $0x24] sm:$0xf]
  %v30 = vld [vmem:[%s1 + $0x28] sm:$0xf]
  %v31 = vld [vmem:[%s1 + $0x2c] sm:$0xf]
  %v34 = vunpack.c.l.b16 %v12
  %v35 = vunpack.c.l.b16 %v13
  %v36 = vpack.c.b16 %v35, %v34
  %v40 = vunpack.c.l.b16 %v20
  %v41 = vunpack.c.l.b16 %v21
  %v42 = vunpack.c.l.b16 %v22
  %v43 = vpack.c.b16 %v41, %v40
  %v44 = vpack.c.b16 %v42, %v42
  %vm45 = vcmask 130048
  %v47 = vsel %vm45, %v36, 0
  %v50 = vsel %vm45, %v43, 0
  %v53 = vsel %vm45, %v44, 0
  %55 = vmatprep.subr.bf16.mxu0 0
  %56 = vmatpush1.bf16.xpose.msra.mxu0 0
  %57 = vmatprep.subr.bf16.mxu0 0
  %58 = vmatpush1.bf16.xpose.msra.mxu0 0
  %59 = vmatprep.subr.bf16.mxu0 0
  %60 = vmatpush1.bf16.xpose.msra.mxu0 0
  %61 = vmatprep.subr.bf16.mxu0 0
  %62 = vmatpush1.bf16.xpose.msra.mxu0 0
  %63 = vmatprep.subr.bf16.mxu0 0
  %64 = vmatpush1.bf16.xpose.msra.mxu0 0
  %65 = vmatprep.subr.bf16.mxu0 0
  %66 = vmatpush1.bf16.xpose.msra.mxu0 0
  %67 = vmatprep.subr.bf16.mxu0 0
  %68 = vmatpush1.bf16.xpose.msra.mxu0 %v53
  %69 = vmatprep.subr.bf16.mxu0 0
  %70 = vmatpush1.bf16.xpose.msra.mxu0 %v50
  %71 = vmatprep.subr.bf16.mxu0 0
  %72 = vmatpush2.bf16.xpose.msra.mxu0 0
  %73 = vmatprep.subr.bf16.mxu0 0
  %74 = vmatpush2.bf16.xpose.msra.mxu0 0
  %75 = vmatprep.subr.bf16.mxu0 0
  %76 = vmatpush2.bf16.xpose.msra.mxu0 0
  %77 = vmatprep.subr.bf16.mxu0 0
  %78 = vmatpush2.bf16.xpose.msra.mxu0 0
  %79 = vmatprep.subr.bf16.mxu0 0
  %80 = vmatpush2.bf16.xpose.msra.mxu0 0
  %81 = vmatprep.subr.bf16.mxu0 0
  %82 = vmatpush2.bf16.xpose.msra.mxu0 0
  %83 = vmatprep.subr.bf16.mxu0 0
  %84 = vmatpush2.bf16.xpose.msra.mxu0 0
  %85 = vmatprep.subr.bf16.mxu0 0
  %86 = vmatpush2.bf16.xpose.msra.mxu0 0
  %87 = vmatprep.mubr.bf16.mxu0 0
  %88 = vmatmul.mubr.bf16.gmra.mxu0 %v47
  %v89 = vpop.f32.mrf.mxu0
  %v90 = vadd.f32 0.0, %v89
  %v91 = vpop.f32.mrf.mxu0
  %v92 = vpop.f32.mrf.mxu0
  %v93 = vadd.f32 0.0, %v92
  %v94 = vpop.f32.mrf.mxu0
  %95 = vdwg.mxu0
  %v98 = vunpack.c.l.b16 %v14
  %v99 = vunpack.c.l.b16 %v15
  %v100 = vpack.c.b16 %v99, %v98
  %v104 = vunpack.c.l.b16 %v23
  %v105 = vunpack.c.l.b16 %v24
  %v106 = vunpack.c.l.b16 %v25
  %v107 = vpack.c.b16 %v105, %v104
  %v108 = vpack.c.b16 %v106, %v106
  %v110 = vsel %vm45, %v100, 0
  %v113 = vsel %vm45, %v107, 0
  %v116 = vsel %vm45, %v108, 0
  %118 = vmatprep.subr.bf16.mxu0 0
  %119 = vmatpush1.bf16.xpose.msra.mxu0 0
  %120 = vmatprep.subr.bf16.mxu0 0
  %121 = vmatpush1.bf16.xpose.msra.mxu0 0
  %122 = vmatprep.subr.bf16.mxu0 0
  %123 = vmatpush1.bf16.xpose.msra.mxu0 0
  %124 = vmatprep.subr.bf16.mxu0 0
  %125 = vmatpush1.bf16.xpose.msra.mxu0 0
  %126 = vmatprep.subr.bf16.mxu0 0
  %127 = vmatpush1.bf16.xpose.msra.mxu0 0
  %128 = vmatprep.subr.bf16.mxu0 0
  %129 = vmatpush1.bf16.xpose.msra.mxu0 0
  %130 = vmatprep.subr.bf16.mxu0 0
  %131 = vmatpush1.bf16.xpose.msra.mxu0 %v116
  %132 = vmatprep.subr.bf16.mxu0 0
  %133 = vmatpush1.bf16.xpose.msra.mxu0 %v113
  %134 = vmatprep.subr.bf16.mxu0 0
  %135 = vmatpush2.bf16.xpose.msra.mxu0 0
  %136 = vmatprep.subr.bf16.mxu0 0
  %137 = vmatpush2.bf16.xpose.msra.mxu0 0
  %138 = vmatprep.subr.bf16.mxu0 0
  %139 = vmatpush2.bf16.xpose.msra.mxu0 0
  %140 = vmatprep.subr.bf16.mxu0 0
  %141 = vmatpush2.bf16.xpose.msra.mxu0 0
  %142 = vmatprep.subr.bf16.mxu0 0
  %143 = vmatpush2.bf16.xpose.msra.mxu0 0
  %144 = vmatprep.subr.bf16.mxu0 0
  %145 = vmatpush2.bf16.xpose.msra.mxu0 0
  %146 = vmatprep.subr.bf16.mxu0 0
  %147 = vmatpush2.bf16.xpose.msra.mxu0 0
  %148 = vmatprep.subr.bf16.mxu0 0
  %149 = vmatpush2.bf16.xpose.msra.mxu0 0
  %150 = vmatprep.mubr.bf16.mxu0 0
  %151 = vmatmul.mubr.bf16.gmra.mxu0 %v110
  %v152 = vpop.f32.mrf.mxu0
  %v153 = vadd.f32 0.0, %v152
  %v154 = vpop.f32.mrf.mxu0
  %v155 = vpop.f32.mrf.mxu0
  %v156 = vadd.f32 0.0, %v155
  %v157 = vpop.f32.mrf.mxu0
  %158 = vdwg.mxu0
  %v161 = vunpack.c.l.b16 %v16
  %v162 = vunpack.c.l.b16 %v17
  %v163 = vpack.c.b16 %v162, %v161
  %v167 = vunpack.c.l.b16 %v26
  %v168 = vunpack.c.l.b16 %v27
  %v169 = vunpack.c.l.b16 %v28
  %v170 = vpack.c.b16 %v168, %v167
  %v171 = vpack.c.b16 %v169, %v169
  %v173 = vsel %vm45, %v163, 0
  %v176 = vsel %vm45, %v170, 0
  %v179 = vsel %vm45, %v171, 0
  %181 = vmatprep.subr.bf16.mxu0 0
  %182 = vmatpush1.bf16.xpose.msra.mxu0 0
  %183 = vmatprep.subr.bf16.mxu0 0
  %184 = vmatpush1.bf16.xpose.msra.mxu0 0
  %185 = vmatprep.subr.bf16.mxu0 0
  %186 = vmatpush1.bf16.xpose.msra.mxu0 0
  %187 = vmatprep.subr.bf16.mxu0 0
  %188 = vmatpush1.bf16.xpose.msra.mxu0 0
  %189 = vmatprep.subr.bf16.mxu0 0
  %190 = vmatpush1.bf16.xpose.msra.mxu0 0
  %191 = vmatprep.subr.bf16.mxu0 0
  %192 = vmatpush1.bf16.xpose.msra.mxu0 0
  %193 = vmatprep.subr.bf16.mxu0 0
  %194 = vmatpush1.bf16.xpose.msra.mxu0 %v179
  %195 = vmatprep.subr.bf16.mxu0 0
  %196 = vmatpush1.bf16.xpose.msra.mxu0 %v176
  %197 = vmatprep.subr.bf16.mxu0 0
  %198 = vmatpush2.bf16.xpose.msra.mxu0 0
  %199 = vmatprep.subr.bf16.mxu0 0
  %200 = vmatpush2.bf16.xpose.msra.mxu0 0
  %201 = vmatprep.subr.bf16.mxu0 0
  %202 = vmatpush2.bf16.xpose.msra.mxu0 0
  %203 = vmatprep.subr.bf16.mxu0 0
  %204 = vmatpush2.bf16.xpose.msra.mxu0 0
  %205 = vmatprep.subr.bf16.mxu0 0
  %206 = vmatpush2.bf16.xpose.msra.mxu0 0
  %207 = vmatprep.subr.bf16.mxu0 0
  %208 = vmatpush2.bf16.xpose.msra.mxu0 0
  %209 = vmatprep.subr.bf16.mxu0 0
  %210 = vmatpush2.bf16.xpose.msra.mxu0 0
  %211 = vmatprep.subr.bf16.mxu0 0
  %212 = vmatpush2.bf16.xpose.msra.mxu0 0
  %213 = vmatprep.mubr.bf16.mxu0 0
  %214 = vmatmul.mubr.bf16.gmra.mxu0 %v173
  %v215 = vpop.f32.mrf.mxu0
  %v216 = vadd.f32 0.0, %v215
  %v217 = vpop.f32.mrf.mxu0
  %v218 = vpop.f32.mrf.mxu0
  %v219 = vadd.f32 0.0, %v218
  %v220 = vpop.f32.mrf.mxu0
  %221 = vdwg.mxu0
  %v224 = vunpack.c.l.b16 %v18
  %v225 = vunpack.c.l.b16 %v19
  %v226 = vpack.c.b16 %v225, %v224
  %v230 = vunpack.c.l.b16 %v29
  %v231 = vunpack.c.l.b16 %v30
  %v232 = vunpack.c.l.b16 %v31
  %v233 = vpack.c.b16 %v231, %v230
  %v234 = vpack.c.b16 %v232, %v232
  %v236 = vsel %vm45, %v226, 0
  %v239 = vsel %vm45, %v233, 0
  %v242 = vsel %vm45, %v234, 0
  %244 = vmatprep.subr.bf16.mxu0 0
  %245 = vmatpush1.bf16.xpose.msra.mxu0 0
  %246 = vmatprep.subr.bf16.mxu0 0
  %247 = vmatpush1.bf16.xpose.msra.mxu0 0
  %248 = vmatprep.subr.bf16.mxu0 0
  %249 = vmatpush1.bf16.xpose.msra.mxu0 0
  %250 = vmatprep.subr.bf16.mxu0 0
  %251 = vmatpush1.bf16.xpose.msra.mxu0 0
  %252 = vmatprep.subr.bf16.mxu0 0
  %253 = vmatpush1.bf16.xpose.msra.mxu0 0
  %254 = vmatprep.subr.bf16.mxu0 0
  %255 = vmatpush1.bf16.xpose.msra.mxu0 0
  %256 = vmatprep.subr.bf16.mxu0 0
  %257 = vmatpush1.bf16.xpose.msra.mxu0 %v242
  %258 = vmatprep.subr.bf16.mxu0 0
  %259 = vmatpush1.bf16.xpose.msra.mxu0 %v239
  %260 = vmatprep.subr.bf16.mxu0 0
  %261 = vmatpush2.bf16.xpose.msra.mxu0 0
  %262 = vmatprep.subr.bf16.mxu0 0
  %263 = vmatpush2.bf16.xpose.msra.mxu0 0
  %264 = vmatprep.subr.bf16.mxu0 0
  %265 = vmatpush2.bf16.xpose.msra.mxu0 0
  %266 = vmatprep.subr.bf16.mxu0 0
  %267 = vmatpush2.bf16.xpose.msra.mxu0 0
  %268 = vmatprep.subr.bf16.mxu0 0
  %269 = vmatpush2.bf16.xpose.msra.mxu0 0
  %270 = vmatprep.subr.bf16.mxu0 0
  %271 = vmatpush2.bf16.xpose.msra.mxu0 0
  %272 = vmatprep.subr.bf16.mxu0 0
  %273 = vmatpush2.bf16.xpose.msra.mxu0 0
  %274 = vmatprep.subr.bf16.mxu0 0
  %275 = vmatpush2.bf16.xpose.msra.mxu0 0
  %276 = vmatprep.mubr.bf16.mxu0 0
  %277 = vmatmul.mubr.bf16.gmra.mxu0 %v236
  %v278 = vpop.f32.mrf.mxu0
  %v279 = vadd.f32 0.0, %v278
  %v280 = vpop.f32.mrf.mxu0
  %v281 = vpop.f32.mrf.mxu0
  %v282 = vadd.f32 0.0, %v281
  %v283 = vpop.f32.mrf.mxu0
  %284 = vdwg.mxu0
  %vm285 = vcmask 195584
  %286 = vst.msk [vmem:[%s2] sm:$0xff] %vm285, %v90
  %vm287 = vcmask 191488
  %288 = vst.msk [vmem:[%s2 + $0x8] sm:$0xf] %vm287, %v93
  %289 = vst.msk [vmem:[%s2 + $0x10] sm:$0xff] %vm285, %v153
  %290 = vst.msk [vmem:[%s2 + $0x18] sm:$0xf] %vm287, %v156
  %291 = vst.msk [vmem:[%s2 + $0x20] sm:$0xff] %vm285, %v216
  %292 = vst.msk [vmem:[%s2 + $0x28] sm:$0xf] %vm287, %v219
  %293 = vst.msk [vmem:[%s2 + $0x30] sm:$0xff] %vm285, %v279
  %294 = vst.msk [vmem:[%s2 + $0x38] sm:$0xf] %vm287, %v282
  // Predicated region
  $region10: #{cqil_forward.6} parent=0 // pred_check
    _
  $region11: #{cqil_forward.6} parent=0 // pred_check_branch
    %296 = sbr.rel (0) target = $region13
  $region12: #{cqil_forward.6} parent=0 // pred_region
    _
  $region13: #{cqil_forward.6} parent=0 // pred_fallthru
    _
  // Predicated region
  $region14: #{cqil_forward.6} parent=0 // pred_check
    _
  $region15: #{cqil_forward.6} parent=0 // pred_check_branch
    %298 = sbr.rel (0) target = $region17
  $region16: #{cqil_forward.6} parent=0 // pred_region
    _
  $region17: #{cqil_forward.6} parent=0 // pred_fallthru
    _

// kernel: cqil_forward.9
$region0: #{cqil_forward.9}
  #allocation0 [shape = 'u32[]', space=smem, size = 0x4, offset = 0x4, fixed_abs, tag = 'smem constant byte address 0x4 - core index']
  #allocation1 [shape = 'u32[144,128]{1,0:T(1,128)}', space=vmem, size = 0x12000, scoped, tag = 'internal scratch']
  %s0 = inlined_call_operand.vmem [shape: bf16[768,18], index: 0, kind: input, shape index: {}]
  %s1 = inlined_call_operand.vmem [shape: bf16[18,128], index: 1, kind: input, shape index: {}]
  %s2 = inlined_call_operand.vmem [shape: f32[1,128], index: 2, kind: input, shape index: {}]
  %s3 = inlined_call_operand.vmem [shape: bf16[768,128], index: 3, kind: output, shape index: {}]
  %s4 = sld [smem:[#allocation0]]
  $region22: #{cqil_forward.9} parent=0
    _
  %s6 = ssub.s32 1, %s4
  %s7 = scalar_select 0, %s6, %s4
  // Predicated region
  $region2: #{cqil_forward.9} parent=0 // pred_check
    _
  $region3: #{cqil_forward.9} parent=0 // pred_check_branch
    %9 = sbr.rel (0) target = $region5
  $region4: #{cqil_forward.9} parent=0 // pred_region
    _
  $region5: #{cqil_forward.9} parent=0 // pred_fallthru
    _
  // Predicated region
  $region6: #{cqil_forward.9} parent=0 // pred_check
    _
  $region7: #{cqil_forward.9} parent=0 // pred_check_branch
    %11 = sbr.rel (0) target = $region9
  $region8: #{cqil_forward.9} parent=0 // pred_region
    _
  $region9: #{cqil_forward.9} parent=0 // pred_fallthru
    _
  // Predicated region
  $region10: #{cqil_forward.9} parent=0 // pred_check
    _
  $region11: #{cqil_forward.9} parent=0 // pred_check_branch
    %13 = sbr.rel (0) target = $region13
  $region12: #{cqil_forward.9} parent=0 // pred_region
    _
  $region13: #{cqil_forward.9} parent=0 // pred_fallthru
    _
  %v15 = vld [vmem:[%s0] sm:$0xf]
  %v16 = vld [vmem:[%s0 + $0x4] sm:$0xf]
  %v17 = vld [vmem:[%s0 + $0x8] sm:$0xf]
  %v18 = vld [vmem:[%s0 + $0xc] sm:$0xf]
  %v19 = vld [vmem:[%s0 + $0x10] sm:$0xf]
  %v20 = vld [vmem:[%s0 + $0x14] sm:$0xf]
  %v21 = vld [vmem:[%s0 + $0x18] sm:$0xf]
  %v22 = vld [vmem:[%s0 + $0x1c] sm:$0xf]
  %v23 = vld [vmem:[%s0 + $0x20] sm:$0xf]
  %v24 = vld [vmem:[%s0 + $0x24] sm:$0xf]
  %v25 = vld [vmem:[%s0 + $0x28] sm:$0xf]
  %v26 = vld [vmem:[%s0 + $0x2c] sm:$0xf]
  %v27 = vld [vmem:[%s0 + $0x30] sm:$0xf]
  %v28 = vld [vmem:[%s0 + $0x34] sm:$0xf]
  %v29 = vld [vmem:[%s0 + $0x38] sm:$0xf]
  %v30 = vld [vmem:[%s0 + $0x3c] sm:$0xf]
  %v31 = vld [vmem:[%s0 + $0x40] sm:$0xf]
  %v32 = vld [vmem:[%s0 + $0x44] sm:$0xf]
  %v33 = vld [vmem:[%s0 + $0x48] sm:$0xf]
  %v34 = vld [vmem:[%s0 + $0x4c] sm:$0xf]
  %v35 = vld [vmem:[%s0 + $0x50] sm:$0xf]
  %v36 = vld [vmem:[%s0 + $0x54] sm:$0xf]
  %v37 = vld [vmem:[%s0 + $0x58] sm:$0xf]
  %v38 = vld [vmem:[%s0 + $0x5c] sm:$0xf]
  %v39 = vld [vmem:[%s0 + $0x60] sm:$0xf]
  %v40 = vld [vmem:[%s0 + $0x64] sm:$0xf]
  %v41 = vld [vmem:[%s0 + $0x68] sm:$0xf]
  %v42 = vld [vmem:[%s0 + $0x6c] sm:$0xf]
  %v43 = vld [vmem:[%s0 + $0x70] sm:$0xf]
  %v44 = vld [vmem:[%s0 + $0x74] sm:$0xf]
  %v45 = vld [vmem:[%s0 + $0x78] sm:$0xf]
  %v46 = vld [vmem:[%s0 + $0x7c] sm:$0xf]
  %v47 = vld [vmem:[%s0 + $0x80] sm:$0xf]
  %v48 = vld [vmem:[%s0 + $0x84] sm:$0xf]
  %v49 = vld [vmem:[%s0 + $0x88] sm:$0xf]
  %v50 = vld [vmem:[%s0 + $0x8c] sm:$0xf]
  %v51 = vld [vmem:[%s0 + $0x90] sm:$0xf]
  %v52 = vld [vmem:[%s0 + $0x94] sm:$0xf]
  %v53 = vld [vmem:[%s0 + $0x98] sm:$0xf]
  %v54 = vld [vmem:[%s0 + $0x9c] sm:$0xf]
  %v55 = vld [vmem:[%s0 + $0xa0] sm:$0xf]
  %v56 = vld [vmem:[%s0 + $0xa4] sm:$0xf]
  %v57 = vld [vmem:[%s0 + $0xa8] sm:$0xf]
  %v58 = vld [vmem:[%s0 + $0xac] sm:$0xf]
  %v59 = vld [vmem:[%s0 + $0xb0] sm:$0xf]
  %v60 = vld [vmem:[%s0 + $0xb4] sm:$0xf]
  %v61 = vld [vmem:[%s0 + $0xb8] sm:$0xf]
  %v62 = vld [vmem:[%s0 + $0xbc] sm:$0xf]
  %v63 = vld [vmem:[%s0 + $0xc0] sm:$0xf]
  %v64 = vld [vmem:[%s0 + $0xc4] sm:$0xf]
  %v65 = vld [vmem:[%s0 + $0xc8] sm:$0xf]
  %v66 = vld [vmem:[%s0 + $0xcc] sm:$0xf]
  %v67 = vld [vmem:[%s0 + $0xd0] sm:$0xf]
  %v68 = vld [vmem:[%s0 + $0xd4] sm:$0xf]
  %v69 = vld [vmem:[%s0 + $0xd8] sm:$0xf]
  %v70 = vld [vmem:[%s0 + $0xdc] sm:$0xf]
  %v71 = vld [vmem:[%s0 + $0xe0] sm:$0xf]
  %v72 = vld [vmem:[%s0 + $0xe4] sm:$0xf]
  %v73 = vld [vmem:[%s0 + $0xe8] sm:$0xf]
  %v74 = vld [vmem:[%s0 + $0xec] sm:$0xf]
  %v75 = vld [vmem:[%s0 + $0xf0] sm:$0xf]
  %v76 = vld [vmem:[%s0 + $0xf4] sm:$0xf]
  %v77 = vld [vmem:[%s0 + $0xf8] sm:$0xf]
  %v78 = vld [vmem:[%s0 + $0xfc] sm:$0xf]
  %v79 = vld [vmem:[%s0 + $0x100] sm:$0xf]
  %v80 = vld [vmem:[%s0 + $0x104] sm:$0xf]
  %v81 = vld [vmem:[%s0 + $0x108] sm:$0xf]
  %v82 = vld [vmem:[%s0 + $0x10c] sm:$0xf]
  %v83 = vld [vmem:[%s0 + $0x110] sm:$0xf]
  %v84 = vld [vmem:[%s0 + $0x114] sm:$0xf]
  %v85 = vld [vmem:[%s0 + $0x118] sm:$0xf]
  %v86 = vld [vmem:[%s0 + $0x11c] sm:$0xf]
  %v87 = vld [vmem:[%s0 + $0x120] sm:$0xf]
  %v88 = vld [vmem:[%s0 + $0x124] sm:$0xf]
  %v89 = vld [vmem:[%s0 + $0x128] sm:$0xf]
  %v90 = vld [vmem:[%s0 + $0x12c] sm:$0xf]
  %v91 = vld [vmem:[%s0 + $0x130] sm:$0xf]
  %v92 = vld [vmem:[%s0 + $0x134] sm:$0xf]
  %v93 = vld [vmem:[%s0 + $0x138] sm:$0xf]
  %v94 = vld [vmem:[%s0 + $0x13c] sm:$0xf]
  %v95 = vld [vmem:[%s0 + $0x140] sm:$0xf]
  %v96 = vld [vmem:[%s0 + $0x144] sm:$0xf]
  %v97 = vld [vmem:[%s0 + $0x148] sm:$0xf]
  %v98 = vld [vmem:[%s0 + $0x14c] sm:$0xf]
  %v99 = vld [vmem:[%s0 + $0x150] sm:$0xf]
  %v100 = vld [vmem:[%s0 + $0x154] sm:$0xf]
  %v101 = vld [vmem:[%s0 + $0x158] sm:$0xf]
  %v102 = vld [vmem:[%s0 + $0x15c] sm:$0xf]
  %v103 = vld [vmem:[%s0 + $0x160] sm:$0xf]
  %v104 = vld [vmem:[%s0 + $0x164] sm:$0xf]
  %v105 = vld [vmem:[%s0 + $0x168] sm:$0xf]
  %v106 = vld [vmem:[%s0 + $0x16c] sm:$0xf]
  %v107 = vld [vmem:[%s0 + $0x170] sm:$0xf]
  %v108 = vld [vmem:[%s0 + $0x174] sm:$0xf]
  %v109 = vld [vmem:[%s0 + $0x178] sm:$0xf]
  %v110 = vld [vmem:[%s0 + $0x17c] sm:$0xf]
  %v111 = vld [vmem:[%s1] sm:$0xf]
  %v112 = vld [vmem:[%s1 + $0x4] sm:$0xf]
  %v113 = vld [vmem:[%s1 + $0x8] sm:$0x1]
  %v114 = vld [vmem:[%s2] sm:$0x1]
  %v116 = vlaneseq
  %v117 = vshrl.u32 %v116, 7
  %v118 = vsub.s32 0, %v117
  %v119 = vrot.slane %v114, %v118
  %v217 = vunpack.c.l.b16 %v15
  %v218 = vunpack.c.l.b16 %v16
  %v219 = vunpack.c.l.b16 %v17
  %v220 = vunpack.c.l.b16 %v18
  %v221 = vunpack.c.l.b16 %v19
  %v222 = vunpack.c.l.b16 %v20
  %v223 = vunpack.c.l.b16 %v21
  %v224 = vunpack.c.l.b16 %v22
  %v225 = vunpack.c.l.b16 %v23
  %v226 = vunpack.c.l.b16 %v24
  %v227 = vunpack.c.l.b16 %v25
  %v228 = vunpack.c.l.b16 %v26
  %v229 = vunpack.c.l.b16 %v27
  %v230 = vunpack.c.l.b16 %v28
  %v231 = vunpack.c.l.b16 %v29
  %v232 = vunpack.c.l.b16 %v30
  %v233 = vunpack.c.l.b16 %v31
  %v234 = vunpack.c.l.b16 %v32
  %v235 = vunpack.c.l.b16 %v33
  %v236 = vunpack.c.l.b16 %v34
  %v237 = vunpack.c.l.b16 %v35
  %v238 = vunpack.c.l.b16 %v36
  %v239 = vunpack.c.l.b16 %v37
  %v240 = vunpack.c.l.b16 %v38
  %v241 = vunpack.c.l.b16 %v39
  %v242 = vunpack.c.l.b16 %v40
  %v243 = vunpack.c.l.b16 %v41
  %v244 = vunpack.c.l.b16 %v42
  %v245 = vunpack.c.l.b16 %v43
  %v246 = vunpack.c.l.b16 %v44
  %v247 = vunpack.c.l.b16 %v45
  %v248 = vunpack.c.l.b16 %v46
  %v249 = vunpack.c.l.b16 %v47
  %v250 = vunpack.c.l.b16 %v48
  %v251 = vunpack.c.l.b16 %v49
  %v252 = vunpack.c.l.b16 %v50
  %v253 = vunpack.c.l.b16 %v51
  %v254 = vunpack.c.l.b16 %v52
  %v255 = vunpack.c.l.b16 %v53
  %v256 = vunpack.c.l.b16 %v54
  %v257 = vunpack.c.l.b16 %v55
  %v258 = vunpack.c.l.b16 %v56
  %v259 = vunpack.c.l.b16 %v57
  %v260 = vunpack.c.l.b16 %v58
  %v261 = vunpack.c.l.b16 %v59
  %v262 = vunpack.c.l.b16 %v60
  %v263 = vunpack.c.l.b16 %v61
  %v264 = vunpack.c.l.b16 %v62
  %v265 = vunpack.c.l.b16 %v63
  %v266 = vunpack.c.l.b16 %v64
  %v267 = vunpack.c.l.b16 %v65
  %v268 = vunpack.c.l.b16 %v66
  %v269 = vunpack.c.l.b16 %v67
  %v270 = vunpack.c.l.b16 %v68
  %v271 = vunpack.c.l.b16 %v69
  %v272 = vunpack.c.l.b16 %v70
  %v273 = vunpack.c.l.b16 %v71
  %v274 = vunpack.c.l.b16 %v72
  %v275 = vunpack.c.l.b16 %v73
  %v276 = vunpack.c.l.b16 %v74
  %v277 = vunpack.c.l.b16 %v75
  %v278 = vunpack.c.l.b16 %v76
  %v279 = vunpack.c.l.b16 %v77
  %v280 = vunpack.c.l.b16 %v78
  %v281 = vunpack.c.l.b16 %v79
  %v282 = vunpack.c.l.b16 %v80
  %v283 = vunpack.c.l.b16 %v81
  %v284 = vunpack.c.l.b16 %v82
  %v285 = vunpack.c.l.b16 %v83
  %v286 = vunpack.c.l.b16 %v84
  %v287 = vunpack.c.l.b16 %v85
  %v288 = vunpack.c.l.b16 %v86
  %v289 = vunpack.c.l.b16 %v87
  %v290 = vunpack.c.l.b16 %v88
  %v291 = vunpack.c.l.b16 %v89
  %v292 = vunpack.c.l.b16 %v90
  %v293 = vunpack.c.l.b16 %v91
  %v294 = vunpack.c.l.b16 %v92
  %v295 = vunpack.c.l.b16 %v93
  %v296 = vunpack.c.l.b16 %v94
  %v297 = vunpack.c.l.b16 %v95
  %v298 = vunpack.c.l.b16 %v96
  %v299 = vunpack.c.l.b16 %v97
  %v300 = vunpack.c.l.b16 %v98
  %v301 = vunpack.c.l.b16 %v99
  %v302 = vunpack.c.l.b16 %v100
  %v303 = vunpack.c.l.b16 %v101
  %v304 = vunpack.c.l.b16 %v102
  %v305 = vunpack.c.l.b16 %v103
  %v306 = vunpack.c.l.b16 %v104
  %v307 = vunpack.c.l.b16 %v105
  %v308 = vunpack.c.l.b16 %v106
  %v309 = vunpack.c.l.b16 %v107
  %v310 = vunpack.c.l.b16 %v108
  %v311 = vunpack.c.l.b16 %v109
  %v312 = vunpack.c.l.b16 %v110
  %v313 = vpack.c.b16 %v218, %v217
  %v314 = vpack.c.b16 %v220, %v219
  %v315 = vpack.c.b16 %v222, %v221
  %v316 = vpack.c.b16 %v224, %v223
  %v317 = vpack.c.b16 %v226, %v225
  %v318 = vpack.c.b16 %v228, %v227
  %v319 = vpack.c.b16 %v230, %v229
  %v320 = vpack.c.b16 %v232, %v231
  %v321 = vpack.c.b16 %v234, %v233
  %v322 = vpack.c.b16 %v236, %v235
  %v323 = vpack.c.b16 %v238, %v237
  %v324 = vpack.c.b16 %v240, %v239
  %v325 = vpack.c.b16 %v242, %v241
  %v326 = vpack.c.b16 %v244, %v243
  %v327 = vpack.c.b16 %v246, %v245
  %v328 = vpack.c.b16 %v248, %v247
  %v329 = vpack.c.b16 %v250, %v249
  %v330 = vpack.c.b16 %v252, %v251
  %v331 = vpack.c.b16 %v254, %v253
  %v332 = vpack.c.b16 %v256, %v255
  %v333 = vpack.c.b16 %v258, %v257
  %v334 = vpack.c.b16 %v260, %v259
  %v335 = vpack.c.b16 %v262, %v261
  %v336 = vpack.c.b16 %v264, %v263
  %v337 = vpack.c.b16 %v266, %v265
  %v338 = vpack.c.b16 %v268, %v267
  %v339 = vpack.c.b16 %v270, %v269
  %v340 = vpack.c.b16 %v272, %v271
  %v341 = vpack.c.b16 %v274, %v273
  %v342 = vpack.c.b16 %v276, %v275
  %v343 = vpack.c.b16 %v278, %v277
  %v344 = vpack.c.b16 %v280, %v279
  %v345 = vpack.c.b16 %v282, %v281
  %v346 = vpack.c.b16 %v284, %v283
  %v347 = vpack.c.b16 %v286, %v285
  %v348 = vpack.c.b16 %v288, %v287
  %v349 = vpack.c.b16 %v290, %v289
  %v350 = vpack.c.b16 %v292, %v291
  %v351 = vpack.c.b16 %v294, %v293
  %v352 = vpack.c.b16 %v296, %v295
  %v353 = vpack.c.b16 %v298, %v297
  %v354 = vpack.c.b16 %v300, %v299
  %v355 = vpack.c.b16 %v302, %v301
  %v356 = vpack.c.b16 %v304, %v303
  %v357 = vpack.c.b16 %v306, %v305
  %v358 = vpack.c.b16 %v308, %v307
  %v359 = vpack.c.b16 %v310, %v309
  %v360 = vpack.c.b16 %v312, %v311
  %v364 = vunpack.c.l.b16 %v111
  %v365 = vunpack.c.l.b16 %v112
  %v366 = vunpack.c.l.b16 %v113
  %v367 = vpack.c.b16 %v365, %v364
  %v368 = vpack.c.b16 %v366, %v366
  %vm370 = vcmask 146432
  %v372 = vsel %vm370, %v313, 0
  %v375 = vsel %vm370, %v314, 0
  %v378 = vsel %vm370, %v315, 0
  %v381 = vsel %vm370, %v316, 0
  %v384 = vsel %vm370, %v317, 0
  %v387 = vsel %vm370, %v318, 0
  %v390 = vsel %vm370, %v319, 0
  %v393 = vsel %vm370, %v320, 0
  %v396 = vsel %vm370, %v321, 0
  %v399 = vsel %vm370, %v322, 0
  %v402 = vsel %vm370, %v323, 0
  %v405 = vsel %vm370, %v324, 0
  %v408 = vsel %vm370, %v325, 0
  %v411 = vsel %vm370, %v326, 0
  %v414 = vsel %vm370, %v327, 0
  %v417 = vsel %vm370, %v328, 0
  %v420 = vsel %vm370, %v329, 0
  %v423 = vsel %vm370, %v330, 0
  %v426 = vsel %vm370, %v331, 0
  %v429 = vsel %vm370, %v332, 0
  %v432 = vsel %vm370, %v333, 0
  %v435 = vsel %vm370, %v334, 0
  %v438 = vsel %vm370, %v335, 0
  %v441 = vsel %vm370, %v336, 0
  %v444 = vsel %vm370, %v337, 0
  %v447 = vsel %vm370, %v338, 0
  %v450 = vsel %vm370, %v339, 0
  %v453 = vsel %vm370, %v340, 0
  %v456 = vsel %vm370, %v341, 0
  %v459 = vsel %vm370, %v342, 0
  %v462 = vsel %vm370, %v343, 0
  %v465 = vsel %vm370, %v344, 0
  %v468 = vsel %vm370, %v345, 0
  %v471 = vsel %vm370, %v346, 0
  %v474 = vsel %vm370, %v347, 0
  %v477 = vsel %vm370, %v348, 0
  %v480 = vsel %vm370, %v349, 0
  %v483 = vsel %vm370, %v350, 0
  %v486 = vsel %vm370, %v351, 0
  %v489 = vsel %vm370, %v352, 0
  %v492 = vsel %vm370, %v353, 0
  %v495 = vsel %vm370, %v354, 0
  %v498 = vsel %vm370, %v355, 0
  %v501 = vsel %vm370, %v356, 0
  %v504 = vsel %vm370, %v357, 0
  %v507 = vsel %vm370, %v358, 0
  %v510 = vsel %vm370, %v359, 0
  %v513 = vsel %vm370, %v360, 0
  %vm515 = vcmask 1040384
  %v517 = vsel %vm515, %v368, 0
  %519 = vmatprep.subr.bf16.mxu0 0
  %520 = vmatpush1.bf16.msra.mxu0 0
  %521 = vmatprep.subr.bf16.mxu0 0
  %522 = vmatpush1.bf16.msra.mxu0 0
  %523 = vmatprep.subr.bf16.mxu0 0
  %524 = vmatpush1.bf16.msra.mxu0 0
  %525 = vmatprep.subr.bf16.mxu0 0
  %526 = vmatpush1.bf16.msra.mxu0 0
  %527 = vmatprep.subr.bf16.mxu0 0
  %528 = vmatpush1.bf16.msra.mxu0 0
  %529 = vmatprep.subr.bf16.mxu0 0
  %530 = vmatpush1.bf16.msra.mxu0 0
  %531 = vmatprep.subr.bf16.mxu0 0
  %532 = vmatpush1.bf16.msra.mxu0 %v517
  %533 = vmatprep.subr.bf16.mxu0 0
  %534 = vmatpush1.bf16.msra.mxu0 %v367
  %535 = vmatprep.subr.bf16.mxu0 0
  %536 = vmatpush2.bf16.msra.mxu0 0
  %537 = vmatprep.subr.bf16.mxu0 0
  %538 = vmatpush2.bf16.msra.mxu0 0
  %539 = vmatprep.subr.bf16.mxu0 0
  %540 = vmatpush2.bf16.msra.mxu0 0
  %541 = vmatprep.subr.bf16.mxu0 0
  %542 = vmatpush2.bf16.msra.mxu0 0
  %543 = vmatprep.subr.bf16.mxu0 0
  %544 = vmatpush2.bf16.msra.mxu0 0
  %545 = vmatprep.subr.bf16.mxu0 0
  %546 = vmatpush2.bf16.msra.mxu0 0
  %547 = vmatprep.subr.bf16.mxu0 0
  %548 = vmatpush2.bf16.msra.mxu0 0
  %549 = vmatprep.subr.bf16.mxu0 0
  %550 = vmatpush2.bf16.msra.mxu0 0
  %551 = vmatprep.mubr.bf16.mxu0 0
  %552 = vmatmul.mubr.bf16.gmra.mxu0 %v372
  %v553 = vpop.f32.mrf.mxu0
  %v554 = vadd.f32 %v119, %v553
  %v555 = vpop.f32.mrf.mxu0
  %v556 = vpop.f32.mrf.mxu0
  %v557 = vadd.f32 %v119, %v556
  %v558 = vpop.f32.mrf.mxu0
  %559 = vmatprep.mubr.bf16.mxu0 0
  %560 = vmatmul.mubr.bf16.gmra.mxu0 %v375
  %v561 = vpop.f32.mrf.mxu0
  %v562 = vadd.f32 %v119, %v561
  %v563 = vpop.f32.mrf.mxu0
  %v564 = vpop.f32.mrf.mxu0
  %v565 = vadd.f32 %v119, %v564
  %v566 = vpop.f32.mrf.mxu0
  %567 = vmatprep.mubr.bf16.mxu0 0
  %568 = vmatmul.mubr.bf16.gmra.mxu0 %v378
  %v569 = vpop.f32.mrf.mxu0
  %v570 = vadd.f32 %v119, %v569
  %v571 = vpop.f32.mrf.mxu0
  %v572 = vpop.f32.mrf.mxu0
  %v573 = vadd.f32 %v119, %v572
  %v574 = vpop.f32.mrf.mxu0
  %575 = vmatprep.mubr.bf16.mxu0 0
  %576 = vmatmul.mubr.bf16.gmra.mxu0 %v381
  %v577 = vpop.f32.mrf.mxu0
  %v578 = vadd.f32 %v119, %v577
  %v579 = vpop.f32.mrf.mxu0
  %v580 = vpop.f32.mrf.mxu0
  %v581 = vadd.f32 %v119, %v580
  %v582 = vpop.f32.mrf.mxu0
  %583 = vmatprep.mubr.bf16.mxu0 0
  %584 = vmatmul.mubr.bf16.gmra.mxu0 %v384
  %v585 = vpop.f32.mrf.mxu0
  %v586 = vadd.f32 %v119, %v585
  %v587 = vpop.f32.mrf.mxu0
  %v588 = vpop.f32.mrf.mxu0
  %v589 = vadd.f32 %v119, %v588
  %v590 = vpop.f32.mrf.mxu0
  %591 = vmatprep.mubr.bf16.mxu0 0
  %592 = vmatmul.mubr.bf16.gmra.mxu0 %v387
  %v593 = vpop.f32.mrf.mxu0
  %v594 = vadd.f32 %v119, %v593
  %v595 = vpop.f32.mrf.mxu0
  %v596 = vpop.f32.mrf.mxu0
  %v597 = vadd.f32 %v119, %v596
  %v598 = vpop.f32.mrf.mxu0
  %599 = vmatprep.mubr.bf16.mxu0 0
  %600 = vmatmul.mubr.bf16.gmra.mxu0 %v390
  %v601 = vpop.f32.mrf.mxu0
  %v602 = vadd.f32 %v119, %v601
  %v603 = vpop.f32.mrf.mxu0
  %v604 = vpop.f32.mrf.mxu0
  %v605 = vadd.f32 %v119, %v604
  %v606 = vpop.f32.mrf.mxu0
  %607 = vmatprep.mubr.bf16.mxu0 0
  %608 = vmatmul.mubr.bf16.gmra.mxu0 %v393
  %v609 = vpop.f32.mrf.mxu0
  %v610 = vadd.f32 %v119, %v609
  %v611 = vpop.f32.mrf.mxu0
  %v612 = vpop.f32.mrf.mxu0
  %v613 = vadd.f32 %v119, %v612
  %v614 = vpop.f32.mrf.mxu0
  %615 = vmatprep.mubr.bf16.mxu0 0
  %616 = vmatmul.mubr.bf16.gmra.mxu0 %v396
  %v617 = vpop.f32.mrf.mxu0
  %v618 = vadd.f32 %v119, %v617
  %v619 = vpop.f32.mrf.mxu0
  %v620 = vpop.f32.mrf.mxu0
  %v621 = vadd.f32 %v119, %v620
  %v622 = vpop.f32.mrf.mxu0
  %623 = vmatprep.mubr.bf16.mxu0 0
  %624 = vmatmul.mubr.bf16.gmra.mxu0 %v399
  %v625 = vpop.f32.mrf.mxu0
  %v626 = vadd.f32 %v119, %v625
  %v627 = vpop.f32.mrf.mxu0
  %v628 = vpop.f32.mrf.mxu0
  %v629 = vadd.f32 %v119, %v628
  %v630 = vpop.f32.mrf.mxu0
  %631 = vmatprep.mubr.bf16.mxu0 0
  %632 = vmatmul.mubr.bf16.gmra.mxu0 %v402
  %v633 = vpop.f32.mrf.mxu0
  %v634 = vadd.f32 %v119, %v633
  %v635 = vpop.f32.mrf.mxu0
  %v636 = vpop.f32.mrf.mxu0
  %v637 = vadd.f32 %v119, %v636
  %v638 = vpop.f32.mrf.mxu0
  %639 = vmatprep.mubr.bf16.mxu0 0
  %640 = vmatmul.mubr.bf16.gmra.mxu0 %v405
  %v641 = vpop.f32.mrf.mxu0
  %v642 = vadd.f32 %v119, %v641
  %v643 = vpop.f32.mrf.mxu0
  %v644 = vpop.f32.mrf.mxu0
  %v645 = vadd.f32 %v119, %v644
  %v646 = vpop.f32.mrf.mxu0
  %647 = vmatprep.mubr.bf16.mxu0 0
  %648 = vmatmul.mubr.bf16.gmra.mxu0 %v408
  %v649 = vpop.f32.mrf.mxu0
  %v650 = vadd.f32 %v119, %v649
  %v651 = vpop.f32.mrf.mxu0
  %v652 = vpop.f32.mrf.mxu0
  %v653 = vadd.f32 %v119, %v652
  %v654 = vpop.f32.mrf.mxu0
  %655 = vmatprep.mubr.bf16.mxu0 0
  %656 = vmatmul.mubr.bf16.gmra.mxu0 %v411
  %v657 = vpop.f32.mrf.mxu0
  %v658 = vadd.f32 %v119, %v657
  %v659 = vpop.f32.mrf.mxu0
  %v660 = vpop.f32.mrf.mxu0
  %v661 = vadd.f32 %v119, %v660
  %v662 = vpop.f32.mrf.mxu0
  %663 = vmatprep.mubr.bf16.mxu0 0
  %664 = vmatmul.mubr.bf16.gmra.mxu0 %v414
  %v665 = vpop.f32.mrf.mxu0
  %v666 = vadd.f32 %v119, %v665
  %v667 = vpop.f32.mrf.mxu0
  %v668 = vpop.f32.mrf.mxu0
  %v669 = vadd.f32 %v119, %v668
  %v670 = vpop.f32.mrf.mxu0
  %671 = vmatprep.mubr.bf16.mxu0 0
  %672 = vmatmul.mubr.bf16.gmra.mxu0 %v417
  %v673 = vpop.f32.mrf.mxu0
  %v674 = vadd.f32 %v119, %v673
  %v675 = vpop.f32.mrf.mxu0
  %v676 = vpop.f32.mrf.mxu0
  %v677 = vadd.f32 %v119, %v676
  %v678 = vpop.f32.mrf.mxu0
  %679 = vmatprep.mubr.bf16.mxu0 0
  %680 = vmatmul.mubr.bf16.gmra.mxu0 %v420
  %v681 = vpop.f32.mrf.mxu0
  %v682 = vadd.f32 %v119, %v681
  %v683 = vpop.f32.mrf.mxu0
  %v684 = vpop.f32.mrf.mxu0
  %v685 = vadd.f32 %v119, %v684
  %v686 = vpop.f32.mrf.mxu0
  %687 = vmatprep.mubr.bf16.mxu0 0
  %688 = vmatmul.mubr.bf16.gmra.mxu0 %v423
  %v689 = vpop.f32.mrf.mxu0
  %v690 = vadd.f32 %v119, %v689
  %v691 = vpop.f32.mrf.mxu0
  %v692 = vpop.f32.mrf.mxu0
  %v693 = vadd.f32 %v119, %v692
  %v694 = vpop.f32.mrf.mxu0
  %695 = vmatprep.mubr.bf16.mxu0 0
  %696 = vmatmul.mubr.bf16.gmra.mxu0 %v426
  %v697 = vpop.f32.mrf.mxu0
  %v698 = vadd.f32 %v119, %v697
  %v699 = vpop.f32.mrf.mxu0
  %v700 = vpop.f32.mrf.mxu0
  %v701 = vadd.f32 %v119, %v700
  %v702 = vpop.f32.mrf.mxu0
  %703 = vmatprep.mubr.bf16.mxu0 0
  %704 = vmatmul.mubr.bf16.gmra.mxu0 %v429
  %v705 = vpop.f32.mrf.mxu0
  %v706 = vadd.f32 %v119, %v705
  %v707 = vpop.f32.mrf.mxu0
  %v708 = vpop.f32.mrf.mxu0
  %v709 = vadd.f32 %v119, %v708
  %v710 = vpop.f32.mrf.mxu0
  %711 = vmatprep.mubr.bf16.mxu0 0
  %712 = vmatmul.mubr.bf16.gmra.mxu0 %v432
  %v713 = vpop.f32.mrf.mxu0
  %v714 = vadd.f32 %v119, %v713
  %v715 = vpop.f32.mrf.mxu0
  %v716 = vpop.f32.mrf.mxu0
  %v717 = vadd.f32 %v119, %v716
  %v718 = vpop.f32.mrf.mxu0
  %719 = vmatprep.mubr.bf16.mxu0 0
  %720 = vmatmul.mubr.bf16.gmra.mxu0 %v435
  %v721 = vpop.f32.mrf.mxu0
  %v722 = vadd.f32 %v119, %v721
  %v723 = vpop.f32.mrf.mxu0
  %v724 = vpop.f32.mrf.mxu0
  %v725 = vadd.f32 %v119, %v724
  %v726 = vpop.f32.mrf.mxu0
  %727 = vmatprep.mubr.bf16.mxu0 0
  %728 = vmatmul.mubr.bf16.gmra.mxu0 %v438
  %v729 = vpop.f32.mrf.mxu0
  %v730 = vadd.f32 %v119, %v729
  %v731 = vpop.f32.mrf.mxu0
  %v732 = vpop.f32.mrf.mxu0
  %v733 = vadd.f32 %v119, %v732
  %v734 = vpop.f32.mrf.mxu0
  %735 = vmatprep.mubr.bf16.mxu0 0
  %736 = vmatmul.mubr.bf16.gmra.mxu0 %v441
  %v737 = vpop.f32.mrf.mxu0
  %v738 = vadd.f32 %v119, %v737
  %v739 = vpop.f32.mrf.mxu0
  %v740 = vpop.f32.mrf.mxu0
  %v741 = vadd.f32 %v119, %v740
  %v742 = vpop.f32.mrf.mxu0
  %743 = vmatprep.mubr.bf16.mxu0 0
  %744 = vmatmul.mubr.bf16.gmra.mxu0 %v444
  %v745 = vpop.f32.mrf.mxu0
  %v746 = vadd.f32 %v119, %v745
  %v747 = vpop.f32.mrf.mxu0
  %v748 = vpop.f32.mrf.mxu0
  %v749 = vadd.f32 %v119, %v748
  %v750 = vpop.f32.mrf.mxu0
  %751 = vmatprep.mubr.bf16.mxu0 0
  %752 = vmatmul.mubr.bf16.gmra.mxu0 %v447
  %v753 = vpop.f32.mrf.mxu0
  %v754 = vadd.f32 %v119, %v753
  %v755 = vpop.f32.mrf.mxu0
  %v756 = vpop.f32.mrf.mxu0
  %v757 = vadd.f32 %v119, %v756
  %v758 = vpop.f32.mrf.mxu0
  %759 = vmatprep.mubr.bf16.mxu0 0
  %760 = vmatmul.mubr.bf16.gmra.mxu0 %v450
  %v761 = vpop.f32.mrf.mxu0
  %v762 = vadd.f32 %v119, %v761
  %v763 = vpop.f32.mrf.mxu0
  %v764 = vpop.f32.mrf.mxu0
  %v765 = vadd.f32 %v119, %v764
  %v766 = vpop.f32.mrf.mxu0
  %767 = vmatprep.mubr.bf16.mxu0 0
  %768 = vmatmul.mubr.bf16.gmra.mxu0 %v453
  %v769 = vpop.f32.mrf.mxu0
  %v770 = vadd.f32 %v119, %v769
  %v771 = vpop.f32.mrf.mxu0
  %v772 = vpop.f32.mrf.mxu0
  %v773 = vadd.f32 %v119, %v772
  %v774 = vpop.f32.mrf.mxu0
  %775 = vmatprep.mubr.bf16.mxu0 0
  %776 = vmatmul.mubr.bf16.gmra.mxu0 %v456
  %v777 = vpop.f32.mrf.mxu0
  %v778 = vadd.f32 %v119, %v777
  %v779 = vpop.f32.mrf.mxu0
  %v780 = vpop.f32.mrf.mxu0
  %v781 = vadd.f32 %v119, %v780
  %v782 = vpop.f32.mrf.mxu0
  %783 = vmatprep.mubr.bf16.mxu0 0
  %784 = vmatmul.mubr.bf16.gmra.mxu0 %v459
  %v785 = vpop.f32.mrf.mxu0
  %v786 = vadd.f32 %v119, %v785
  %v787 = vpop.f32.mrf.mxu0
  %v788 = vpop.f32.mrf.mxu0
  %v789 = vadd.f32 %v119, %v788
  %v790 = vpop.f32.mrf.mxu0
  %791 = vmatprep.mubr.bf16.mxu0 0
  %792 = vmatmul.mubr.bf16.gmra.mxu0 %v462
  %v793 = vpop.f32.mrf.mxu0
  %v794 = vadd.f32 %v119, %v793
  %v795 = vpop.f32.mrf.mxu0
  %v796 = vpop.f32.mrf.mxu0
  %v797 = vadd.f32 %v119, %v796
  %v798 = vpop.f32.mrf.mxu0
  %799 = vmatprep.mubr.bf16.mxu0 0
  %800 = vmatmul.mubr.bf16.gmra.mxu0 %v465
  %v801 = vpop.f32.mrf.mxu0
  %v802 = vadd.f32 %v119, %v801
  %v803 = vpop.f32.mrf.mxu0
  %v804 = vpop.f32.mrf.mxu0
  %v805 = vadd.f32 %v119, %v804
  %v806 = vpop.f32.mrf.mxu0
  %807 = vmatprep.mubr.bf16.mxu0 0
  %808 = vmatmul.mubr.bf16.gmra.mxu0 %v468
  %v809 = vpop.f32.mrf.mxu0
  %v810 = vadd.f32 %v119, %v809
  %v811 = vpop.f32.mrf.mxu0
  %v812 = vpop.f32.mrf.mxu0
  %v813 = vadd.f32 %v119, %v812
  %v814 = vpop.f32.mrf.mxu0
  %815 = vmatprep.mubr.bf16.mxu0 0
  %816 = vmatmul.mubr.bf16.gmra.mxu0 %v471
  %v817 = vpop.f32.mrf.mxu0
  %v818 = vadd.f32 %v119, %v817
  %v819 = vpop.f32.mrf.mxu0
  %v820 = vpop.f32.mrf.mxu0
  %v821 = vadd.f32 %v119, %v820
  %v822 = vpop.f32.mrf.mxu0
  %823 = vmatprep.mubr.bf16.mxu0 0
  %824 = vmatmul.mubr.bf16.gmra.mxu0 %v474
  %v825 = vpop.f32.mrf.mxu0
  %v826 = vadd.f32 %v119, %v825
  %v827 = vpop.f32.mrf.mxu0
  %v828 = vpop.f32.mrf.mxu0
  %v829 = vadd.f32 %v119, %v828
  %v830 = vpop.f32.mrf.mxu0
  %831 = vmatprep.mubr.bf16.mxu0 0
  %832 = vmatmul.mubr.bf16.gmra.mxu0 %v477
  %v833 = vpop.f32.mrf.mxu0
  %v834 = vadd.f32 %v119, %v833
  %v835 = vpop.f32.mrf.mxu0
  %v836 = vpop.f32.mrf.mxu0
  %v837 = vadd.f32 %v119, %v836
  %v838 = vpop.f32.mrf.mxu0
  %839 = vmatprep.mubr.bf16.mxu0 0
  %840 = vmatmul.mubr.bf16.gmra.mxu0 %v480
  %v841 = vpop.f32.mrf.mxu0
  %v842 = vadd.f32 %v119, %v841
  %v843 = vpop.f32.mrf.mxu0
  %v844 = vpop.f32.mrf.mxu0
  %v845 = vadd.f32 %v119, %v844
  %v846 = vpop.f32.mrf.mxu0
  %847 = vmatprep.mubr.bf16.mxu0 0
  %848 = vmatmul.mubr.bf16.gmra.mxu0 %v483
  %v849 = vpop.f32.mrf.mxu0
  %v850 = vadd.f32 %v119, %v849
  %v851 = vpop.f32.mrf.mxu0
  %v852 = vpop.f32.mrf.mxu0
  %v853 = vadd.f32 %v119, %v852
  %v854 = vpop.f32.mrf.mxu0
  %855 = vmatprep.mubr.bf16.mxu0 0
  %856 = vmatmul.mubr.bf16.gmra.mxu0 %v486
  %v857 = vpop.f32.mrf.mxu0
  %v858 = vadd.f32 %v119, %v857
  %v859 = vpop.f32.mrf.mxu0
  %v860 = vpop.f32.mrf.mxu0
  %v861 = vadd.f32 %v119, %v860
  %v862 = vpop.f32.mrf.mxu0
  %863 = vmatprep.mubr.bf16.mxu0 0
  %864 = vmatmul.mubr.bf16.gmra.mxu0 %v489
  %v865 = vpop.f32.mrf.mxu0
  %v866 = vadd.f32 %v119, %v865
  %v867 = vpop.f32.mrf.mxu0
  %v868 = vpop.f32.mrf.mxu0
  %v869 = vadd.f32 %v119, %v868
  %v870 = vpop.f32.mrf.mxu0
  %871 = vmatprep.mubr.bf16.mxu0 0
  %872 = vmatmul.mubr.bf16.gmra.mxu0 %v492
  %v873 = vpop.f32.mrf.mxu0
  %v874 = vadd.f32 %v119, %v873
  %v875 = vpop.f32.mrf.mxu0
  %v876 = vpop.f32.mrf.mxu0
  %v877 = vadd.f32 %v119, %v876
  %v878 = vpop.f32.mrf.mxu0
  %879 = vmatprep.mubr.bf16.mxu0 0
  %880 = vmatmul.mubr.bf16.gmra.mxu0 %v495
  %v881 = vpop.f32.mrf.mxu0
  %v882 = vadd.f32 %v119, %v881
  %v883 = vpop.f32.mrf.mxu0
  %v884 = vpop.f32.mrf.mxu0
  %v885 = vadd.f32 %v119, %v884
  %v886 = vpop.f32.mrf.mxu0
  %887 = vmatprep.mubr.bf16.mxu0 0
  %888 = vmatmul.mubr.bf16.gmra.mxu0 %v498
  %v889 = vpop.f32.mrf.mxu0
  %v890 = vadd.f32 %v119, %v889
  %v891 = vpop.f32.mrf.mxu0
  %v892 = vpop.f32.mrf.mxu0
  %v893 = vadd.f32 %v119, %v892
  %v894 = vpop.f32.mrf.mxu0
  %895 = vmatprep.mubr.bf16.mxu0 0
  %896 = vmatmul.mubr.bf16.gmra.mxu0 %v501
  %v897 = vpop.f32.mrf.mxu0
  %v898 = vadd.f32 %v119, %v897
  %v899 = vpop.f32.mrf.mxu0
  %v900 = vpop.f32.mrf.mxu0
  %v901 = vadd.f32 %v119, %v900
  %v902 = vpop.f32.mrf.mxu0
  %903 = vmatprep.mubr.bf16.mxu0 0
  %904 = vmatmul.mubr.bf16.gmra.mxu0 %v504
  %v905 = vpop.f32.mrf.mxu0
  %v906 = vadd.f32 %v119, %v905
  %v907 = vpop.f32.mrf.mxu0
  %v908 = vpop.f32.mrf.mxu0
  %v909 = vadd.f32 %v119, %v908
  %v910 = vpop.f32.mrf.mxu0
  %911 = vmatprep.mubr.bf16.mxu0 0
  %912 = vmatmul.mubr.bf16.gmra.mxu0 %v507
  %v913 = vpop.f32.mrf.mxu0
  %v914 = vadd.f32 %v119, %v913
  %v915 = vpop.f32.mrf.mxu0
  %v916 = vpop.f32.mrf.mxu0
  %v917 = vadd.f32 %v119, %v916
  %v918 = vpop.f32.mrf.mxu0
  %919 = vmatprep.mubr.bf16.mxu0 0
  %920 = vmatmul.mubr.bf16.gmra.mxu0 %v510
  %v921 = vpop.f32.mrf.mxu0
  %v922 = vadd.f32 %v119, %v921
  %v923 = vpop.f32.mrf.mxu0
  %v924 = vpop.f32.mrf.mxu0
  %v925 = vadd.f32 %v119, %v924
  %v926 = vpop.f32.mrf.mxu0
  %927 = vmatprep.mubr.bf16.mxu0 0
  %928 = vmatmul.mubr.bf16.gmra.mxu0 %v513
  %v929 = vpop.f32.mrf.mxu0
  %v930 = vadd.f32 %v119, %v929
  %v931 = vpop.f32.mrf.mxu0
  %v932 = vpop.f32.mrf.mxu0
  %v933 = vadd.f32 %v119, %v932
  %v934 = vpop.f32.mrf.mxu0
  %935 = vdwg.mxu0
  %v936 = vmax.f32 %v554, 0.0
  %v937 = vmax.f32 %v557, 0.0
  %v938 = vmax.f32 %v562, 0.0
  %v939 = vmax.f32 %v565, 0.0
  %v940 = vmax.f32 %v570, 0.0
  %v941 = vmax.f32 %v573, 0.0
  %v942 = vmax.f32 %v578, 0.0
  %v943 = vmax.f32 %v581, 0.0
  %v944 = vmax.f32 %v586, 0.0
  %v945 = vmax.f32 %v589, 0.0
  %v946 = vmax.f32 %v594, 0.0
  %v947 = vmax.f32 %v597, 0.0
  %v948 = vmax.f32 %v602, 0.0
  %v949 = vmax.f32 %v605, 0.0
  %v950 = vmax.f32 %v610, 0.0
  %v951 = vmax.f32 %v613, 0.0
  %v952 = vmax.f32 %v618, 0.0
  %v953 = vmax.f32 %v621, 0.0
  %v954 = vmax.f32 %v626, 0.0
  %v955 = vmax.f32 %v629, 0.0
  %v956 = vmax.f32 %v634, 0.0
  %v957 = vmax.f32 %v637, 0.0
  %v958 = vmax.f32 %v642, 0.0
  %v959 = vmax.f32 %v645, 0.0
  %v960 = vmax.f32 %v650, 0.0
  %v961 = vmax.f32 %v653, 0.0
  %v962 = vmax.f32 %v658, 0.0
  %v963 = vmax.f32 %v661, 0.0
  %v964 = vmax.f32 %v666, 0.0
  %v965 = vmax.f32 %v669, 0.0
  %v966 = vmax.f32 %v674, 0.0
  %v967 = vmax.f32 %v677, 0.0
  %v968 = vmax.f32 %v682, 0.0
  %v969 = vmax.f32 %v685, 0.0
  %v970 = vmax.f32 %v690, 0.0
  %v971 = vmax.f32 %v693, 0.0
  %v972 = vmax.f32 %v698, 0.0
  %v973 = vmax.f32 %v701, 0.0
  %v974 = vmax.f32 %v706, 0.0
  %v975 = vmax.f32 %v709, 0.0
  %v976 = vmax.f32 %v714, 0.0
  %v977 = vmax.f32 %v717, 0.0
  %v978 = vmax.f32 %v722, 0.0
  %v979 = vmax.f32 %v725, 0.0
  %v980 = vmax.f32 %v730, 0.0
  %v981 = vmax.f32 %v733, 0.0
  %v982 = vmax.f32 %v738, 0.0
  %v983 = vmax.f32 %v741, 0.0
  %v984 = vmax.f32 %v746, 0.0
  %v985 = vmax.f32 %v749, 0.0
  %v986 = vmax.f32 %v754, 0.0
  %v987 = vmax.f32 %v757, 0.0
  %v988 = vmax.f32 %v762, 0.0
  %v989 = vmax.f32 %v765, 0.0
  %v990 = vmax.f32 %v770, 0.0
  %v991 = vmax.f32 %v773, 0.0
  %v992 = vmax.f32 %v778, 0.0
  %v993 = vmax.f32 %v781, 0.0
  %v994 = vmax.f32 %v786, 0.0
  %v995 = vmax.f32 %v789, 0.0
  %v996 = vmax.f32 %v794, 0.0
  %v997 = vmax.f32 %v797, 0.0
  %v998 = vmax.f32 %v802, 0.0
  %v999 = vmax.f32 %v805, 0.0
  %v1000 = vmax.f32 %v810, 0.0
  %v1001 = vmax.f32 %v813, 0.0
  %v1002 = vmax.f32 %v818, 0.0
  %v1003 = vmax.f32 %v821, 0.0
  %v1004 = vmax.f32 %v826, 0.0
  %v1005 = vmax.f32 %v829, 0.0
  %v1006 = vmax.f32 %v834, 0.0
  %v1007 = vmax.f32 %v837, 0.0
  %v1008 = vmax.f32 %v842, 0.0
  %v1009 = vmax.f32 %v845, 0.0
  %v1010 = vmax.f32 %v850, 0.0
  %v1011 = vmax.f32 %v853, 0.0
  %v1012 = vmax.f32 %v858, 0.0
  %v1013 = vmax.f32 %v861, 0.0
  %v1014 = vmax.f32 %v866, 0.0
  %v1015 = vmax.f32 %v869, 0.0
  %v1016 = vmax.f32 %v874, 0.0
  %v1017 = vmax.f32 %v877, 0.0
  %v1018 = vmax.f32 %v882, 0.0
  %v1019 = vmax.f32 %v885, 0.0
  %v1020 = vmax.f32 %v890, 0.0
  %v1021 = vmax.f32 %v893, 0.0
  %v1022 = vmax.f32 %v898, 0.0
  %v1023 = vmax.f32 %v901, 0.0
  %v1024 = vmax.f32 %v906, 0.0
  %v1025 = vmax.f32 %v909, 0.0
  %v1026 = vmax.f32 %v914, 0.0
  %v1027 = vmax.f32 %v917, 0.0
  %v1028 = vmax.f32 %v922, 0.0
  %v1029 = vmax.f32 %v925, 0.0
  %v1030 = vmax.f32 %v930, 0.0
  %v1031 = vmax.f32 %v933, 0.0
  %v1032 = vpack.c.bf16 %v937, %v936
  %v1033 = vpack.c.bf16 %v939, %v938
  %v1034 = vpack.c.bf16 %v941, %v940
  %v1035 = vpack.c.bf16 %v943, %v942
  %v1036 = vpack.c.bf16 %v945, %v944
  %v1037 = vpack.c.bf16 %v947, %v946
  %v1038 = vpack.c.bf16 %v949, %v948
  %v1039 = vpack.c.bf16 %v951, %v950
  %v1040 = vpack.c.bf16 %v953, %v952
  %v1041 = vpack.c.bf16 %v955, %v954
  %v1042 = vpack.c.bf16 %v957, %v956
  %v1043 = vpack.c.bf16 %v959, %v958
  %v1044 = vpack.c.bf16 %v961, %v960
  %v1045 = vpack.c.bf16 %v963, %v962
  %v1046 = vpack.c.bf16 %v965, %v964
  %v1047 = vpack.c.bf16 %v967, %v966
  %v1048 = vpack.c.bf16 %v969, %v968
  %v1049 = vpack.c.bf16 %v971, %v970
  %v1050 = vpack.c.bf16 %v973, %v972
  %v1051 = vpack.c.bf16 %v975, %v974
  %v1052 = vpack.c.bf16 %v977, %v976
  %v1053 = vpack.c.bf16 %v979, %v978
  %v1054 = vpack.c.bf16 %v981, %v980
  %v1055 = vpack.c.bf16 %v983, %v982
  %v1056 = vpack.c.bf16 %v985, %v984
  %v1057 = vpack.c.bf16 %v987, %v986
  %v1058 = vpack.c.bf16 %v989, %v988
  %v1059 = vpack.c.bf16 %v991, %v990
  %v1060 = vpack.c.bf16 %v993, %v992
  %v1061 = vpack.c.bf16 %v995, %v994
  %v1062 = vpack.c.bf16 %v997, %v996
  %v1063 = vpack.c.bf16 %v999, %v998
  %v1064 = vpack.c.bf16 %v1001, %v1000
  %v1065 = vpack.c.bf16 %v1003, %v1002
  %v1066 = vpack.c.bf16 %v1005, %v1004
  %v1067 = vpack.c.bf16 %v1007, %v1006
  %v1068 = vpack.c.bf16 %v1009, %v1008
  %v1069 = vpack.c.bf16 %v1011, %v1010
  %v1070 = vpack.c.bf16 %v1013, %v1012
  %v1071 = vpack.c.bf16 %v1015, %v1014
  %v1072 = vpack.c.bf16 %v1017, %v1016
  %v1073 = vpack.c.bf16 %v1019, %v1018
  %v1074 = vpack.c.bf16 %v1021, %v1020
  %v1075 = vpack.c.bf16 %v1023, %v1022
  %v1076 = vpack.c.bf16 %v1025, %v1024
  %v1077 = vpack.c.bf16 %v1027, %v1026
  %v1078 = vpack.c.bf16 %v1029, %v1028
  %v1079 = vpack.c.bf16 %v1031, %v1030
  %v1128 = vunpack.c.l.b16 %v1032
  %v1129 = vunpack.c.h.b16 %v1032
  %v1130 = vunpack.c.l.b16 %v1033
  %v1131 = vunpack.c.h.b16 %v1033
  %v1132 = vunpack.c.l.b16 %v1034
  %v1133 = vunpack.c.h.b16 %v1034
  %v1134 = vunpack.c.l.b16 %v1035
  %v1135 = vunpack.c.h.b16 %v1035
  %v1136 = vunpack.c.l.b16 %v1036
  %v1137 = vunpack.c.h.b16 %v1036
  %v1138 = vunpack.c.l.b16 %v1037
  %v1139 = vunpack.c.h.b16 %v1037
  %v1140 = vunpack.c.l.b16 %v1038
  %v1141 = vunpack.c.h.b16 %v1038
  %v1142 = vunpack.c.l.b16 %v1039
  %v1143 = vunpack.c.h.b16 %v1039
  %v1144 = vunpack.c.l.b16 %v1040
  %v1145 = vunpack.c.h.b16 %v1040
  %v1146 = vunpack.c.l.b16 %v1041
  %v1147 = vunpack.c.h.b16 %v1041
  %v1148 = vunpack.c.l.b16 %v1042
  %v1149 = vunpack.c.h.b16 %v1042
  %v1150 = vunpack.c.l.b16 %v1043
  %v1151 = vunpack.c.h.b16 %v1043
  %v1152 = vunpack.c.l.b16 %v1044
  %v1153 = vunpack.c.h.b16 %v1044
  %v1154 = vunpack.c.l.b16 %v1045
  %v1155 = vunpack.c.h.b16 %v1045
  %v1156 = vunpack.c.l.b16 %v1046
  %v1157 = vunpack.c.h.b16 %v1046
  %v1158 = vunpack.c.l.b16 %v1047
  %v1159 = vunpack.c.h.b16 %v1047
  %v1160 = vunpack.c.l.b16 %v1048
  %v1161 = vunpack.c.h.b16 %v1048
  %v1162 = vunpack.c.l.b16 %v1049
  %v1163 = vunpack.c.h.b16 %v1049
  %v1164 = vunpack.c.l.b16 %v1050
  %v1165 = vunpack.c.h.b16 %v1050
  %v1166 = vunpack.c.l.b16 %v1051
  %v1167 = vunpack.c.h.b16 %v1051
  %v1168 = vunpack.c.l.b16 %v1052
  %v1169 = vunpack.c.h.b16 %v1052
  %v1170 = vunpack.c.l.b16 %v1053
  %v1171 = vunpack.c.h.b16 %v1053
  %v1172 = vunpack.c.l.b16 %v1054
  %v1173 = vunpack.c.h.b16 %v1054
  %v1174 = vunpack.c.l.b16 %v1055
  %v1175 = vunpack.c.h.b16 %v1055
  %v1176 = vunpack.c.l.b16 %v1056
  %v1177 = vunpack.c.h.b16 %v1056
  %v1178 = vunpack.c.l.b16 %v1057
  %v1179 = vunpack.c.h.b16 %v1057
  %v1180 = vunpack.c.l.b16 %v1058
  %v1181 = vunpack.c.h.b16 %v1058
  %v1182 = vunpack.c.l.b16 %v1059
  %v1183 = vunpack.c.h.b16 %v1059
  %v1184 = vunpack.c.l.b16 %v1060
  %v1185 = vunpack.c.h.b16 %v1060
  %v1186 = vunpack.c.l.b16 %v1061
  %v1187 = vunpack.c.h.b16 %v1061
  %v1188 = vunpack.c.l.b16 %v1062
  %v1189 = vunpack.c.h.b16 %v1062
  %v1190 = vunpack.c.l.b16 %v1063
  %v1191 = vunpack.c.h.b16 %v1063
  %v1192 = vunpack.c.l.b16 %v1064
  %v1193 = vunpack.c.h.b16 %v1064
  %v1194 = vunpack.c.l.b16 %v1065
  %v1195 = vunpack.c.h.b16 %v1065
  %v1196 = vunpack.c.l.b16 %v1066
  %v1197 = vunpack.c.h.b16 %v1066
  %v1198 = vunpack.c.l.b16 %v1067
  %v1199 = vunpack.c.h.b16 %v1067
  %v1200 = vunpack.c.l.b16 %v1068
  %v1201 = vunpack.c.h.b16 %v1068
  %v1202 = vunpack.c.l.b16 %v1069
  %v1203 = vunpack.c.h.b16 %v1069
  %v1204 = vunpack.c.l.b16 %v1070
  %v1205 = vunpack.c.h.b16 %v1070
  %v1206 = vunpack.c.l.b16 %v1071
  %v1207 = vunpack.c.h.b16 %v1071
  %v1208 = vunpack.c.l.b16 %v1072
  %v1209 = vunpack.c.h.b16 %v1072
  %v1210 = vunpack.c.l.b16 %v1073
  %v1211 = vunpack.c.h.b16 %v1073
  %v1212 = vunpack.c.l.b16 %v1074
  %v1213 = vunpack.c.h.b16 %v1074
  %v1214 = vunpack.c.l.b16 %v1075
  %v1215 = vunpack.c.h.b16 %v1075
  %v1216 = vunpack.c.l.b16 %v1076
  %v1217 = vunpack.c.h.b16 %v1076
  %v1218 = vunpack.c.l.b16 %v1077
  %v1219 = vunpack.c.h.b16 %v1077
  %v1220 = vunpack.c.l.b16 %v1078
  %v1221 = vunpack.c.h.b16 %v1078
  %v1222 = vunpack.c.l.b16 %v1079
  %v1223 = vunpack.c.h.b16 %v1079
  %v1224 = vpack.c.b16 %v1128, %v1128
  %v1225 = vpack.c.b16 %v1129, %v1129
  %v1226 = vpack.c.b16 %v1130, %v1130
  %v1227 = vpack.c.b16 %v1131, %v1131
  %v1228 = vpack.c.b16 %v1132, %v1132
  %v1229 = vpack.c.b16 %v1133, %v1133
  %v1230 = vpack.c.b16 %v1134, %v1134
  %v1231 = vpack.c.b16 %v1135, %v1135
  %v1232 = vpack.c.b16 %v1136, %v1136
  %v1233 = vpack.c.b16 %v1137, %v1137
  %v1234 = vpack.c.b16 %v1138, %v1138
  %v1235 = vpack.c.b16 %v1139, %v1139
  %v1236 = vpack.c.b16 %v1140, %v1140
  %v1237 = vpack.c.b16 %v1141, %v1141
  %v1238 = vpack.c.b16 %v1142, %v1142
  %v1239 = vpack.c.b16 %v1143, %v1143
  %v1240 = vpack.c.b16 %v1144, %v1144
  %v1241 = vpack.c.b16 %v1145, %v1145
  %v1242 = vpack.c.b16 %v1146, %v1146
  %v1243 = vpack.c.b16 %v1147, %v1147
  %v1244 = vpack.c.b16 %v1148, %v1148
  %v1245 = vpack.c.b16 %v1149, %v1149
  %v1246 = vpack.c.b16 %v1150, %v1150
  %v1247 = vpack.c.b16 %v1151, %v1151
  %v1248 = vpack.c.b16 %v1152, %v1152
  %v1249 = vpack.c.b16 %v1153, %v1153
  %v1250 = vpack.c.b16 %v1154, %v1154
  %v1251 = vpack.c.b16 %v1155, %v1155
  %v1252 = vpack.c.b16 %v1156, %v1156
  %v1253 = vpack.c.b16 %v1157, %v1157
  %v1254 = vpack.c.b16 %v1158, %v1158
  %v1255 = vpack.c.b16 %v1159, %v1159
  %v1256 = vpack.c.b16 %v1160, %v1160
  %v1257 = vpack.c.b16 %v1161, %v1161
  %v1258 = vpack.c.b16 %v1162, %v1162
  %v1259 = vpack.c.b16 %v1163, %v1163
  %v1260 = vpack.c.b16 %v1164, %v1164
  %v1261 = vpack.c.b16 %v1165, %v1165
  %v1262 = vpack.c.b16 %v1166, %v1166
  %v1263 = vpack.c.b16 %v1167, %v1167
  %v1264 = vpack.c.b16 %v1168, %v1168
  %v1265 = vpack.c.b16 %v1169, %v1169
  %v1266 = vpack.c.b16 %v1170, %v1170
  %v1267 = vpack.c.b16 %v1171, %v1171
  %v1268 = vpack.c.b16 %v1172, %v1172
  %v1269 = vpack.c.b16 %v1173, %v1173
  %v1270 = vpack.c.b16 %v1174, %v1174
  %v1271 = vpack.c.b16 %v1175, %v1175
  %v1272 = vpack.c.b16 %v1176, %v1176
  %v1273 = vpack.c.b16 %v1177, %v1177
  %v1274 = vpack.c.b16 %v1178, %v1178
  %v1275 = vpack.c.b16 %v1179, %v1179
  %v1276 = vpack.c.b16 %v1180, %v1180
  %v1277 = vpack.c.b16 %v1181, %v1181
  %v1278 = vpack.c.b16 %v1182, %v1182
  %v1279 = vpack.c.b16 %v1183, %v1183
  %v1280 = vpack.c.b16 %v1184, %v1184
  %v1281 = vpack.c.b16 %v1185, %v1185
  %v1282 = vpack.c.b16 %v1186, %v1186
  %v1283 = vpack.c.b16 %v1187, %v1187
  %v1284 = vpack.c.b16 %v1188, %v1188
  %v1285 = vpack.c.b16 %v1189, %v1189
  %v1286 = vpack.c.b16 %v1190, %v1190
  %v1287 = vpack.c.b16 %v1191, %v1191
  %v1288 = vpack.c.b16 %v1192, %v1192
  %v1289 = vpack.c.b16 %v1193, %v1193
  %v1290 = vpack.c.b16 %v1194, %v1194
  %v1291 = vpack.c.b16 %v1195, %v1195
  %v1292 = vpack.c.b16 %v1196, %v1196
  %v1293 = vpack.c.b16 %v1197, %v1197
  %v1294 = vpack.c.b16 %v1198, %v1198
  %v1295 = vpack.c.b16 %v1199, %v1199
  %v1296 = vpack.c.b16 %v1200, %v1200
  %v1297 = vpack.c.b16 %v1201, %v1201
  %v1298 = vpack.c.b16 %v1202, %v1202
  %v1299 = vpack.c.b16 %v1203, %v1203
  %v1300 = vpack.c.b16 %v1204, %v1204
  %v1301 = vpack.c.b16 %v1205, %v1205
  %v1302 = vpack.c.b16 %v1206, %v1206
  %v1303 = vpack.c.b16 %v1207, %v1207
  %v1304 = vpack.c.b16 %v1208, %v1208
  %v1305 = vpack.c.b16 %v1209, %v1209
  %v1306 = vpack.c.b16 %v1210, %v1210
  %v1307 = vpack.c.b16 %v1211, %v1211
  %v1308 = vpack.c.b16 %v1212, %v1212
  %v1309 = vpack.c.b16 %v1213, %v1213
  %v1310 = vpack.c.b16 %v1214, %v1214
  %v1311 = vpack.c.b16 %v1215, %v1215
  %v1312 = vpack.c.b16 %v1216, %v1216
  %v1313 = vpack.c.b16 %v1217, %v1217
  %v1314 = vpack.c.b16 %v1218, %v1218
  %v1315 = vpack.c.b16 %v1219, %v1219
  %v1316 = vpack.c.b16 %v1220, %v1220
  %v1317 = vpack.c.b16 %v1221, %v1221
  %v1318 = vpack.c.b16 %v1222, %v1222
  %v1319 = vpack.c.b16 %v1223, %v1223
  %1416 = vst [vmem:[%s3] sm:$0xf] %v1224
  %1417 = vst [vmem:[%s3 + $0x4] sm:$0xf] %v1225
  %1418 = vst [vmem:[%s3 + $0x8] sm:$0xf] %v1226
  %1419 = vst [vmem:[%s3 + $0xc] sm:$0xf] %v1227
  %1420 = vst [vmem:[%s3 + $0x10] sm:$0xf] %v1228
  %1421 = vst [vmem:[%s3 + $0x14] sm:$0xf] %v1229
  %1422 = vst [vmem:[%s3 + $0x18] sm:$0xf] %v1230
  %1423 = vst [vmem:[%s3 + $0x1c] sm:$0xf] %v1231
  %1424 = vst [vmem:[%s3 + $0x20] sm:$0xf] %v1232
  %1425 = vst [vmem:[%s3 + $0x24] sm:$0xf] %v1233
  %1426 = vst [vmem:[%s3 + $0x28] sm:$0xf] %v1234
  %1427 = vst [vmem:[%s3 + $0x2c] sm:$0xf] %v1235
  %1428 = vst [vmem:[%s3 + $0x30] sm:$0xf] %v1236
  %1429 = vst [vmem:[%s3 + $0x34] sm:$0xf] %v1237
  %1430 = vst [vmem:[%s3 + $0x38] sm:$0xf] %v1238
  %1431 = vst [vmem:[%s3 + $0x3c] sm:$0xf] %v1239
  %1432 = vst [vmem:[%s3 + $0x40] sm:$0xf] %v1240
  %1433 = vst [vmem:[%s3 + $0x44] sm:$0xf] %v1241
  %1434 = vst [vmem:[%s3 + $0x48] sm:$0xf] %v1242
  %1435 = vst [vmem:[%s3 + $0x4c] sm:$0xf] %v1243
  %1436 = vst [vmem:[%s3 + $0x50] sm:$0xf] %v1244
  %1437 = vst [vmem:[%s3 + $0x54] sm:$0xf] %v1245
  %1438 = vst [vmem:[%s3 + $0x58] sm:$0xf] %v1246
  %1439 = vst [vmem:[%s3 + $0x5c] sm:$0xf] %v1247
  %1440 = vst [vmem:[%s3 + $0x60] sm:$0xf] %v1248
  %1441 = vst [vmem:[%s3 + $0x64] sm:$0xf] %v1249
  %1442 = vst [vmem:[%s3 + $0x68] sm:$0xf] %v1250
  %1443 = vst [vmem:[%s3 + $0x6c] sm:$0xf] %v1251
  %1444 = vst [vmem:[%s3 + $0x70] sm:$0xf] %v1252
  %1445 = vst [vmem:[%s3 + $0x74] sm:$0xf] %v1253
  %1446 = vst [vmem:[%s3 + $0x78] sm:$0xf] %v1254
  %1447 = vst [vmem:[%s3 + $0x7c] sm:$0xf] %v1255
  %1448 = vst [vmem:[%s3 + $0x80] sm:$0xf] %v1256
  %1449 = vst [vmem:[%s3 + $0x84] sm:$0xf] %v1257
  %1450 = vst [vmem:[%s3 + $0x88] sm:$0xf] %v1258
  %1451 = vst [vmem:[%s3 + $0x8c] sm:$0xf] %v1259
  %1452 = vst [vmem:[%s3 + $0x90] sm:$0xf] %v1260
  %1453 = vst [vmem:[%s3 + $0x94] sm:$0xf] %v1261
  %1454 = vst [vmem:[%s3 + $0x98] sm:$0xf] %v1262
  %1455 = vst [vmem:[%s3 + $0x9c] sm:$0xf] %v1263
  %1456 = vst [vmem:[%s3 + $0xa0] sm:$0xf] %v1264
  %1457 = vst [vmem:[%s3 + $0xa4] sm:$0xf] %v1265
  %1458 = vst [vmem:[%s3 + $0xa8] sm:$0xf] %v1266
  %1459 = vst [vmem:[%s3 + $0xac] sm:$0xf] %v1267
  %1460 = vst [vmem:[%s3 + $0xb0] sm:$0xf] %v1268
  %1461 = vst [vmem:[%s3 + $0xb4] sm:$0xf] %v1269
  %1462 = vst [vmem:[%s3 + $0xb8] sm:$0xf] %v1270
  %1463 = vst [vmem:[%s3 + $0xbc] sm:$0xf] %v1271
  %1464 = vst [vmem:[%s3 + $0xc0] sm:$0xf] %v1272
  %1465 = vst [vmem:[%s3 + $0xc4] sm:$0xf] %v1273
  %1466 = vst [vmem:[%s3 + $0xc8] sm:$0xf] %v1274
  %1467 = vst [vmem:[%s3 + $0xcc] sm:$0xf] %v1275
  %1468 = vst [vmem:[%s3 + $0xd0] sm:$0xf] %v1276
  %1469 = vst [vmem:[%s3 + $0xd4] sm:$0xf] %v1277
  %1470 = vst [vmem:[%s3 + $0xd8] sm:$0xf] %v1278
  %1471 = vst [vmem:[%s3 + $0xdc] sm:$0xf] %v1279
  %1472 = vst [vmem:[%s3 + $0xe0] sm:$0xf] %v1280
  %1473 = vst [vmem:[%s3 + $0xe4] sm:$0xf] %v1281
  %1474 = vst [vmem:[%s3 + $0xe8] sm:$0xf] %v1282
  %1475 = vst [vmem:[%s3 + $0xec] sm:$0xf] %v1283
  %1476 = vst [vmem:[%s3 + $0xf0] sm:$0xf] %v1284
  %1477 = vst [vmem:[%s3 + $0xf4] sm:$0xf] %v1285
  %1478 = vst [vmem:[%s3 + $0xf8] sm:$0xf] %v1286
  %1479 = vst [vmem:[%s3 + $0xfc] sm:$0xf] %v1287
  %1480 = vst [vmem:[%s3 + $0x100] sm:$0xf] %v1288
  %1481 = vst [vmem:[%s3 + $0x104] sm:$0xf] %v1289
  %1482 = vst [vmem:[%s3 + $0x108] sm:$0xf] %v1290
  %1483 = vst [vmem:[%s3 + $0x10c] sm:$0xf] %v1291
  %1484 = vst [vmem:[%s3 + $0x110] sm:$0xf] %v1292
  %1485 = vst [vmem:[%s3 + $0x114] sm:$0xf] %v1293
  %1486 = vst [vmem:[%s3 + $0x118] sm:$0xf] %v1294
  %1487 = vst [vmem:[%s3 + $0x11c] sm:$0xf] %v1295
  %1488 = vst [vmem:[%s3 + $0x120] sm:$0xf] %v1296
  %1489 = vst [vmem:[%s3 + $0x124] sm:$0xf] %v1297
  %1490 = vst [vmem:[%s3 + $0x128] sm:$0xf] %v1298
  %1491 = vst [vmem:[%s3 + $0x12c] sm:$0xf] %v1299
  %1492 = vst [vmem:[%s3 + $0x130] sm:$0xf] %v1300
  %1493 = vst [vmem:[%s3 + $0x134] sm:$0xf] %v1301
  %1494 = vst [vmem:[%s3 + $0x138] sm:$0xf] %v1302
  %1495 = vst [vmem:[%s3 + $0x13c] sm:$0xf] %v1303
  %1496 = vst [vmem:[%s3 + $0x140] sm:$0xf] %v1304
  %1497 = vst [vmem:[%s3 + $0x144] sm:$0xf] %v1305
  %1498 = vst [vmem:[%s3 + $0x148] sm:$0xf] %v1306
  %1499 = vst [vmem:[%s3 + $0x14c] sm:$0xf] %v1307
  %1500 = vst [vmem:[%s3 + $0x150] sm:$0xf] %v1308
  %1501 = vst [vmem:[%s3 + $0x154] sm:$0xf] %v1309
  %1502 = vst [vmem:[%s3 + $0x158] sm:$0xf] %v1310
  %1503 = vst [vmem:[%s3 + $0x15c] sm:$0xf] %v1311
  %1504 = vst [vmem:[%s3 + $0x160] sm:$0xf] %v1312
  %1505 = vst [vmem:[%s3 + $0x164] sm:$0xf] %v1313
  %1506 = vst [vmem:[%s3 + $0x168] sm:$0xf] %v1314
  %1507 = vst [vmem:[%s3 + $0x16c] sm:$0xf] %v1315
  %1508 = vst [vmem:[%s3 + $0x170] sm:$0xf] %v1316
  %1509 = vst [vmem:[%s3 + $0x174] sm:$0xf] %v1317
  %1510 = vst [vmem:[%s3 + $0x178] sm:$0xf] %v1318
  %1511 = vst [vmem:[%s3 + $0x17c] sm:$0xf] %v1319
  // Predicated region
  $region14: #{cqil_forward.9} parent=0 // pred_check
    _
  $region15: #{cqil_forward.9} parent=0 // pred_check_branch
    %1513 = sbr.rel (0) target = $region17
  $region16: #{cqil_forward.9} parent=0 // pred_region
    _
  $region17: #{cqil_forward.9} parent=0 // pred_fallthru
    _
  // Predicated region
  $region18: #{cqil_forward.9} parent=0 // pred_check
    _
  $region19: #{cqil_forward.9} parent=0 // pred_check_branch
    %1515 = sbr.rel (0) target = $region21
  $region20: #{cqil_forward.9} parent=0 // pred_region
    _
  $region21: #{cqil_forward.9} parent=0 // pred_fallthru
    _

// kernel: cqil_forward.10
$region0: #{cqil_forward.10}
  #allocation0 [shape = 'u32[]', space=smem, size = 0x4, offset = 0x4, fixed_abs, tag = 'smem constant byte address 0x4 - core index']
  #allocation1 [shape = 'u32[144,128]{1,0:T(1,128)}', space=vmem, size = 0x12000, scoped, tag = 'internal scratch']
  %s0 = inlined_call_operand.vmem [shape: bf16[192,1152], index: 0, kind: input, shape index: {}]
  %s1 = inlined_call_operand.vmem [shape: bf16[1152,128], index: 1, kind: input, shape index: {}]
  %s2 = inlined_call_operand.vmem [shape: f32[1,128], index: 2, kind: input, shape index: {}]
  %s3 = inlined_call_operand.vmem [shape: bf16[192,128], index: 3, kind: output, shape index: {}]
  %s4 = sld [smem:[#allocation0]]
  $region22: #{cqil_forward.10} parent=0
    _
  %s6 = ssub.s32 1, %s4
  %s7 = scalar_select 0, %s6, %s4
  // Predicated region
  $region2: #{cqil_forward.10} parent=0 // pred_check
    _
  $region3: #{cqil_forward.10} parent=0 // pred_check_branch
    %9 = sbr.rel (0) target = $region5
  $region4: #{cqil_forward.10} parent=0 // pred_region
    _
  $region5: #{cqil_forward.10} parent=0 // pred_fallthru
    _
  // Predicated region
  $region6: #{cqil_forward.10} parent=0 // pred_check
    _
  $region7: #{cqil_forward.10} parent=0 // pred_check_branch
    %11 = sbr.rel (0) target = $region9
  $region8: #{cqil_forward.10} parent=0 // pred_region
    _
  $region9: #{cqil_forward.10} parent=0 // pred_fallthru
    _
  // Predicated region
  $region10: #{cqil_forward.10} parent=0 // pred_check
    _
  $region11: #{cqil_forward.10} parent=0 // pred_check_branch
    %13 = sbr.rel (0) target = $region13
  $region12: #{cqil_forward.10} parent=0 // pred_region
    _
  $region13: #{cqil_forward.10} parent=0 // pred_fallthru
    _
  %v15 = vld [vmem:[%s0] sm:$0xff]
  %v16 = vld [vmem:[%s0 + $0x8] sm:$0xff]
  %v17 = vld [vmem:[%s0 + $0x10] sm:$0xff]
  %v18 = vld [vmem:[%s0 + $0x18] sm:$0xff]
  %v19 = vld [vmem:[%s0 + $0x20] sm:$0xf]
  %v20 = vld [vmem:[%s0 + $0x24] sm:$0xff]
  %v21 = vld [vmem:[%s0 + $0x2c] sm:$0xff]
  %v22 = vld [vmem:[%s0 + $0x34] sm:$0xff]
  %v23 = vld [vmem:[%s0 + $0x3c] sm:$0xff]
  %v24 = vld [vmem:[%s0 + $0x44] sm:$0xf]
  %v25 = vld [vmem:[%s0 + $0x48] sm:$0xff]
  %v26 = vld [vmem:[%s0 + $0x50] sm:$0xff]
  %v27 = vld [vmem:[%s0 + $0x58] sm:$0xff]
  %v28 = vld [vmem:[%s0 + $0x60] sm:$0xff]
  %v29 = vld [vmem:[%s0 + $0x68] sm:$0xf]
  %v30 = vld [vmem:[%s0 + $0x6c] sm:$0xff]
  %v31 = vld [vmem:[%s0 + $0x74] sm:$0xff]
  %v32 = vld [vmem:[%s0 + $0x7c] sm:$0xff]
  %v33 = vld [vmem:[%s0 + $0x84] sm:$0xff]
  %v34 = vld [vmem:[%s0 + $0x8c] sm:$0xf]
  %v35 = vld [vmem:[%s0 + $0x90] sm:$0xff]
  %v36 = vld [vmem:[%s0 + $0x98] sm:$0xff]
  %v37 = vld [vmem:[%s0 + $0xa0] sm:$0xff]
  %v38 = vld [vmem:[%s0 + $0xa8] sm:$0xff]
  %v39 = vld [vmem:[%s0 + $0xb0] sm:$0xf]
  %v40 = vld [vmem:[%s0 + $0xb4] sm:$0xff]
  %v41 = vld [vmem:[%s0 + $0xbc] sm:$0xff]
  %v42 = vld [vmem:[%s0 + $0xc4] sm:$0xff]
  %v43 = vld [vmem:[%s0 + $0xcc] sm:$0xff]
  %v44 = vld [vmem:[%s0 + $0xd4] sm:$0xf]
  %v45 = vld [vmem:[%s0 + $0xd8] sm:$0xff]
  %v46 = vld [vmem:[%s0 + $0xe0] sm:$0xff]
  %v47 = vld [vmem:[%s0 + $0xe8] sm:$0xff]
  %v48 = vld [vmem:[%s0 + $0xf0] sm:$0xff]
  %v49 = vld [vmem:[%s0 + $0xf8] sm:$0xf]
  %v50 = vld [vmem:[%s0 + $0xfc] sm:$0xff]
  %v51 = vld [vmem:[%s0 + $0x104] sm:$0xff]
  %v52 = vld [vmem:[%s0 + $0x10c] sm:$0xff]
  %v53 = vld [vmem:[%s0 + $0x114] sm:$0xff]
  %v54 = vld [vmem:[%s0 + $0x11c] sm:$0xf]
  %v55 = vld [vmem:[%s0 + $0x120] sm:$0xff]
  %v56 = vld [vmem:[%s0 + $0x128] sm:$0xff]
  %v57 = vld [vmem:[%s0 + $0x130] sm:$0xff]
  %v58 = vld [vmem:[%s0 + $0x138] sm:$0xff]
  %v59 = vld [vmem:[%s0 + $0x140] sm:$0xf]
  %v60 = vld [vmem:[%s0 + $0x144] sm:$0xff]
  %v61 = vld [vmem:[%s0 + $0x14c] sm:$0xff]
  %v62 = vld [vmem:[%s0 + $0x154] sm:$0xff]
  %v63 = vld [vmem:[%s0 + $0x15c] sm:$0xff]
  %v64 = vld [vmem:[%s0 + $0x164] sm:$0xf]
  %v65 = vld [vmem:[%s0 + $0x168] sm:$0xff]
  %v66 = vld [vmem:[%s0 + $0x170] sm:$0xff]
  %v67 = vld [vmem:[%s0 + $0x178] sm:$0xff]
  %v68 = vld [vmem:[%s0 + $0x180] sm:$0xff]
  %v69 = vld [vmem:[%s0 + $0x188] sm:$0xf]
  %v70 = vld [vmem:[%s0 + $0x18c] sm:$0xff]
  %v71 = vld [vmem:[%s0 + $0x194] sm:$0xff]
  %v72 = vld [vmem:[%s0 + $0x19c] sm:$0xff]
  %v73 = vld [vmem:[%s0 + $0x1a4] sm:$0xff]
  %v74 = vld [vmem:[%s0 + $0x1ac] sm:$0xf]
  %v75 = vld [vmem:[%s0 + $0x1b0] sm:$0xff]
  %v76 = vld [vmem:[%s0 + $0x1b8] sm:$0xff]
  %v77 = vld [vmem:[%s0 + $0x1c0] sm:$0xff]
  %v78 = vld [vmem:[%s0 + $0x1c8] sm:$0xff]
  %v79 = vld [vmem:[%s0 + $0x1d0] sm:$0xf]
  %v80 = vld [vmem:[%s0 + $0x1d4] sm:$0xff]
  %v81 = vld [vmem:[%s0 + $0x1dc] sm:$0xff]
  %v82 = vld [vmem:[%s0 + $0x1e4] sm:$0xff]
  %v83 = vld [vmem:[%s0 + $0x1ec] sm:$0xff]
  %v84 = vld [vmem:[%s0 + $0x1f4] sm:$0xf]
  %v85 = vld [vmem:[%s0 + $0x1f8] sm:$0xff]
  %v86 = vld [vmem:[%s0 + $0x200] sm:$0xff]
  %v87 = vld [vmem:[%s0 + $0x208] sm:$0xff]
  %v88 = vld [vmem:[%s0 + $0x210] sm:$0xff]
  %v89 = vld [vmem:[%s0 + $0x218] sm:$0xf]
  %v90 = vld [vmem:[%s0 + $0x21c] sm:$0xff]
  %v91 = vld [vmem:[%s0 + $0x224] sm:$0xff]
  %v92 = vld [vmem:[%s0 + $0x22c] sm:$0xff]
  %v93 = vld [vmem:[%s0 + $0x234] sm:$0xff]
  %v94 = vld [vmem:[%s0 + $0x23c] sm:$0xf]
  %v95 = vld [vmem:[%s0 + $0x240] sm:$0xff]
  %v96 = vld [vmem:[%s0 + $0x248] sm:$0xff]
  %v97 = vld [vmem:[%s0 + $0x250] sm:$0xff]
  %v98 = vld [vmem:[%s0 + $0x258] sm:$0xff]
  %v99 = vld [vmem:[%s0 + $0x260] sm:$0xf]
  %v100 = vld [vmem:[%s0 + $0x264] sm:$0xff]
  %v101 = vld [vmem:[%s0 + $0x26c] sm:$0xff]
  %v102 = vld [vmem:[%s0 + $0x274] sm:$0xff]
  %v103 = vld [vmem:[%s0 + $0x27c] sm:$0xff]
  %v104 = vld [vmem:[%s0 + $0x284] sm:$0xf]
  %v105 = vld [vmem:[%s0 + $0x288] sm:$0xff]
  %v106 = vld [vmem:[%s0 + $0x290] sm:$0xff]
  %v107 = vld [vmem:[%s0 + $0x298] sm:$0xff]
  %v108 = vld [vmem:[%s0 + $0x2a0] sm:$0xff]
  %v109 = vld [vmem:[%s0 + $0x2a8] sm:$0xf]
  %v110 = vld [vmem:[%s0 + $0x2ac] sm:$0xff]
  %v111 = vld [vmem:[%s0 + $0x2b4] sm:$0xff]
  %v112 = vld [vmem:[%s0 + $0x2bc] sm:$0xff]
  %v113 = vld [vmem:[%s0 + $0x2c4] sm:$0xff]
  %v114 = vld [vmem:[%s0 + $0x2cc] sm:$0xf]
  %v115 = vld [vmem:[%s0 + $0x2d0] sm:$0xff]
  %v116 = vld [vmem:[%s0 + $0x2d8] sm:$0xff]
  %v117 = vld [vmem:[%s0 + $0x2e0] sm:$0xff]
  %v118 = vld [vmem:[%s0 + $0x2e8] sm:$0xff]
  %v119 = vld [vmem:[%s0 + $0x2f0] sm:$0xf]
  %v120 = vld [vmem:[%s0 + $0x2f4] sm:$0xff]
  %v121 = vld [vmem:[%s0 + $0x2fc] sm:$0xff]
  %v122 = vld [vmem:[%s0 + $0x304] sm:$0xff]
  %v123 = vld [vmem:[%s0 + $0x30c] sm:$0xff]
  %v124 = vld [vmem:[%s0 + $0x314] sm:$0xf]
  %v125 = vld [vmem:[%s0 + $0x318] sm:$0xff]
  %v126 = vld [vmem:[%s0 + $0x320] sm:$0xff]
  %v127 = vld [vmem:[%s0 + $0x328] sm:$0xff]
  %v128 = vld [vmem:[%s0 + $0x330] sm:$0xff]
  %v129 = vld [vmem:[%s0 + $0x338] sm:$0xf]
  %v130 = vld [vmem:[%s0 + $0x33c] sm:$0xff]
  %v131 = vld [vmem:[%s0 + $0x344] sm:$0xff]
  %v132 = vld [vmem:[%s0 + $0x34c] sm:$0xff]
  %v133 = vld [vmem:[%s0 + $0x354] sm:$0xff]
  %v134 = vld [vmem:[%s0 + $0x35c] sm:$0xf]
  %v135 = vld [vmem:[%s1] sm:$0xf]
  %v136 = vld [vmem:[%s1 + $0x4] sm:$0xf]
  %v137 = vld [vmem:[%s1 + $0x8] sm:$0xf]
  %v138 = vld [vmem:[%s1 + $0xc] sm:$0xf]
  %v139 = vld [vmem:[%s1 + $0x10] sm:$0xf]
  %v140 = vld [vmem:[%s1 + $0x14] sm:$0xf]
  %v141 = vld [vmem:[%s1 + $0x18] sm:$0xf]
  %v142 = vld [vmem:[%s1 + $0x1c] sm:$0xf]
  %v143 = vld [vmem:[%s1 + $0x20] sm:$0xf]
  %v144 = vld [vmem:[%s1 + $0x24] sm:$0xf]
  %v145 = vld [vmem:[%s1 + $0x28] sm:$0xf]
  %v146 = vld [vmem:[%s1 + $0x2c] sm:$0xf]
  %v147 = vld [vmem:[%s1 + $0x30] sm:$0xf]
  %v148 = vld [vmem:[%s1 + $0x34] sm:$0xf]
  %v149 = vld [vmem:[%s1 + $0x38] sm:$0xf]
  %v150 = vld [vmem:[%s1 + $0x3c] sm:$0xf]
  %v151 = vld [vmem:[%s1 + $0x40] sm:$0xf]
  %v152 = vld [vmem:[%s1 + $0x44] sm:$0xf]
  %v153 = vld [vmem:[%s1 + $0x48] sm:$0xf]
  %v154 = vld [vmem:[%s1 + $0x4c] sm:$0xf]
  %v155 = vld [vmem:[%s1 + $0x50] sm:$0xf]
  %v156 = vld [vmem:[%s1 + $0x54] sm:$0xf]
  %v157 = vld [vmem:[%s1 + $0x58] sm:$0xf]
  %v158 = vld [vmem:[%s1 + $0x5c] sm:$0xf]
  %v159 = vld [vmem:[%s1 + $0x60] sm:$0xf]
  %v160 = vld [vmem:[%s1 + $0x64] sm:$0xf]
  %v161 = vld [vmem:[%s1 + $0x68] sm:$0xf]
  %v162 = vld [vmem:[%s1 + $0x6c] sm:$0xf]
  %v163 = vld [vmem:[%s1 + $0x70] sm:$0xf]
  %v164 = vld [vmem:[%s1 + $0x74] sm:$0xf]
  %v165 = vld [vmem:[%s1 + $0x78] sm:$0xf]
  %v166 = vld [vmem:[%s1 + $0x7c] sm:$0xf]
  %v167 = vld [vmem:[%s1 + $0x80] sm:$0xf]
  %v168 = vld [vmem:[%s1 + $0x84] sm:$0xf]
  %v169 = vld [vmem:[%s1 + $0x88] sm:$0xf]
  %v170 = vld [vmem:[%s1 + $0x8c] sm:$0xf]
  %v171 = vld [vmem:[%s1 + $0x90] sm:$0xf]
  %v172 = vld [vmem:[%s1 + $0x94] sm:$0xf]
  %v173 = vld [vmem:[%s1 + $0x98] sm:$0xf]
  %v174 = vld [vmem:[%s1 + $0x9c] sm:$0xf]
  %v175 = vld [vmem:[%s1 + $0xa0] sm:$0xf]
  %v176 = vld [vmem:[%s1 + $0xa4] sm:$0xf]
  %v177 = vld [vmem:[%s1 + $0xa8] sm:$0xf]
  %v178 = vld [vmem:[%s1 + $0xac] sm:$0xf]
  %v179 = vld [vmem:[%s1 + $0xb0] sm:$0xf]
  %v180 = vld [vmem:[%s1 + $0xb4] sm:$0xf]
  %v181 = vld [vmem:[%s1 + $0xb8] sm:$0xf]
  %v182 = vld [vmem:[%s1 + $0xbc] sm:$0xf]
  %v183 = vld [vmem:[%s1 + $0xc0] sm:$0xf]
  %v184 = vld [vmem:[%s1 + $0xc4] sm:$0xf]
  %v185 = vld [vmem:[%s1 + $0xc8] sm:$0xf]
  %v186 = vld [vmem:[%s1 + $0xcc] sm:$0xf]
  %v187 = vld [vmem:[%s1 + $0xd0] sm:$0xf]
  %v188 = vld [vmem:[%s1 + $0xd4] sm:$0xf]
  %v189 = vld [vmem:[%s1 + $0xd8] sm:$0xf]
  %v190 = vld [vmem:[%s1 + $0xdc] sm:$0xf]
  %v191 = vld [vmem:[%s1 + $0xe0] sm:$0xf]
  %v192 = vld [vmem:[%s1 + $0xe4] sm:$0xf]
  %v193 = vld [vmem:[%s1 + $0xe8] sm:$0xf]
  %v194 = vld [vmem:[%s1 + $0xec] sm:$0xf]
  %v195 = vld [vmem:[%s1 + $0xf0] sm:$0xf]
  %v196 = vld [vmem:[%s1 + $0xf4] sm:$0xf]
  %v197 = vld [vmem:[%s1 + $0xf8] sm:$0xf]
  %v198 = vld [vmem:[%s1 + $0xfc] sm:$0xf]
  %v199 = vld [vmem:[%s1 + $0x100] sm:$0xf]
  %v200 = vld [vmem:[%s1 + $0x104] sm:$0xf]
  %v201 = vld [vmem:[%s1 + $0x108] sm:$0xf]
  %v202 = vld [vmem:[%s1 + $0x10c] sm:$0xf]
  %v203 = vld [vmem:[%s1 + $0x110] sm:$0xf]
  %v204 = vld [vmem:[%s1 + $0x114] sm:$0xf]
  %v205 = vld [vmem:[%s1 + $0x118] sm:$0xf]
  %v206 = vld [vmem:[%s1 + $0x11c] sm:$0xf]
  %v207 = vld [vmem:[%s1 + $0x120] sm:$0xf]
  %v208 = vld [vmem:[%s1 + $0x124] sm:$0xf]
  %v209 = vld [vmem:[%s1 + $0x128] sm:$0xf]
  %v210 = vld [vmem:[%s1 + $0x12c] sm:$0xf]
  %v211 = vld [vmem:[%s1 + $0x130] sm:$0xf]
  %v212 = vld [vmem:[%s1 + $0x134] sm:$0xf]
  %v213 = vld [vmem:[%s1 + $0x138] sm:$0xf]
  %v214 = vld [vmem:[%s1 + $0x13c] sm:$0xf]
  %v215 = vld [vmem:[%s1 + $0x140] sm:$0xf]
  %v216 = vld [vmem:[%s1 + $0x144] sm:$0xf]
  %v217 = vld [vmem:[%s1 + $0x148] sm:$0xf]
  %v218 = vld [vmem:[%s1 + $0x14c] sm:$0xf]
  %v219 = vld [vmem:[%s1 + $0x150] sm:$0xf]
  %v220 = vld [vmem:[%s1 + $0x154] sm:$0xf]
  %v221 = vld [vmem:[%s1 + $0x158] sm:$0xf]
  %v222 = vld [vmem:[%s1 + $0x15c] sm:$0xf]
  %v223 = vld [vmem:[%s1 + $0x160] sm:$0xf]
  %v224 = vld [vmem:[%s1 + $0x164] sm:$0xf]
  %v225 = vld [vmem:[%s1 + $0x168] sm:$0xf]
  %v226 = vld [vmem:[%s1 + $0x16c] sm:$0xf]
  %v227 = vld [vmem:[%s1 + $0x170] sm:$0xf]
  %v228 = vld [vmem:[%s1 + $0x174] sm:$0xf]
  %v229 = vld [vmem:[%s1 + $0x178] sm:$0xf]
  %v230 = vld [vmem:[%s1 + $0x17c] sm:$0xf]
  %v231 = vld [vmem:[%s1 + $0x180] sm:$0xf]
  %v232 = vld [vmem:[%s1 + $0x184] sm:$0xf]
  %v233 = vld [vmem:[%s1 + $0x188] sm:$0xf]
  %v234 = vld [vmem:[%s1 + $0x18c] sm:$0xf]
  %v235 = vld [vmem:[%s1 + $0x190] sm:$0xf]
  %v236 = vld [vmem:[%s1 + $0x194] sm:$0xf]
  %v237 = vld [vmem:[%s1 + $0x198] sm:$0xf]
  %v238 = vld [vmem:[%s1 + $0x19c] sm:$0xf]
  %v239 = vld [vmem:[%s1 + $0x1a0] sm:$0xf]
  %v240 = vld [vmem:[%s1 + $0x1a4] sm:$0xf]
  %v241 = vld [vmem:[%s1 + $0x1a8] sm:$0xf]
  %v242 = vld [vmem:[%s1 + $0x1ac] sm:$0xf]
  %v243 = vld [vmem:[%s1 + $0x1b0] sm:$0xf]
  %v244 = vld [vmem:[%s1 + $0x1b4] sm:$0xf]
  %v245 = vld [vmem:[%s1 + $0x1b8] sm:$0xf]
  %v246 = vld [vmem:[%s1 + $0x1bc] sm:$0xf]
  %v247 = vld [vmem:[%s1 + $0x1c0] sm:$0xf]
  %v248 = vld [vmem:[%s1 + $0x1c4] sm:$0xf]
  %v249 = vld [vmem:[%s1 + $0x1c8] sm:$0xf]
  %v250 = vld [vmem:[%s1 + $0x1cc] sm:$0xf]
  %v251 = vld [vmem:[%s1 + $0x1d0] sm:$0xf]
  %v252 = vld [vmem:[%s1 + $0x1d4] sm:$0xf]
  %v253 = vld [vmem:[%s1 + $0x1d8] sm:$0xf]
  %v254 = vld [vmem:[%s1 + $0x1dc] sm:$0xf]
  %v255 = vld [vmem:[%s1 + $0x1e0] sm:$0xf]
  %v256 = vld [vmem:[%s1 + $0x1e4] sm:$0xf]
  %v257 = vld [vmem:[%s1 + $0x1e8] sm:$0xf]
  %v258 = vld [vmem:[%s1 + $0x1ec] sm:$0xf]
  %v259 = vld [vmem:[%s1 + $0x1f0] sm:$0xf]
  %v260 = vld [vmem:[%s1 + $0x1f4] sm:$0xf]
  %v261 = vld [vmem:[%s1 + $0x1f8] sm:$0xf]
  %v262 = vld [vmem:[%s1 + $0x1fc] sm:$0xf]
  %v263 = vld [vmem:[%s1 + $0x200] sm:$0xf]
  %v264 = vld [vmem:[%s1 + $0x204] sm:$0xf]
  %v265 = vld [vmem:[%s1 + $0x208] sm:$0xf]
  %v266 = vld [vmem:[%s1 + $0x20c] sm:$0xf]
  %v267 = vld [vmem:[%s1 + $0x210] sm:$0xf]
  %v268 = vld [vmem:[%s1 + $0x214] sm:$0xf]
  %v269 = vld [vmem:[%s1 + $0x218] sm:$0xf]
  %v270 = vld [vmem:[%s1 + $0x21c] sm:$0xf]
  %v271 = vld [vmem:[%s1 + $0x220] sm:$0xf]
  %v272 = vld [vmem:[%s1 + $0x224] sm:$0xf]
  %v273 = vld [vmem:[%s1 + $0x228] sm:$0xf]
  %v274 = vld [vmem:[%s1 + $0x22c] sm:$0xf]
  %v275 = vld [vmem:[%s1 + $0x230] sm:$0xf]
  %v276 = vld [vmem:[%s1 + $0x234] sm:$0xf]
  %v277 = vld [vmem:[%s1 + $0x238] sm:$0xf]
  %v278 = vld [vmem:[%s1 + $0x23c] sm:$0xf]
  %v279 = vld [vmem:[%s2] sm:$0x1]
  %v281 = vlaneseq
  %v282 = vshrl.u32 %v281, 7
  %v283 = vsub.s32 0, %v282
  %v284 = vrot.slane %v279, %v283
  %v406 = vunpack.c.l.b16 %v15
  %v407 = vunpack.c.h.b16 %v15
  %v408 = vunpack.c.l.b16 %v16
  %v409 = vunpack.c.h.b16 %v16
  %v410 = vunpack.c.l.b16 %v17
  %v411 = vunpack.c.h.b16 %v17
  %v412 = vunpack.c.l.b16 %v18
  %v413 = vunpack.c.h.b16 %v18
  %v414 = vunpack.c.l.b16 %v19
  %v415 = vunpack.c.l.b16 %v20
  %v416 = vunpack.c.h.b16 %v20
  %v417 = vunpack.c.l.b16 %v21
  %v418 = vunpack.c.h.b16 %v21
  %v419 = vunpack.c.l.b16 %v22
  %v420 = vunpack.c.h.b16 %v22
  %v421 = vunpack.c.l.b16 %v23
  %v422 = vunpack.c.h.b16 %v23
  %v423 = vunpack.c.l.b16 %v24
  %v424 = vunpack.c.l.b16 %v25
  %v425 = vunpack.c.h.b16 %v25
  %v426 = vunpack.c.l.b16 %v26
  %v427 = vunpack.c.h.b16 %v26
  %v428 = vunpack.c.l.b16 %v27
  %v429 = vunpack.c.h.b16 %v27
  %v430 = vunpack.c.l.b16 %v28
  %v431 = vunpack.c.h.b16 %v28
  %v432 = vunpack.c.l.b16 %v29
  %v433 = vunpack.c.l.b16 %v30
  %v434 = vunpack.c.h.b16 %v30
  %v435 = vunpack.c.l.b16 %v31
  %v436 = vunpack.c.h.b16 %v31
  %v437 = vunpack.c.l.b16 %v32
  %v438 = vunpack.c.h.b16 %v32
  %v439 = vunpack.c.l.b16 %v33
  %v440 = vunpack.c.h.b16 %v33
  %v441 = vunpack.c.l.b16 %v34
  %v442 = vunpack.c.l.b16 %v35
  %v443 = vunpack.c.h.b16 %v35
  %v444 = vunpack.c.l.b16 %v36
  %v445 = vunpack.c.h.b16 %v36
  %v446 = vunpack.c.l.b16 %v37
  %v447 = vunpack.c.h.b16 %v37
  %v448 = vunpack.c.l.b16 %v38
  %v449 = vunpack.c.h.b16 %v38
  %v450 = vunpack.c.l.b16 %v39
  %v451 = vunpack.c.l.b16 %v40
  %v452 = vunpack.c.h.b16 %v40
  %v453 = vunpack.c.l.b16 %v41
  %v454 = vunpack.c.h.b16 %v41
  %v455 = vunpack.c.l.b16 %v42
  %v456 = vunpack.c.h.b16 %v42
  %v457 = vunpack.c.l.b16 %v43
  %v458 = vunpack.c.h.b16 %v43
  %v459 = vunpack.c.l.b16 %v44
  %v460 = vunpack.c.l.b16 %v45
  %v461 = vunpack.c.h.b16 %v45
  %v462 = vunpack.c.l.b16 %v46
  %v463 = vunpack.c.h.b16 %v46
  %v464 = vunpack.c.l.b16 %v47
  %v465 = vunpack.c.h.b16 %v47
  %v466 = vunpack.c.l.b16 %v48
  %v467 = vunpack.c.h.b16 %v48
  %v468 = vunpack.c.l.b16 %v49
  %v469 = vunpack.c.l.b16 %v50
  %v470 = vunpack.c.h.b16 %v50
  %v471 = vunpack.c.l.b16 %v51
  %v472 = vunpack.c.h.b16 %v51
  %v473 = vunpack.c.l.b16 %v52
  %v474 = vunpack.c.h.b16 %v52
  %v475 = vunpack.c.l.b16 %v53
  %v476 = vunpack.c.h.b16 %v53
  %v477 = vunpack.c.l.b16 %v54
  %v478 = vunpack.c.l.b16 %v55
  %v479 = vunpack.c.h.b16 %v55
  %v480 = vunpack.c.l.b16 %v56
  %v481 = vunpack.c.h.b16 %v56
  %v482 = vunpack.c.l.b16 %v57
  %v483 = vunpack.c.h.b16 %v57
  %v484 = vunpack.c.l.b16 %v58
  %v485 = vunpack.c.h.b16 %v58
  %v486 = vunpack.c.l.b16 %v59
  %v487 = vunpack.c.l.b16 %v60
  %v488 = vunpack.c.h.b16 %v60
  %v489 = vunpack.c.l.b16 %v61
  %v490 = vunpack.c.h.b16 %v61
  %v491 = vunpack.c.l.b16 %v62
  %v492 = vunpack.c.h.b16 %v62
  %v493 = vunpack.c.l.b16 %v63
  %v494 = vunpack.c.h.b16 %v63
  %v495 = vunpack.c.l.b16 %v64
  %v496 = vunpack.c.l.b16 %v65
  %v497 = vunpack.c.h.b16 %v65
  %v498 = vunpack.c.l.b16 %v66
  %v499 = vunpack.c.h.b16 %v66
  %v500 = vunpack.c.l.b16 %v67
  %v501 = vunpack.c.h.b16 %v67
  %v502 = vunpack.c.l.b16 %v68
  %v503 = vunpack.c.h.b16 %v68
  %v504 = vunpack.c.l.b16 %v69
  %v505 = vunpack.c.l.b16 %v70
  %v506 = vunpack.c.h.b16 %v70
  %v507 = vunpack.c.l.b16 %v71
  %v508 = vunpack.c.h.b16 %v71
  %v509 = vunpack.c.l.b16 %v72
  %v510 = vunpack.c.h.b16 %v72
  %v511 = vunpack.c.l.b16 %v73
  %v512 = vunpack.c.h.b16 %v73
  %v513 = vunpack.c.l.b16 %v74
  %v514 = vunpack.c.l.b16 %v75
  %v515 = vunpack.c.h.b16 %v75
  %v516 = vunpack.c.l.b16 %v76
  %v517 = vunpack.c.h.b16 %v76
  %v518 = vunpack.c.l.b16 %v77
  %v519 = vunpack.c.h.b16 %v77
  %v520 = vunpack.c.l.b16 %v78
  %v521 = vunpack.c.h.b16 %v78
  %v522 = vunpack.c.l.b16 %v79
  %v523 = vunpack.c.l.b16 %v80
  %v524 = vunpack.c.h.b16 %v80
  %v525 = vunpack.c.l.b16 %v81
  %v526 = vunpack.c.h.b16 %v81
  %v527 = vunpack.c.l.b16 %v82
  %v528 = vunpack.c.h.b16 %v82
  %v529 = vunpack.c.l.b16 %v83
  %v530 = vunpack.c.h.b16 %v83
  %v531 = vunpack.c.l.b16 %v84
  %v532 = vunpack.c.l.b16 %v85
  %v533 = vunpack.c.h.b16 %v85
  %v534 = vunpack.c.l.b16 %v86
  %v535 = vunpack.c.h.b16 %v86
  %v536 = vunpack.c.l.b16 %v87
  %v537 = vunpack.c.h.b16 %v87
  %v538 = vunpack.c.l.b16 %v88
  %v539 = vunpack.c.h.b16 %v88
  %v540 = vunpack.c.l.b16 %v89
  %v541 = vunpack.c.l.b16 %v90
  %v542 = vunpack.c.h.b16 %v90
  %v543 = vunpack.c.l.b16 %v91
  %v544 = vunpack.c.h.b16 %v91
  %v545 = vunpack.c.l.b16 %v92
  %v546 = vunpack.c.h.b16 %v92
  %v547 = vunpack.c.l.b16 %v93
  %v548 = vunpack.c.h.b16 %v93
  %v549 = vunpack.c.l.b16 %v94
  %v550 = vunpack.c.l.b16 %v95
  %v551 = vunpack.c.h.b16 %v95
  %v552 = vunpack.c.l.b16 %v96
  %v553 = vunpack.c.h.b16 %v96
  %v554 = vunpack.c.l.b16 %v97
  %v555 = vunpack.c.h.b16 %v97
  %v556 = vunpack.c.l.b16 %v98
  %v557 = vunpack.c.h.b16 %v98
  %v558 = vunpack.c.l.b16 %v99
  %v559 = vunpack.c.l.b16 %v100
  %v560 = vunpack.c.h.b16 %v100
  %v561 = vunpack.c.l.b16 %v101
  %v562 = vunpack.c.h.b16 %v101
  %v563 = vunpack.c.l.b16 %v102
  %v564 = vunpack.c.h.b16 %v102
  %v565 = vunpack.c.l.b16 %v103
  %v566 = vunpack.c.h.b16 %v103
  %v567 = vunpack.c.l.b16 %v104
  %v568 = vunpack.c.l.b16 %v105
  %v569 = vunpack.c.h.b16 %v105
  %v570 = vunpack.c.l.b16 %v106
  %v571 = vunpack.c.h.b16 %v106
  %v572 = vunpack.c.l.b16 %v107
  %v573 = vunpack.c.h.b16 %v107
  %v574 = vunpack.c.l.b16 %v108
  %v575 = vunpack.c.h.b16 %v108
  %v576 = vunpack.c.l.b16 %v109
  %v577 = vunpack.c.l.b16 %v110
  %v578 = vunpack.c.h.b16 %v110
  %v579 = vunpack.c.l.b16 %v111
  %v580 = vunpack.c.h.b16 %v111
  %v581 = vunpack.c.l.b16 %v112
  %v582 = vunpack.c.h.b16 %v112
  %v583 = vunpack.c.l.b16 %v113
  %v584 = vunpack.c.h.b16 %v113
  %v585 = vunpack.c.l.b16 %v114
  %v586 = vunpack.c.l.b16 %v115
  %v587 = vunpack.c.h.b16 %v115
  %v588 = vunpack.c.l.b16 %v116
  %v589 = vunpack.c.h.b16 %v116
  %v590 = vunpack.c.l.b16 %v117
  %v591 = vunpack.c.h.b16 %v117
  %v592 = vunpack.c.l.b16 %v118
  %v593 = vunpack.c.h.b16 %v118
  %v594 = vunpack.c.l.b16 %v119
  %v595 = vunpack.c.l.b16 %v120
  %v596 = vunpack.c.h.b16 %v120
  %v597 = vunpack.c.l.b16 %v121
  %v598 = vunpack.c.h.b16 %v121
  %v599 = vunpack.c.l.b16 %v122
  %v600 = vunpack.c.h.b16 %v122
  %v601 = vunpack.c.l.b16 %v123
  %v602 = vunpack.c.h.b16 %v123
  %v603 = vunpack.c.l.b16 %v124
  %v604 = vunpack.c.l.b16 %v125
  %v605 = vunpack.c.h.b16 %v125
  %v606 = vunpack.c.l.b16 %v126
  %v607 = vunpack.c.h.b16 %v126
  %v608 = vunpack.c.l.b16 %v127
  %v609 = vunpack.c.h.b16 %v127
  %v610 = vunpack.c.l.b16 %v128
  %v611 = vunpack.c.h.b16 %v128
  %v612 = vunpack.c.l.b16 %v129
  %v613 = vunpack.c.l.b16 %v130
  %v614 = vunpack.c.h.b16 %v130
  %v615 = vunpack.c.l.b16 %v131
  %v616 = vunpack.c.h.b16 %v131
  %v617 = vunpack.c.l.b16 %v132
  %v618 = vunpack.c.h.b16 %v132
  %v619 = vunpack.c.l.b16 %v133
  %v620 = vunpack.c.h.b16 %v133
  %v621 = vunpack.c.l.b16 %v134
  %v622 = vpack.c.b16 %v415, %v406
  %v623 = vpack.c.b16 %v416, %v407
  %v624 = vpack.c.b16 %v417, %v408
  %v625 = vpack.c.b16 %v418, %v409
  %v626 = vpack.c.b16 %v419, %v410
  %v627 = vpack.c.b16 %v420, %v411
  %v628 = vpack.c.b16 %v421, %v412
  %v629 = vpack.c.b16 %v422, %v413
  %v630 = vpack.c.b16 %v423, %v414
  %v631 = vpack.c.b16 %v433, %v424
  %v632 = vpack.c.b16 %v434, %v425
  %v633 = vpack.c.b16 %v435, %v426
  %v634 = vpack.c.b16 %v436, %v427
  %v635 = vpack.c.b16 %v437, %v428
  %v636 = vpack.c.b16 %v438, %v429
  %v637 = vpack.c.b16 %v439, %v430
  %v638 = vpack.c.b16 %v440, %v431
  %v639 = vpack.c.b16 %v441, %v432
  %v640 = vpack.c.b16 %v451, %v442
  %v641 = vpack.c.b16 %v452, %v443
  %v642 = vpack.c.b16 %v453, %v444
  %v643 = vpack.c.b16 %v454, %v445
  %v644 = vpack.c.b16 %v455, %v446
  %v645 = vpack.c.b16 %v456, %v447
  %v646 = vpack.c.b16 %v457, %v448
  %v647 = vpack.c.b16 %v458, %v449
  %v648 = vpack.c.b16 %v459, %v450
  %v649 = vpack.c.b16 %v469, %v460
  %v650 = vpack.c.b16 %v470, %v461
  %v651 = vpack.c.b16 %v471, %v462
  %v652 = vpack.c.b16 %v472, %v463
  %v653 = vpack.c.b16 %v473, %v464
  %v654 = vpack.c.b16 %v474, %v465
  %v655 = vpack.c.b16 %v475, %v466
  %v656 = vpack.c.b16 %v476, %v467
  %v657 = vpack.c.b16 %v477, %v468
  %v658 = vpack.c.b16 %v487, %v478
  %v659 = vpack.c.b16 %v488, %v479
  %v660 = vpack.c.b16 %v489, %v480
  %v661 = vpack.c.b16 %v490, %v481
  %v662 = vpack.c.b16 %v491, %v482
  %v663 = vpack.c.b16 %v492, %v483
  %v664 = vpack.c.b16 %v493, %v484
  %v665 = vpack.c.b16 %v494, %v485
  %v666 = vpack.c.b16 %v495, %v486
  %v667 = vpack.c.b16 %v505, %v496
  %v668 = vpack.c.b16 %v506, %v497
  %v669 = vpack.c.b16 %v507, %v498
  %v670 = vpack.c.b16 %v508, %v499
  %v671 = vpack.c.b16 %v509, %v500
  %v672 = vpack.c.b16 %v510, %v501
  %v673 = vpack.c.b16 %v511, %v502
  %v674 = vpack.c.b16 %v512, %v503
  %v675 = vpack.c.b16 %v513, %v504
  %v676 = vpack.c.b16 %v523, %v514
  %v677 = vpack.c.b16 %v524, %v515
  %v678 = vpack.c.b16 %v525, %v516
  %v679 = vpack.c.b16 %v526, %v517
  %v680 = vpack.c.b16 %v527, %v518
  %v681 = vpack.c.b16 %v528, %v519
  %v682 = vpack.c.b16 %v529, %v520
  %v683 = vpack.c.b16 %v530, %v521
  %v684 = vpack.c.b16 %v531, %v522
  %v685 = vpack.c.b16 %v541, %v532
  %v686 = vpack.c.b16 %v542, %v533
  %v687 = vpack.c.b16 %v543, %v534
  %v688 = vpack.c.b16 %v544, %v535
  %v689 = vpack.c.b16 %v545, %v536
  %v690 = vpack.c.b16 %v546, %v537
  %v691 = vpack.c.b16 %v547, %v538
  %v692 = vpack.c.b16 %v548, %v539
  %v693 = vpack.c.b16 %v549, %v540
  %v694 = vpack.c.b16 %v559, %v550
  %v695 = vpack.c.b16 %v560, %v551
  %v696 = vpack.c.b16 %v561, %v552
  %v697 = vpack.c.b16 %v562, %v553
  %v698 = vpack.c.b16 %v563, %v554
  %v699 = vpack.c.b16 %v564, %v555
  %v700 = vpack.c.b16 %v565, %v556
  %v701 = vpack.c.b16 %v566, %v557
  %v702 = vpack.c.b16 %v567, %v558
  %v703 = vpack.c.b16 %v577, %v568
  %v704 = vpack.c.b16 %v578, %v569
  %v705 = vpack.c.b16 %v579, %v570
  %v706 = vpack.c.b16 %v580, %v571
  %v707 = vpack.c.b16 %v581, %v572
  %v708 = vpack.c.b16 %v582, %v573
  %v709 = vpack.c.b16 %v583, %v574
  %v710 = vpack.c.b16 %v584, %v575
  %v711 = vpack.c.b16 %v585, %v576
  %v712 = vpack.c.b16 %v595, %v586
  %v713 = vpack.c.b16 %v596, %v587
  %v714 = vpack.c.b16 %v597, %v588
  %v715 = vpack.c.b16 %v598, %v589
  %v716 = vpack.c.b16 %v599, %v590
  %v717 = vpack.c.b16 %v600, %v591
  %v718 = vpack.c.b16 %v601, %v592
  %v719 = vpack.c.b16 %v602, %v593
  %v720 = vpack.c.b16 %v603, %v594
  %v721 = vpack.c.b16 %v613, %v604
  %v722 = vpack.c.b16 %v614, %v605
  %v723 = vpack.c.b16 %v615, %v606
  %v724 = vpack.c.b16 %v616, %v607
  %v725 = vpack.c.b16 %v617, %v608
  %v726 = vpack.c.b16 %v618, %v609
  %v727 = vpack.c.b16 %v619, %v610
  %v728 = vpack.c.b16 %v620, %v611
  %v729 = vpack.c.b16 %v621, %v612
  %v982 = vunpack.c.l.b16 %v135
  %v983 = vunpack.c.l.b16 %v136
  %v984 = vunpack.c.l.b16 %v137
  %v985 = vunpack.c.l.b16 %v138
  %v986 = vunpack.c.l.b16 %v139
  %v987 = vunpack.c.l.b16 %v140
  %v988 = vunpack.c.l.b16 %v141
  %v989 = vunpack.c.l.b16 %v142
  %v990 = vunpack.c.l.b16 %v143
  %v991 = vunpack.c.l.b16 %v144
  %v992 = vunpack.c.l.b16 %v145
  %v993 = vunpack.c.l.b16 %v146
  %v994 = vunpack.c.l.b16 %v147
  %v995 = vunpack.c.l.b16 %v148
  %v996 = vunpack.c.l.b16 %v149
  %v997 = vunpack.c.l.b16 %v150
  %v998 = vunpack.c.l.b16 %v151
  %v999 = vunpack.c.l.b16 %v152
  %v1000 = vunpack.c.l.b16 %v153
  %v1001 = vunpack.c.l.b16 %v154
  %v1002 = vunpack.c.l.b16 %v155
  %v1003 = vunpack.c.l.b16 %v156
  %v1004 = vunpack.c.l.b16 %v157
  %v1005 = vunpack.c.l.b16 %v158
  %v1006 = vunpack.c.l.b16 %v159
  %v1007 = vunpack.c.l.b16 %v160
  %v1008 = vunpack.c.l.b16 %v161
  %v1009 = vunpack.c.l.b16 %v162
  %v1010 = vunpack.c.l.b16 %v163
  %v1011 = vunpack.c.l.b16 %v164
  %v1012 = vunpack.c.l.b16 %v165
  %v1013 = vunpack.c.l.b16 %v166
  %v1014 = vunpack.c.l.b16 %v167
  %v1015 = vunpack.c.l.b16 %v168
  %v1016 = vunpack.c.l.b16 %v169
  %v1017 = vunpack.c.l.b16 %v170
  %v1018 = vunpack.c.l.b16 %v171
  %v1019 = vunpack.c.l.b16 %v172
  %v1020 = vunpack.c.l.b16 %v173
  %v1021 = vunpack.c.l.b16 %v174
  %v1022 = vunpack.c.l.b16 %v175
  %v1023 = vunpack.c.l.b16 %v176
  %v1024 = vunpack.c.l.b16 %v177
  %v1025 = vunpack.c.l.b16 %v178
  %v1026 = vunpack.c.l.b16 %v179
  %v1027 = vunpack.c.l.b16 %v180
  %v1028 = vunpack.c.l.b16 %v181
  %v1029 = vunpack.c.l.b16 %v182
  %v1030 = vunpack.c.l.b16 %v183
  %v1031 = vunpack.c.l.b16 %v184
  %v1032 = vunpack.c.l.b16 %v185
  %v1033 = vunpack.c.l.b16 %v186
  %v1034 = vunpack.c.l.b16 %v187
  %v1035 = vunpack.c.l.b16 %v188
  %v1036 = vunpack.c.l.b16 %v189
  %v1037 = vunpack.c.l.b16 %v190
  %v1038 = vunpack.c.l.b16 %v191
  %v1039 = vunpack.c.l.b16 %v192
  %v1040 = vunpack.c.l.b16 %v193
  %v1041 = vunpack.c.l.b16 %v194
  %v1042 = vunpack.c.l.b16 %v195
  %v1043 = vunpack.c.l.b16 %v196
  %v1044 = vunpack.c.l.b16 %v197
  %v1045 = vunpack.c.l.b16 %v198
  %v1046 = vunpack.c.l.b16 %v199
  %v1047 = vunpack.c.l.b16 %v200
  %v1048 = vunpack.c.l.b16 %v201
  %v1049 = vunpack.c.l.b16 %v202
  %v1050 = vunpack.c.l.b16 %v203
  %v1051 = vunpack.c.l.b16 %v204
  %v1052 = vunpack.c.l.b16 %v205
  %v1053 = vunpack.c.l.b16 %v206
  %v1054 = vunpack.c.l.b16 %v207
  %v1055 = vunpack.c.l.b16 %v208
  %v1056 = vunpack.c.l.b16 %v209
  %v1057 = vunpack.c.l.b16 %v210
  %v1058 = vunpack.c.l.b16 %v211
  %v1059 = vunpack.c.l.b16 %v212
  %v1060 = vunpack.c.l.b16 %v213
  %v1061 = vunpack.c.l.b16 %v214
  %v1062 = vunpack.c.l.b16 %v215
  %v1063 = vunpack.c.l.b16 %v216
  %v1064 = vunpack.c.l.b16 %v217
  %v1065 = vunpack.c.l.b16 %v218
  %v1066 = vunpack.c.l.b16 %v219
  %v1067 = vunpack.c.l.b16 %v220
  %v1068 = vunpack.c.l.b16 %v221
  %v1069 = vunpack.c.l.b16 %v222
  %v1070 = vunpack.c.l.b16 %v223
  %v1071 = vunpack.c.l.b16 %v224
  %v1072 = vunpack.c.l.b16 %v225
  %v1073 = vunpack.c.l.b16 %v226
  %v1074 = vunpack.c.l.b16 %v227
  %v1075 = vunpack.c.l.b16 %v228
  %v1076 = vunpack.c.l.b16 %v229
  %v1077 = vunpack.c.l.b16 %v230
  %v1078 = vunpack.c.l.b16 %v231
  %v1079 = vunpack.c.l.b16 %v232
  %v1080 = vunpack.c.l.b16 %v233
  %v1081 = vunpack.c.l.b16 %v234
  %v1082 = vunpack.c.l.b16 %v235
  %v1083 = vunpack.c.l.b16 %v236
  %v1084 = vunpack.c.l.b16 %v237
  %v1085 = vunpack.c.l.b16 %v238
  %v1086 = vunpack.c.l.b16 %v239
  %v1087 = vunpack.c.l.b16 %v240
  %v1088 = vunpack.c.l.b16 %v241
  %v1089 = vunpack.c.l.b16 %v242
  %v1090 = vunpack.c.l.b16 %v243
  %v1091 = vunpack.c.l.b16 %v244
  %v1092 = vunpack.c.l.b16 %v245
  %v1093 = vunpack.c.l.b16 %v246
  %v1094 = vunpack.c.l.b16 %v247
  %v1095 = vunpack.c.l.b16 %v248
  %v1096 = vunpack.c.l.b16 %v249
  %v1097 = vunpack.c.l.b16 %v250
  %v1098 = vunpack.c.l.b16 %v251
  %v1099 = vunpack.c.l.b16 %v252
  %v1100 = vunpack.c.l.b16 %v253
  %v1101 = vunpack.c.l.b16 %v254
  %v1102 = vunpack.c.l.b16 %v255
  %v1103 = vunpack.c.l.b16 %v256
  %v1104 = vunpack.c.l.b16 %v257
  %v1105 = vunpack.c.l.b16 %v258
  %v1106 = vunpack.c.l.b16 %v259
  %v1107 = vunpack.c.l.b16 %v260
  %v1108 = vunpack.c.l.b16 %v261
  %v1109 = vunpack.c.l.b16 %v262
  %v1110 = vunpack.c.l.b16 %v263
  %v1111 = vunpack.c.l.b16 %v264
  %v1112 = vunpack.c.l.b16 %v265
  %v1113 = vunpack.c.l.b16 %v266
  %v1114 = vunpack.c.l.b16 %v267
  %v1115 = vunpack.c.l.b16 %v268
  %v1116 = vunpack.c.l.b16 %v269
  %v1117 = vunpack.c.l.b16 %v270
  %v1118 = vunpack.c.l.b16 %v271
  %v1119 = vunpack.c.l.b16 %v272
  %v1120 = vunpack.c.l.b16 %v273
  %v1121 = vunpack.c.l.b16 %v274
  %v1122 = vunpack.c.l.b16 %v275
  %v1123 = vunpack.c.l.b16 %v276
  %v1124 = vunpack.c.l.b16 %v277
  %v1125 = vunpack.c.l.b16 %v278
  %v1126 = vpack.c.b16 %v983, %v982
  %v1127 = vpack.c.b16 %v985, %v984
  %v1128 = vpack.c.b16 %v987, %v986
  %v1129 = vpack.c.b16 %v989, %v988
  %v1130 = vpack.c.b16 %v991, %v990
  %v1131 = vpack.c.b16 %v993, %v992
  %v1132 = vpack.c.b16 %v995, %v994
  %v1133 = vpack.c.b16 %v997, %v996
  %v1134 = vpack.c.b16 %v999, %v998
  %v1135 = vpack.c.b16 %v1001, %v1000
  %v1136 = vpack.c.b16 %v1003, %v1002
  %v1137 = vpack.c.b16 %v1005, %v1004
  %v1138 = vpack.c.b16 %v1007, %v1006
  %v1139 = vpack.c.b16 %v1009, %v1008
  %v1140 = vpack.c.b16 %v1011, %v1010
  %v1141 = vpack.c.b16 %v1013, %v1012
  %v1142 = vpack.c.b16 %v1015, %v1014
  %v1143 = vpack.c.b16 %v1017, %v1016
  %v1144 = vpack.c.b16 %v1019, %v1018
  %v1145 = vpack.c.b16 %v1021, %v1020
  %v1146 = vpack.c.b16 %v1023, %v1022
  %v1147 = vpack.c.b16 %v1025, %v1024
  %v1148 = vpack.c.b16 %v1027, %v1026
  %v1149 = vpack.c.b16 %v1029, %v1028
  %v1150 = vpack.c.b16 %v1031, %v1030
  %v1151 = vpack.c.b16 %v1033, %v1032
  %v1152 = vpack.c.b16 %v1035, %v1034
  %v1153 = vpack.c.b16 %v1037, %v1036
  %v1154 = vpack.c.b16 %v1039, %v1038
  %v1155 = vpack.c.b16 %v1041, %v1040
  %v1156 = vpack.c.b16 %v1043, %v1042
  %v1157 = vpack.c.b16 %v1045, %v1044
  %v1158 = vpack.c.b16 %v1047, %v1046
  %v1159 = vpack.c.b16 %v1049, %v1048
  %v1160 = vpack.c.b16 %v1051, %v1050
  %v1161 = vpack.c.b16 %v1053, %v1052
  %v1162 = vpack.c.b16 %v1055, %v1054
  %v1163 = vpack.c.b16 %v1057, %v1056
  %v1164 = vpack.c.b16 %v1059, %v1058
  %v1165 = vpack.c.b16 %v1061, %v1060
  %v1166 = vpack.c.b16 %v1063, %v1062
  %v1167 = vpack.c.b16 %v1065, %v1064
  %v1168 = vpack.c.b16 %v1067, %v1066
  %v1169 = vpack.c.b16 %v1069, %v1068
  %v1170 = vpack.c.b16 %v1071, %v1070
  %v1171 = vpack.c.b16 %v1073, %v1072
  %v1172 = vpack.c.b16 %v1075, %v1074
  %v1173 = vpack.c.b16 %v1077, %v1076
  %v1174 = vpack.c.b16 %v1079, %v1078
  %v1175 = vpack.c.b16 %v1081, %v1080
  %v1176 = vpack.c.b16 %v1083, %v1082
  %v1177 = vpack.c.b16 %v1085, %v1084
  %v1178 = vpack.c.b16 %v1087, %v1086
  %v1179 = vpack.c.b16 %v1089, %v1088
  %v1180 = vpack.c.b16 %v1091, %v1090
  %v1181 = vpack.c.b16 %v1093, %v1092
  %v1182 = vpack.c.b16 %v1095, %v1094
  %v1183 = vpack.c.b16 %v1097, %v1096
  %v1184 = vpack.c.b16 %v1099, %v1098
  %v1185 = vpack.c.b16 %v1101, %v1100
  %v1186 = vpack.c.b16 %v1103, %v1102
  %v1187 = vpack.c.b16 %v1105, %v1104
  %v1188 = vpack.c.b16 %v1107, %v1106
  %v1189 = vpack.c.b16 %v1109, %v1108
  %v1190 = vpack.c.b16 %v1111, %v1110
  %v1191 = vpack.c.b16 %v1113, %v1112
  %v1192 = vpack.c.b16 %v1115, %v1114
  %v1193 = vpack.c.b16 %v1117, %v1116
  %v1194 = vpack.c.b16 %v1119, %v1118
  %v1195 = vpack.c.b16 %v1121, %v1120
  %v1196 = vpack.c.b16 %v1123, %v1122
  %v1197 = vpack.c.b16 %v1125, %v1124
  %1270 = vmatprep.subr.bf16.mxu0 0
  %1271 = vmatpush1.bf16.msra.mxu0 %v1133
  %1272 = vmatprep.subr.bf16.mxu0 0
  %1273 = vmatpush1.bf16.msra.mxu0 %v1132
  %1274 = vmatprep.subr.bf16.mxu0 0
  %1275 = vmatpush1.bf16.msra.mxu0 %v1131
  %1276 = vmatprep.subr.bf16.mxu0 0
  %1277 = vmatpush1.bf16.msra.mxu0 %v1130
  %1278 = vmatprep.subr.bf16.mxu0 0
  %1279 = vmatpush1.bf16.msra.mxu0 %v1129
  %1280 = vmatprep.subr.bf16.mxu0 0
  %1281 = vmatpush1.bf16.msra.mxu0 %v1128
  %1282 = vmatprep.subr.bf16.mxu0 0
  %1283 = vmatpush1.bf16.msra.mxu0 %v1127
  %1284 = vmatprep.subr.bf16.mxu0 0
  %1285 = vmatpush1.bf16.msra.mxu0 %v1126
  %1286 = vmatprep.subr.bf16.mxu0 0
  %1287 = vmatpush2.bf16.msra.mxu0 %v1141
  %1288 = vmatprep.subr.bf16.mxu0 0
  %1289 = vmatpush2.bf16.msra.mxu0 %v1140
  %1290 = vmatprep.subr.bf16.mxu0 0
  %1291 = vmatpush2.bf16.msra.mxu0 %v1139
  %1292 = vmatprep.subr.bf16.mxu0 0
  %1293 = vmatpush2.bf16.msra.mxu0 %v1138
  %1294 = vmatprep.subr.bf16.mxu0 0
  %1295 = vmatpush2.bf16.msra.mxu0 %v1137
  %1296 = vmatprep.subr.bf16.mxu0 0
  %1297 = vmatpush2.bf16.msra.mxu0 %v1136
  %1298 = vmatprep.subr.bf16.mxu0 0
  %1299 = vmatpush2.bf16.msra.mxu0 %v1135
  %1300 = vmatprep.subr.bf16.mxu0 0
  %1301 = vmatpush2.bf16.msra.mxu0 %v1134
  %1302 = vmatprep.mubr.bf16.mxu0 %v623
  %1303 = vmatmul.mubr.bf16.gmra.mxu0 %v622
  %v1304 = vpop.f32.mrf.mxu0
  %v1305 = vadd.f32 %v284, %v1304
  %v1306 = vpop.f32.mrf.mxu0
  %v1307 = vpop.f32.mrf.mxu0
  %v1308 = vadd.f32 %v284, %v1307
  %v1309 = vpop.f32.mrf.mxu0
  %1310 = vmatprep.mubr.bf16.mxu0 %v632
  %1311 = vmatmul.mubr.bf16.gmra.mxu0 %v631
  %v1312 = vpop.f32.mrf.mxu0
  %v1313 = vadd.f32 %v284, %v1312
  %v1314 = vpop.f32.mrf.mxu0
  %v1315 = vpop.f32.mrf.mxu0
  %v1316 = vadd.f32 %v284, %v1315
  %v1317 = vpop.f32.mrf.mxu0
  %1318 = vmatprep.mubr.bf16.mxu0 %v641
  %1319 = vmatmul.mubr.bf16.gmra.mxu0 %v640
  %v1320 = vpop.f32.mrf.mxu0
  %v1321 = vadd.f32 %v284, %v1320
  %v1322 = vpop.f32.mrf.mxu0
  %v1323 = vpop.f32.mrf.mxu0
  %v1324 = vadd.f32 %v284, %v1323
  %v1325 = vpop.f32.mrf.mxu0
  %1326 = vmatprep.mubr.bf16.mxu0 %v650
  %1327 = vmatmul.mubr.bf16.gmra.mxu0 %v649
  %v1328 = vpop.f32.mrf.mxu0
  %v1329 = vadd.f32 %v284, %v1328
  %v1330 = vpop.f32.mrf.mxu0
  %v1331 = vpop.f32.mrf.mxu0
  %v1332 = vadd.f32 %v284, %v1331
  %v1333 = vpop.f32.mrf.mxu0
  %1334 = vmatprep.mubr.bf16.mxu0 %v659
  %1335 = vmatmul.mubr.bf16.gmra.mxu0 %v658
  %v1336 = vpop.f32.mrf.mxu0
  %v1337 = vadd.f32 %v284, %v1336
  %v1338 = vpop.f32.mrf.mxu0
  %v1339 = vpop.f32.mrf.mxu0
  %v1340 = vadd.f32 %v284, %v1339
  %v1341 = vpop.f32.mrf.mxu0
  %1342 = vmatprep.mubr.bf16.mxu0 %v668
  %1343 = vmatmul.mubr.bf16.gmra.mxu0 %v667
  %v1344 = vpop.f32.mrf.mxu0
  %v1345 = vadd.f32 %v284, %v1344
  %v1346 = vpop.f32.mrf.mxu0
  %v1347 = vpop.f32.mrf.mxu0
  %v1348 = vadd.f32 %v284, %v1347
  %v1349 = vpop.f32.mrf.mxu0
  %1350 = vmatprep.mubr.bf16.mxu0 %v677
  %1351 = vmatmul.mubr.bf16.gmra.mxu0 %v676
  %v1352 = vpop.f32.mrf.mxu0
  %v1353 = vadd.f32 %v284, %v1352
  %v1354 = vpop.f32.mrf.mxu0
  %v1355 = vpop.f32.mrf.mxu0
  %v1356 = vadd.f32 %v284, %v1355
  %v1357 = vpop.f32.mrf.mxu0
  %1358 = vmatprep.mubr.bf16.mxu0 %v686
  %1359 = vmatmul.mubr.bf16.gmra.mxu0 %v685
  %v1360 = vpop.f32.mrf.mxu0
  %v1361 = vadd.f32 %v284, %v1360
  %v1362 = vpop.f32.mrf.mxu0
  %v1363 = vpop.f32.mrf.mxu0
  %v1364 = vadd.f32 %v284, %v1363
  %v1365 = vpop.f32.mrf.mxu0
  %1366 = vmatprep.mubr.bf16.mxu0 %v695
  %1367 = vmatmul.mubr.bf16.gmra.mxu0 %v694
  %v1368 = vpop.f32.mrf.mxu0
  %v1369 = vadd.f32 %v284, %v1368
  %v1370 = vpop.f32.mrf.mxu0
  %v1371 = vpop.f32.mrf.mxu0
  %v1372 = vadd.f32 %v284, %v1371
  %v1373 = vpop.f32.mrf.mxu0
  %1374 = vmatprep.mubr.bf16.mxu0 %v704
  %1375 = vmatmul.mubr.bf16.gmra.mxu0 %v703
  %v1376 = vpop.f32.mrf.mxu0
  %v1377 = vadd.f32 %v284, %v1376
  %v1378 = vpop.f32.mrf.mxu0
  %v1379 = vpop.f32.mrf.mxu0
  %v1380 = vadd.f32 %v284, %v1379
  %v1381 = vpop.f32.mrf.mxu0
  %1382 = vmatprep.mubr.bf16.mxu0 %v713
  %1383 = vmatmul.mubr.bf16.gmra.mxu0 %v712
  %v1384 = vpop.f32.mrf.mxu0
  %v1385 = vadd.f32 %v284, %v1384
  %v1386 = vpop.f32.mrf.mxu0
  %v1387 = vpop.f32.mrf.mxu0
  %v1388 = vadd.f32 %v284, %v1387
  %v1389 = vpop.f32.mrf.mxu0
  %1390 = vmatprep.mubr.bf16.mxu0 %v722
  %1391 = vmatmul.mubr.bf16.gmra.mxu0 %v721
  %v1392 = vpop.f32.mrf.mxu0
  %v1393 = vadd.f32 %v284, %v1392
  %v1394 = vpop.f32.mrf.mxu0
  %v1395 = vpop.f32.mrf.mxu0
  %v1396 = vadd.f32 %v284, %v1395
  %v1397 = vpop.f32.mrf.mxu0
  %1398 = vdwg.mxu0
  %1399 = vmatprep.subr.bf16.mxu0 0
  %1400 = vmatpush1.bf16.msra.mxu0 %v1149
  %1401 = vmatprep.subr.bf16.mxu0 0
  %1402 = vmatpush1.bf16.msra.mxu0 %v1148
  %1403 = vmatprep.subr.bf16.mxu0 0
  %1404 = vmatpush1.bf16.msra.mxu0 %v1147
  %1405 = vmatprep.subr.bf16.mxu0 0
  %1406 = vmatpush1.bf16.msra.mxu0 %v1146
  %1407 = vmatprep.subr.bf16.mxu0 0
  %1408 = vmatpush1.bf16.msra.mxu0 %v1145
  %1409 = vmatprep.subr.bf16.mxu0 0
  %1410 = vmatpush1.bf16.msra.mxu0 %v1144
  %1411 = vmatprep.subr.bf16.mxu0 0
  %1412 = vmatpush1.bf16.msra.mxu0 %v1143
  %1413 = vmatprep.subr.bf16.mxu0 0
  %1414 = vmatpush1.bf16.msra.mxu0 %v1142
  %1415 = vmatprep.subr.bf16.mxu0 0
  %1416 = vmatpush2.bf16.msra.mxu0 %v1157
  %1417 = vmatprep.subr.bf16.mxu0 0
  %1418 = vmatpush2.bf16.msra.mxu0 %v1156
  %1419 = vmatprep.subr.bf16.mxu0 0
  %1420 = vmatpush2.bf16.msra.mxu0 %v1155
  %1421 = vmatprep.subr.bf16.mxu0 0
  %1422 = vmatpush2.bf16.msra.mxu0 %v1154
  %1423 = vmatprep.subr.bf16.mxu0 0
  %1424 = vmatpush2.bf16.msra.mxu0 %v1153
  %1425 = vmatprep.subr.bf16.mxu0 0
  %1426 = vmatpush2.bf16.msra.mxu0 %v1152
  %1427 = vmatprep.subr.bf16.mxu0 0
  %1428 = vmatpush2.bf16.msra.mxu0 %v1151
  %1429 = vmatprep.subr.bf16.mxu0 0
  %1430 = vmatpush2.bf16.msra.mxu0 %v1150
  %1431 = vmatprep.mubr.bf16.mxu0 %v625
  %1432 = vmatmul.mubr.bf16.gmra.mxu0 %v624
  %v1433 = vpop.f32.mrf.mxu0
  %v1434 = vadd.f32 %v1305, %v1433
  %v1435 = vpop.f32.mrf.mxu0
  %v1436 = vpop.f32.mrf.mxu0
  %v1437 = vadd.f32 %v1308, %v1436
  %v1438 = vpop.f32.mrf.mxu0
  %1439 = vmatprep.mubr.bf16.mxu0 %v634
  %1440 = vmatmul.mubr.bf16.gmra.mxu0 %v633
  %v1441 = vpop.f32.mrf.mxu0
  %v1442 = vadd.f32 %v1313, %v1441
  %v1443 = vpop.f32.mrf.mxu0
  %v1444 = vpop.f32.mrf.mxu0
  %v1445 = vadd.f32 %v1316, %v1444
  %v1446 = vpop.f32.mrf.mxu0
  %1447 = vmatprep.mubr.bf16.mxu0 %v643
  %1448 = vmatmul.mubr.bf16.gmra.mxu0 %v642
  %v1449 = vpop.f32.mrf.mxu0
  %v1450 = vadd.f32 %v1321, %v1449
  %v1451 = vpop.f32.mrf.mxu0
  %v1452 = vpop.f32.mrf.mxu0
  %v1453 = vadd.f32 %v1324, %v1452
  %v1454 = vpop.f32.mrf.mxu0
  %1455 = vmatprep.mubr.bf16.mxu0 %v652
  %1456 = vmatmul.mubr.bf16.gmra.mxu0 %v651
  %v1457 = vpop.f32.mrf.mxu0
  %v1458 = vadd.f32 %v1329, %v1457
  %v1459 = vpop.f32.mrf.mxu0
  %v1460 = vpop.f32.mrf.mxu0
  %v1461 = vadd.f32 %v1332, %v1460
  %v1462 = vpop.f32.mrf.mxu0
  %1463 = vmatprep.mubr.bf16.mxu0 %v661
  %1464 = vmatmul.mubr.bf16.gmra.mxu0 %v660
  %v1465 = vpop.f32.mrf.mxu0
  %v1466 = vadd.f32 %v1337, %v1465
  %v1467 = vpop.f32.mrf.mxu0
  %v1468 = vpop.f32.mrf.mxu0
  %v1469 = vadd.f32 %v1340, %v1468
  %v1470 = vpop.f32.mrf.mxu0
  %1471 = vmatprep.mubr.bf16.mxu0 %v670
  %1472 = vmatmul.mubr.bf16.gmra.mxu0 %v669
  %v1473 = vpop.f32.mrf.mxu0
  %v1474 = vadd.f32 %v1345, %v1473
  %v1475 = vpop.f32.mrf.mxu0
  %v1476 = vpop.f32.mrf.mxu0
  %v1477 = vadd.f32 %v1348, %v1476
  %v1478 = vpop.f32.mrf.mxu0
  %1479 = vmatprep.mubr.bf16.mxu0 %v679
  %1480 = vmatmul.mubr.bf16.gmra.mxu0 %v678
  %v1481 = vpop.f32.mrf.mxu0
  %v1482 = vadd.f32 %v1353, %v1481
  %v1483 = vpop.f32.mrf.mxu0
  %v1484 = vpop.f32.mrf.mxu0
  %v1485 = vadd.f32 %v1356, %v1484
  %v1486 = vpop.f32.mrf.mxu0
  %1487 = vmatprep.mubr.bf16.mxu0 %v688
  %1488 = vmatmul.mubr.bf16.gmra.mxu0 %v687
  %v1489 = vpop.f32.mrf.mxu0
  %v1490 = vadd.f32 %v1361, %v1489
  %v1491 = vpop.f32.mrf.mxu0
  %v1492 = vpop.f32.mrf.mxu0
  %v1493 = vadd.f32 %v1364, %v1492
  %v1494 = vpop.f32.mrf.mxu0
  %1495 = vmatprep.mubr.bf16.mxu0 %v697
  %1496 = vmatmul.mubr.bf16.gmra.mxu0 %v696
  %v1497 = vpop.f32.mrf.mxu0
  %v1498 = vadd.f32 %v1369, %v1497
  %v1499 = vpop.f32.mrf.mxu0
  %v1500 = vpop.f32.mrf.mxu0
  %v1501 = vadd.f32 %v1372, %v1500
  %v1502 = vpop.f32.mrf.mxu0
  %1503 = vmatprep.mubr.bf16.mxu0 %v706
  %1504 = vmatmul.mubr.bf16.gmra.mxu0 %v705
  %v1505 = vpop.f32.mrf.mxu0
  %v1506 = vadd.f32 %v1377, %v1505
  %v1507 = vpop.f32.mrf.mxu0
  %v1508 = vpop.f32.mrf.mxu0
  %v1509 = vadd.f32 %v1380, %v1508
  %v1510 = vpop.f32.mrf.mxu0
  %1511 = vmatprep.mubr.bf16.mxu0 %v715
  %1512 = vmatmul.mubr.bf16.gmra.mxu0 %v714
  %v1513 = vpop.f32.mrf.mxu0
  %v1514 = vadd.f32 %v1385, %v1513
  %v1515 = vpop.f32.mrf.mxu0
  %v1516 = vpop.f32.mrf.mxu0
  %v1517 = vadd.f32 %v1388, %v1516
  %v1518 = vpop.f32.mrf.mxu0
  %1519 = vmatprep.mubr.bf16.mxu0 %v724
  %1520 = vmatmul.mubr.bf16.gmra.mxu0 %v723
  %v1521 = vpop.f32.mrf.mxu0
  %v1522 = vadd.f32 %v1393, %v1521
  %v1523 = vpop.f32.mrf.mxu0
  %v1524 = vpop.f32.mrf.mxu0
  %v1525 = vadd.f32 %v1396, %v1524
  %v1526 = vpop.f32.mrf.mxu0
  %1527 = vdwg.mxu0
  %1528 = vmatprep.subr.bf16.mxu0 0
  %1529 = vmatpush1.bf16.msra.mxu0 %v1165
  %1530 = vmatprep.subr.bf16.mxu0 0
  %1531 = vmatpush1.bf16.msra.mxu0 %v1164
  %1532 = vmatprep.subr.bf16.mxu0 0
  %1533 = vmatpush1.bf16.msra.mxu0 %v1163
  %1534 = vmatprep.subr.bf16.mxu0 0
  %1535 = vmatpush1.bf16.msra.mxu0 %v1162
  %1536 = vmatprep.subr.bf16.mxu0 0
  %1537 = vmatpush1.bf16.msra.mxu0 %v1161
  %1538 = vmatprep.subr.bf16.mxu0 0
  %1539 = vmatpush1.bf16.msra.mxu0 %v1160
  %1540 = vmatprep.subr.bf16.mxu0 0
  %1541 = vmatpush1.bf16.msra.mxu0 %v1159
  %1542 = vmatprep.subr.bf16.mxu0 0
  %1543 = vmatpush1.bf16.msra.mxu0 %v1158
  %1544 = vmatprep.subr.bf16.mxu0 0
  %1545 = vmatpush2.bf16.msra.mxu0 %v1173
  %1546 = vmatprep.subr.bf16.mxu0 0
  %1547 = vmatpush2.bf16.msra.mxu0 %v1172
  %1548 = vmatprep.subr.bf16.mxu0 0
  %1549 = vmatpush2.bf16.msra.mxu0 %v1171
  %1550 = vmatprep.subr.bf16.mxu0 0
  %1551 = vmatpush2.bf16.msra.mxu0 %v1170
  %1552 = vmatprep.subr.bf16.mxu0 0
  %1553 = vmatpush2.bf16.msra.mxu0 %v1169
  %1554 = vmatprep.subr.bf16.mxu0 0
  %1555 = vmatpush2.bf16.msra.mxu0 %v1168
  %1556 = vmatprep.subr.bf16.mxu0 0
  %1557 = vmatpush2.bf16.msra.mxu0 %v1167
  %1558 = vmatprep.subr.bf16.mxu0 0
  %1559 = vmatpush2.bf16.msra.mxu0 %v1166
  %1560 = vmatprep.mubr.bf16.mxu0 %v627
  %1561 = vmatmul.mubr.bf16.gmra.mxu0 %v626
  %v1562 = vpop.f32.mrf.mxu0
  %v1563 = vadd.f32 %v1434, %v1562
  %v1564 = vpop.f32.mrf.mxu0
  %v1565 = vpop.f32.mrf.mxu0
  %v1566 = vadd.f32 %v1437, %v1565
  %v1567 = vpop.f32.mrf.mxu0
  %1568 = vmatprep.mubr.bf16.mxu0 %v636
  %1569 = vmatmul.mubr.bf16.gmra.mxu0 %v635
  %v1570 = vpop.f32.mrf.mxu0
  %v1571 = vadd.f32 %v1442, %v1570
  %v1572 = vpop.f32.mrf.mxu0
  %v1573 = vpop.f32.mrf.mxu0
  %v1574 = vadd.f32 %v1445, %v1573
  %v1575 = vpop.f32.mrf.mxu0
  %1576 = vmatprep.mubr.bf16.mxu0 %v645
  %1577 = vmatmul.mubr.bf16.gmra.mxu0 %v644
  %v1578 = vpop.f32.mrf.mxu0
  %v1579 = vadd.f32 %v1450, %v1578
  %v1580 = vpop.f32.mrf.mxu0
  %v1581 = vpop.f32.mrf.mxu0
  %v1582 = vadd.f32 %v1453, %v1581
  %v1583 = vpop.f32.mrf.mxu0
  %1584 = vmatprep.mubr.bf16.mxu0 %v654
  %1585 = vmatmul.mubr.bf16.gmra.mxu0 %v653
  %v1586 = vpop.f32.mrf.mxu0
  %v1587 = vadd.f32 %v1458, %v1586
  %v1588 = vpop.f32.mrf.mxu0
  %v1589 = vpop.f32.mrf.mxu0
  %v1590 = vadd.f32 %v1461, %v1589
  %v1591 = vpop.f32.mrf.mxu0
  %1592 = vmatprep.mubr.bf16.mxu0 %v663
  %1593 = vmatmul.mubr.bf16.gmra.mxu0 %v662
  %v1594 = vpop.f32.mrf.mxu0
  %v1595 = vadd.f32 %v1466, %v1594
  %v1596 = vpop.f32.mrf.mxu0
  %v1597 = vpop.f32.mrf.mxu0
  %v1598 = vadd.f32 %v1469, %v1597
  %v1599 = vpop.f32.mrf.mxu0
  %1600 = vmatprep.mubr.bf16.mxu0 %v672
  %1601 = vmatmul.mubr.bf16.gmra.mxu0 %v671
  %v1602 = vpop.f32.mrf.mxu0
  %v1603 = vadd.f32 %v1474, %v1602
  %v1604 = vpop.f32.mrf.mxu0
  %v1605 = vpop.f32.mrf.mxu0
  %v1606 = vadd.f32 %v1477, %v1605
  %v1607 = vpop.f32.mrf.mxu0
  %1608 = vmatprep.mubr.bf16.mxu0 %v681
  %1609 = vmatmul.mubr.bf16.gmra.mxu0 %v680
  %v1610 = vpop.f32.mrf.mxu0
  %v1611 = vadd.f32 %v1482, %v1610
  %v1612 = vpop.f32.mrf.mxu0
  %v1613 = vpop.f32.mrf.mxu0
  %v1614 = vadd.f32 %v1485, %v1613
  %v1615 = vpop.f32.mrf.mxu0
  %1616 = vmatprep.mubr.bf16.mxu0 %v690
  %1617 = vmatmul.mubr.bf16.gmra.mxu0 %v689
  %v1618 = vpop.f32.mrf.mxu0
  %v1619 = vadd.f32 %v1490, %v1618
  %v1620 = vpop.f32.mrf.mxu0
  %v1621 = vpop.f32.mrf.mxu0
  %v1622 = vadd.f32 %v1493, %v1621
  %v1623 = vpop.f32.mrf.mxu0
  %1624 = vmatprep.mubr.bf16.mxu0 %v699
  %1625 = vmatmul.mubr.bf16.gmra.mxu0 %v698
  %v1626 = vpop.f32.mrf.mxu0
  %v1627 = vadd.f32 %v1498, %v1626
  %v1628 = vpop.f32.mrf.mxu0
  %v1629 = vpop.f32.mrf.mxu0
  %v1630 = vadd.f32 %v1501, %v1629
  %v1631 = vpop.f32.mrf.mxu0
  %1632 = vmatprep.mubr.bf16.mxu0 %v708
  %1633 = vmatmul.mubr.bf16.gmra.mxu0 %v707
  %v1634 = vpop.f32.mrf.mxu0
  %v1635 = vadd.f32 %v1506, %v1634
  %v1636 = vpop.f32.mrf.mxu0
  %v1637 = vpop.f32.mrf.mxu0
  %v1638 = vadd.f32 %v1509, %v1637
  %v1639 = vpop.f32.mrf.mxu0
  %1640 = vmatprep.mubr.bf16.mxu0 %v717
  %1641 = vmatmul.mubr.bf16.gmra.mxu0 %v716
  %v1642 = vpop.f32.mrf.mxu0
  %v1643 = vadd.f32 %v1514, %v1642
  %v1644 = vpop.f32.mrf.mxu0
  %v1645 = vpop.f32.mrf.mxu0
  %v1646 = vadd.f32 %v1517, %v1645
  %v1647 = vpop.f32.mrf.mxu0
  %1648 = vmatprep.mubr.bf16.mxu0 %v726
  %1649 = vmatmul.mubr.bf16.gmra.mxu0 %v725
  %v1650 = vpop.f32.mrf.mxu0
  %v1651 = vadd.f32 %v1522, %v1650
  %v1652 = vpop.f32.mrf.mxu0
  %v1653 = vpop.f32.mrf.mxu0
  %v1654 = vadd.f32 %v1525, %v1653
  %v1655 = vpop.f32.mrf.mxu0
  %1656 = vdwg.mxu0
  %1657 = vmatprep.subr.bf16.mxu0 0
  %1658 = vmatpush1.bf16.msra.mxu0 %v1181
  %1659 = vmatprep.subr.bf16.mxu0 0
  %1660 = vmatpush1.bf16.msra.mxu0 %v1180
  %1661 = vmatprep.subr.bf16.mxu0 0
  %1662 = vmatpush1.bf16.msra.mxu0 %v1179
  %1663 = vmatprep.subr.bf16.mxu0 0
  %1664 = vmatpush1.bf16.msra.mxu0 %v1178
  %1665 = vmatprep.subr.bf16.mxu0 0
  %1666 = vmatpush1.bf16.msra.mxu0 %v1177
  %1667 = vmatprep.subr.bf16.mxu0 0
  %1668 = vmatpush1.bf16.msra.mxu0 %v1176
  %1669 = vmatprep.subr.bf16.mxu0 0
  %1670 = vmatpush1.bf16.msra.mxu0 %v1175
  %1671 = vmatprep.subr.bf16.mxu0 0
  %1672 = vmatpush1.bf16.msra.mxu0 %v1174
  %1673 = vmatprep.subr.bf16.mxu0 0
  %1674 = vmatpush2.bf16.msra.mxu0 %v1189
  %1675 = vmatprep.subr.bf16.mxu0 0
  %1676 = vmatpush2.bf16.msra.mxu0 %v1188
  %1677 = vmatprep.subr.bf16.mxu0 0
  %1678 = vmatpush2.bf16.msra.mxu0 %v1187
  %1679 = vmatprep.subr.bf16.mxu0 0
  %1680 = vmatpush2.bf16.msra.mxu0 %v1186
  %1681 = vmatprep.subr.bf16.mxu0 0
  %1682 = vmatpush2.bf16.msra.mxu0 %v1185
  %1683 = vmatprep.subr.bf16.mxu0 0
  %1684 = vmatpush2.bf16.msra.mxu0 %v1184
  %1685 = vmatprep.subr.bf16.mxu0 0
  %1686 = vmatpush2.bf16.msra.mxu0 %v1183
  %1687 = vmatprep.subr.bf16.mxu0 0
  %1688 = vmatpush2.bf16.msra.mxu0 %v1182
  %1689 = vmatprep.mubr.bf16.mxu0 %v629
  %1690 = vmatmul.mubr.bf16.gmra.mxu0 %v628
  %v1691 = vpop.f32.mrf.mxu0
  %v1692 = vadd.f32 %v1563, %v1691
  %v1693 = vpop.f32.mrf.mxu0
  %v1694 = vpop.f32.mrf.mxu0
  %v1695 = vadd.f32 %v1566, %v1694
  %v1696 = vpop.f32.mrf.mxu0
  %1697 = vmatprep.mubr.bf16.mxu0 %v638
  %1698 = vmatmul.mubr.bf16.gmra.mxu0 %v637
  %v1699 = vpop.f32.mrf.mxu0
  %v1700 = vadd.f32 %v1571, %v1699
  %v1701 = vpop.f32.mrf.mxu0
  %v1702 = vpop.f32.mrf.mxu0
  %v1703 = vadd.f32 %v1574, %v1702
  %v1704 = vpop.f32.mrf.mxu0
  %1705 = vmatprep.mubr.bf16.mxu0 %v647
  %1706 = vmatmul.mubr.bf16.gmra.mxu0 %v646
  %v1707 = vpop.f32.mrf.mxu0
  %v1708 = vadd.f32 %v1579, %v1707
  %v1709 = vpop.f32.mrf.mxu0
  %v1710 = vpop.f32.mrf.mxu0
  %v1711 = vadd.f32 %v1582, %v1710
  %v1712 = vpop.f32.mrf.mxu0
  %1713 = vmatprep.mubr.bf16.mxu0 %v656
  %1714 = vmatmul.mubr.bf16.gmra.mxu0 %v655
  %v1715 = vpop.f32.mrf.mxu0
  %v1716 = vadd.f32 %v1587, %v1715
  %v1717 = vpop.f32.mrf.mxu0
  %v1718 = vpop.f32.mrf.mxu0
  %v1719 = vadd.f32 %v1590, %v1718
  %v1720 = vpop.f32.mrf.mxu0
  %1721 = vmatprep.mubr.bf16.mxu0 %v665
  %1722 = vmatmul.mubr.bf16.gmra.mxu0 %v664
  %v1723 = vpop.f32.mrf.mxu0
  %v1724 = vadd.f32 %v1595, %v1723
  %v1725 = vpop.f32.mrf.mxu0
  %v1726 = vpop.f32.mrf.mxu0
  %v1727 = vadd.f32 %v1598, %v1726
  %v1728 = vpop.f32.mrf.mxu0
  %1729 = vmatprep.mubr.bf16.mxu0 %v674
  %1730 = vmatmul.mubr.bf16.gmra.mxu0 %v673
  %v1731 = vpop.f32.mrf.mxu0
  %v1732 = vadd.f32 %v1603, %v1731
  %v1733 = vpop.f32.mrf.mxu0
  %v1734 = vpop.f32.mrf.mxu0
  %v1735 = vadd.f32 %v1606, %v1734
  %v1736 = vpop.f32.mrf.mxu0
  %1737 = vmatprep.mubr.bf16.mxu0 %v683
  %1738 = vmatmul.mubr.bf16.gmra.mxu0 %v682
  %v1739 = vpop.f32.mrf.mxu0
  %v1740 = vadd.f32 %v1611, %v1739
  %v1741 = vpop.f32.mrf.mxu0
  %v1742 = vpop.f32.mrf.mxu0
  %v1743 = vadd.f32 %v1614, %v1742
  %v1744 = vpop.f32.mrf.mxu0
  %1745 = vmatprep.mubr.bf16.mxu0 %v692
  %1746 = vmatmul.mubr.bf16.gmra.mxu0 %v691
  %v1747 = vpop.f32.mrf.mxu0
  %v1748 = vadd.f32 %v1619, %v1747
  %v1749 = vpop.f32.mrf.mxu0
  %v1750 = vpop.f32.mrf.mxu0
  %v1751 = vadd.f32 %v1622, %v1750
  %v1752 = vpop.f32.mrf.mxu0
  %1753 = vmatprep.mubr.bf16.mxu0 %v701
  %1754 = vmatmul.mubr.bf16.gmra.mxu0 %v700
  %v1755 = vpop.f32.mrf.mxu0
  %v1756 = vadd.f32 %v1627, %v1755
  %v1757 = vpop.f32.mrf.mxu0
  %v1758 = vpop.f32.mrf.mxu0
  %v1759 = vadd.f32 %v1630, %v1758
  %v1760 = vpop.f32.mrf.mxu0
  %1761 = vmatprep.mubr.bf16.mxu0 %v710
  %1762 = vmatmul.mubr.bf16.gmra.mxu0 %v709
  %v1763 = vpop.f32.mrf.mxu0
  %v1764 = vadd.f32 %v1635, %v1763
  %v1765 = vpop.f32.mrf.mxu0
  %v1766 = vpop.f32.mrf.mxu0
  %v1767 = vadd.f32 %v1638, %v1766
  %v1768 = vpop.f32.mrf.mxu0
  %1769 = vmatprep.mubr.bf16.mxu0 %v719
  %1770 = vmatmul.mubr.bf16.gmra.mxu0 %v718
  %v1771 = vpop.f32.mrf.mxu0
  %v1772 = vadd.f32 %v1643, %v1771
  %v1773 = vpop.f32.mrf.mxu0
  %v1774 = vpop.f32.mrf.mxu0
  %v1775 = vadd.f32 %v1646, %v1774
  %v1776 = vpop.f32.mrf.mxu0
  %1777 = vmatprep.mubr.bf16.mxu0 %v728
  %1778 = vmatmul.mubr.bf16.gmra.mxu0 %v727
  %v1779 = vpop.f32.mrf.mxu0
  %v1780 = vadd.f32 %v1651, %v1779
  %v1781 = vpop.f32.mrf.mxu0
  %v1782 = vpop.f32.mrf.mxu0
  %v1783 = vadd.f32 %v1654, %v1782
  %v1784 = vpop.f32.mrf.mxu0
  %1785 = vdwg.mxu0
  %1786 = vmatprep.subr.bf16.mxu0 0
  %1787 = vmatpush1.bf16.msra.mxu0 %v1197
  %1788 = vmatprep.subr.bf16.mxu0 0
  %1789 = vmatpush1.bf16.msra.mxu0 %v1196
  %1790 = vmatprep.subr.bf16.mxu0 0
  %1791 = vmatpush1.bf16.msra.mxu0 %v1195
  %1792 = vmatprep.subr.bf16.mxu0 0
  %1793 = vmatpush1.bf16.msra.mxu0 %v1194
  %1794 = vmatprep.subr.bf16.mxu0 0
  %1795 = vmatpush1.bf16.msra.mxu0 %v1193
  %1796 = vmatprep.subr.bf16.mxu0 0
  %1797 = vmatpush1.bf16.msra.mxu0 %v1192
  %1798 = vmatprep.subr.bf16.mxu0 0
  %1799 = vmatpush1.bf16.msra.mxu0 %v1191
  %1800 = vmatprep.subr.bf16.mxu0 0
  %1801 = vmatpush1.bf16.msra.mxu0 %v1190
  %1802 = vmatprep.subr.bf16.mxu0 0
  %1803 = vmatpush2.bf16.msra.mxu0 0
  %1804 = vmatprep.subr.bf16.mxu0 0
  %1805 = vmatpush2.bf16.msra.mxu0 0
  %1806 = vmatprep.subr.bf16.mxu0 0
  %1807 = vmatpush2.bf16.msra.mxu0 0
  %1808 = vmatprep.subr.bf16.mxu0 0
  %1809 = vmatpush2.bf16.msra.mxu0 0
  %1810 = vmatprep.subr.bf16.mxu0 0
  %1811 = vmatpush2.bf16.msra.mxu0 0
  %1812 = vmatprep.subr.bf16.mxu0 0
  %1813 = vmatpush2.bf16.msra.mxu0 0
  %1814 = vmatprep.subr.bf16.mxu0 0
  %1815 = vmatpush2.bf16.msra.mxu0 0
  %1816 = vmatprep.subr.bf16.mxu0 0
  %1817 = vmatpush2.bf16.msra.mxu0 0
  %1818 = vmatprep.mubr.bf16.mxu0 0
  %1819 = vmatmul.mubr.bf16.gmra.mxu0 %v630
  %v1820 = vpop.f32.mrf.mxu0
  %v1821 = vadd.f32 %v1692, %v1820
  %v1822 = vpop.f32.mrf.mxu0
  %v1823 = vpop.f32.mrf.mxu0
  %v1824 = vadd.f32 %v1695, %v1823
  %v1825 = vpop.f32.mrf.mxu0
  %1826 = vmatprep.mubr.bf16.mxu0 0
  %1827 = vmatmul.mubr.bf16.gmra.mxu0 %v639
  %v1828 = vpop.f32.mrf.mxu0
  %v1829 = vadd.f32 %v1700, %v1828
  %v1830 = vpop.f32.mrf.mxu0
  %v1831 = vpop.f32.mrf.mxu0
  %v1832 = vadd.f32 %v1703, %v1831
  %v1833 = vpop.f32.mrf.mxu0
  %1834 = vmatprep.mubr.bf16.mxu0 0
  %1835 = vmatmul.mubr.bf16.gmra.mxu0 %v648
  %v1836 = vpop.f32.mrf.mxu0
  %v1837 = vadd.f32 %v1708, %v1836
  %v1838 = vpop.f32.mrf.mxu0
  %v1839 = vpop.f32.mrf.mxu0
  %v1840 = vadd.f32 %v1711, %v1839
  %v1841 = vpop.f32.mrf.mxu0
  %1842 = vmatprep.mubr.bf16.mxu0 0
  %1843 = vmatmul.mubr.bf16.gmra.mxu0 %v657
  %v1844 = vpop.f32.mrf.mxu0
  %v1845 = vadd.f32 %v1716, %v1844
  %v1846 = vpop.f32.mrf.mxu0
  %v1847 = vpop.f32.mrf.mxu0
  %v1848 = vadd.f32 %v1719, %v1847
  %v1849 = vpop.f32.mrf.mxu0
  %1850 = vmatprep.mubr.bf16.mxu0 0
  %1851 = vmatmul.mubr.bf16.gmra.mxu0 %v666
  %v1852 = vpop.f32.mrf.mxu0
  %v1853 = vadd.f32 %v1724, %v1852
  %v1854 = vpop.f32.mrf.mxu0
  %v1855 = vpop.f32.mrf.mxu0
  %v1856 = vadd.f32 %v1727, %v1855
  %v1857 = vpop.f32.mrf.mxu0
  %1858 = vmatprep.mubr.bf16.mxu0 0
  %1859 = vmatmul.mubr.bf16.gmra.mxu0 %v675
  %v1860 = vpop.f32.mrf.mxu0
  %v1861 = vadd.f32 %v1732, %v1860
  %v1862 = vpop.f32.mrf.mxu0
  %v1863 = vpop.f32.mrf.mxu0
  %v1864 = vadd.f32 %v1735, %v1863
  %v1865 = vpop.f32.mrf.mxu0
  %1866 = vmatprep.mubr.bf16.mxu0 0
  %1867 = vmatmul.mubr.bf16.gmra.mxu0 %v684
  %v1868 = vpop.f32.mrf.mxu0
  %v1869 = vadd.f32 %v1740, %v1868
  %v1870 = vpop.f32.mrf.mxu0
  %v1871 = vpop.f32.mrf.mxu0
  %v1872 = vadd.f32 %v1743, %v1871
  %v1873 = vpop.f32.mrf.mxu0
  %1874 = vmatprep.mubr.bf16.mxu0 0
  %1875 = vmatmul.mubr.bf16.gmra.mxu0 %v693
  %v1876 = vpop.f32.mrf.mxu0
  %v1877 = vadd.f32 %v1748, %v1876
  %v1878 = vpop.f32.mrf.mxu0
  %v1879 = vpop.f32.mrf.mxu0
  %v1880 = vadd.f32 %v1751, %v1879
  %v1881 = vpop.f32.mrf.mxu0
  %1882 = vmatprep.mubr.bf16.mxu0 0
  %1883 = vmatmul.mubr.bf16.gmra.mxu0 %v702
  %v1884 = vpop.f32.mrf.mxu0
  %v1885 = vadd.f32 %v1756, %v1884
  %v1886 = vpop.f32.mrf.mxu0
  %v1887 = vpop.f32.mrf.mxu0
  %v1888 = vadd.f32 %v1759, %v1887
  %v1889 = vpop.f32.mrf.mxu0
  %1890 = vmatprep.mubr.bf16.mxu0 0
  %1891 = vmatmul.mubr.bf16.gmra.mxu0 %v711
  %v1892 = vpop.f32.mrf.mxu0
  %v1893 = vadd.f32 %v1764, %v1892
  %v1894 = vpop.f32.mrf.mxu0
  %v1895 = vpop.f32.mrf.mxu0
  %v1896 = vadd.f32 %v1767, %v1895
  %v1897 = vpop.f32.mrf.mxu0
  %1898 = vmatprep.mubr.bf16.mxu0 0
  %1899 = vmatmul.mubr.bf16.gmra.mxu0 %v720
  %v1900 = vpop.f32.mrf.mxu0
  %v1901 = vadd.f32 %v1772, %v1900
  %v1902 = vpop.f32.mrf.mxu0
  %v1903 = vpop.f32.mrf.mxu0
  %v1904 = vadd.f32 %v1775, %v1903
  %v1905 = vpop.f32.mrf.mxu0
  %1906 = vmatprep.mubr.bf16.mxu0 0
  %1907 = vmatmul.mubr.bf16.gmra.mxu0 %v729
  %v1908 = vpop.f32.mrf.mxu0
  %v1909 = vadd.f32 %v1780, %v1908
  %v1910 = vpop.f32.mrf.mxu0
  %v1911 = vpop.f32.mrf.mxu0
  %v1912 = vadd.f32 %v1783, %v1911
  %v1913 = vpop.f32.mrf.mxu0
  %1914 = vdwg.mxu0
  %v1915 = vmax.f32 %v1821, 0.0
  %v1916 = vmax.f32 %v1824, 0.0
  %v1917 = vmax.f32 %v1829, 0.0
  %v1918 = vmax.f32 %v1832, 0.0
  %v1919 = vmax.f32 %v1837, 0.0
  %v1920 = vmax.f32 %v1840, 0.0
  %v1921 = vmax.f32 %v1845, 0.0
  %v1922 = vmax.f32 %v1848, 0.0
  %v1923 = vmax.f32 %v1853, 0.0
  %v1924 = vmax.f32 %v1856, 0.0
  %v1925 = vmax.f32 %v1861, 0.0
  %v1926 = vmax.f32 %v1864, 0.0
  %v1927 = vmax.f32 %v1869, 0.0
  %v1928 = vmax.f32 %v1872, 0.0
  %v1929 = vmax.f32 %v1877, 0.0
  %v1930 = vmax.f32 %v1880, 0.0
  %v1931 = vmax.f32 %v1885, 0.0
  %v1932 = vmax.f32 %v1888, 0.0
  %v1933 = vmax.f32 %v1893, 0.0
  %v1934 = vmax.f32 %v1896, 0.0
  %v1935 = vmax.f32 %v1901, 0.0
  %v1936 = vmax.f32 %v1904, 0.0
  %v1937 = vmax.f32 %v1909, 0.0
  %v1938 = vmax.f32 %v1912, 0.0
  %v1939 = vpack.c.bf16 %v1916, %v1915
  %v1940 = vpack.c.bf16 %v1918, %v1917
  %v1941 = vpack.c.bf16 %v1920, %v1919
  %v1942 = vpack.c.bf16 %v1922, %v1921
  %v1943 = vpack.c.bf16 %v1924, %v1923
  %v1944 = vpack.c.bf16 %v1926, %v1925
  %v1945 = vpack.c.bf16 %v1928, %v1927
  %v1946 = vpack.c.bf16 %v1930, %v1929
  %v1947 = vpack.c.bf16 %v1932, %v1931
  %v1948 = vpack.c.bf16 %v1934, %v1933
  %v1949 = vpack.c.bf16 %v1936, %v1935
  %v1950 = vpack.c.bf16 %v1938, %v1937
  %v1963 = vunpack.c.l.b16 %v1939
  %v1964 = vunpack.c.h.b16 %v1939
  %v1965 = vunpack.c.l.b16 %v1940
  %v1966 = vunpack.c.h.b16 %v1940
  %v1967 = vunpack.c.l.b16 %v1941
  %v1968 = vunpack.c.h.b16 %v1941
  %v1969 = vunpack.c.l.b16 %v1942
  %v1970 = vunpack.c.h.b16 %v1942
  %v1971 = vunpack.c.l.b16 %v1943
  %v1972 = vunpack.c.h.b16 %v1943
  %v1973 = vunpack.c.l.b16 %v1944
  %v1974 = vunpack.c.h.b16 %v1944
  %v1975 = vunpack.c.l.b16 %v1945
  %v1976 = vunpack.c.h.b16 %v1945
  %v1977 = vunpack.c.l.b16 %v1946
  %v1978 = vunpack.c.h.b16 %v1946
  %v1979 = vunpack.c.l.b16 %v1947
  %v1980 = vunpack.c.h.b16 %v1947
  %v1981 = vunpack.c.l.b16 %v1948
  %v1982 = vunpack.c.h.b16 %v1948
  %v1983 = vunpack.c.l.b16 %v1949
  %v1984 = vunpack.c.h.b16 %v1949
  %v1985 = vunpack.c.l.b16 %v1950
  %v1986 = vunpack.c.h.b16 %v1950
  %v1987 = vpack.c.b16 %v1963, %v1963
  %v1988 = vpack.c.b16 %v1964, %v1964
  %v1989 = vpack.c.b16 %v1965, %v1965
  %v1990 = vpack.c.b16 %v1966, %v1966
  %v1991 = vpack.c.b16 %v1967, %v1967
  %v1992 = vpack.c.b16 %v1968, %v1968
  %v1993 = vpack.c.b16 %v1969, %v1969
  %v1994 = vpack.c.b16 %v1970, %v1970
  %v1995 = vpack.c.b16 %v1971, %v1971
  %v1996 = vpack.c.b16 %v1972, %v1972
  %v1997 = vpack.c.b16 %v1973, %v1973
  %v1998 = vpack.c.b16 %v1974, %v1974
  %v1999 = vpack.c.b16 %v1975, %v1975
  %v2000 = vpack.c.b16 %v1976, %v1976
  %v2001 = vpack.c.b16 %v1977, %v1977
  %v2002 = vpack.c.b16 %v1978, %v1978
  %v2003 = vpack.c.b16 %v1979, %v1979
  %v2004 = vpack.c.b16 %v1980, %v1980
  %v2005 = vpack.c.b16 %v1981, %v1981
  %v2006 = vpack.c.b16 %v1982, %v1982
  %v2007 = vpack.c.b16 %v1983, %v1983
  %v2008 = vpack.c.b16 %v1984, %v1984
  %v2009 = vpack.c.b16 %v1985, %v1985
  %v2010 = vpack.c.b16 %v1986, %v1986
  %2035 = vst [vmem:[%s3] sm:$0xf] %v1987
  %2036 = vst [vmem:[%s3 + $0x4] sm:$0xf] %v1988
  %2037 = vst [vmem:[%s3 + $0x8] sm:$0xf] %v1989
  %2038 = vst [vmem:[%s3 + $0xc] sm:$0xf] %v1990
  %2039 = vst [vmem:[%s3 + $0x10] sm:$0xf] %v1991
  %2040 = vst [vmem:[%s3 + $0x14] sm:$0xf] %v1992
  %2041 = vst [vmem:[%s3 + $0x18] sm:$0xf] %v1993
  %2042 = vst [vmem:[%s3 + $0x1c] sm:$0xf] %v1994
  %2043 = vst [vmem:[%s3 + $0x20] sm:$0xf] %v1995
  %2044 = vst [vmem:[%s3 + $0x24] sm:$0xf] %v1996
  %2045 = vst [vmem:[%s3 + $0x28] sm:$0xf] %v1997
  %2046 = vst [vmem:[%s3 + $0x2c] sm:$0xf] %v1998
  %2047 = vst [vmem:[%s3 + $0x30] sm:$0xf] %v1999
  %2048 = vst [vmem:[%s3 + $0x34] sm:$0xf] %v2000
  %2049 = vst [vmem:[%s3 + $0x38] sm:$0xf] %v2001
  %2050 = vst [vmem:[%s3 + $0x3c] sm:$0xf] %v2002
  %2051 = vst [vmem:[%s3 + $0x40] sm:$0xf] %v2003
  %2052 = vst [vmem:[%s3 + $0x44] sm:$0xf] %v2004
  %2053 = vst [vmem:[%s3 + $0x48] sm:$0xf] %v2005
  %2054 = vst [vmem:[%s3 + $0x4c] sm:$0xf] %v2006
  %2055 = vst [vmem:[%s3 + $0x50] sm:$0xf] %v2007
  %2056 = vst [vmem:[%s3 + $0x54] sm:$0xf] %v2008
  %2057 = vst [vmem:[%s3 + $0x58] sm:$0xf] %v2009
  %2058 = vst [vmem:[%s3 + $0x5c] sm:$0xf] %v2010
  // Predicated region
  $region14: #{cqil_forward.10} parent=0 // pred_check
    _
  $region15: #{cqil_forward.10} parent=0 // pred_check_branch
    %2060 = sbr.rel (0) target = $region17
  $region16: #{cqil_forward.10} parent=0 // pred_region
    _
  $region17: #{cqil_forward.10} parent=0 // pred_fallthru
    _
  // Predicated region
  $region18: #{cqil_forward.10} parent=0 // pred_check
    _
  $region19: #{cqil_forward.10} parent=0 // pred_check_branch
    %2062 = sbr.rel (0) target = $region21
  $region20: #{cqil_forward.10} parent=0 // pred_region
    _
  $region21: #{cqil_forward.10} parent=0 // pred_fallthru
    _

// kernel: cqil_forward.7
$region0: #{cqil_forward.7}
  #allocation0 [shape = 'u32[]', space=smem, size = 0x4, offset = 0x4, fixed_abs, tag = 'smem constant byte address 0x4 - core index']
  #allocation1 [shape = 'u32[144,128]{1,0:T(1,128)}', space=vmem, size = 0x12000, scoped, tag = 'internal scratch']
  %s0 = inlined_call_operand.vmem [shape: bf16[384,18], index: 0, kind: input, shape index: {}]
  %s1 = inlined_call_operand.vmem [shape: bf16[18,128], index: 1, kind: input, shape index: {}]
  %s2 = inlined_call_operand.vmem [shape: f32[1,128], index: 2, kind: input, shape index: {}]
  %s3 = inlined_call_operand.vmem [shape: bf16[384,128], index: 3, kind: output, shape index: {}]
  %s4 = sld [smem:[#allocation0]]
  $region22: #{cqil_forward.7} parent=0
    _
  %s6 = ssub.s32 1, %s4
  %s7 = scalar_select 0, %s6, %s4
  // Predicated region
  $region2: #{cqil_forward.7} parent=0 // pred_check
    _
  $region3: #{cqil_forward.7} parent=0 // pred_check_branch
    %9 = sbr.rel (0) target = $region5
  $region4: #{cqil_forward.7} parent=0 // pred_region
    _
  $region5: #{cqil_forward.7} parent=0 // pred_fallthru
    _
  // Predicated region
  $region6: #{cqil_forward.7} parent=0 // pred_check
    _
  $region7: #{cqil_forward.7} parent=0 // pred_check_branch
    %11 = sbr.rel (0) target = $region9
  $region8: #{cqil_forward.7} parent=0 // pred_region
    _
  $region9: #{cqil_forward.7} parent=0 // pred_fallthru
    _
  // Predicated region
  $region10: #{cqil_forward.7} parent=0 // pred_check
    _
  $region11: #{cqil_forward.7} parent=0 // pred_check_branch
    %13 = sbr.rel (0) target = $region13
  $region12: #{cqil_forward.7} parent=0 // pred_region
    _
  $region13: #{cqil_forward.7} parent=0 // pred_fallthru
    _
  %v15 = vld [vmem:[%s0] sm:$0xf]
  %v16 = vld [vmem:[%s0 + $0x4] sm:$0xf]
  %v17 = vld [vmem:[%s0 + $0x8] sm:$0xf]
  %v18 = vld [vmem:[%s0 + $0xc] sm:$0xf]
  %v19 = vld [vmem:[%s0 + $0x10] sm:$0xf]
  %v20 = vld [vmem:[%s0 + $0x14] sm:$0xf]
  %v21 = vld [vmem:[%s0 + $0x18] sm:$0xf]
  %v22 = vld [vmem:[%s0 + $0x1c] sm:$0xf]
  %v23 = vld [vmem:[%s0 + $0x20] sm:$0xf]
  %v24 = vld [vmem:[%s0 + $0x24] sm:$0xf]
  %v25 = vld [vmem:[%s0 + $0x28] sm:$0xf]
  %v26 = vld [vmem:[%s0 + $0x2c] sm:$0xf]
  %v27 = vld [vmem:[%s0 + $0x30] sm:$0xf]
  %v28 = vld [vmem:[%s0 + $0x34] sm:$0xf]
  %v29 = vld [vmem:[%s0 + $0x38] sm:$0xf]
  %v30 = vld [vmem:[%s0 + $0x3c] sm:$0xf]
  %v31 = vld [vmem:[%s0 + $0x40] sm:$0xf]
  %v32 = vld [vmem:[%s0 + $0x44] sm:$0xf]
  %v33 = vld [vmem:[%s0 + $0x48] sm:$0xf]
  %v34 = vld [vmem:[%s0 + $0x4c] sm:$0xf]
  %v35 = vld [vmem:[%s0 + $0x50] sm:$0xf]
  %v36 = vld [vmem:[%s0 + $0x54] sm:$0xf]
  %v37 = vld [vmem:[%s0 + $0x58] sm:$0xf]
  %v38 = vld [vmem:[%s0 + $0x5c] sm:$0xf]
  %v39 = vld [vmem:[%s0 + $0x60] sm:$0xf]
  %v40 = vld [vmem:[%s0 + $0x64] sm:$0xf]
  %v41 = vld [vmem:[%s0 + $0x68] sm:$0xf]
  %v42 = vld [vmem:[%s0 + $0x6c] sm:$0xf]
  %v43 = vld [vmem:[%s0 + $0x70] sm:$0xf]
  %v44 = vld [vmem:[%s0 + $0x74] sm:$0xf]
  %v45 = vld [vmem:[%s0 + $0x78] sm:$0xf]
  %v46 = vld [vmem:[%s0 + $0x7c] sm:$0xf]
  %v47 = vld [vmem:[%s0 + $0x80] sm:$0xf]
  %v48 = vld [vmem:[%s0 + $0x84] sm:$0xf]
  %v49 = vld [vmem:[%s0 + $0x88] sm:$0xf]
  %v50 = vld [vmem:[%s0 + $0x8c] sm:$0xf]
  %v51 = vld [vmem:[%s0 + $0x90] sm:$0xf]
  %v52 = vld [vmem:[%s0 + $0x94] sm:$0xf]
  %v53 = vld [vmem:[%s0 + $0x98] sm:$0xf]
  %v54 = vld [vmem:[%s0 + $0x9c] sm:$0xf]
  %v55 = vld [vmem:[%s0 + $0xa0] sm:$0xf]
  %v56 = vld [vmem:[%s0 + $0xa4] sm:$0xf]
  %v57 = vld [vmem:[%s0 + $0xa8] sm:$0xf]
  %v58 = vld [vmem:[%s0 + $0xac] sm:$0xf]
  %v59 = vld [vmem:[%s0 + $0xb0] sm:$0xf]
  %v60 = vld [vmem:[%s0 + $0xb4] sm:$0xf]
  %v61 = vld [vmem:[%s0 + $0xb8] sm:$0xf]
  %v62 = vld [vmem:[%s0 + $0xbc] sm:$0xf]
  %v63 = vld [vmem:[%s1] sm:$0xf]
  %v64 = vld [vmem:[%s1 + $0x4] sm:$0xf]
  %v65 = vld [vmem:[%s1 + $0x8] sm:$0x1]
  %v66 = vld [vmem:[%s2] sm:$0x1]
  %v68 = vlaneseq
  %v69 = vshrl.u32 %v68, 7
  %v70 = vsub.s32 0, %v69
  %v71 = vrot.slane %v66, %v70
  %v121 = vunpack.c.l.b16 %v15
  %v122 = vunpack.c.l.b16 %v16
  %v123 = vunpack.c.l.b16 %v17
  %v124 = vunpack.c.l.b16 %v18
  %v125 = vunpack.c.l.b16 %v19
  %v126 = vunpack.c.l.b16 %v20
  %v127 = vunpack.c.l.b16 %v21
  %v128 = vunpack.c.l.b16 %v22
  %v129 = vunpack.c.l.b16 %v23
  %v130 = vunpack.c.l.b16 %v24
  %v131 = vunpack.c.l.b16 %v25
  %v132 = vunpack.c.l.b16 %v26
  %v133 = vunpack.c.l.b16 %v27
  %v134 = vunpack.c.l.b16 %v28
  %v135 = vunpack.c.l.b16 %v29
  %v136 = vunpack.c.l.b16 %v30
  %v137 = vunpack.c.l.b16 %v31
  %v138 = vunpack.c.l.b16 %v32
  %v139 = vunpack.c.l.b16 %v33
  %v140 = vunpack.c.l.b16 %v34
  %v141 = vunpack.c.l.b16 %v35
  %v142 = vunpack.c.l.b16 %v36
  %v143 = vunpack.c.l.b16 %v37
  %v144 = vunpack.c.l.b16 %v38
  %v145 = vunpack.c.l.b16 %v39
  %v146 = vunpack.c.l.b16 %v40
  %v147 = vunpack.c.l.b16 %v41
  %v148 = vunpack.c.l.b16 %v42
  %v149 = vunpack.c.l.b16 %v43
  %v150 = vunpack.c.l.b16 %v44
  %v151 = vunpack.c.l.b16 %v45
  %v152 = vunpack.c.l.b16 %v46
  %v153 = vunpack.c.l.b16 %v47
  %v154 = vunpack.c.l.b16 %v48
  %v155 = vunpack.c.l.b16 %v49
  %v156 = vunpack.c.l.b16 %v50
  %v157 = vunpack.c.l.b16 %v51
  %v158 = vunpack.c.l.b16 %v52
  %v159 = vunpack.c.l.b16 %v53
  %v160 = vunpack.c.l.b16 %v54
  %v161 = vunpack.c.l.b16 %v55
  %v162 = vunpack.c.l.b16 %v56
  %v163 = vunpack.c.l.b16 %v57
  %v164 = vunpack.c.l.b16 %v58
  %v165 = vunpack.c.l.b16 %v59
  %v166 = vunpack.c.l.b16 %v60
  %v167 = vunpack.c.l.b16 %v61
  %v168 = vunpack.c.l.b16 %v62
  %v169 = vpack.c.b16 %v122, %v121
  %v170 = vpack.c.b16 %v124, %v123
  %v171 = vpack.c.b16 %v126, %v125
  %v172 = vpack.c.b16 %v128, %v127
  %v173 = vpack.c.b16 %v130, %v129
  %v174 = vpack.c.b16 %v132, %v131
  %v175 = vpack.c.b16 %v134, %v133
  %v176 = vpack.c.b16 %v136, %v135
  %v177 = vpack.c.b16 %v138, %v137
  %v178 = vpack.c.b16 %v140, %v139
  %v179 = vpack.c.b16 %v142, %v141
  %v180 = vpack.c.b16 %v144, %v143
  %v181 = vpack.c.b16 %v146, %v145
  %v182 = vpack.c.b16 %v148, %v147
  %v183 = vpack.c.b16 %v150, %v149
  %v184 = vpack.c.b16 %v152, %v151
  %v185 = vpack.c.b16 %v154, %v153
  %v186 = vpack.c.b16 %v156, %v155
  %v187 = vpack.c.b16 %v158, %v157
  %v188 = vpack.c.b16 %v160, %v159
  %v189 = vpack.c.b16 %v162, %v161
  %v190 = vpack.c.b16 %v164, %v163
  %v191 = vpack.c.b16 %v166, %v165
  %v192 = vpack.c.b16 %v168, %v167
  %v196 = vunpack.c.l.b16 %v63
  %v197 = vunpack.c.l.b16 %v64
  %v198 = vunpack.c.l.b16 %v65
  %v199 = vpack.c.b16 %v197, %v196
  %v200 = vpack.c.b16 %v198, %v198
  %vm202 = vcmask 146432
  %v204 = vsel %vm202, %v169, 0
  %v207 = vsel %vm202, %v170, 0
  %v210 = vsel %vm202, %v171, 0
  %v213 = vsel %vm202, %v172, 0
  %v216 = vsel %vm202, %v173, 0
  %v219 = vsel %vm202, %v174, 0
  %v222 = vsel %vm202, %v175, 0
  %v225 = vsel %vm202, %v176, 0
  %v228 = vsel %vm202, %v177, 0
  %v231 = vsel %vm202, %v178, 0
  %v234 = vsel %vm202, %v179, 0
  %v237 = vsel %vm202, %v180, 0
  %v240 = vsel %vm202, %v181, 0
  %v243 = vsel %vm202, %v182, 0
  %v246 = vsel %vm202, %v183, 0
  %v249 = vsel %vm202, %v184, 0
  %v252 = vsel %vm202, %v185, 0
  %v255 = vsel %vm202, %v186, 0
  %v258 = vsel %vm202, %v187, 0
  %v261 = vsel %vm202, %v188, 0
  %v264 = vsel %vm202, %v189, 0
  %v267 = vsel %vm202, %v190, 0
  %v270 = vsel %vm202, %v191, 0
  %v273 = vsel %vm202, %v192, 0
  %vm275 = vcmask 1040384
  %v277 = vsel %vm275, %v200, 0
  %279 = vmatprep.subr.bf16.mxu0 0
  %280 = vmatpush1.bf16.msra.mxu0 0
  %281 = vmatprep.subr.bf16.mxu0 0
  %282 = vmatpush1.bf16.msra.mxu0 0
  %283 = vmatprep.subr.bf16.mxu0 0
  %284 = vmatpush1.bf16.msra.mxu0 0
  %285 = vmatprep.subr.bf16.mxu0 0
  %286 = vmatpush1.bf16.msra.mxu0 0
  %287 = vmatprep.subr.bf16.mxu0 0
  %288 = vmatpush1.bf16.msra.mxu0 0
  %289 = vmatprep.subr.bf16.mxu0 0
  %290 = vmatpush1.bf16.msra.mxu0 0
  %291 = vmatprep.subr.bf16.mxu0 0
  %292 = vmatpush1.bf16.msra.mxu0 %v277
  %293 = vmatprep.subr.bf16.mxu0 0
  %294 = vmatpush1.bf16.msra.mxu0 %v199
  %295 = vmatprep.subr.bf16.mxu0 0
  %296 = vmatpush2.bf16.msra.mxu0 0
  %297 = vmatprep.subr.bf16.mxu0 0
  %298 = vmatpush2.bf16.msra.mxu0 0
  %299 = vmatprep.subr.bf16.mxu0 0
  %300 = vmatpush2.bf16.msra.mxu0 0
  %301 = vmatprep.subr.bf16.mxu0 0
  %302 = vmatpush2.bf16.msra.mxu0 0
  %303 = vmatprep.subr.bf16.mxu0 0
  %304 = vmatpush2.bf16.msra.mxu0 0
  %305 = vmatprep.subr.bf16.mxu0 0
  %306 = vmatpush2.bf16.msra.mxu0 0
  %307 = vmatprep.subr.bf16.mxu0 0
  %308 = vmatpush2.bf16.msra.mxu0 0
  %309 = vmatprep.subr.bf16.mxu0 0
  %310 = vmatpush2.bf16.msra.mxu0 0
  %311 = vmatprep.mubr.bf16.mxu0 0
  %312 = vmatmul.mubr.bf16.gmra.mxu0 %v204
  %v313 = vpop.f32.mrf.mxu0
  %v314 = vadd.f32 %v71, %v313
  %v315 = vpop.f32.mrf.mxu0
  %v316 = vpop.f32.mrf.mxu0
  %v317 = vadd.f32 %v71, %v316
  %v318 = vpop.f32.mrf.mxu0
  %319 = vmatprep.mubr.bf16.mxu0 0
  %320 = vmatmul.mubr.bf16.gmra.mxu0 %v207
  %v321 = vpop.f32.mrf.mxu0
  %v322 = vadd.f32 %v71, %v321
  %v323 = vpop.f32.mrf.mxu0
  %v324 = vpop.f32.mrf.mxu0
  %v325 = vadd.f32 %v71, %v324
  %v326 = vpop.f32.mrf.mxu0
  %327 = vmatprep.mubr.bf16.mxu0 0
  %328 = vmatmul.mubr.bf16.gmra.mxu0 %v210
  %v329 = vpop.f32.mrf.mxu0
  %v330 = vadd.f32 %v71, %v329
  %v331 = vpop.f32.mrf.mxu0
  %v332 = vpop.f32.mrf.mxu0
  %v333 = vadd.f32 %v71, %v332
  %v334 = vpop.f32.mrf.mxu0
  %335 = vmatprep.mubr.bf16.mxu0 0
  %336 = vmatmul.mubr.bf16.gmra.mxu0 %v213
  %v337 = vpop.f32.mrf.mxu0
  %v338 = vadd.f32 %v71, %v337
  %v339 = vpop.f32.mrf.mxu0
  %v340 = vpop.f32.mrf.mxu0
  %v341 = vadd.f32 %v71, %v340
  %v342 = vpop.f32.mrf.mxu0
  %343 = vmatprep.mubr.bf16.mxu0 0
  %344 = vmatmul.mubr.bf16.gmra.mxu0 %v216
  %v345 = vpop.f32.mrf.mxu0
  %v346 = vadd.f32 %v71, %v345
  %v347 = vpop.f32.mrf.mxu0
  %v348 = vpop.f32.mrf.mxu0
  %v349 = vadd.f32 %v71, %v348
  %v350 = vpop.f32.mrf.mxu0
  %351 = vmatprep.mubr.bf16.mxu0 0
  %352 = vmatmul.mubr.bf16.gmra.mxu0 %v219
  %v353 = vpop.f32.mrf.mxu0
  %v354 = vadd.f32 %v71, %v353
  %v355 = vpop.f32.mrf.mxu0
  %v356 = vpop.f32.mrf.mxu0
  %v357 = vadd.f32 %v71, %v356
  %v358 = vpop.f32.mrf.mxu0
  %359 = vmatprep.mubr.bf16.mxu0 0
  %360 = vmatmul.mubr.bf16.gmra.mxu0 %v222
  %v361 = vpop.f32.mrf.mxu0
  %v362 = vadd.f32 %v71, %v361
  %v363 = vpop.f32.mrf.mxu0
  %v364 = vpop.f32.mrf.mxu0
  %v365 = vadd.f32 %v71, %v364
  %v366 = vpop.f32.mrf.mxu0
  %367 = vmatprep.mubr.bf16.mxu0 0
  %368 = vmatmul.mubr.bf16.gmra.mxu0 %v225
  %v369 = vpop.f32.mrf.mxu0
  %v370 = vadd.f32 %v71, %v369
  %v371 = vpop.f32.mrf.mxu0
  %v372 = vpop.f32.mrf.mxu0
  %v373 = vadd.f32 %v71, %v372
  %v374 = vpop.f32.mrf.mxu0
  %375 = vmatprep.mubr.bf16.mxu0 0
  %376 = vmatmul.mubr.bf16.gmra.mxu0 %v228
  %v377 = vpop.f32.mrf.mxu0
  %v378 = vadd.f32 %v71, %v377
  %v379 = vpop.f32.mrf.mxu0
  %v380 = vpop.f32.mrf.mxu0
  %v381 = vadd.f32 %v71, %v380
  %v382 = vpop.f32.mrf.mxu0
  %383 = vmatprep.mubr.bf16.mxu0 0
  %384 = vmatmul.mubr.bf16.gmra.mxu0 %v231
  %v385 = vpop.f32.mrf.mxu0
  %v386 = vadd.f32 %v71, %v385
  %v387 = vpop.f32.mrf.mxu0
  %v388 = vpop.f32.mrf.mxu0
  %v389 = vadd.f32 %v71, %v388
  %v390 = vpop.f32.mrf.mxu0
  %391 = vmatprep.mubr.bf16.mxu0 0
  %392 = vmatmul.mubr.bf16.gmra.mxu0 %v234
  %v393 = vpop.f32.mrf.mxu0
  %v394 = vadd.f32 %v71, %v393
  %v395 = vpop.f32.mrf.mxu0
  %v396 = vpop.f32.mrf.mxu0
  %v397 = vadd.f32 %v71, %v396
  %v398 = vpop.f32.mrf.mxu0
  %399 = vmatprep.mubr.bf16.mxu0 0
  %400 = vmatmul.mubr.bf16.gmra.mxu0 %v237
  %v401 = vpop.f32.mrf.mxu0
  %v402 = vadd.f32 %v71, %v401
  %v403 = vpop.f32.mrf.mxu0
  %v404 = vpop.f32.mrf.mxu0
  %v405 = vadd.f32 %v71, %v404
  %v406 = vpop.f32.mrf.mxu0
  %407 = vmatprep.mubr.bf16.mxu0 0
  %408 = vmatmul.mubr.bf16.gmra.mxu0 %v240
  %v409 = vpop.f32.mrf.mxu0
  %v410 = vadd.f32 %v71, %v409
  %v411 = vpop.f32.mrf.mxu0
  %v412 = vpop.f32.mrf.mxu0
  %v413 = vadd.f32 %v71, %v412
  %v414 = vpop.f32.mrf.mxu0
  %415 = vmatprep.mubr.bf16.mxu0 0
  %416 = vmatmul.mubr.bf16.gmra.mxu0 %v243
  %v417 = vpop.f32.mrf.mxu0
  %v418 = vadd.f32 %v71, %v417
  %v419 = vpop.f32.mrf.mxu0
  %v420 = vpop.f32.mrf.mxu0
  %v421 = vadd.f32 %v71, %v420
  %v422 = vpop.f32.mrf.mxu0
  %423 = vmatprep.mubr.bf16.mxu0 0
  %424 = vmatmul.mubr.bf16.gmra.mxu0 %v246
  %v425 = vpop.f32.mrf.mxu0
  %v426 = vadd.f32 %v71, %v425
  %v427 = vpop.f32.mrf.mxu0
  %v428 = vpop.f32.mrf.mxu0
  %v429 = vadd.f32 %v71, %v428
  %v430 = vpop.f32.mrf.mxu0
  %431 = vmatprep.mubr.bf16.mxu0 0
  %432 = vmatmul.mubr.bf16.gmra.mxu0 %v249
  %v433 = vpop.f32.mrf.mxu0
  %v434 = vadd.f32 %v71, %v433
  %v435 = vpop.f32.mrf.mxu0
  %v436 = vpop.f32.mrf.mxu0
  %v437 = vadd.f32 %v71, %v436
  %v438 = vpop.f32.mrf.mxu0
  %439 = vmatprep.mubr.bf16.mxu0 0
  %440 = vmatmul.mubr.bf16.gmra.mxu0 %v252
  %v441 = vpop.f32.mrf.mxu0
  %v442 = vadd.f32 %v71, %v441
  %v443 = vpop.f32.mrf.mxu0
  %v444 = vpop.f32.mrf.mxu0
  %v445 = vadd.f32 %v71, %v444
  %v446 = vpop.f32.mrf.mxu0
  %447 = vmatprep.mubr.bf16.mxu0 0
  %448 = vmatmul.mubr.bf16.gmra.mxu0 %v255
  %v449 = vpop.f32.mrf.mxu0
  %v450 = vadd.f32 %v71, %v449
  %v451 = vpop.f32.mrf.mxu0
  %v452 = vpop.f32.mrf.mxu0
  %v453 = vadd.f32 %v71, %v452
  %v454 = vpop.f32.mrf.mxu0
  %455 = vmatprep.mubr.bf16.mxu0 0
  %456 = vmatmul.mubr.bf16.gmra.mxu0 %v258
  %v457 = vpop.f32.mrf.mxu0
  %v458 = vadd.f32 %v71, %v457
  %v459 = vpop.f32.mrf.mxu0
  %v460 = vpop.f32.mrf.mxu0
  %v461 = vadd.f32 %v71, %v460
  %v462 = vpop.f32.mrf.mxu0
  %463 = vmatprep.mubr.bf16.mxu0 0
  %464 = vmatmul.mubr.bf16.gmra.mxu0 %v261
  %v465 = vpop.f32.mrf.mxu0
  %v466 = vadd.f32 %v71, %v465
  %v467 = vpop.f32.mrf.mxu0
  %v468 = vpop.f32.mrf.mxu0
  %v469 = vadd.f32 %v71, %v468
  %v470 = vpop.f32.mrf.mxu0
  %471 = vmatprep.mubr.bf16.mxu0 0
  %472 = vmatmul.mubr.bf16.gmra.mxu0 %v264
  %v473 = vpop.f32.mrf.mxu0
  %v474 = vadd.f32 %v71, %v473
  %v475 = vpop.f32.mrf.mxu0
  %v476 = vpop.f32.mrf.mxu0
  %v477 = vadd.f32 %v71, %v476
  %v478 = vpop.f32.mrf.mxu0
  %479 = vmatprep.mubr.bf16.mxu0 0
  %480 = vmatmul.mubr.bf16.gmra.mxu0 %v267
  %v481 = vpop.f32.mrf.mxu0
  %v482 = vadd.f32 %v71, %v481
  %v483 = vpop.f32.mrf.mxu0
  %v484 = vpop.f32.mrf.mxu0
  %v485 = vadd.f32 %v71, %v484
  %v486 = vpop.f32.mrf.mxu0
  %487 = vmatprep.mubr.bf16.mxu0 0
  %488 = vmatmul.mubr.bf16.gmra.mxu0 %v270
  %v489 = vpop.f32.mrf.mxu0
  %v490 = vadd.f32 %v71, %v489
  %v491 = vpop.f32.mrf.mxu0
  %v492 = vpop.f32.mrf.mxu0
  %v493 = vadd.f32 %v71, %v492
  %v494 = vpop.f32.mrf.mxu0
  %495 = vmatprep.mubr.bf16.mxu0 0
  %496 = vmatmul.mubr.bf16.gmra.mxu0 %v273
  %v497 = vpop.f32.mrf.mxu0
  %v498 = vadd.f32 %v71, %v497
  %v499 = vpop.f32.mrf.mxu0
  %v500 = vpop.f32.mrf.mxu0
  %v501 = vadd.f32 %v71, %v500
  %v502 = vpop.f32.mrf.mxu0
  %503 = vdwg.mxu0
  %v504 = vmax.f32 %v314, 0.0
  %v505 = vmax.f32 %v317, 0.0
  %v506 = vmax.f32 %v322, 0.0
  %v507 = vmax.f32 %v325, 0.0
  %v508 = vmax.f32 %v330, 0.0
  %v509 = vmax.f32 %v333, 0.0
  %v510 = vmax.f32 %v338, 0.0
  %v511 = vmax.f32 %v341, 0.0
  %v512 = vmax.f32 %v346, 0.0
  %v513 = vmax.f32 %v349, 0.0
  %v514 = vmax.f32 %v354, 0.0
  %v515 = vmax.f32 %v357, 0.0
  %v516 = vmax.f32 %v362, 0.0
  %v517 = vmax.f32 %v365, 0.0
  %v518 = vmax.f32 %v370, 0.0
  %v519 = vmax.f32 %v373, 0.0
  %v520 = vmax.f32 %v378, 0.0
  %v521 = vmax.f32 %v381, 0.0
  %v522 = vmax.f32 %v386, 0.0
  %v523 = vmax.f32 %v389, 0.0
  %v524 = vmax.f32 %v394, 0.0
  %v525 = vmax.f32 %v397, 0.0
  %v526 = vmax.f32 %v402, 0.0
  %v527 = vmax.f32 %v405, 0.0
  %v528 = vmax.f32 %v410, 0.0
  %v529 = vmax.f32 %v413, 0.0
  %v530 = vmax.f32 %v418, 0.0
  %v531 = vmax.f32 %v421, 0.0
  %v532 = vmax.f32 %v426, 0.0
  %v533 = vmax.f32 %v429, 0.0
  %v534 = vmax.f32 %v434, 0.0
  %v535 = vmax.f32 %v437, 0.0
  %v536 = vmax.f32 %v442, 0.0
  %v537 = vmax.f32 %v445, 0.0
  %v538 = vmax.f32 %v450, 0.0
  %v539 = vmax.f32 %v453, 0.0
  %v540 = vmax.f32 %v458, 0.0
  %v541 = vmax.f32 %v461, 0.0
  %v542 = vmax.f32 %v466, 0.0
  %v543 = vmax.f32 %v469, 0.0
  %v544 = vmax.f32 %v474, 0.0
  %v545 = vmax.f32 %v477, 0.0
  %v546 = vmax.f32 %v482, 0.0
  %v547 = vmax.f32 %v485, 0.0
  %v548 = vmax.f32 %v490, 0.0
  %v549 = vmax.f32 %v493, 0.0
  %v550 = vmax.f32 %v498, 0.0
  %v551 = vmax.f32 %v501, 0.0
  %v552 = vpack.c.bf16 %v505, %v504
  %v553 = vpack.c.bf16 %v507, %v506
  %v554 = vpack.c.bf16 %v509, %v508
  %v555 = vpack.c.bf16 %v511, %v510
  %v556 = vpack.c.bf16 %v513, %v512
  %v557 = vpack.c.bf16 %v515, %v514
  %v558 = vpack.c.bf16 %v517, %v516
  %v559 = vpack.c.bf16 %v519, %v518
  %v560 = vpack.c.bf16 %v521, %v520
  %v561 = vpack.c.bf16 %v523, %v522
  %v562 = vpack.c.bf16 %v525, %v524
  %v563 = vpack.c.bf16 %v527, %v526
  %v564 = vpack.c.bf16 %v529, %v528
  %v565 = vpack.c.bf16 %v531, %v530
  %v566 = vpack.c.bf16 %v533, %v532
  %v567 = vpack.c.bf16 %v535, %v534
  %v568 = vpack.c.bf16 %v537, %v536
  %v569 = vpack.c.bf16 %v539, %v538
  %v570 = vpack.c.bf16 %v541, %v540
  %v571 = vpack.c.bf16 %v543, %v542
  %v572 = vpack.c.bf16 %v545, %v544
  %v573 = vpack.c.bf16 %v547, %v546
  %v574 = vpack.c.bf16 %v549, %v548
  %v575 = vpack.c.bf16 %v551, %v550
  %v600 = vunpack.c.l.b16 %v552
  %v601 = vunpack.c.h.b16 %v552
  %v602 = vunpack.c.l.b16 %v553
  %v603 = vunpack.c.h.b16 %v553
  %v604 = vunpack.c.l.b16 %v554
  %v605 = vunpack.c.h.b16 %v554
  %v606 = vunpack.c.l.b16 %v555
  %v607 = vunpack.c.h.b16 %v555
  %v608 = vunpack.c.l.b16 %v556
  %v609 = vunpack.c.h.b16 %v556
  %v610 = vunpack.c.l.b16 %v557
  %v611 = vunpack.c.h.b16 %v557
  %v612 = vunpack.c.l.b16 %v558
  %v613 = vunpack.c.h.b16 %v558
  %v614 = vunpack.c.l.b16 %v559
  %v615 = vunpack.c.h.b16 %v559
  %v616 = vunpack.c.l.b16 %v560
  %v617 = vunpack.c.h.b16 %v560
  %v618 = vunpack.c.l.b16 %v561
  %v619 = vunpack.c.h.b16 %v561
  %v620 = vunpack.c.l.b16 %v562
  %v621 = vunpack.c.h.b16 %v562
  %v622 = vunpack.c.l.b16 %v563
  %v623 = vunpack.c.h.b16 %v563
  %v624 = vunpack.c.l.b16 %v564
  %v625 = vunpack.c.h.b16 %v564
  %v626 = vunpack.c.l.b16 %v565
  %v627 = vunpack.c.h.b16 %v565
  %v628 = vunpack.c.l.b16 %v566
  %v629 = vunpack.c.h.b16 %v566
  %v630 = vunpack.c.l.b16 %v567
  %v631 = vunpack.c.h.b16 %v567
  %v632 = vunpack.c.l.b16 %v568
  %v633 = vunpack.c.h.b16 %v568
  %v634 = vunpack.c.l.b16 %v569
  %v635 = vunpack.c.h.b16 %v569
  %v636 = vunpack.c.l.b16 %v570
  %v637 = vunpack.c.h.b16 %v570
  %v638 = vunpack.c.l.b16 %v571
  %v639 = vunpack.c.h.b16 %v571
  %v640 = vunpack.c.l.b16 %v572
  %v641 = vunpack.c.h.b16 %v572
  %v642 = vunpack.c.l.b16 %v573
  %v643 = vunpack.c.h.b16 %v573
  %v644 = vunpack.c.l.b16 %v574
  %v645 = vunpack.c.h.b16 %v574
  %v646 = vunpack.c.l.b16 %v575
  %v647 = vunpack.c.h.b16 %v575
  %v648 = vpack.c.b16 %v600, %v600
  %v649 = vpack.c.b16 %v601, %v601
  %v650 = vpack.c.b16 %v602, %v602
  %v651 = vpack.c.b16 %v603, %v603
  %v652 = vpack.c.b16 %v604, %v604
  %v653 = vpack.c.b16 %v605, %v605
  %v654 = vpack.c.b16 %v606, %v606
  %v655 = vpack.c.b16 %v607, %v607
  %v656 = vpack.c.b16 %v608, %v608
  %v657 = vpack.c.b16 %v609, %v609
  %v658 = vpack.c.b16 %v610, %v610
  %v659 = vpack.c.b16 %v611, %v611
  %v660 = vpack.c.b16 %v612, %v612
  %v661 = vpack.c.b16 %v613, %v613
  %v662 = vpack.c.b16 %v614, %v614
  %v663 = vpack.c.b16 %v615, %v615
  %v664 = vpack.c.b16 %v616, %v616
  %v665 = vpack.c.b16 %v617, %v617
  %v666 = vpack.c.b16 %v618, %v618
  %v667 = vpack.c.b16 %v619, %v619
  %v668 = vpack.c.b16 %v620, %v620
  %v669 = vpack.c.b16 %v621, %v621
  %v670 = vpack.c.b16 %v622, %v622
  %v671 = vpack.c.b16 %v623, %v623
  %v672 = vpack.c.b16 %v624, %v624
  %v673 = vpack.c.b16 %v625, %v625
  %v674 = vpack.c.b16 %v626, %v626
  %v675 = vpack.c.b16 %v627, %v627
  %v676 = vpack.c.b16 %v628, %v628
  %v677 = vpack.c.b16 %v629, %v629
  %v678 = vpack.c.b16 %v630, %v630
  %v679 = vpack.c.b16 %v631, %v631
  %v680 = vpack.c.b16 %v632, %v632
  %v681 = vpack.c.b16 %v633, %v633
  %v682 = vpack.c.b16 %v634, %v634
  %v683 = vpack.c.b16 %v635, %v635
  %v684 = vpack.c.b16 %v636, %v636
  %v685 = vpack.c.b16 %v637, %v637
  %v686 = vpack.c.b16 %v638, %v638
  %v687 = vpack.c.b16 %v639, %v639
  %v688 = vpack.c.b16 %v640, %v640
  %v689 = vpack.c.b16 %v641, %v641
  %v690 = vpack.c.b16 %v642, %v642
  %v691 = vpack.c.b16 %v643, %v643
  %v692 = vpack.c.b16 %v644, %v644
  %v693 = vpack.c.b16 %v645, %v645
  %v694 = vpack.c.b16 %v646, %v646
  %v695 = vpack.c.b16 %v647, %v647
  %744 = vst [vmem:[%s3] sm:$0xf] %v648
  %745 = vst [vmem:[%s3 + $0x4] sm:$0xf] %v649
  %746 = vst [vmem:[%s3 + $0x8] sm:$0xf] %v650
  %747 = vst [vmem:[%s3 + $0xc] sm:$0xf] %v651
  %748 = vst [vmem:[%s3 + $0x10] sm:$0xf] %v652
  %749 = vst [vmem:[%s3 + $0x14] sm:$0xf] %v653
  %750 = vst [vmem:[%s3 + $0x18] sm:$0xf] %v654
  %751 = vst [vmem:[%s3 + $0x1c] sm:$0xf] %v655
  %752 = vst [vmem:[%s3 + $0x20] sm:$0xf] %v656
  %753 = vst [vmem:[%s3 + $0x24] sm:$0xf] %v657
  %754 = vst [vmem:[%s3 + $0x28] sm:$0xf] %v658
  %755 = vst [vmem:[%s3 + $0x2c] sm:$0xf] %v659
  %756 = vst [vmem:[%s3 + $0x30] sm:$0xf] %v660
  %757 = vst [vmem:[%s3 + $0x34] sm:$0xf] %v661
  %758 = vst [vmem:[%s3 + $0x38] sm:$0xf] %v662
  %759 = vst [vmem:[%s3 + $0x3c] sm:$0xf] %v663
  %760 = vst [vmem:[%s3 + $0x40] sm:$0xf] %v664
  %761 = vst [vmem:[%s3 + $0x44] sm:$0xf] %v665
  %762 = vst [vmem:[%s3 + $0x48] sm:$0xf] %v666
  %763 = vst [vmem:[%s3 + $0x4c] sm:$0xf] %v667
  %764 = vst [vmem:[%s3 + $0x50] sm:$0xf] %v668
  %765 = vst [vmem:[%s3 + $0x54] sm:$0xf] %v669
  %766 = vst [vmem:[%s3 + $0x58] sm:$0xf] %v670
  %767 = vst [vmem:[%s3 + $0x5c] sm:$0xf] %v671
  %768 = vst [vmem:[%s3 + $0x60] sm:$0xf] %v672
  %769 = vst [vmem:[%s3 + $0x64] sm:$0xf] %v673
  %770 = vst [vmem:[%s3 + $0x68] sm:$0xf] %v674
  %771 = vst [vmem:[%s3 + $0x6c] sm:$0xf] %v675
  %772 = vst [vmem:[%s3 + $0x70] sm:$0xf] %v676
  %773 = vst [vmem:[%s3 + $0x74] sm:$0xf] %v677
  %774 = vst [vmem:[%s3 + $0x78] sm:$0xf] %v678
  %775 = vst [vmem:[%s3 + $0x7c] sm:$0xf] %v679
  %776 = vst [vmem:[%s3 + $0x80] sm:$0xf] %v680
  %777 = vst [vmem:[%s3 + $0x84] sm:$0xf] %v681
  %778 = vst [vmem:[%s3 + $0x88] sm:$0xf] %v682
  %779 = vst [vmem:[%s3 + $0x8c] sm:$0xf] %v683
  %780 = vst [vmem:[%s3 + $0x90] sm:$0xf] %v684
  %781 = vst [vmem:[%s3 + $0x94] sm:$0xf] %v685
  %782 = vst [vmem:[%s3 + $0x98] sm:$0xf] %v686
  %783 = vst [vmem:[%s3 + $0x9c] sm:$0xf] %v687
  %784 = vst [vmem:[%s3 + $0xa0] sm:$0xf] %v688
  %785 = vst [vmem:[%s3 + $0xa4] sm:$0xf] %v689
  %786 = vst [vmem:[%s3 + $0xa8] sm:$0xf] %v690
  %787 = vst [vmem:[%s3 + $0xac] sm:$0xf] %v691
  %788 = vst [vmem:[%s3 + $0xb0] sm:$0xf] %v692
  %789 = vst [vmem:[%s3 + $0xb4] sm:$0xf] %v693
  %790 = vst [vmem:[%s3 + $0xb8] sm:$0xf] %v694
  %791 = vst [vmem:[%s3 + $0xbc] sm:$0xf] %v695
  // Predicated region
  $region14: #{cqil_forward.7} parent=0 // pred_check
    _
  $region15: #{cqil_forward.7} parent=0 // pred_check_branch
    %793 = sbr.rel (0) target = $region17
  $region16: #{cqil_forward.7} parent=0 // pred_region
    _
  $region17: #{cqil_forward.7} parent=0 // pred_fallthru
    _
  // Predicated region
  $region18: #{cqil_forward.7} parent=0 // pred_check
    _
  $region19: #{cqil_forward.7} parent=0 // pred_check_branch
    %795 = sbr.rel (0) target = $region21
  $region20: #{cqil_forward.7} parent=0 // pred_region
    _
  $region21: #{cqil_forward.7} parent=0 // pred_fallthru
    _

// kernel: cqil_forward.8
$region0: #{cqil_forward.8}
  #allocation0 [shape = 'u32[]', space=smem, size = 0x4, offset = 0x4, fixed_abs, tag = 'smem constant byte address 0x4 - core index']
  #allocation1 [shape = 'u32[144,128]{1,0:T(1,128)}', space=vmem, size = 0x12000, scoped, tag = 'internal scratch']
  %s0 = inlined_call_operand.vmem [shape: bf16[96,1152], index: 0, kind: input, shape index: {}]
  %s1 = inlined_call_operand.vmem [shape: bf16[1152,128], index: 1, kind: input, shape index: {}]
  %s2 = inlined_call_operand.vmem [shape: f32[1,128], index: 2, kind: input, shape index: {}]
  %s3 = inlined_call_operand.vmem [shape: bf16[96,128], index: 3, kind: output, shape index: {}]
  %s4 = sld [smem:[#allocation0]]
  $region22: #{cqil_forward.8} parent=0
    _
  %s6 = ssub.s32 1, %s4
  %s7 = scalar_select 0, %s6, %s4
  // Predicated region
  $region2: #{cqil_forward.8} parent=0 // pred_check
    _
  $region3: #{cqil_forward.8} parent=0 // pred_check_branch
    %9 = sbr.rel (0) target = $region5
  $region4: #{cqil_forward.8} parent=0 // pred_region
    _
  $region5: #{cqil_forward.8} parent=0 // pred_fallthru
    _
  // Predicated region
  $region6: #{cqil_forward.8} parent=0 // pred_check
    _
  $region7: #{cqil_forward.8} parent=0 // pred_check_branch
    %11 = sbr.rel (0) target = $region9
  $region8: #{cqil_forward.8} parent=0 // pred_region
    _
  $region9: #{cqil_forward.8} parent=0 // pred_fallthru
    _
  // Predicated region
  $region10: #{cqil_forward.8} parent=0 // pred_check
    _
  $region11: #{cqil_forward.8} parent=0 // pred_check_branch
    %13 = sbr.rel (0) target = $region13
  $region12: #{cqil_forward.8} parent=0 // pred_region
    _
  $region13: #{cqil_forward.8} parent=0 // pred_fallthru
    _
  %v15 = vld [vmem:[%s0] sm:$0xff]
  %v16 = vld [vmem:[%s0 + $0x8] sm:$0xff]
  %v17 = vld [vmem:[%s0 + $0x10] sm:$0xff]
  %v18 = vld [vmem:[%s0 + $0x18] sm:$0xff]
  %v19 = vld [vmem:[%s0 + $0x20] sm:$0xf]
  %v20 = vld [vmem:[%s0 + $0x24] sm:$0xff]
  %v21 = vld [vmem:[%s0 + $0x2c] sm:$0xff]
  %v22 = vld [vmem:[%s0 + $0x34] sm:$0xff]
  %v23 = vld [vmem:[%s0 + $0x3c] sm:$0xff]
  %v24 = vld [vmem:[%s0 + $0x44] sm:$0xf]
  %v25 = vld [vmem:[%s0 + $0x48] sm:$0xff]
  %v26 = vld [vmem:[%s0 + $0x50] sm:$0xff]
  %v27 = vld [vmem:[%s0 + $0x58] sm:$0xff]
  %v28 = vld [vmem:[%s0 + $0x60] sm:$0xff]
  %v29 = vld [vmem:[%s0 + $0x68] sm:$0xf]
  %v30 = vld [vmem:[%s0 + $0x6c] sm:$0xff]
  %v31 = vld [vmem:[%s0 + $0x74] sm:$0xff]
  %v32 = vld [vmem:[%s0 + $0x7c] sm:$0xff]
  %v33 = vld [vmem:[%s0 + $0x84] sm:$0xff]
  %v34 = vld [vmem:[%s0 + $0x8c] sm:$0xf]
  %v35 = vld [vmem:[%s0 + $0x90] sm:$0xff]
  %v36 = vld [vmem:[%s0 + $0x98] sm:$0xff]
  %v37 = vld [vmem:[%s0 + $0xa0] sm:$0xff]
  %v38 = vld [vmem:[%s0 + $0xa8] sm:$0xff]
  %v39 = vld [vmem:[%s0 + $0xb0] sm:$0xf]
  %v40 = vld [vmem:[%s0 + $0xb4] sm:$0xff]
  %v41 = vld [vmem:[%s0 + $0xbc] sm:$0xff]
  %v42 = vld [vmem:[%s0 + $0xc4] sm:$0xff]
  %v43 = vld [vmem:[%s0 + $0xcc] sm:$0xff]
  %v44 = vld [vmem:[%s0 + $0xd4] sm:$0xf]
  %v45 = vld [vmem:[%s0 + $0xd8] sm:$0xff]
  %v46 = vld [vmem:[%s0 + $0xe0] sm:$0xff]
  %v47 = vld [vmem:[%s0 + $0xe8] sm:$0xff]
  %v48 = vld [vmem:[%s0 + $0xf0] sm:$0xff]
  %v49 = vld [vmem:[%s0 + $0xf8] sm:$0xf]
  %v50 = vld [vmem:[%s0 + $0xfc] sm:$0xff]
  %v51 = vld [vmem:[%s0 + $0x104] sm:$0xff]
  %v52 = vld [vmem:[%s0 + $0x10c] sm:$0xff]
  %v53 = vld [vmem:[%s0 + $0x114] sm:$0xff]
  %v54 = vld [vmem:[%s0 + $0x11c] sm:$0xf]
  %v55 = vld [vmem:[%s0 + $0x120] sm:$0xff]
  %v56 = vld [vmem:[%s0 + $0x128] sm:$0xff]
  %v57 = vld [vmem:[%s0 + $0x130] sm:$0xff]
  %v58 = vld [vmem:[%s0 + $0x138] sm:$0xff]
  %v59 = vld [vmem:[%s0 + $0x140] sm:$0xf]
  %v60 = vld [vmem:[%s0 + $0x144] sm:$0xff]
  %v61 = vld [vmem:[%s0 + $0x14c] sm:$0xff]
  %v62 = vld [vmem:[%s0 + $0x154] sm:$0xff]
  %v63 = vld [vmem:[%s0 + $0x15c] sm:$0xff]
  %v64 = vld [vmem:[%s0 + $0x164] sm:$0xf]
  %v65 = vld [vmem:[%s0 + $0x168] sm:$0xff]
  %v66 = vld [vmem:[%s0 + $0x170] sm:$0xff]
  %v67 = vld [vmem:[%s0 + $0x178] sm:$0xff]
  %v68 = vld [vmem:[%s0 + $0x180] sm:$0xff]
  %v69 = vld [vmem:[%s0 + $0x188] sm:$0xf]
  %v70 = vld [vmem:[%s0 + $0x18c] sm:$0xff]
  %v71 = vld [vmem:[%s0 + $0x194] sm:$0xff]
  %v72 = vld [vmem:[%s0 + $0x19c] sm:$0xff]
  %v73 = vld [vmem:[%s0 + $0x1a4] sm:$0xff]
  %v74 = vld [vmem:[%s0 + $0x1ac] sm:$0xf]
  %v75 = vld [vmem:[%s1] sm:$0xf]
  %v76 = vld [vmem:[%s1 + $0x4] sm:$0xf]
  %v77 = vld [vmem:[%s1 + $0x8] sm:$0xf]
  %v78 = vld [vmem:[%s1 + $0xc] sm:$0xf]
  %v79 = vld [vmem:[%s1 + $0x10] sm:$0xf]
  %v80 = vld [vmem:[%s1 + $0x14] sm:$0xf]
  %v81 = vld [vmem:[%s1 + $0x18] sm:$0xf]
  %v82 = vld [vmem:[%s1 + $0x1c] sm:$0xf]
  %v83 = vld [vmem:[%s1 + $0x20] sm:$0xf]
  %v84 = vld [vmem:[%s1 + $0x24] sm:$0xf]
  %v85 = vld [vmem:[%s1 + $0x28] sm:$0xf]
  %v86 = vld [vmem:[%s1 + $0x2c] sm:$0xf]
  %v87 = vld [vmem:[%s1 + $0x30] sm:$0xf]
  %v88 = vld [vmem:[%s1 + $0x34] sm:$0xf]
  %v89 = vld [vmem:[%s1 + $0x38] sm:$0xf]
  %v90 = vld [vmem:[%s1 + $0x3c] sm:$0xf]
  %v91 = vld [vmem:[%s1 + $0x40] sm:$0xf]
  %v92 = vld [vmem:[%s1 + $0x44] sm:$0xf]
  %v93 = vld [vmem:[%s1 + $0x48] sm:$0xf]
  %v94 = vld [vmem:[%s1 + $0x4c] sm:$0xf]
  %v95 = vld [vmem:[%s1 + $0x50] sm:$0xf]
  %v96 = vld [vmem:[%s1 + $0x54] sm:$0xf]
  %v97 = vld [vmem:[%s1 + $0x58] sm:$0xf]
  %v98 = vld [vmem:[%s1 + $0x5c] sm:$0xf]
  %v99 = vld [vmem:[%s1 + $0x60] sm:$0xf]
  %v100 = vld [vmem:[%s1 + $0x64] sm:$0xf]
  %v101 = vld [vmem:[%s1 + $0x68] sm:$0xf]
  %v102 = vld [vmem:[%s1 + $0x6c] sm:$0xf]
  %v103 = vld [vmem:[%s1 + $0x70] sm:$0xf]
  %v104 = vld [vmem:[%s1 + $0x74] sm:$0xf]
  %v105 = vld [vmem:[%s1 + $0x78] sm:$0xf]
  %v106 = vld [vmem:[%s1 + $0x7c] sm:$0xf]
  %v107 = vld [vmem:[%s1 + $0x80] sm:$0xf]
  %v108 = vld [vmem:[%s1 + $0x84] sm:$0xf]
  %v109 = vld [vmem:[%s1 + $0x88] sm:$0xf]
  %v110 = vld [vmem:[%s1 + $0x8c] sm:$0xf]
  %v111 = vld [vmem:[%s1 + $0x90] sm:$0xf]
  %v112 = vld [vmem:[%s1 + $0x94] sm:$0xf]
  %v113 = vld [vmem:[%s1 + $0x98] sm:$0xf]
  %v114 = vld [vmem:[%s1 + $0x9c] sm:$0xf]
  %v115 = vld [vmem:[%s1 + $0xa0] sm:$0xf]
  %v116 = vld [vmem:[%s1 + $0xa4] sm:$0xf]
  %v117 = vld [vmem:[%s1 + $0xa8] sm:$0xf]
  %v118 = vld [vmem:[%s1 + $0xac] sm:$0xf]
  %v119 = vld [vmem:[%s1 + $0xb0] sm:$0xf]
  %v120 = vld [vmem:[%s1 + $0xb4] sm:$0xf]
  %v121 = vld [vmem:[%s1 + $0xb8] sm:$0xf]
  %v122 = vld [vmem:[%s1 + $0xbc] sm:$0xf]
  %v123 = vld [vmem:[%s1 + $0xc0] sm:$0xf]
  %v124 = vld [vmem:[%s1 + $0xc4] sm:$0xf]
  %v125 = vld [vmem:[%s1 + $0xc8] sm:$0xf]
  %v126 = vld [vmem:[%s1 + $0xcc] sm:$0xf]
  %v127 = vld [vmem:[%s1 + $0xd0] sm:$0xf]
  %v128 = vld [vmem:[%s1 + $0xd4] sm:$0xf]
  %v129 = vld [vmem:[%s1 + $0xd8] sm:$0xf]
  %v130 = vld [vmem:[%s1 + $0xdc] sm:$0xf]
  %v131 = vld [vmem:[%s1 + $0xe0] sm:$0xf]
  %v132 = vld [vmem:[%s1 + $0xe4] sm:$0xf]
  %v133 = vld [vmem:[%s1 + $0xe8] sm:$0xf]
  %v134 = vld [vmem:[%s1 + $0xec] sm:$0xf]
  %v135 = vld [vmem:[%s1 + $0xf0] sm:$0xf]
  %v136 = vld [vmem:[%s1 + $0xf4] sm:$0xf]
  %v137 = vld [vmem:[%s1 + $0xf8] sm:$0xf]
  %v138 = vld [vmem:[%s1 + $0xfc] sm:$0xf]
  %v139 = vld [vmem:[%s1 + $0x100] sm:$0xf]
  %v140 = vld [vmem:[%s1 + $0x104] sm:$0xf]
  %v141 = vld [vmem:[%s1 + $0x108] sm:$0xf]
  %v142 = vld [vmem:[%s1 + $0x10c] sm:$0xf]
  %v143 = vld [vmem:[%s1 + $0x110] sm:$0xf]
  %v144 = vld [vmem:[%s1 + $0x114] sm:$0xf]
  %v145 = vld [vmem:[%s1 + $0x118] sm:$0xf]
  %v146 = vld [vmem:[%s1 + $0x11c] sm:$0xf]
  %v147 = vld [vmem:[%s1 + $0x120] sm:$0xf]
  %v148 = vld [vmem:[%s1 + $0x124] sm:$0xf]
  %v149 = vld [vmem:[%s1 + $0x128] sm:$0xf]
  %v150 = vld [vmem:[%s1 + $0x12c] sm:$0xf]
  %v151 = vld [vmem:[%s1 + $0x130] sm:$0xf]
  %v152 = vld [vmem:[%s1 + $0x134] sm:$0xf]
  %v153 = vld [vmem:[%s1 + $0x138] sm:$0xf]
  %v154 = vld [vmem:[%s1 + $0x13c] sm:$0xf]
  %v155 = vld [vmem:[%s1 + $0x140] sm:$0xf]
  %v156 = vld [vmem:[%s1 + $0x144] sm:$0xf]
  %v157 = vld [vmem:[%s1 + $0x148] sm:$0xf]
  %v158 = vld [vmem:[%s1 + $0x14c] sm:$0xf]
  %v159 = vld [vmem:[%s1 + $0x150] sm:$0xf]
  %v160 = vld [vmem:[%s1 + $0x154] sm:$0xf]
  %v161 = vld [vmem:[%s1 + $0x158] sm:$0xf]
  %v162 = vld [vmem:[%s1 + $0x15c] sm:$0xf]
  %v163 = vld [vmem:[%s1 + $0x160] sm:$0xf]
  %v164 = vld [vmem:[%s1 + $0x164] sm:$0xf]
  %v165 = vld [vmem:[%s1 + $0x168] sm:$0xf]
  %v166 = vld [vmem:[%s1 + $0x16c] sm:$0xf]
  %v167 = vld [vmem:[%s1 + $0x170] sm:$0xf]
  %v168 = vld [vmem:[%s1 + $0x174] sm:$0xf]
  %v169 = vld [vmem:[%s1 + $0x178] sm:$0xf]
  %v170 = vld [vmem:[%s1 + $0x17c] sm:$0xf]
  %v171 = vld [vmem:[%s1 + $0x180] sm:$0xf]
  %v172 = vld [vmem:[%s1 + $0x184] sm:$0xf]
  %v173 = vld [vmem:[%s1 + $0x188] sm:$0xf]
  %v174 = vld [vmem:[%s1 + $0x18c] sm:$0xf]
  %v175 = vld [vmem:[%s1 + $0x190] sm:$0xf]
  %v176 = vld [vmem:[%s1 + $0x194] sm:$0xf]
  %v177 = vld [vmem:[%s1 + $0x198] sm:$0xf]
  %v178 = vld [vmem:[%s1 + $0x19c] sm:$0xf]
  %v179 = vld [vmem:[%s1 + $0x1a0] sm:$0xf]
  %v180 = vld [vmem:[%s1 + $0x1a4] sm:$0xf]
  %v181 = vld [vmem:[%s1 + $0x1a8] sm:$0xf]
  %v182 = vld [vmem:[%s1 + $0x1ac] sm:$0xf]
  %v183 = vld [vmem:[%s1 + $0x1b0] sm:$0xf]
  %v184 = vld [vmem:[%s1 + $0x1b4] sm:$0xf]
  %v185 = vld [vmem:[%s1 + $0x1b8] sm:$0xf]
  %v186 = vld [vmem:[%s1 + $0x1bc] sm:$0xf]
  %v187 = vld [vmem:[%s1 + $0x1c0] sm:$0xf]
  %v188 = vld [vmem:[%s1 + $0x1c4] sm:$0xf]
  %v189 = vld [vmem:[%s1 + $0x1c8] sm:$0xf]
  %v190 = vld [vmem:[%s1 + $0x1cc] sm:$0xf]
  %v191 = vld [vmem:[%s1 + $0x1d0] sm:$0xf]
  %v192 = vld [vmem:[%s1 + $0x1d4] sm:$0xf]
  %v193 = vld [vmem:[%s1 + $0x1d8] sm:$0xf]
  %v194 = vld [vmem:[%s1 + $0x1dc] sm:$0xf]
  %v195 = vld [vmem:[%s1 + $0x1e0] sm:$0xf]
  %v196 = vld [vmem:[%s1 + $0x1e4] sm:$0xf]
  %v197 = vld [vmem:[%s1 + $0x1e8] sm:$0xf]
  %v198 = vld [vmem:[%s1 + $0x1ec] sm:$0xf]
  %v199 = vld [vmem:[%s1 + $0x1f0] sm:$0xf]
  %v200 = vld [vmem:[%s1 + $0x1f4] sm:$0xf]
  %v201 = vld [vmem:[%s1 + $0x1f8] sm:$0xf]
  %v202 = vld [vmem:[%s1 + $0x1fc] sm:$0xf]
  %v203 = vld [vmem:[%s1 + $0x200] sm:$0xf]
  %v204 = vld [vmem:[%s1 + $0x204] sm:$0xf]
  %v205 = vld [vmem:[%s1 + $0x208] sm:$0xf]
  %v206 = vld [vmem:[%s1 + $0x20c] sm:$0xf]
  %v207 = vld [vmem:[%s1 + $0x210] sm:$0xf]
  %v208 = vld [vmem:[%s1 + $0x214] sm:$0xf]
  %v209 = vld [vmem:[%s1 + $0x218] sm:$0xf]
  %v210 = vld [vmem:[%s1 + $0x21c] sm:$0xf]
  %v211 = vld [vmem:[%s1 + $0x220] sm:$0xf]
  %v212 = vld [vmem:[%s1 + $0x224] sm:$0xf]
  %v213 = vld [vmem:[%s1 + $0x228] sm:$0xf]
  %v214 = vld [vmem:[%s1 + $0x22c] sm:$0xf]
  %v215 = vld [vmem:[%s1 + $0x230] sm:$0xf]
  %v216 = vld [vmem:[%s1 + $0x234] sm:$0xf]
  %v217 = vld [vmem:[%s1 + $0x238] sm:$0xf]
  %v218 = vld [vmem:[%s1 + $0x23c] sm:$0xf]
  %v219 = vld [vmem:[%s2] sm:$0x1]
  %v221 = vlaneseq
  %v222 = vshrl.u32 %v221, 7
  %v223 = vsub.s32 0, %v222
  %v224 = vrot.slane %v219, %v223
  %v286 = vunpack.c.l.b16 %v15
  %v287 = vunpack.c.h.b16 %v15
  %v288 = vunpack.c.l.b16 %v16
  %v289 = vunpack.c.h.b16 %v16
  %v290 = vunpack.c.l.b16 %v17
  %v291 = vunpack.c.h.b16 %v17
  %v292 = vunpack.c.l.b16 %v18
  %v293 = vunpack.c.h.b16 %v18
  %v294 = vunpack.c.l.b16 %v19
  %v295 = vunpack.c.l.b16 %v20
  %v296 = vunpack.c.h.b16 %v20
  %v297 = vunpack.c.l.b16 %v21
  %v298 = vunpack.c.h.b16 %v21
  %v299 = vunpack.c.l.b16 %v22
  %v300 = vunpack.c.h.b16 %v22
  %v301 = vunpack.c.l.b16 %v23
  %v302 = vunpack.c.h.b16 %v23
  %v303 = vunpack.c.l.b16 %v24
  %v304 = vunpack.c.l.b16 %v25
  %v305 = vunpack.c.h.b16 %v25
  %v306 = vunpack.c.l.b16 %v26
  %v307 = vunpack.c.h.b16 %v26
  %v308 = vunpack.c.l.b16 %v27
  %v309 = vunpack.c.h.b16 %v27
  %v310 = vunpack.c.l.b16 %v28
  %v311 = vunpack.c.h.b16 %v28
  %v312 = vunpack.c.l.b16 %v29
  %v313 = vunpack.c.l.b16 %v30
  %v314 = vunpack.c.h.b16 %v30
  %v315 = vunpack.c.l.b16 %v31
  %v316 = vunpack.c.h.b16 %v31
  %v317 = vunpack.c.l.b16 %v32
  %v318 = vunpack.c.h.b16 %v32
  %v319 = vunpack.c.l.b16 %v33
  %v320 = vunpack.c.h.b16 %v33
  %v321 = vunpack.c.l.b16 %v34
  %v322 = vunpack.c.l.b16 %v35
  %v323 = vunpack.c.h.b16 %v35
  %v324 = vunpack.c.l.b16 %v36
  %v325 = vunpack.c.h.b16 %v36
  %v326 = vunpack.c.l.b16 %v37
  %v327 = vunpack.c.h.b16 %v37
  %v328 = vunpack.c.l.b16 %v38
  %v329 = vunpack.c.h.b16 %v38
  %v330 = vunpack.c.l.b16 %v39
  %v331 = vunpack.c.l.b16 %v40
  %v332 = vunpack.c.h.b16 %v40
  %v333 = vunpack.c.l.b16 %v41
  %v334 = vunpack.c.h.b16 %v41
  %v335 = vunpack.c.l.b16 %v42
  %v336 = vunpack.c.h.b16 %v42
  %v337 = vunpack.c.l.b16 %v43
  %v338 = vunpack.c.h.b16 %v43
  %v339 = vunpack.c.l.b16 %v44
  %v340 = vunpack.c.l.b16 %v45
  %v341 = vunpack.c.h.b16 %v45
  %v342 = vunpack.c.l.b16 %v46
  %v343 = vunpack.c.h.b16 %v46
  %v344 = vunpack.c.l.b16 %v47
  %v345 = vunpack.c.h.b16 %v47
  %v346 = vunpack.c.l.b16 %v48
  %v347 = vunpack.c.h.b16 %v48
  %v348 = vunpack.c.l.b16 %v49
  %v349 = vunpack.c.l.b16 %v50
  %v350 = vunpack.c.h.b16 %v50
  %v351 = vunpack.c.l.b16 %v51
  %v352 = vunpack.c.h.b16 %v51
  %v353 = vunpack.c.l.b16 %v52
  %v354 = vunpack.c.h.b16 %v52
  %v355 = vunpack.c.l.b16 %v53
  %v356 = vunpack.c.h.b16 %v53
  %v357 = vunpack.c.l.b16 %v54
  %v358 = vunpack.c.l.b16 %v55
  %v359 = vunpack.c.h.b16 %v55
  %v360 = vunpack.c.l.b16 %v56
  %v361 = vunpack.c.h.b16 %v56
  %v362 = vunpack.c.l.b16 %v57
  %v363 = vunpack.c.h.b16 %v57
  %v364 = vunpack.c.l.b16 %v58
  %v365 = vunpack.c.h.b16 %v58
  %v366 = vunpack.c.l.b16 %v59
  %v367 = vunpack.c.l.b16 %v60
  %v368 = vunpack.c.h.b16 %v60
  %v369 = vunpack.c.l.b16 %v61
  %v370 = vunpack.c.h.b16 %v61
  %v371 = vunpack.c.l.b16 %v62
  %v372 = vunpack.c.h.b16 %v62
  %v373 = vunpack.c.l.b16 %v63
  %v374 = vunpack.c.h.b16 %v63
  %v375 = vunpack.c.l.b16 %v64
  %v376 = vunpack.c.l.b16 %v65
  %v377 = vunpack.c.h.b16 %v65
  %v378 = vunpack.c.l.b16 %v66
  %v379 = vunpack.c.h.b16 %v66
  %v380 = vunpack.c.l.b16 %v67
  %v381 = vunpack.c.h.b16 %v67
  %v382 = vunpack.c.l.b16 %v68
  %v383 = vunpack.c.h.b16 %v68
  %v384 = vunpack.c.l.b16 %v69
  %v385 = vunpack.c.l.b16 %v70
  %v386 = vunpack.c.h.b16 %v70
  %v387 = vunpack.c.l.b16 %v71
  %v388 = vunpack.c.h.b16 %v71
  %v389 = vunpack.c.l.b16 %v72
  %v390 = vunpack.c.h.b16 %v72
  %v391 = vunpack.c.l.b16 %v73
  %v392 = vunpack.c.h.b16 %v73
  %v393 = vunpack.c.l.b16 %v74
  %v394 = vpack.c.b16 %v295, %v286
  %v395 = vpack.c.b16 %v296, %v287
  %v396 = vpack.c.b16 %v297, %v288
  %v397 = vpack.c.b16 %v298, %v289
  %v398 = vpack.c.b16 %v299, %v290
  %v399 = vpack.c.b16 %v300, %v291
  %v400 = vpack.c.b16 %v301, %v292
  %v401 = vpack.c.b16 %v302, %v293
  %v402 = vpack.c.b16 %v303, %v294
  %v403 = vpack.c.b16 %v313, %v304
  %v404 = vpack.c.b16 %v314, %v305
  %v405 = vpack.c.b16 %v315, %v306
  %v406 = vpack.c.b16 %v316, %v307
  %v407 = vpack.c.b16 %v317, %v308
  %v408 = vpack.c.b16 %v318, %v309
  %v409 = vpack.c.b16 %v319, %v310
  %v410 = vpack.c.b16 %v320, %v311
  %v411 = vpack.c.b16 %v321, %v312
  %v412 = vpack.c.b16 %v331, %v322
  %v413 = vpack.c.b16 %v332, %v323
  %v414 = vpack.c.b16 %v333, %v324
  %v415 = vpack.c.b16 %v334, %v325
  %v416 = vpack.c.b16 %v335, %v326
  %v417 = vpack.c.b16 %v336, %v327
  %v418 = vpack.c.b16 %v337, %v328
  %v419 = vpack.c.b16 %v338, %v329
  %v420 = vpack.c.b16 %v339, %v330
  %v421 = vpack.c.b16 %v349, %v340
  %v422 = vpack.c.b16 %v350, %v341
  %v423 = vpack.c.b16 %v351, %v342
  %v424 = vpack.c.b16 %v352, %v343
  %v425 = vpack.c.b16 %v353, %v344
  %v426 = vpack.c.b16 %v354, %v345
  %v427 = vpack.c.b16 %v355, %v346
  %v428 = vpack.c.b16 %v356, %v347
  %v429 = vpack.c.b16 %v357, %v348
  %v430 = vpack.c.b16 %v367, %v358
  %v431 = vpack.c.b16 %v368, %v359
  %v432 = vpack.c.b16 %v369, %v360
  %v433 = vpack.c.b16 %v370, %v361
  %v434 = vpack.c.b16 %v371, %v362
  %v435 = vpack.c.b16 %v372, %v363
  %v436 = vpack.c.b16 %v373, %v364
  %v437 = vpack.c.b16 %v374, %v365
  %v438 = vpack.c.b16 %v375, %v366
  %v439 = vpack.c.b16 %v385, %v376
  %v440 = vpack.c.b16 %v386, %v377
  %v441 = vpack.c.b16 %v387, %v378
  %v442 = vpack.c.b16 %v388, %v379
  %v443 = vpack.c.b16 %v389, %v380
  %v444 = vpack.c.b16 %v390, %v381
  %v445 = vpack.c.b16 %v391, %v382
  %v446 = vpack.c.b16 %v392, %v383
  %v447 = vpack.c.b16 %v393, %v384
  %v646 = vunpack.c.l.b16 %v75
  %v647 = vunpack.c.l.b16 %v76
  %v648 = vunpack.c.l.b16 %v77
  %v649 = vunpack.c.l.b16 %v78
  %v650 = vunpack.c.l.b16 %v79
  %v651 = vunpack.c.l.b16 %v80
  %v652 = vunpack.c.l.b16 %v81
  %v653 = vunpack.c.l.b16 %v82
  %v654 = vunpack.c.l.b16 %v83
  %v655 = vunpack.c.l.b16 %v84
  %v656 = vunpack.c.l.b16 %v85
  %v657 = vunpack.c.l.b16 %v86
  %v658 = vunpack.c.l.b16 %v87
  %v659 = vunpack.c.l.b16 %v88
  %v660 = vunpack.c.l.b16 %v89
  %v661 = vunpack.c.l.b16 %v90
  %v662 = vunpack.c.l.b16 %v91
  %v663 = vunpack.c.l.b16 %v92
  %v664 = vunpack.c.l.b16 %v93
  %v665 = vunpack.c.l.b16 %v94
  %v666 = vunpack.c.l.b16 %v95
  %v667 = vunpack.c.l.b16 %v96
  %v668 = vunpack.c.l.b16 %v97
  %v669 = vunpack.c.l.b16 %v98
  %v670 = vunpack.c.l.b16 %v99
  %v671 = vunpack.c.l.b16 %v100
  %v672 = vunpack.c.l.b16 %v101
  %v673 = vunpack.c.l.b16 %v102
  %v674 = vunpack.c.l.b16 %v103
  %v675 = vunpack.c.l.b16 %v104
  %v676 = vunpack.c.l.b16 %v105
  %v677 = vunpack.c.l.b16 %v106
  %v678 = vunpack.c.l.b16 %v107
  %v679 = vunpack.c.l.b16 %v108
  %v680 = vunpack.c.l.b16 %v109
  %v681 = vunpack.c.l.b16 %v110
  %v682 = vunpack.c.l.b16 %v111
  %v683 = vunpack.c.l.b16 %v112
  %v684 = vunpack.c.l.b16 %v113
  %v685 = vunpack.c.l.b16 %v114
  %v686 = vunpack.c.l.b16 %v115
  %v687 = vunpack.c.l.b16 %v116
  %v688 = vunpack.c.l.b16 %v117
  %v689 = vunpack.c.l.b16 %v118
  %v690 = vunpack.c.l.b16 %v119
  %v691 = vunpack.c.l.b16 %v120
  %v692 = vunpack.c.l.b16 %v121
  %v693 = vunpack.c.l.b16 %v122
  %v694 = vunpack.c.l.b16 %v123
  %v695 = vunpack.c.l.b16 %v124
  %v696 = vunpack.c.l.b16 %v125
  %v697 = vunpack.c.l.b16 %v126
  %v698 = vunpack.c.l.b16 %v127
  %v699 = vunpack.c.l.b16 %v128
  %v700 = vunpack.c.l.b16 %v129
  %v701 = vunpack.c.l.b16 %v130
  %v702 = vunpack.c.l.b16 %v131
  %v703 = vunpack.c.l.b16 %v132
  %v704 = vunpack.c.l.b16 %v133
  %v705 = vunpack.c.l.b16 %v134
  %v706 = vunpack.c.l.b16 %v135
  %v707 = vunpack.c.l.b16 %v136
  %v708 = vunpack.c.l.b16 %v137
  %v709 = vunpack.c.l.b16 %v138
  %v710 = vunpack.c.l.b16 %v139
  %v711 = vunpack.c.l.b16 %v140
  %v712 = vunpack.c.l.b16 %v141
  %v713 = vunpack.c.l.b16 %v142
  %v714 = vunpack.c.l.b16 %v143
  %v715 = vunpack.c.l.b16 %v144
  %v716 = vunpack.c.l.b16 %v145
  %v717 = vunpack.c.l.b16 %v146
  %v718 = vunpack.c.l.b16 %v147
  %v719 = vunpack.c.l.b16 %v148
  %v720 = vunpack.c.l.b16 %v149
  %v721 = vunpack.c.l.b16 %v150
  %v722 = vunpack.c.l.b16 %v151
  %v723 = vunpack.c.l.b16 %v152
  %v724 = vunpack.c.l.b16 %v153
  %v725 = vunpack.c.l.b16 %v154
  %v726 = vunpack.c.l.b16 %v155
  %v727 = vunpack.c.l.b16 %v156
  %v728 = vunpack.c.l.b16 %v157
  %v729 = vunpack.c.l.b16 %v158
  %v730 = vunpack.c.l.b16 %v159
  %v731 = vunpack.c.l.b16 %v160
  %v732 = vunpack.c.l.b16 %v161
  %v733 = vunpack.c.l.b16 %v162
  %v734 = vunpack.c.l.b16 %v163
  %v735 = vunpack.c.l.b16 %v164
  %v736 = vunpack.c.l.b16 %v165
  %v737 = vunpack.c.l.b16 %v166
  %v738 = vunpack.c.l.b16 %v167
  %v739 = vunpack.c.l.b16 %v168
  %v740 = vunpack.c.l.b16 %v169
  %v741 = vunpack.c.l.b16 %v170
  %v742 = vunpack.c.l.b16 %v171
  %v743 = vunpack.c.l.b16 %v172
  %v744 = vunpack.c.l.b16 %v173
  %v745 = vunpack.c.l.b16 %v174
  %v746 = vunpack.c.l.b16 %v175
  %v747 = vunpack.c.l.b16 %v176
  %v748 = vunpack.c.l.b16 %v177
  %v749 = vunpack.c.l.b16 %v178
  %v750 = vunpack.c.l.b16 %v179
  %v751 = vunpack.c.l.b16 %v180
  %v752 = vunpack.c.l.b16 %v181
  %v753 = vunpack.c.l.b16 %v182
  %v754 = vunpack.c.l.b16 %v183
  %v755 = vunpack.c.l.b16 %v184
  %v756 = vunpack.c.l.b16 %v185
  %v757 = vunpack.c.l.b16 %v186
  %v758 = vunpack.c.l.b16 %v187
  %v759 = vunpack.c.l.b16 %v188
  %v760 = vunpack.c.l.b16 %v189
  %v761 = vunpack.c.l.b16 %v190
  %v762 = vunpack.c.l.b16 %v191
  %v763 = vunpack.c.l.b16 %v192
  %v764 = vunpack.c.l.b16 %v193
  %v765 = vunpack.c.l.b16 %v194
  %v766 = vunpack.c.l.b16 %v195
  %v767 = vunpack.c.l.b16 %v196
  %v768 = vunpack.c.l.b16 %v197
  %v769 = vunpack.c.l.b16 %v198
  %v770 = vunpack.c.l.b16 %v199
  %v771 = vunpack.c.l.b16 %v200
  %v772 = vunpack.c.l.b16 %v201
  %v773 = vunpack.c.l.b16 %v202
  %v774 = vunpack.c.l.b16 %v203
  %v775 = vunpack.c.l.b16 %v204
  %v776 = vunpack.c.l.b16 %v205
  %v777 = vunpack.c.l.b16 %v206
  %v778 = vunpack.c.l.b16 %v207
  %v779 = vunpack.c.l.b16 %v208
  %v780 = vunpack.c.l.b16 %v209
  %v781 = vunpack.c.l.b16 %v210
  %v782 = vunpack.c.l.b16 %v211
  %v783 = vunpack.c.l.b16 %v212
  %v784 = vunpack.c.l.b16 %v213
  %v785 = vunpack.c.l.b16 %v214
  %v786 = vunpack.c.l.b16 %v215
  %v787 = vunpack.c.l.b16 %v216
  %v788 = vunpack.c.l.b16 %v217
  %v789 = vunpack.c.l.b16 %v218
  %v790 = vpack.c.b16 %v647, %v646
  %v791 = vpack.c.b16 %v649, %v648
  %v792 = vpack.c.b16 %v651, %v650
  %v793 = vpack.c.b16 %v653, %v652
  %v794 = vpack.c.b16 %v655, %v654
  %v795 = vpack.c.b16 %v657, %v656
  %v796 = vpack.c.b16 %v659, %v658
  %v797 = vpack.c.b16 %v661, %v660
  %v798 = vpack.c.b16 %v663, %v662
  %v799 = vpack.c.b16 %v665, %v664
  %v800 = vpack.c.b16 %v667, %v666
  %v801 = vpack.c.b16 %v669, %v668
  %v802 = vpack.c.b16 %v671, %v670
  %v803 = vpack.c.b16 %v673, %v672
  %v804 = vpack.c.b16 %v675, %v674
  %v805 = vpack.c.b16 %v677, %v676
  %v806 = vpack.c.b16 %v679, %v678
  %v807 = vpack.c.b16 %v681, %v680
  %v808 = vpack.c.b16 %v683, %v682
  %v809 = vpack.c.b16 %v685, %v684
  %v810 = vpack.c.b16 %v687, %v686
  %v811 = vpack.c.b16 %v689, %v688
  %v812 = vpack.c.b16 %v691, %v690
  %v813 = vpack.c.b16 %v693, %v692
  %v814 = vpack.c.b16 %v695, %v694
  %v815 = vpack.c.b16 %v697, %v696
  %v816 = vpack.c.b16 %v699, %v698
  %v817 = vpack.c.b16 %v701, %v700
  %v818 = vpack.c.b16 %v703, %v702
  %v819 = vpack.c.b16 %v705, %v704
  %v820 = vpack.c.b16 %v707, %v706
  %v821 = vpack.c.b16 %v709, %v708
  %v822 = vpack.c.b16 %v711, %v710
  %v823 = vpack.c.b16 %v713, %v712
  %v824 = vpack.c.b16 %v715, %v714
  %v825 = vpack.c.b16 %v717, %v716
  %v826 = vpack.c.b16 %v719, %v718
  %v827 = vpack.c.b16 %v721, %v720
  %v828 = vpack.c.b16 %v723, %v722
  %v829 = vpack.c.b16 %v725, %v724
  %v830 = vpack.c.b16 %v727, %v726
  %v831 = vpack.c.b16 %v729, %v728
  %v832 = vpack.c.b16 %v731, %v730
  %v833 = vpack.c.b16 %v733, %v732
  %v834 = vpack.c.b16 %v735, %v734
  %v835 = vpack.c.b16 %v737, %v736
  %v836 = vpack.c.b16 %v739, %v738
  %v837 = vpack.c.b16 %v741, %v740
  %v838 = vpack.c.b16 %v743, %v742
  %v839 = vpack.c.b16 %v745, %v744
  %v840 = vpack.c.b16 %v747, %v746
  %v841 = vpack.c.b16 %v749, %v748
  %v842 = vpack.c.b16 %v751, %v750
  %v843 = vpack.c.b16 %v753, %v752
  %v844 = vpack.c.b16 %v755, %v754
  %v845 = vpack.c.b16 %v757, %v756
  %v846 = vpack.c.b16 %v759, %v758
  %v847 = vpack.c.b16 %v761, %v760
  %v848 = vpack.c.b16 %v763, %v762
  %v849 = vpack.c.b16 %v765, %v764
  %v850 = vpack.c.b16 %v767, %v766
  %v851 = vpack.c.b16 %v769, %v768
  %v852 = vpack.c.b16 %v771, %v770
  %v853 = vpack.c.b16 %v773, %v772
  %v854 = vpack.c.b16 %v775, %v774
  %v855 = vpack.c.b16 %v777, %v776
  %v856 = vpack.c.b16 %v779, %v778
  %v857 = vpack.c.b16 %v781, %v780
  %v858 = vpack.c.b16 %v783, %v782
  %v859 = vpack.c.b16 %v785, %v784
  %v860 = vpack.c.b16 %v787, %v786
  %v861 = vpack.c.b16 %v789, %v788
  %934 = vmatprep.subr.bf16.mxu0 0
  %935 = vmatpush1.bf16.msra.mxu0 %v797
  %936 = vmatprep.subr.bf16.mxu0 0
  %937 = vmatpush1.bf16.msra.mxu0 %v796
  %938 = vmatprep.subr.bf16.mxu0 0
  %939 = vmatpush1.bf16.msra.mxu0 %v795
  %940 = vmatprep.subr.bf16.mxu0 0
  %941 = vmatpush1.bf16.msra.mxu0 %v794
  %942 = vmatprep.subr.bf16.mxu0 0
  %943 = vmatpush1.bf16.msra.mxu0 %v793
  %944 = vmatprep.subr.bf16.mxu0 0
  %945 = vmatpush1.bf16.msra.mxu0 %v792
  %946 = vmatprep.subr.bf16.mxu0 0
  %947 = vmatpush1.bf16.msra.mxu0 %v791
  %948 = vmatprep.subr.bf16.mxu0 0
  %949 = vmatpush1.bf16.msra.mxu0 %v790
  %950 = vmatprep.subr.bf16.mxu0 0
  %951 = vmatpush2.bf16.msra.mxu0 %v805
  %952 = vmatprep.subr.bf16.mxu0 0
  %953 = vmatpush2.bf16.msra.mxu0 %v804
  %954 = vmatprep.subr.bf16.mxu0 0
  %955 = vmatpush2.bf16.msra.mxu0 %v803
  %956 = vmatprep.subr.bf16.mxu0 0
  %957 = vmatpush2.bf16.msra.mxu0 %v802
  %958 = vmatprep.subr.bf16.mxu0 0
  %959 = vmatpush2.bf16.msra.mxu0 %v801
  %960 = vmatprep.subr.bf16.mxu0 0
  %961 = vmatpush2.bf16.msra.mxu0 %v800
  %962 = vmatprep.subr.bf16.mxu0 0
  %963 = vmatpush2.bf16.msra.mxu0 %v799
  %964 = vmatprep.subr.bf16.mxu0 0
  %965 = vmatpush2.bf16.msra.mxu0 %v798
  %966 = vmatprep.mubr.bf16.mxu0 %v395
  %967 = vmatmul.mubr.bf16.gmra.mxu0 %v394
  %v968 = vpop.f32.mrf.mxu0
  %v969 = vadd.f32 %v224, %v968
  %v970 = vpop.f32.mrf.mxu0
  %v971 = vpop.f32.mrf.mxu0
  %v972 = vadd.f32 %v224, %v971
  %v973 = vpop.f32.mrf.mxu0
  %974 = vmatprep.mubr.bf16.mxu0 %v404
  %975 = vmatmul.mubr.bf16.gmra.mxu0 %v403
  %v976 = vpop.f32.mrf.mxu0
  %v977 = vadd.f32 %v224, %v976
  %v978 = vpop.f32.mrf.mxu0
  %v979 = vpop.f32.mrf.mxu0
  %v980 = vadd.f32 %v224, %v979
  %v981 = vpop.f32.mrf.mxu0
  %982 = vmatprep.mubr.bf16.mxu0 %v413
  %983 = vmatmul.mubr.bf16.gmra.mxu0 %v412
  %v984 = vpop.f32.mrf.mxu0
  %v985 = vadd.f32 %v224, %v984
  %v986 = vpop.f32.mrf.mxu0
  %v987 = vpop.f32.mrf.mxu0
  %v988 = vadd.f32 %v224, %v987
  %v989 = vpop.f32.mrf.mxu0
  %990 = vmatprep.mubr.bf16.mxu0 %v422
  %991 = vmatmul.mubr.bf16.gmra.mxu0 %v421
  %v992 = vpop.f32.mrf.mxu0
  %v993 = vadd.f32 %v224, %v992
  %v994 = vpop.f32.mrf.mxu0
  %v995 = vpop.f32.mrf.mxu0
  %v996 = vadd.f32 %v224, %v995
  %v997 = vpop.f32.mrf.mxu0
  %998 = vmatprep.mubr.bf16.mxu0 %v431
  %999 = vmatmul.mubr.bf16.gmra.mxu0 %v430
  %v1000 = vpop.f32.mrf.mxu0
  %v1001 = vadd.f32 %v224, %v1000
  %v1002 = vpop.f32.mrf.mxu0
  %v1003 = vpop.f32.mrf.mxu0
  %v1004 = vadd.f32 %v224, %v1003
  %v1005 = vpop.f32.mrf.mxu0
  %1006 = vmatprep.mubr.bf16.mxu0 %v440
  %1007 = vmatmul.mubr.bf16.gmra.mxu0 %v439
  %v1008 = vpop.f32.mrf.mxu0
  %v1009 = vadd.f32 %v224, %v1008
  %v1010 = vpop.f32.mrf.mxu0
  %v1011 = vpop.f32.mrf.mxu0
  %v1012 = vadd.f32 %v224, %v1011
  %v1013 = vpop.f32.mrf.mxu0
  %1014 = vdwg.mxu0
  %1015 = vmatprep.subr.bf16.mxu0 0
  %1016 = vmatpush1.bf16.msra.mxu0 %v813
  %1017 = vmatprep.subr.bf16.mxu0 0
  %1018 = vmatpush1.bf16.msra.mxu0 %v812
  %1019 = vmatprep.subr.bf16.mxu0 0
  %1020 = vmatpush1.bf16.msra.mxu0 %v811
  %1021 = vmatprep.subr.bf16.mxu0 0
  %1022 = vmatpush1.bf16.msra.mxu0 %v810
  %1023 = vmatprep.subr.bf16.mxu0 0
  %1024 = vmatpush1.bf16.msra.mxu0 %v809
  %1025 = vmatprep.subr.bf16.mxu0 0
  %1026 = vmatpush1.bf16.msra.mxu0 %v808
  %1027 = vmatprep.subr.bf16.mxu0 0
  %1028 = vmatpush1.bf16.msra.mxu0 %v807
  %1029 = vmatprep.subr.bf16.mxu0 0
  %1030 = vmatpush1.bf16.msra.mxu0 %v806
  %1031 = vmatprep.subr.bf16.mxu0 0
  %1032 = vmatpush2.bf16.msra.mxu0 %v821
  %1033 = vmatprep.subr.bf16.mxu0 0
  %1034 = vmatpush2.bf16.msra.mxu0 %v820
  %1035 = vmatprep.subr.bf16.mxu0 0
  %1036 = vmatpush2.bf16.msra.mxu0 %v819
  %1037 = vmatprep.subr.bf16.mxu0 0
  %1038 = vmatpush2.bf16.msra.mxu0 %v818
  %1039 = vmatprep.subr.bf16.mxu0 0
  %1040 = vmatpush2.bf16.msra.mxu0 %v817
  %1041 = vmatprep.subr.bf16.mxu0 0
  %1042 = vmatpush2.bf16.msra.mxu0 %v816
  %1043 = vmatprep.subr.bf16.mxu0 0
  %1044 = vmatpush2.bf16.msra.mxu0 %v815
  %1045 = vmatprep.subr.bf16.mxu0 0
  %1046 = vmatpush2.bf16.msra.mxu0 %v814
  %1047 = vmatprep.mubr.bf16.mxu0 %v397
  %1048 = vmatmul.mubr.bf16.gmra.mxu0 %v396
  %v1049 = vpop.f32.mrf.mxu0
  %v1050 = vadd.f32 %v969, %v1049
  %v1051 = vpop.f32.mrf.mxu0
  %v1052 = vpop.f32.mrf.mxu0
  %v1053 = vadd.f32 %v972, %v1052
  %v1054 = vpop.f32.mrf.mxu0
  %1055 = vmatprep.mubr.bf16.mxu0 %v406
  %1056 = vmatmul.mubr.bf16.gmra.mxu0 %v405
  %v1057 = vpop.f32.mrf.mxu0
  %v1058 = vadd.f32 %v977, %v1057
  %v1059 = vpop.f32.mrf.mxu0
  %v1060 = vpop.f32.mrf.mxu0
  %v1061 = vadd.f32 %v980, %v1060
  %v1062 = vpop.f32.mrf.mxu0
  %1063 = vmatprep.mubr.bf16.mxu0 %v415
  %1064 = vmatmul.mubr.bf16.gmra.mxu0 %v414
  %v1065 = vpop.f32.mrf.mxu0
  %v1066 = vadd.f32 %v985, %v1065
  %v1067 = vpop.f32.mrf.mxu0
  %v1068 = vpop.f32.mrf.mxu0
  %v1069 = vadd.f32 %v988, %v1068
  %v1070 = vpop.f32.mrf.mxu0
  %1071 = vmatprep.mubr.bf16.mxu0 %v424
  %1072 = vmatmul.mubr.bf16.gmra.mxu0 %v423
  %v1073 = vpop.f32.mrf.mxu0
  %v1074 = vadd.f32 %v993, %v1073
  %v1075 = vpop.f32.mrf.mxu0
  %v1076 = vpop.f32.mrf.mxu0
  %v1077 = vadd.f32 %v996, %v1076
  %v1078 = vpop.f32.mrf.mxu0
  %1079 = vmatprep.mubr.bf16.mxu0 %v433
  %1080 = vmatmul.mubr.bf16.gmra.mxu0 %v432
  %v1081 = vpop.f32.mrf.mxu0
  %v1082 = vadd.f32 %v1001, %v1081
  %v1083 = vpop.f32.mrf.mxu0
  %v1084 = vpop.f32.mrf.mxu0
  %v1085 = vadd.f32 %v1004, %v1084
  %v1086 = vpop.f32.mrf.mxu0
  %1087 = vmatprep.mubr.bf16.mxu0 %v442
  %1088 = vmatmul.mubr.bf16.gmra.mxu0 %v441
  %v1089 = vpop.f32.mrf.mxu0
  %v1090 = vadd.f32 %v1009, %v1089
  %v1091 = vpop.f32.mrf.mxu0
  %v1092 = vpop.f32.mrf.mxu0
  %v1093 = vadd.f32 %v1012, %v1092
  %v1094 = vpop.f32.mrf.mxu0
  %1095 = vdwg.mxu0
  %1096 = vmatprep.subr.bf16.mxu0 0
  %1097 = vmatpush1.bf16.msra.mxu0 %v829
  %1098 = vmatprep.subr.bf16.mxu0 0
  %1099 = vmatpush1.bf16.msra.mxu0 %v828
  %1100 = vmatprep.subr.bf16.mxu0 0
  %1101 = vmatpush1.bf16.msra.mxu0 %v827
  %1102 = vmatprep.subr.bf16.mxu0 0
  %1103 = vmatpush1.bf16.msra.mxu0 %v826
  %1104 = vmatprep.subr.bf16.mxu0 0
  %1105 = vmatpush1.bf16.msra.mxu0 %v825
  %1106 = vmatprep.subr.bf16.mxu0 0
  %1107 = vmatpush1.bf16.msra.mxu0 %v824
  %1108 = vmatprep.subr.bf16.mxu0 0
  %1109 = vmatpush1.bf16.msra.mxu0 %v823
  %1110 = vmatprep.subr.bf16.mxu0 0
  %1111 = vmatpush1.bf16.msra.mxu0 %v822
  %1112 = vmatprep.subr.bf16.mxu0 0
  %1113 = vmatpush2.bf16.msra.mxu0 %v837
  %1114 = vmatprep.subr.bf16.mxu0 0
  %1115 = vmatpush2.bf16.msra.mxu0 %v836
  %1116 = vmatprep.subr.bf16.mxu0 0
  %1117 = vmatpush2.bf16.msra.mxu0 %v835
  %1118 = vmatprep.subr.bf16.mxu0 0
  %1119 = vmatpush2.bf16.msra.mxu0 %v834
  %1120 = vmatprep.subr.bf16.mxu0 0
  %1121 = vmatpush2.bf16.msra.mxu0 %v833
  %1122 = vmatprep.subr.bf16.mxu0 0
  %1123 = vmatpush2.bf16.msra.mxu0 %v832
  %1124 = vmatprep.subr.bf16.mxu0 0
  %1125 = vmatpush2.bf16.msra.mxu0 %v831
  %1126 = vmatprep.subr.bf16.mxu0 0
  %1127 = vmatpush2.bf16.msra.mxu0 %v830
  %1128 = vmatprep.mubr.bf16.mxu0 %v399
  %1129 = vmatmul.mubr.bf16.gmra.mxu0 %v398
  %v1130 = vpop.f32.mrf.mxu0
  %v1131 = vadd.f32 %v1050, %v1130
  %v1132 = vpop.f32.mrf.mxu0
  %v1133 = vpop.f32.mrf.mxu0
  %v1134 = vadd.f32 %v1053, %v1133
  %v1135 = vpop.f32.mrf.mxu0
  %1136 = vmatprep.mubr.bf16.mxu0 %v408
  %1137 = vmatmul.mubr.bf16.gmra.mxu0 %v407
  %v1138 = vpop.f32.mrf.mxu0
  %v1139 = vadd.f32 %v1058, %v1138
  %v1140 = vpop.f32.mrf.mxu0
  %v1141 = vpop.f32.mrf.mxu0
  %v1142 = vadd.f32 %v1061, %v1141
  %v1143 = vpop.f32.mrf.mxu0
  %1144 = vmatprep.mubr.bf16.mxu0 %v417
  %1145 = vmatmul.mubr.bf16.gmra.mxu0 %v416
  %v1146 = vpop.f32.mrf.mxu0
  %v1147 = vadd.f32 %v1066, %v1146
  %v1148 = vpop.f32.mrf.mxu0
  %v1149 = vpop.f32.mrf.mxu0
  %v1150 = vadd.f32 %v1069, %v1149
  %v1151 = vpop.f32.mrf.mxu0
  %1152 = vmatprep.mubr.bf16.mxu0 %v426
  %1153 = vmatmul.mubr.bf16.gmra.mxu0 %v425
  %v1154 = vpop.f32.mrf.mxu0
  %v1155 = vadd.f32 %v1074, %v1154
  %v1156 = vpop.f32.mrf.mxu0
  %v1157 = vpop.f32.mrf.mxu0
  %v1158 = vadd.f32 %v1077, %v1157
  %v1159 = vpop.f32.mrf.mxu0
  %1160 = vmatprep.mubr.bf16.mxu0 %v435
  %1161 = vmatmul.mubr.bf16.gmra.mxu0 %v434
  %v1162 = vpop.f32.mrf.mxu0
  %v1163 = vadd.f32 %v1082, %v1162
  %v1164 = vpop.f32.mrf.mxu0
  %v1165 = vpop.f32.mrf.mxu0
  %v1166 = vadd.f32 %v1085, %v1165
  %v1167 = vpop.f32.mrf.mxu0
  %1168 = vmatprep.mubr.bf16.mxu0 %v444
  %1169 = vmatmul.mubr.bf16.gmra.mxu0 %v443
  %v1170 = vpop.f32.mrf.mxu0
  %v1171 = vadd.f32 %v1090, %v1170
  %v1172 = vpop.f32.mrf.mxu0
  %v1173 = vpop.f32.mrf.mxu0
  %v1174 = vadd.f32 %v1093, %v1173
  %v1175 = vpop.f32.mrf.mxu0
  %1176 = vdwg.mxu0
  %1177 = vmatprep.subr.bf16.mxu0 0
  %1178 = vmatpush1.bf16.msra.mxu0 %v845
  %1179 = vmatprep.subr.bf16.mxu0 0
  %1180 = vmatpush1.bf16.msra.mxu0 %v844
  %1181 = vmatprep.subr.bf16.mxu0 0
  %1182 = vmatpush1.bf16.msra.mxu0 %v843
  %1183 = vmatprep.subr.bf16.mxu0 0
  %1184 = vmatpush1.bf16.msra.mxu0 %v842
  %1185 = vmatprep.subr.bf16.mxu0 0
  %1186 = vmatpush1.bf16.msra.mxu0 %v841
  %1187 = vmatprep.subr.bf16.mxu0 0
  %1188 = vmatpush1.bf16.msra.mxu0 %v840
  %1189 = vmatprep.subr.bf16.mxu0 0
  %1190 = vmatpush1.bf16.msra.mxu0 %v839
  %1191 = vmatprep.subr.bf16.mxu0 0
  %1192 = vmatpush1.bf16.msra.mxu0 %v838
  %1193 = vmatprep.subr.bf16.mxu0 0
  %1194 = vmatpush2.bf16.msra.mxu0 %v853
  %1195 = vmatprep.subr.bf16.mxu0 0
  %1196 = vmatpush2.bf16.msra.mxu0 %v852
  %1197 = vmatprep.subr.bf16.mxu0 0
  %1198 = vmatpush2.bf16.msra.mxu0 %v851
  %1199 = vmatprep.subr.bf16.mxu0 0
  %1200 = vmatpush2.bf16.msra.mxu0 %v850
  %1201 = vmatprep.subr.bf16.mxu0 0
  %1202 = vmatpush2.bf16.msra.mxu0 %v849
  %1203 = vmatprep.subr.bf16.mxu0 0
  %1204 = vmatpush2.bf16.msra.mxu0 %v848
  %1205 = vmatprep.subr.bf16.mxu0 0
  %1206 = vmatpush2.bf16.msra.mxu0 %v847
  %1207 = vmatprep.subr.bf16.mxu0 0
  %1208 = vmatpush2.bf16.msra.mxu0 %v846
  %1209 = vmatprep.mubr.bf16.mxu0 %v401
  %1210 = vmatmul.mubr.bf16.gmra.mxu0 %v400
  %v1211 = vpop.f32.mrf.mxu0
  %v1212 = vadd.f32 %v1131, %v1211
  %v1213 = vpop.f32.mrf.mxu0
  %v1214 = vpop.f32.mrf.mxu0
  %v1215 = vadd.f32 %v1134, %v1214
  %v1216 = vpop.f32.mrf.mxu0
  %1217 = vmatprep.mubr.bf16.mxu0 %v410
  %1218 = vmatmul.mubr.bf16.gmra.mxu0 %v409
  %v1219 = vpop.f32.mrf.mxu0
  %v1220 = vadd.f32 %v1139, %v1219
  %v1221 = vpop.f32.mrf.mxu0
  %v1222 = vpop.f32.mrf.mxu0
  %v1223 = vadd.f32 %v1142, %v1222
  %v1224 = vpop.f32.mrf.mxu0
  %1225 = vmatprep.mubr.bf16.mxu0 %v419
  %1226 = vmatmul.mubr.bf16.gmra.mxu0 %v418
  %v1227 = vpop.f32.mrf.mxu0
  %v1228 = vadd.f32 %v1147, %v1227
  %v1229 = vpop.f32.mrf.mxu0
  %v1230 = vpop.f32.mrf.mxu0
  %v1231 = vadd.f32 %v1150, %v1230
  %v1232 = vpop.f32.mrf.mxu0
  %1233 = vmatprep.mubr.bf16.mxu0 %v428
  %1234 = vmatmul.mubr.bf16.gmra.mxu0 %v427
  %v1235 = vpop.f32.mrf.mxu0
  %v1236 = vadd.f32 %v1155, %v1235
  %v1237 = vpop.f32.mrf.mxu0
  %v1238 = vpop.f32.mrf.mxu0
  %v1239 = vadd.f32 %v1158, %v1238
  %v1240 = vpop.f32.mrf.mxu0
  %1241 = vmatprep.mubr.bf16.mxu0 %v437
  %1242 = vmatmul.mubr.bf16.gmra.mxu0 %v436
  %v1243 = vpop.f32.mrf.mxu0
  %v1244 = vadd.f32 %v1163, %v1243
  %v1245 = vpop.f32.mrf.mxu0
  %v1246 = vpop.f32.mrf.mxu0
  %v1247 = vadd.f32 %v1166, %v1246
  %v1248 = vpop.f32.mrf.mxu0
  %1249 = vmatprep.mubr.bf16.mxu0 %v446
  %1250 = vmatmul.mubr.bf16.gmra.mxu0 %v445
  %v1251 = vpop.f32.mrf.mxu0
  %v1252 = vadd.f32 %v1171, %v1251
  %v1253 = vpop.f32.mrf.mxu0
  %v1254 = vpop.f32.mrf.mxu0
  %v1255 = vadd.f32 %v1174, %v1254
  %v1256 = vpop.f32.mrf.mxu0
  %1257 = vdwg.mxu0
  %1258 = vmatprep.subr.bf16.mxu0 0
  %1259 = vmatpush1.bf16.msra.mxu0 %v861
  %1260 = vmatprep.subr.bf16.mxu0 0
  %1261 = vmatpush1.bf16.msra.mxu0 %v860
  %1262 = vmatprep.subr.bf16.mxu0 0
  %1263 = vmatpush1.bf16.msra.mxu0 %v859
  %1264 = vmatprep.subr.bf16.mxu0 0
  %1265 = vmatpush1.bf16.msra.mxu0 %v858
  %1266 = vmatprep.subr.bf16.mxu0 0
  %1267 = vmatpush1.bf16.msra.mxu0 %v857
  %1268 = vmatprep.subr.bf16.mxu0 0
  %1269 = vmatpush1.bf16.msra.mxu0 %v856
  %1270 = vmatprep.subr.bf16.mxu0 0
  %1271 = vmatpush1.bf16.msra.mxu0 %v855
  %1272 = vmatprep.subr.bf16.mxu0 0
  %1273 = vmatpush1.bf16.msra.mxu0 %v854
  %1274 = vmatprep.subr.bf16.mxu0 0
  %1275 = vmatpush2.bf16.msra.mxu0 0
  %1276 = vmatprep.subr.bf16.mxu0 0
  %1277 = vmatpush2.bf16.msra.mxu0 0
  %1278 = vmatprep.subr.bf16.mxu0 0
  %1279 = vmatpush2.bf16.msra.mxu0 0
  %1280 = vmatprep.subr.bf16.mxu0 0
  %1281 = vmatpush2.bf16.msra.mxu0 0
  %1282 = vmatprep.subr.bf16.mxu0 0
  %1283 = vmatpush2.bf16.msra.mxu0 0
  %1284 = vmatprep.subr.bf16.mxu0 0
  %1285 = vmatpush2.bf16.msra.mxu0 0
  %1286 = vmatprep.subr.bf16.mxu0 0
  %1287 = vmatpush2.bf16.msra.mxu0 0
  %1288 = vmatprep.subr.bf16.mxu0 0
  %1289 = vmatpush2.bf16.msra.mxu0 0
  %1290 = vmatprep.mubr.bf16.mxu0 0
  %1291 = vmatmul.mubr.bf16.gmra.mxu0 %v402
  %v1292 = vpop.f32.mrf.mxu0
  %v1293 = vadd.f32 %v1212, %v1292
  %v1294 = vpop.f32.mrf.mxu0
  %v1295 = vpop.f32.mrf.mxu0
  %v1296 = vadd.f32 %v1215, %v1295
  %v1297 = vpop.f32.mrf.mxu0
  %1298 = vmatprep.mubr.bf16.mxu0 0
  %1299 = vmatmul.mubr.bf16.gmra.mxu0 %v411
  %v1300 = vpop.f32.mrf.mxu0
  %v1301 = vadd.f32 %v1220, %v1300
  %v1302 = vpop.f32.mrf.mxu0
  %v1303 = vpop.f32.mrf.mxu0
  %v1304 = vadd.f32 %v1223, %v1303
  %v1305 = vpop.f32.mrf.mxu0
  %1306 = vmatprep.mubr.bf16.mxu0 0
  %1307 = vmatmul.mubr.bf16.gmra.mxu0 %v420
  %v1308 = vpop.f32.mrf.mxu0
  %v1309 = vadd.f32 %v1228, %v1308
  %v1310 = vpop.f32.mrf.mxu0
  %v1311 = vpop.f32.mrf.mxu0
  %v1312 = vadd.f32 %v1231, %v1311
  %v1313 = vpop.f32.mrf.mxu0
  %1314 = vmatprep.mubr.bf16.mxu0 0
  %1315 = vmatmul.mubr.bf16.gmra.mxu0 %v429
  %v1316 = vpop.f32.mrf.mxu0
  %v1317 = vadd.f32 %v1236, %v1316
  %v1318 = vpop.f32.mrf.mxu0
  %v1319 = vpop.f32.mrf.mxu0
  %v1320 = vadd.f32 %v1239, %v1319
  %v1321 = vpop.f32.mrf.mxu0
  %1322 = vmatprep.mubr.bf16.mxu0 0
  %1323 = vmatmul.mubr.bf16.gmra.mxu0 %v438
  %v1324 = vpop.f32.mrf.mxu0
  %v1325 = vadd.f32 %v1244, %v1324
  %v1326 = vpop.f32.mrf.mxu0
  %v1327 = vpop.f32.mrf.mxu0
  %v1328 = vadd.f32 %v1247, %v1327
  %v1329 = vpop.f32.mrf.mxu0
  %1330 = vmatprep.mubr.bf16.mxu0 0
  %1331 = vmatmul.mubr.bf16.gmra.mxu0 %v447
  %v1332 = vpop.f32.mrf.mxu0
  %v1333 = vadd.f32 %v1252, %v1332
  %v1334 = vpop.f32.mrf.mxu0
  %v1335 = vpop.f32.mrf.mxu0
  %v1336 = vadd.f32 %v1255, %v1335
  %v1337 = vpop.f32.mrf.mxu0
  %1338 = vdwg.mxu0
  %v1339 = vmax.f32 %v1293, 0.0
  %v1340 = vmax.f32 %v1296, 0.0
  %v1341 = vmax.f32 %v1301, 0.0
  %v1342 = vmax.f32 %v1304, 0.0
  %v1343 = vmax.f32 %v1309, 0.0
  %v1344 = vmax.f32 %v1312, 0.0
  %v1345 = vmax.f32 %v1317, 0.0
  %v1346 = vmax.f32 %v1320, 0.0
  %v1347 = vmax.f32 %v1325, 0.0
  %v1348 = vmax.f32 %v1328, 0.0
  %v1349 = vmax.f32 %v1333, 0.0
  %v1350 = vmax.f32 %v1336, 0.0
  %v1351 = vpack.c.bf16 %v1340, %v1339
  %v1352 = vpack.c.bf16 %v1342, %v1341
  %v1353 = vpack.c.bf16 %v1344, %v1343
  %v1354 = vpack.c.bf16 %v1346, %v1345
  %v1355 = vpack.c.bf16 %v1348, %v1347
  %v1356 = vpack.c.bf16 %v1350, %v1349
  %v1363 = vunpack.c.l.b16 %v1351
  %v1364 = vunpack.c.h.b16 %v1351
  %v1365 = vunpack.c.l.b16 %v1352
  %v1366 = vunpack.c.h.b16 %v1352
  %v1367 = vunpack.c.l.b16 %v1353
  %v1368 = vunpack.c.h.b16 %v1353
  %v1369 = vunpack.c.l.b16 %v1354
  %v1370 = vunpack.c.h.b16 %v1354
  %v1371 = vunpack.c.l.b16 %v1355
  %v1372 = vunpack.c.h.b16 %v1355
  %v1373 = vunpack.c.l.b16 %v1356
  %v1374 = vunpack.c.h.b16 %v1356
  %v1375 = vpack.c.b16 %v1363, %v1363
  %v1376 = vpack.c.b16 %v1364, %v1364
  %v1377 = vpack.c.b16 %v1365, %v1365
  %v1378 = vpack.c.b16 %v1366, %v1366
  %v1379 = vpack.c.b16 %v1367, %v1367
  %v1380 = vpack.c.b16 %v1368, %v1368
  %v1381 = vpack.c.b16 %v1369, %v1369
  %v1382 = vpack.c.b16 %v1370, %v1370
  %v1383 = vpack.c.b16 %v1371, %v1371
  %v1384 = vpack.c.b16 %v1372, %v1372
  %v1385 = vpack.c.b16 %v1373, %v1373
  %v1386 = vpack.c.b16 %v1374, %v1374
  %1399 = vst [vmem:[%s3] sm:$0xf] %v1375
  %1400 = vst [vmem:[%s3 + $0x4] sm:$0xf] %v1376
  %1401 = vst [vmem:[%s3 + $0x8] sm:$0xf] %v1377
  %1402 = vst [vmem:[%s3 + $0xc] sm:$0xf] %v1378
  %1403 = vst [vmem:[%s3 + $0x10] sm:$0xf] %v1379
  %1404 = vst [vmem:[%s3 + $0x14] sm:$0xf] %v1380
  %1405 = vst [vmem:[%s3 + $0x18] sm:$0xf] %v1381
  %1406 = vst [vmem:[%s3 + $0x1c] sm:$0xf] %v1382
  %1407 = vst [vmem:[%s3 + $0x20] sm:$0xf] %v1383
  %1408 = vst [vmem:[%s3 + $0x24] sm:$0xf] %v1384
  %1409 = vst [vmem:[%s3 + $0x28] sm:$0xf] %v1385
  %1410 = vst [vmem:[%s3 + $0x2c] sm:$0xf] %v1386
  // Predicated region
  $region14: #{cqil_forward.8} parent=0 // pred_check
    _
  $region15: #{cqil_forward.8} parent=0 // pred_check_branch
    %1412 = sbr.rel (0) target = $region17
  $region16: #{cqil_forward.8} parent=0 // pred_region
    _
  $region17: #{cqil_forward.8} parent=0 // pred_fallthru
    _
  // Predicated region
  $region18: #{cqil_forward.8} parent=0 // pred_check
    _
  $region19: #{cqil_forward.8} parent=0 // pred_check_branch
    %1414 = sbr.rel (0) target = $region21
  $region20: #{cqil_forward.8} parent=0 // pred_region
    _
  $region21: #{cqil_forward.8} parent=0 // pred_fallthru
    _

// kernel: cqil_forward.11
$region0: #{cqil_forward.11}
  #allocation0 [shape = 'u32[]', space=smem, size = 0x4, offset = 0x4, fixed_abs, tag = 'smem constant byte address 0x4 - core index']
  #allocation1 [shape = 'u32[144,128]{1,0:T(1,128)}', space=vmem, size = 0x12000, scoped, tag = 'internal scratch']
  #allocation2 [shape = 'f32[1,1]{1,0:T(1,128)S(1)}', space=vmem, size = 0x200, scoped, tag = 'scoped memory for cqil_forward.11']
  %s0 = inlined_call_operand.vmem [shape: bf16[4,768], index: 0, kind: input, shape index: {}]
  %s1 = inlined_call_operand.vmem [shape: bf16[4,1536], index: 1, kind: input, shape index: {}]
  %s2 = inlined_call_operand.vmem [shape: bf16[768,32], index: 2, kind: input, shape index: {}]
  %s3 = inlined_call_operand.vmem [shape: f32[1,32], index: 3, kind: input, shape index: {}]
  %s4 = inlined_call_operand.vmem [shape: bf16[1536,32], index: 4, kind: input, shape index: {}]
  %s5 = inlined_call_operand.vmem [shape: f32[1,32], index: 5, kind: input, shape index: {}]
  %s6 = inlined_call_operand.vmem [shape: bf16[32,32], index: 6, kind: input, shape index: {}]
  %s7 = inlined_call_operand.vmem [shape: f32[1,32], index: 7, kind: input, shape index: {}]
  %s8 = inlined_call_operand.vmem [shape: bf16[32,32], index: 8, kind: input, shape index: {}]
  %s9 = inlined_call_operand.vmem [shape: f32[1,32], index: 9, kind: input, shape index: {}]
  %s10 = inlined_call_operand.vmem [shape: bf16[32,1], index: 10, kind: input, shape index: {}]
  %s11 = inlined_call_operand.<no memory space> [shape: f32[1,1], index: 11, kind: input, shape index: {}]
  %s12 = inlined_call_operand.hbm [shape: f32[1,1], index: 12, kind: output, shape index: {}]
  %s13 = sld [smem:[#allocation0]]
  $region58: #{cqil_forward.11} parent=0
    _
  %s15 = ssub.s32 1, %s13
  %s16 = scalar_select 0, %s15, %s13
  %v17 = vstv %s11
  %18 = vst [vmem:[#allocation2] sm:$0x1] %v17
  $region1: #{cqil_forward.11} parent=0
    #allocation3 [shape = 'u8[512]{0}', space=vmem, size = 0x400, scoped, tag = 'output window, operand 0, single buffered']
    #allocation4 [shape = 's32[1]{0}', space=sflag, size = 0x4, scoped, tag = 'scoped memory for cqil_forward.11']
    %19 = vsyncpa [#allocation4], 0
    // Predicated region
    $region2: #{cqil_forward.11} parent=1 // pred_check
      _
    $region3: #{cqil_forward.11} parent=1 // pred_check_branch
      %21 = sbr.rel (0) target = $region5
    $region4: #{cqil_forward.11} parent=1 // pred_region
      _
    $region5: #{cqil_forward.11} parent=1 // pred_fallthru
      _
    // Predicated region
    $region6: #{cqil_forward.11} parent=1 // pred_check
      _
    $region7: #{cqil_forward.11} parent=1 // pred_check_branch
      %23 = sbr.rel (0) target = $region9
    $region8: #{cqil_forward.11} parent=1 // pred_region
      _
    $region9: #{cqil_forward.11} parent=1 // pred_fallthru
      _
    // Predicated region
    $region10: #{cqil_forward.11} parent=1 // pred_check
      _
    $region11: #{cqil_forward.11} parent=1 // pred_check_branch
      %25 = sbr.rel (0) target = $region13
    $region12: #{cqil_forward.11} parent=1 // pred_region
      _
    $region13: #{cqil_forward.11} parent=1 // pred_fallthru
      _
    // Predicated region
    $region14: #{cqil_forward.11} parent=1 // pred_check
      _
    $region15: #{cqil_forward.11} parent=1 // pred_check_branch
      %27 = sbr.rel (0) target = $region17
    $region16: #{cqil_forward.11} parent=1 // pred_region
      _
    $region17: #{cqil_forward.11} parent=1 // pred_fallthru
      _
    // Predicated region
    $region18: #{cqil_forward.11} parent=1 // pred_check
      _
    $region19: #{cqil_forward.11} parent=1 // pred_check_branch
      %29 = sbr.rel (0) target = $region21
    $region20: #{cqil_forward.11} parent=1 // pred_region
      _
    $region21: #{cqil_forward.11} parent=1 // pred_fallthru
      _
    // Predicated region
    $region22: #{cqil_forward.11} parent=1 // pred_check
      _
    $region23: #{cqil_forward.11} parent=1 // pred_check_branch
      %31 = sbr.rel (0) target = $region25
    $region24: #{cqil_forward.11} parent=1 // pred_region
      _
    $region25: #{cqil_forward.11} parent=1 // pred_fallthru
      _
    // Predicated region
    $region26: #{cqil_forward.11} parent=1 // pred_check
      _
    $region27: #{cqil_forward.11} parent=1 // pred_check_branch
      %33 = sbr.rel (0) target = $region29
    $region28: #{cqil_forward.11} parent=1 // pred_region
      _
    $region29: #{cqil_forward.11} parent=1 // pred_fallthru
      _
    // Predicated region
    $region30: #{cqil_forward.11} parent=1 // pred_check
      _
    $region31: #{cqil_forward.11} parent=1 // pred_check_branch
      %35 = sbr.rel (0) target = $region33
    $region32: #{cqil_forward.11} parent=1 // pred_region
      _
    $region33: #{cqil_forward.11} parent=1 // pred_fallthru
      _
    // Predicated region
    $region34: #{cqil_forward.11} parent=1 // pred_check
      _
    $region35: #{cqil_forward.11} parent=1 // pred_check_branch
      %37 = sbr.rel (0) target = $region37
    $region36: #{cqil_forward.11} parent=1 // pred_region
      _
    $region37: #{cqil_forward.11} parent=1 // pred_fallthru
      _
    // Predicated region
    $region38: #{cqil_forward.11} parent=1 // pred_check
      _
    $region39: #{cqil_forward.11} parent=1 // pred_check_branch
      %39 = sbr.rel (0) target = $region41
    $region40: #{cqil_forward.11} parent=1 // pred_region
      _
    $region41: #{cqil_forward.11} parent=1 // pred_fallthru
      _
    // Predicated region
    $region42: #{cqil_forward.11} parent=1 // pred_check
      _
    $region43: #{cqil_forward.11} parent=1 // pred_check_branch
      %41 = sbr.rel (0) target = $region45
    $region44: #{cqil_forward.11} parent=1 // pred_region
      _
    $region45: #{cqil_forward.11} parent=1 // pred_fallthru
      _
    // Predicated region
    $region46: #{cqil_forward.11} parent=1 // pred_check
      _
    $region47: #{cqil_forward.11} parent=1 // pred_check_branch
      %43 = sbr.rel (0) target = $region49
    $region48: #{cqil_forward.11} parent=1 // pred_region
      _
    $region49: #{cqil_forward.11} parent=1 // pred_fallthru
      _
    %v45 = vld [vmem:[%s0] sm:$0xff]
    %v46 = vld [vmem:[%s0 + $0x8] sm:$0xf]
    %v47 = vld [vmem:[%s2] sm:$0xf]
    %v48 = vld [vmem:[%s2 + $0x4] sm:$0xf]
    %v49 = vld [vmem:[%s2 + $0x8] sm:$0xf]
    %v50 = vld [vmem:[%s2 + $0xc] sm:$0xf]
    %v51 = vld [vmem:[%s2 + $0x10] sm:$0xf]
    %v52 = vld [vmem:[%s2 + $0x14] sm:$0xf]
    %v53 = vld [vmem:[%s2 + $0x18] sm:$0xf]
    %v54 = vld [vmem:[%s2 + $0x1c] sm:$0xf]
    %v55 = vld [vmem:[%s2 + $0x20] sm:$0xf]
    %v56 = vld [vmem:[%s2 + $0x24] sm:$0xf]
    %v57 = vld [vmem:[%s2 + $0x28] sm:$0xf]
    %v58 = vld [vmem:[%s2 + $0x2c] sm:$0xf]
    %v59 = vld [vmem:[%s2 + $0x30] sm:$0xf]
    %v60 = vld [vmem:[%s2 + $0x34] sm:$0xf]
    %v61 = vld [vmem:[%s2 + $0x38] sm:$0xf]
    %v62 = vld [vmem:[%s2 + $0x3c] sm:$0xf]
    %v63 = vld [vmem:[%s2 + $0x40] sm:$0xf]
    %v64 = vld [vmem:[%s2 + $0x44] sm:$0xf]
    %v65 = vld [vmem:[%s2 + $0x48] sm:$0xf]
    %v66 = vld [vmem:[%s2 + $0x4c] sm:$0xf]
    %v67 = vld [vmem:[%s2 + $0x50] sm:$0xf]
    %v68 = vld [vmem:[%s2 + $0x54] sm:$0xf]
    %v69 = vld [vmem:[%s2 + $0x58] sm:$0xf]
    %v70 = vld [vmem:[%s2 + $0x5c] sm:$0xf]
    %v71 = vld [vmem:[%s2 + $0x60] sm:$0xf]
    %v72 = vld [vmem:[%s2 + $0x64] sm:$0xf]
    %v73 = vld [vmem:[%s2 + $0x68] sm:$0xf]
    %v74 = vld [vmem:[%s2 + $0x6c] sm:$0xf]
    %v75 = vld [vmem:[%s2 + $0x70] sm:$0xf]
    %v76 = vld [vmem:[%s2 + $0x74] sm:$0xf]
    %v77 = vld [vmem:[%s2 + $0x78] sm:$0xf]
    %v78 = vld [vmem:[%s2 + $0x7c] sm:$0xf]
    %v79 = vld [vmem:[%s2 + $0x80] sm:$0xf]
    %v80 = vld [vmem:[%s2 + $0x84] sm:$0xf]
    %v81 = vld [vmem:[%s2 + $0x88] sm:$0xf]
    %v82 = vld [vmem:[%s2 + $0x8c] sm:$0xf]
    %v83 = vld [vmem:[%s2 + $0x90] sm:$0xf]
    %v84 = vld [vmem:[%s2 + $0x94] sm:$0xf]
    %v85 = vld [vmem:[%s2 + $0x98] sm:$0xf]
    %v86 = vld [vmem:[%s2 + $0x9c] sm:$0xf]
    %v87 = vld [vmem:[%s2 + $0xa0] sm:$0xf]
    %v88 = vld [vmem:[%s2 + $0xa4] sm:$0xf]
    %v89 = vld [vmem:[%s2 + $0xa8] sm:$0xf]
    %v90 = vld [vmem:[%s2 + $0xac] sm:$0xf]
    %v91 = vld [vmem:[%s2 + $0xb0] sm:$0xf]
    %v92 = vld [vmem:[%s2 + $0xb4] sm:$0xf]
    %v93 = vld [vmem:[%s2 + $0xb8] sm:$0xf]
    %v94 = vld [vmem:[%s2 + $0xbc] sm:$0xf]
    %v95 = vld [vmem:[%s2 + $0xc0] sm:$0xf]
    %v96 = vld [vmem:[%s2 + $0xc4] sm:$0xf]
    %v97 = vld [vmem:[%s2 + $0xc8] sm:$0xf]
    %v98 = vld [vmem:[%s2 + $0xcc] sm:$0xf]
    %v99 = vld [vmem:[%s2 + $0xd0] sm:$0xf]
    %v100 = vld [vmem:[%s2 + $0xd4] sm:$0xf]
    %v101 = vld [vmem:[%s2 + $0xd8] sm:$0xf]
    %v102 = vld [vmem:[%s2 + $0xdc] sm:$0xf]
    %v103 = vld [vmem:[%s2 + $0xe0] sm:$0xf]
    %v104 = vld [vmem:[%s2 + $0xe4] sm:$0xf]
    %v105 = vld [vmem:[%s2 + $0xe8] sm:$0xf]
    %v106 = vld [vmem:[%s2 + $0xec] sm:$0xf]
    %v107 = vld [vmem:[%s2 + $0xf0] sm:$0xf]
    %v108 = vld [vmem:[%s2 + $0xf4] sm:$0xf]
    %v109 = vld [vmem:[%s2 + $0xf8] sm:$0xf]
    %v110 = vld [vmem:[%s2 + $0xfc] sm:$0xf]
    %v111 = vld [vmem:[%s2 + $0x100] sm:$0xf]
    %v112 = vld [vmem:[%s2 + $0x104] sm:$0xf]
    %v113 = vld [vmem:[%s2 + $0x108] sm:$0xf]
    %v114 = vld [vmem:[%s2 + $0x10c] sm:$0xf]
    %v115 = vld [vmem:[%s2 + $0x110] sm:$0xf]
    %v116 = vld [vmem:[%s2 + $0x114] sm:$0xf]
    %v117 = vld [vmem:[%s2 + $0x118] sm:$0xf]
    %v118 = vld [vmem:[%s2 + $0x11c] sm:$0xf]
    %v119 = vld [vmem:[%s2 + $0x120] sm:$0xf]
    %v120 = vld [vmem:[%s2 + $0x124] sm:$0xf]
    %v121 = vld [vmem:[%s2 + $0x128] sm:$0xf]
    %v122 = vld [vmem:[%s2 + $0x12c] sm:$0xf]
    %v123 = vld [vmem:[%s2 + $0x130] sm:$0xf]
    %v124 = vld [vmem:[%s2 + $0x134] sm:$0xf]
    %v125 = vld [vmem:[%s2 + $0x138] sm:$0xf]
    %v126 = vld [vmem:[%s2 + $0x13c] sm:$0xf]
    %v127 = vld [vmem:[%s2 + $0x140] sm:$0xf]
    %v128 = vld [vmem:[%s2 + $0x144] sm:$0xf]
    %v129 = vld [vmem:[%s2 + $0x148] sm:$0xf]
    %v130 = vld [vmem:[%s2 + $0x14c] sm:$0xf]
    %v131 = vld [vmem:[%s2 + $0x150] sm:$0xf]
    %v132 = vld [vmem:[%s2 + $0x154] sm:$0xf]
    %v133 = vld [vmem:[%s2 + $0x158] sm:$0xf]
    %v134 = vld [vmem:[%s2 + $0x15c] sm:$0xf]
    %v135 = vld [vmem:[%s2 + $0x160] sm:$0xf]
    %v136 = vld [vmem:[%s2 + $0x164] sm:$0xf]
    %v137 = vld [vmem:[%s2 + $0x168] sm:$0xf]
    %v138 = vld [vmem:[%s2 + $0x16c] sm:$0xf]
    %v139 = vld [vmem:[%s2 + $0x170] sm:$0xf]
    %v140 = vld [vmem:[%s2 + $0x174] sm:$0xf]
    %v141 = vld [vmem:[%s2 + $0x178] sm:$0xf]
    %v142 = vld [vmem:[%s2 + $0x17c] sm:$0xf]
    %v143 = vld [vmem:[%s3] sm:$0x1]
    %v145 = vlaneseq
    %v146 = vshrl.u32 %v145, 7
    %v147 = vsub.s32 0, %v146
    %v148 = vrot.slane %v143, %v147
    %v152 = vcombine.high %v45, %v45
    %v154 = vunpack.c.l.s4 1983009808
    %v155 = vunpack.c.0.s8 %v154
    %v156 = vlaneseq
    %v157 = vshrl.u32 %v156, 7
    %v158 = vsub.s32 %v155, %v157
    %v159 = vrot.slane %v45, %v158
    %v161 = vunpack.c.l.s4 1983009808
    %v162 = vunpack.c.0.s8 %v161
    %v163 = vlaneseq
    %v164 = vshrl.u32 %v163, 7
    %v165 = vsub.s32 %v162, %v164
    %v166 = vrot.slane %v152, %v165
    %v167 = vcombine.high %v159, %v159
    %v168 = vcombine.high %v166, %v166
    %v170 = vunpack.c.l.s4 1983009808
    %v171 = vunpack.c.0.s8 %v170
    %v172 = vlaneseq
    %v173 = vshrl.u32 %v172, 7
    %v174 = vsub.s32 %v171, %v173
    %v175 = vrot.slane %v46, %v174
    %v176 = vcombine.high %v175, %v175
    %v279 = vunpack.c.l.b16 %v47
    %v280 = vunpack.c.l.b16 %v48
    %v281 = vunpack.c.l.b16 %v49
    %v282 = vunpack.c.l.b16 %v50
    %v283 = vunpack.c.l.b16 %v51
    %v284 = vunpack.c.l.b16 %v52
    %v285 = vunpack.c.l.b16 %v53
    %v286 = vunpack.c.l.b16 %v54
    %v287 = vunpack.c.l.b16 %v55
    %v288 = vunpack.c.l.b16 %v56
    %v289 = vunpack.c.l.b16 %v57
    %v290 = vunpack.c.l.b16 %v58
    %v291 = vunpack.c.l.b16 %v59
    %v292 = vunpack.c.l.b16 %v60
    %v293 = vunpack.c.l.b16 %v61
    %v294 = vunpack.c.l.b16 %v62
    %v295 = vunpack.c.l.b16 %v63
    %v296 = vunpack.c.l.b16 %v64
    %v297 = vunpack.c.l.b16 %v65
    %v298 = vunpack.c.l.b16 %v66
    %v299 = vunpack.c.l.b16 %v67
    %v300 = vunpack.c.l.b16 %v68
    %v301 = vunpack.c.l.b16 %v69
    %v302 = vunpack.c.l.b16 %v70
    %v303 = vunpack.c.l.b16 %v71
    %v304 = vunpack.c.l.b16 %v72
    %v305 = vunpack.c.l.b16 %v73
    %v306 = vunpack.c.l.b16 %v74
    %v307 = vunpack.c.l.b16 %v75
    %v308 = vunpack.c.l.b16 %v76
    %v309 = vunpack.c.l.b16 %v77
    %v310 = vunpack.c.l.b16 %v78
    %v311 = vunpack.c.l.b16 %v79
    %v312 = vunpack.c.l.b16 %v80
    %v313 = vunpack.c.l.b16 %v81
    %v314 = vunpack.c.l.b16 %v82
    %v315 = vunpack.c.l.b16 %v83
    %v316 = vunpack.c.l.b16 %v84
    %v317 = vunpack.c.l.b16 %v85
    %v318 = vunpack.c.l.b16 %v86
    %v319 = vunpack.c.l.b16 %v87
    %v320 = vunpack.c.l.b16 %v88
    %v321 = vunpack.c.l.b16 %v89
    %v322 = vunpack.c.l.b16 %v90
    %v323 = vunpack.c.l.b16 %v91
    %v324 = vunpack.c.l.b16 %v92
    %v325 = vunpack.c.l.b16 %v93
    %v326 = vunpack.c.l.b16 %v94
    %v327 = vunpack.c.l.b16 %v95
    %v328 = vunpack.c.l.b16 %v96
    %v329 = vunpack.c.l.b16 %v97
    %v330 = vunpack.c.l.b16 %v98
    %v331 = vunpack.c.l.b16 %v99
    %v332 = vunpack.c.l.b16 %v100
    %v333 = vunpack.c.l.b16 %v101
    %v334 = vunpack.c.l.b16 %v102
    %v335 = vunpack.c.l.b16 %v103
    %v336 = vunpack.c.l.b16 %v104
    %v337 = vunpack.c.l.b16 %v105
    %v338 = vunpack.c.l.b16 %v106
    %v339 = vunpack.c.l.b16 %v107
    %v340 = vunpack.c.l.b16 %v108
    %v341 = vunpack.c.l.b16 %v109
    %v342 = vunpack.c.l.b16 %v110
    %v343 = vunpack.c.l.b16 %v111
    %v344 = vunpack.c.l.b16 %v112
    %v345 = vunpack.c.l.b16 %v113
    %v346 = vunpack.c.l.b16 %v114
    %v347 = vunpack.c.l.b16 %v115
    %v348 = vunpack.c.l.b16 %v116
    %v349 = vunpack.c.l.b16 %v117
    %v350 = vunpack.c.l.b16 %v118
    %v351 = vunpack.c.l.b16 %v119
    %v352 = vunpack.c.l.b16 %v120
    %v353 = vunpack.c.l.b16 %v121
    %v354 = vunpack.c.l.b16 %v122
    %v355 = vunpack.c.l.b16 %v123
    %v356 = vunpack.c.l.b16 %v124
    %v357 = vunpack.c.l.b16 %v125
    %v358 = vunpack.c.l.b16 %v126
    %v359 = vunpack.c.l.b16 %v127
    %v360 = vunpack.c.l.b16 %v128
    %v361 = vunpack.c.l.b16 %v129
    %v362 = vunpack.c.l.b16 %v130
    %v363 = vunpack.c.l.b16 %v131
    %v364 = vunpack.c.l.b16 %v132
    %v365 = vunpack.c.l.b16 %v133
    %v366 = vunpack.c.l.b16 %v134
    %v367 = vunpack.c.l.b16 %v135
    %v368 = vunpack.c.l.b16 %v136
    %v369 = vunpack.c.l.b16 %v137
    %v370 = vunpack.c.l.b16 %v138
    %v371 = vunpack.c.l.b16 %v139
    %v372 = vunpack.c.l.b16 %v140
    %v373 = vunpack.c.l.b16 %v141
    %v374 = vunpack.c.l.b16 %v142
    %v375 = vpack.c.b16 %v280, %v279
    %v376 = vpack.c.b16 %v282, %v281
    %v377 = vpack.c.b16 %v284, %v283
    %v378 = vpack.c.b16 %v286, %v285
    %v379 = vpack.c.b16 %v288, %v287
    %v380 = vpack.c.b16 %v290, %v289
    %v381 = vpack.c.b16 %v292, %v291
    %v382 = vpack.c.b16 %v294, %v293
    %v383 = vpack.c.b16 %v296, %v295
    %v384 = vpack.c.b16 %v298, %v297
    %v385 = vpack.c.b16 %v300, %v299
    %v386 = vpack.c.b16 %v302, %v301
    %v387 = vpack.c.b16 %v304, %v303
    %v388 = vpack.c.b16 %v306, %v305
    %v389 = vpack.c.b16 %v308, %v307
    %v390 = vpack.c.b16 %v310, %v309
    %v391 = vpack.c.b16 %v312, %v311
    %v392 = vpack.c.b16 %v314, %v313
    %v393 = vpack.c.b16 %v316, %v315
    %v394 = vpack.c.b16 %v318, %v317
    %v395 = vpack.c.b16 %v320, %v319
    %v396 = vpack.c.b16 %v322, %v321
    %v397 = vpack.c.b16 %v324, %v323
    %v398 = vpack.c.b16 %v326, %v325
    %v399 = vpack.c.b16 %v328, %v327
    %v400 = vpack.c.b16 %v330, %v329
    %v401 = vpack.c.b16 %v332, %v331
    %v402 = vpack.c.b16 %v334, %v333
    %v403 = vpack.c.b16 %v336, %v335
    %v404 = vpack.c.b16 %v338, %v337
    %v405 = vpack.c.b16 %v340, %v339
    %v406 = vpack.c.b16 %v342, %v341
    %v407 = vpack.c.b16 %v344, %v343
    %v408 = vpack.c.b16 %v346, %v345
    %v409 = vpack.c.b16 %v348, %v347
    %v410 = vpack.c.b16 %v350, %v349
    %v411 = vpack.c.b16 %v352, %v351
    %v412 = vpack.c.b16 %v354, %v353
    %v413 = vpack.c.b16 %v356, %v355
    %v414 = vpack.c.b16 %v358, %v357
    %v415 = vpack.c.b16 %v360, %v359
    %v416 = vpack.c.b16 %v362, %v361
    %v417 = vpack.c.b16 %v364, %v363
    %v418 = vpack.c.b16 %v366, %v365
    %v419 = vpack.c.b16 %v368, %v367
    %v420 = vpack.c.b16 %v370, %v369
    %v421 = vpack.c.b16 %v372, %v371
    %v422 = vpack.c.b16 %v374, %v373
    %471 = vmatprep.subr.bf16.mxu0 0
    %472 = vmatpush1.bf16.msra.mxu0 %v382
    %473 = vmatprep.subr.bf16.mxu0 0
    %474 = vmatpush1.bf16.msra.mxu0 %v381
    %475 = vmatprep.subr.bf16.mxu0 0
    %476 = vmatpush1.bf16.msra.mxu0 %v380
    %477 = vmatprep.subr.bf16.mxu0 0
    %478 = vmatpush1.bf16.msra.mxu0 %v379
    %479 = vmatprep.subr.bf16.mxu0 0
    %480 = vmatpush1.bf16.msra.mxu0 %v378
    %481 = vmatprep.subr.bf16.mxu0 0
    %482 = vmatpush1.bf16.msra.mxu0 %v377
    %483 = vmatprep.subr.bf16.mxu0 0
    %484 = vmatpush1.bf16.msra.mxu0 %v376
    %485 = vmatprep.subr.bf16.mxu0 0
    %486 = vmatpush1.bf16.msra.mxu0 %v375
    %487 = vmatprep.subr.bf16.mxu0 0
    %488 = vmatpush2.bf16.msra.mxu0 %v390
    %489 = vmatprep.subr.bf16.mxu0 0
    %490 = vmatpush2.bf16.msra.mxu0 %v389
    %491 = vmatprep.subr.bf16.mxu0 0
    %492 = vmatpush2.bf16.msra.mxu0 %v388
    %493 = vmatprep.subr.bf16.mxu0 0
    %494 = vmatpush2.bf16.msra.mxu0 %v387
    %495 = vmatprep.subr.bf16.mxu0 0
    %496 = vmatpush2.bf16.msra.mxu0 %v386
    %497 = vmatprep.subr.bf16.mxu0 0
    %498 = vmatpush2.bf16.msra.mxu0 %v385
    %499 = vmatprep.subr.bf16.mxu0 0
    %500 = vmatpush2.bf16.msra.mxu0 %v384
    %501 = vmatprep.subr.bf16.mxu0 0
    %502 = vmatpush2.bf16.msra.mxu0 %v383
    %503 = vmatprep.mubr.bf16.mxu0 %v167
    %504 = vmatmul.mubr.bf16.gmra.mxu0 %v159
    %v505 = vpop.f32.mrf.mxu0
    %v506 = vadd.f32 %v148, %v505
    %v507 = vpop.f32.mrf.mxu0
    %v508 = vpop.f32.mrf.mxu0
    %v509 = vpop.f32.mrf.mxu0
    %510 = vdwg.mxu0
    %511 = vmatprep.subr.bf16.mxu0 0
    %512 = vmatpush1.bf16.msra.mxu0 %v398
    %513 = vmatprep.subr.bf16.mxu0 0
    %514 = vmatpush1.bf16.msra.mxu0 %v397
    %515 = vmatprep.subr.bf16.mxu0 0
    %516 = vmatpush1.bf16.msra.mxu0 %v396
    %517 = vmatprep.subr.bf16.mxu0 0
    %518 = vmatpush1.bf16.msra.mxu0 %v395
    %519 = vmatprep.subr.bf16.mxu0 0
    %520 = vmatpush1.bf16.msra.mxu0 %v394
    %521 = vmatprep.subr.bf16.mxu0 0
    %522 = vmatpush1.bf16.msra.mxu0 %v393
    %523 = vmatprep.subr.bf16.mxu0 0
    %524 = vmatpush1.bf16.msra.mxu0 %v392
    %525 = vmatprep.subr.bf16.mxu0 0
    %526 = vmatpush1.bf16.msra.mxu0 %v391
    %527 = vmatprep.subr.bf16.mxu0 0
    %528 = vmatpush2.bf16.msra.mxu0 %v406
    %529 = vmatprep.subr.bf16.mxu0 0
    %530 = vmatpush2.bf16.msra.mxu0 %v405
    %531 = vmatprep.subr.bf16.mxu0 0
    %532 = vmatpush2.bf16.msra.mxu0 %v404
    %533 = vmatprep.subr.bf16.mxu0 0
    %534 = vmatpush2.bf16.msra.mxu0 %v403
    %535 = vmatprep.subr.bf16.mxu0 0
    %536 = vmatpush2.bf16.msra.mxu0 %v402
    %537 = vmatprep.subr.bf16.mxu0 0
    %538 = vmatpush2.bf16.msra.mxu0 %v401
    %539 = vmatprep.subr.bf16.mxu0 0
    %540 = vmatpush2.bf16.msra.mxu0 %v400
    %541 = vmatprep.subr.bf16.mxu0 0
    %542 = vmatpush2.bf16.msra.mxu0 %v399
    %543 = vmatprep.mubr.bf16.mxu0 %v168
    %544 = vmatmul.mubr.bf16.gmra.mxu0 %v166
    %v545 = vpop.f32.mrf.mxu0
    %v546 = vadd.f32 %v506, %v545
    %v547 = vpop.f32.mrf.mxu0
    %v548 = vpop.f32.mrf.mxu0
    %v549 = vpop.f32.mrf.mxu0
    %550 = vdwg.mxu0
    %551 = vmatprep.subr.bf16.mxu0 0
    %552 = vmatpush1.bf16.msra.mxu0 %v414
    %553 = vmatprep.subr.bf16.mxu0 0
    %554 = vmatpush1.bf16.msra.mxu0 %v413
    %555 = vmatprep.subr.bf16.mxu0 0
    %556 = vmatpush1.bf16.msra.mxu0 %v412
    %557 = vmatprep.subr.bf16.mxu0 0
    %558 = vmatpush1.bf16.msra.mxu0 %v411
    %559 = vmatprep.subr.bf16.mxu0 0
    %560 = vmatpush1.bf16.msra.mxu0 %v410
    %561 = vmatprep.subr.bf16.mxu0 0
    %562 = vmatpush1.bf16.msra.mxu0 %v409
    %563 = vmatprep.subr.bf16.mxu0 0
    %564 = vmatpush1.bf16.msra.mxu0 %v408
    %565 = vmatprep.subr.bf16.mxu0 0
    %566 = vmatpush1.bf16.msra.mxu0 %v407
    %567 = vmatprep.subr.bf16.mxu0 0
    %568 = vmatpush2.bf16.msra.mxu0 %v422
    %569 = vmatprep.subr.bf16.mxu0 0
    %570 = vmatpush2.bf16.msra.mxu0 %v421
    %571 = vmatprep.subr.bf16.mxu0 0
    %572 = vmatpush2.bf16.msra.mxu0 %v420
    %573 = vmatprep.subr.bf16.mxu0 0
    %574 = vmatpush2.bf16.msra.mxu0 %v419
    %575 = vmatprep.subr.bf16.mxu0 0
    %576 = vmatpush2.bf16.msra.mxu0 %v418
    %577 = vmatprep.subr.bf16.mxu0 0
    %578 = vmatpush2.bf16.msra.mxu0 %v417
    %579 = vmatprep.subr.bf16.mxu0 0
    %580 = vmatpush2.bf16.msra.mxu0 %v416
    %581 = vmatprep.subr.bf16.mxu0 0
    %582 = vmatpush2.bf16.msra.mxu0 %v415
    %583 = vmatprep.mubr.bf16.mxu0 %v176
    %584 = vmatmul.mubr.bf16.gmra.mxu0 %v175
    %v585 = vpop.f32.mrf.mxu0
    %v586 = vadd.f32 %v546, %v585
    %v587 = vpop.f32.mrf.mxu0
    %v588 = vpop.f32.mrf.mxu0
    %v589 = vpop.f32.mrf.mxu0
    %590 = vdwg.mxu0
    %v591 = vmax.f32 %v586, 0.0
    %v592 = vld [vmem:[%s1] sm:$0xff]
    %v593 = vld [vmem:[%s1 + $0x8] sm:$0xff]
    %v594 = vld [vmem:[%s1 + $0x10] sm:$0xff]
    %v595 = vld [vmem:[%s4] sm:$0xf]
    %v596 = vld [vmem:[%s4 + $0x4] sm:$0xf]
    %v597 = vld [vmem:[%s4 + $0x8] sm:$0xf]
    %v598 = vld [vmem:[%s4 + $0xc] sm:$0xf]
    %v599 = vld [vmem:[%s4 + $0x10] sm:$0xf]
    %v600 = vld [vmem:[%s4 + $0x14] sm:$0xf]
    %v601 = vld [vmem:[%s4 + $0x18] sm:$0xf]
    %v602 = vld [vmem:[%s4 + $0x1c] sm:$0xf]
    %v603 = vld [vmem:[%s4 + $0x20] sm:$0xf]
    %v604 = vld [vmem:[%s4 + $0x24] sm:$0xf]
    %v605 = vld [vmem:[%s4 + $0x28] sm:$0xf]
    %v606 = vld [vmem:[%s4 + $0x2c] sm:$0xf]
    %v607 = vld [vmem:[%s4 + $0x30] sm:$0xf]
    %v608 = vld [vmem:[%s4 + $0x34] sm:$0xf]
    %v609 = vld [vmem:[%s4 + $0x38] sm:$0xf]
    %v610 = vld [vmem:[%s4 + $0x3c] sm:$0xf]
    %v611 = vld [vmem:[%s4 + $0x40] sm:$0xf]
    %v612 = vld [vmem:[%s4 + $0x44] sm:$0xf]
    %v613 = vld [vmem:[%s4 + $0x48] sm:$0xf]
    %v614 = vld [vmem:[%s4 + $0x4c] sm:$0xf]
    %v615 = vld [vmem:[%s4 + $0x50] sm:$0xf]
    %v616 = vld [vmem:[%s4 + $0x54] sm:$0xf]
    %v617 = vld [vmem:[%s4 + $0x58] sm:$0xf]
    %v618 = vld [vmem:[%s4 + $0x5c] sm:$0xf]
    %v619 = vld [vmem:[%s4 + $0x60] sm:$0xf]
    %v620 = vld [vmem:[%s4 + $0x64] sm:$0xf]
    %v621 = vld [vmem:[%s4 + $0x68] sm:$0xf]
    %v622 = vld [vmem:[%s4 + $0x6c] sm:$0xf]
    %v623 = vld [vmem:[%s4 + $0x70] sm:$0xf]
    %v624 = vld [vmem:[%s4 + $0x74] sm:$0xf]
    %v625 = vld [vmem:[%s4 + $0x78] sm:$0xf]
    %v626 = vld [vmem:[%s4 + $0x7c] sm:$0xf]
    %v627 = vld [vmem:[%s4 + $0x80] sm:$0xf]
    %v628 = vld [vmem:[%s4 + $0x84] sm:$0xf]
    %v629 = vld [vmem:[%s4 + $0x88] sm:$0xf]
    %v630 = vld [vmem:[%s4 + $0x8c] sm:$0xf]
    %v631 = vld [vmem:[%s4 + $0x90] sm:$0xf]
    %v632 = vld [vmem:[%s4 + $0x94] sm:$0xf]
    %v633 = vld [vmem:[%s4 + $0x98] sm:$0xf]
    %v634 = vld [vmem:[%s4 + $0x9c] sm:$0xf]
    %v635 = vld [vmem:[%s4 + $0xa0] sm:$0xf]
    %v636 = vld [vmem:[%s4 + $0xa4] sm:$0xf]
    %v637 = vld [vmem:[%s4 + $0xa8] sm:$0xf]
    %v638 = vld [vmem:[%s4 + $0xac] sm:$0xf]
    %v639 = vld [vmem:[%s4 + $0xb0] sm:$0xf]
    %v640 = vld [vmem:[%s4 + $0xb4] sm:$0xf]
    %v641 = vld [vmem:[%s4 + $0xb8] sm:$0xf]
    %v642 = vld [vmem:[%s4 + $0xbc] sm:$0xf]
    %v643 = vld [vmem:[%s4 + $0xc0] sm:$0xf]
    %v644 = vld [vmem:[%s4 + $0xc4] sm:$0xf]
    %v645 = vld [vmem:[%s4 + $0xc8] sm:$0xf]
    %v646 = vld [vmem:[%s4 + $0xcc] sm:$0xf]
    %v647 = vld [vmem:[%s4 + $0xd0] sm:$0xf]
    %v648 = vld [vmem:[%s4 + $0xd4] sm:$0xf]
    %v649 = vld [vmem:[%s4 + $0xd8] sm:$0xf]
    %v650 = vld [vmem:[%s4 + $0xdc] sm:$0xf]
    %v651 = vld [vmem:[%s4 + $0xe0] sm:$0xf]
    %v652 = vld [vmem:[%s4 + $0xe4] sm:$0xf]
    %v653 = vld [vmem:[%s4 + $0xe8] sm:$0xf]
    %v654 = vld [vmem:[%s4 + $0xec] sm:$0xf]
    %v655 = vld [vmem:[%s4 + $0xf0] sm:$0xf]
    %v656 = vld [vmem:[%s4 + $0xf4] sm:$0xf]
    %v657 = vld [vmem:[%s4 + $0xf8] sm:$0xf]
    %v658 = vld [vmem:[%s4 + $0xfc] sm:$0xf]
    %v659 = vld [vmem:[%s4 + $0x100] sm:$0xf]
    %v660 = vld [vmem:[%s4 + $0x104] sm:$0xf]
    %v661 = vld [vmem:[%s4 + $0x108] sm:$0xf]
    %v662 = vld [vmem:[%s4 + $0x10c] sm:$0xf]
    %v663 = vld [vmem:[%s4 + $0x110] sm:$0xf]
    %v664 = vld [vmem:[%s4 + $0x114] sm:$0xf]
    %v665 = vld [vmem:[%s4 + $0x118] sm:$0xf]
    %v666 = vld [vmem:[%s4 + $0x11c] sm:$0xf]
    %v667 = vld [vmem:[%s4 + $0x120] sm:$0xf]
    %v668 = vld [vmem:[%s4 + $0x124] sm:$0xf]
    %v669 = vld [vmem:[%s4 + $0x128] sm:$0xf]
    %v670 = vld [vmem:[%s4 + $0x12c] sm:$0xf]
    %v671 = vld [vmem:[%s4 + $0x130] sm:$0xf]
    %v672 = vld [vmem:[%s4 + $0x134] sm:$0xf]
    %v673 = vld [vmem:[%s4 + $0x138] sm:$0xf]
    %v674 = vld [vmem:[%s4 + $0x13c] sm:$0xf]
    %v675 = vld [vmem:[%s4 + $0x140] sm:$0xf]
    %v676 = vld [vmem:[%s4 + $0x144] sm:$0xf]
    %v677 = vld [vmem:[%s4 + $0x148] sm:$0xf]
    %v678 = vld [vmem:[%s4 + $0x14c] sm:$0xf]
    %v679 = vld [vmem:[%s4 + $0x150] sm:$0xf]
    %v680 = vld [vmem:[%s4 + $0x154] sm:$0xf]
    %v681 = vld [vmem:[%s4 + $0x158] sm:$0xf]
    %v682 = vld [vmem:[%s4 + $0x15c] sm:$0xf]
    %v683 = vld [vmem:[%s4 + $0x160] sm:$0xf]
    %v684 = vld [vmem:[%s4 + $0x164] sm:$0xf]
    %v685 = vld [vmem:[%s4 + $0x168] sm:$0xf]
    %v686 = vld [vmem:[%s4 + $0x16c] sm:$0xf]
    %v687 = vld [vmem:[%s4 + $0x170] sm:$0xf]
    %v688 = vld [vmem:[%s4 + $0x174] sm:$0xf]
    %v689 = vld [vmem:[%s4 + $0x178] sm:$0xf]
    %v690 = vld [vmem:[%s4 + $0x17c] sm:$0xf]
    %v691 = vld [vmem:[%s4 + $0x180] sm:$0xf]
    %v692 = vld [vmem:[%s4 + $0x184] sm:$0xf]
    %v693 = vld [vmem:[%s4 + $0x188] sm:$0xf]
    %v694 = vld [vmem:[%s4 + $0x18c] sm:$0xf]
    %v695 = vld [vmem:[%s4 + $0x190] sm:$0xf]
    %v696 = vld [vmem:[%s4 + $0x194] sm:$0xf]
    %v697 = vld [vmem:[%s4 + $0x198] sm:$0xf]
    %v698 = vld [vmem:[%s4 + $0x19c] sm:$0xf]
    %v699 = vld [vmem:[%s4 + $0x1a0] sm:$0xf]
    %v700 = vld [vmem:[%s4 + $0x1a4] sm:$0xf]
    %v701 = vld [vmem:[%s4 + $0x1a8] sm:$0xf]
    %v702 = vld [vmem:[%s4 + $0x1ac] sm:$0xf]
    %v703 = vld [vmem:[%s4 + $0x1b0] sm:$0xf]
    %v704 = vld [vmem:[%s4 + $0x1b4] sm:$0xf]
    %v705 = vld [vmem:[%s4 + $0x1b8] sm:$0xf]
    %v706 = vld [vmem:[%s4 + $0x1bc] sm:$0xf]
    %v707 = vld [vmem:[%s4 + $0x1c0] sm:$0xf]
    %v708 = vld [vmem:[%s4 + $0x1c4] sm:$0xf]
    %v709 = vld [vmem:[%s4 + $0x1c8] sm:$0xf]
    %v710 = vld [vmem:[%s4 + $0x1cc] sm:$0xf]
    %v711 = vld [vmem:[%s4 + $0x1d0] sm:$0xf]
    %v712 = vld [vmem:[%s4 + $0x1d4] sm:$0xf]
    %v713 = vld [vmem:[%s4 + $0x1d8] sm:$0xf]
    %v714 = vld [vmem:[%s4 + $0x1dc] sm:$0xf]
    %v715 = vld [vmem:[%s4 + $0x1e0] sm:$0xf]
    %v716 = vld [vmem:[%s4 + $0x1e4] sm:$0xf]
    %v717 = vld [vmem:[%s4 + $0x1e8] sm:$0xf]
    %v718 = vld [vmem:[%s4 + $0x1ec] sm:$0xf]
    %v719 = vld [vmem:[%s4 + $0x1f0] sm:$0xf]
    %v720 = vld [vmem:[%s4 + $0x1f4] sm:$0xf]
    %v721 = vld [vmem:[%s4 + $0x1f8] sm:$0xf]
    %v722 = vld [vmem:[%s4 + $0x1fc] sm:$0xf]
    %v723 = vld [vmem:[%s4 + $0x200] sm:$0xf]
    %v724 = vld [vmem:[%s4 + $0x204] sm:$0xf]
    %v725 = vld [vmem:[%s4 + $0x208] sm:$0xf]
    %v726 = vld [vmem:[%s4 + $0x20c] sm:$0xf]
    %v727 = vld [vmem:[%s4 + $0x210] sm:$0xf]
    %v728 = vld [vmem:[%s4 + $0x214] sm:$0xf]
    %v729 = vld [vmem:[%s4 + $0x218] sm:$0xf]
    %v730 = vld [vmem:[%s4 + $0x21c] sm:$0xf]
    %v731 = vld [vmem:[%s4 + $0x220] sm:$0xf]
    %v732 = vld [vmem:[%s4 + $0x224] sm:$0xf]
    %v733 = vld [vmem:[%s4 + $0x228] sm:$0xf]
    %v734 = vld [vmem:[%s4 + $0x22c] sm:$0xf]
    %v735 = vld [vmem:[%s4 + $0x230] sm:$0xf]
    %v736 = vld [vmem:[%s4 + $0x234] sm:$0xf]
    %v737 = vld [vmem:[%s4 + $0x238] sm:$0xf]
    %v738 = vld [vmem:[%s4 + $0x23c] sm:$0xf]
    %v739 = vld [vmem:[%s4 + $0x240] sm:$0xf]
    %v740 = vld [vmem:[%s4 + $0x244] sm:$0xf]
    %v741 = vld [vmem:[%s4 + $0x248] sm:$0xf]
    %v742 = vld [vmem:[%s4 + $0x24c] sm:$0xf]
    %v743 = vld [vmem:[%s4 + $0x250] sm:$0xf]
    %v744 = vld [vmem:[%s4 + $0x254] sm:$0xf]
    %v745 = vld [vmem:[%s4 + $0x258] sm:$0xf]
    %v746 = vld [vmem:[%s4 + $0x25c] sm:$0xf]
    %v747 = vld [vmem:[%s4 + $0x260] sm:$0xf]
    %v748 = vld [vmem:[%s4 + $0x264] sm:$0xf]
    %v749 = vld [vmem:[%s4 + $0x268] sm:$0xf]
    %v750 = vld [vmem:[%s4 + $0x26c] sm:$0xf]
    %v751 = vld [vmem:[%s4 + $0x270] sm:$0xf]
    %v752 = vld [vmem:[%s4 + $0x274] sm:$0xf]
    %v753 = vld [vmem:[%s4 + $0x278] sm:$0xf]
    %v754 = vld [vmem:[%s4 + $0x27c] sm:$0xf]
    %v755 = vld [vmem:[%s4 + $0x280] sm:$0xf]
    %v756 = vld [vmem:[%s4 + $0x284] sm:$0xf]
    %v757 = vld [vmem:[%s4 + $0x288] sm:$0xf]
    %v758 = vld [vmem:[%s4 + $0x28c] sm:$0xf]
    %v759 = vld [vmem:[%s4 + $0x290] sm:$0xf]
    %v760 = vld [vmem:[%s4 + $0x294] sm:$0xf]
    %v761 = vld [vmem:[%s4 + $0x298] sm:$0xf]
    %v762 = vld [vmem:[%s4 + $0x29c] sm:$0xf]
    %v763 = vld [vmem:[%s4 + $0x2a0] sm:$0xf]
    %v764 = vld [vmem:[%s4 + $0x2a4] sm:$0xf]
    %v765 = vld [vmem:[%s4 + $0x2a8] sm:$0xf]
    %v766 = vld [vmem:[%s4 + $0x2ac] sm:$0xf]
    %v767 = vld [vmem:[%s4 + $0x2b0] sm:$0xf]
    %v768 = vld [vmem:[%s4 + $0x2b4] sm:$0xf]
    %v769 = vld [vmem:[%s4 + $0x2b8] sm:$0xf]
    %v770 = vld [vmem:[%s4 + $0x2bc] sm:$0xf]
    %v771 = vld [vmem:[%s4 + $0x2c0] sm:$0xf]
    %v772 = vld [vmem:[%s4 + $0x2c4] sm:$0xf]
    %v773 = vld [vmem:[%s4 + $0x2c8] sm:$0xf]
    %v774 = vld [vmem:[%s4 + $0x2cc] sm:$0xf]
    %v775 = vld [vmem:[%s4 + $0x2d0] sm:$0xf]
    %v776 = vld [vmem:[%s4 + $0x2d4] sm:$0xf]
    %v777 = vld [vmem:[%s4 + $0x2d8] sm:$0xf]
    %v778 = vld [vmem:[%s4 + $0x2dc] sm:$0xf]
    %v779 = vld [vmem:[%s4 + $0x2e0] sm:$0xf]
    %v780 = vld [vmem:[%s4 + $0x2e4] sm:$0xf]
    %v781 = vld [vmem:[%s4 + $0x2e8] sm:$0xf]
    %v782 = vld [vmem:[%s4 + $0x2ec] sm:$0xf]
    %v783 = vld [vmem:[%s4 + $0x2f0] sm:$0xf]
    %v784 = vld [vmem:[%s4 + $0x2f4] sm:$0xf]
    %v785 = vld [vmem:[%s4 + $0x2f8] sm:$0xf]
    %v786 = vld [vmem:[%s4 + $0x2fc] sm:$0xf]
    %v787 = vld [vmem:[%s5] sm:$0x1]
    %v789 = vlaneseq
    %v790 = vshrl.u32 %v789, 7
    %v791 = vsub.s32 0, %v790
    %v792 = vrot.slane %v787, %v791
    %v797 = vcombine.high %v592, %v592
    %v799 = vunpack.c.l.s4 1983009808
    %v800 = vunpack.c.0.s8 %v799
    %v801 = vlaneseq
    %v802 = vshrl.u32 %v801, 7
    %v803 = vsub.s32 %v800, %v802
    %v804 = vrot.slane %v592, %v803
    %v806 = vunpack.c.l.s4 1983009808
    %v807 = vunpack.c.0.s8 %v806
    %v808 = vlaneseq
    %v809 = vshrl.u32 %v808, 7
    %v810 = vsub.s32 %v807, %v809
    %v811 = vrot.slane %v797, %v810
    %v812 = vcombine.high %v804, %v804
    %v813 = vcombine.high %v811, %v811
    %v814 = vcombine.high %v593, %v593
    %v816 = vunpack.c.l.s4 1983009808
    %v817 = vunpack.c.0.s8 %v816
    %v818 = vlaneseq
    %v819 = vshrl.u32 %v818, 7
    %v820 = vsub.s32 %v817, %v819
    %v821 = vrot.slane %v593, %v820
    %v823 = vunpack.c.l.s4 1983009808
    %v824 = vunpack.c.0.s8 %v823
    %v825 = vlaneseq
    %v826 = vshrl.u32 %v825, 7
    %v827 = vsub.s32 %v824, %v826
    %v828 = vrot.slane %v814, %v827
    %v829 = vcombine.high %v821, %v821
    %v830 = vcombine.high %v828, %v828
    %v831 = vcombine.high %v594, %v594
    %v833 = vunpack.c.l.s4 1983009808
    %v834 = vunpack.c.0.s8 %v833
    %v835 = vlaneseq
    %v836 = vshrl.u32 %v835, 7
    %v837 = vsub.s32 %v834, %v836
    %v838 = vrot.slane %v594, %v837
    %v840 = vunpack.c.l.s4 1983009808
    %v841 = vunpack.c.0.s8 %v840
    %v842 = vlaneseq
    %v843 = vshrl.u32 %v842, 7
    %v844 = vsub.s32 %v841, %v843
    %v845 = vrot.slane %v831, %v844
    %v846 = vcombine.high %v838, %v838
    %v847 = vcombine.high %v845, %v845
    %v1052 = vunpack.c.l.b16 %v595
    %v1053 = vunpack.c.l.b16 %v596
    %v1054 = vunpack.c.l.b16 %v597
    %v1055 = vunpack.c.l.b16 %v598
    %v1056 = vunpack.c.l.b16 %v599
    %v1057 = vunpack.c.l.b16 %v600
    %v1058 = vunpack.c.l.b16 %v601
    %v1059 = vunpack.c.l.b16 %v602
    %v1060 = vunpack.c.l.b16 %v603
    %v1061 = vunpack.c.l.b16 %v604
    %v1062 = vunpack.c.l.b16 %v605
    %v1063 = vunpack.c.l.b16 %v606
    %v1064 = vunpack.c.l.b16 %v607
    %v1065 = vunpack.c.l.b16 %v608
    %v1066 = vunpack.c.l.b16 %v609
    %v1067 = vunpack.c.l.b16 %v610
    %v1068 = vunpack.c.l.b16 %v611
    %v1069 = vunpack.c.l.b16 %v612
    %v1070 = vunpack.c.l.b16 %v613
    %v1071 = vunpack.c.l.b16 %v614
    %v1072 = vunpack.c.l.b16 %v615
    %v1073 = vunpack.c.l.b16 %v616
    %v1074 = vunpack.c.l.b16 %v617
    %v1075 = vunpack.c.l.b16 %v618
    %v1076 = vunpack.c.l.b16 %v619
    %v1077 = vunpack.c.l.b16 %v620
    %v1078 = vunpack.c.l.b16 %v621
    %v1079 = vunpack.c.l.b16 %v622
    %v1080 = vunpack.c.l.b16 %v623
    %v1081 = vunpack.c.l.b16 %v624
    %v1082 = vunpack.c.l.b16 %v625
    %v1083 = vunpack.c.l.b16 %v626
    %v1084 = vunpack.c.l.b16 %v627
    %v1085 = vunpack.c.l.b16 %v628
    %v1086 = vunpack.c.l.b16 %v629
    %v1087 = vunpack.c.l.b16 %v630
    %v1088 = vunpack.c.l.b16 %v631
    %v1089 = vunpack.c.l.b16 %v632
    %v1090 = vunpack.c.l.b16 %v633
    %v1091 = vunpack.c.l.b16 %v634
    %v1092 = vunpack.c.l.b16 %v635
    %v1093 = vunpack.c.l.b16 %v636
    %v1094 = vunpack.c.l.b16 %v637
    %v1095 = vunpack.c.l.b16 %v638
    %v1096 = vunpack.c.l.b16 %v639
    %v1097 = vunpack.c.l.b16 %v640
    %v1098 = vunpack.c.l.b16 %v641
    %v1099 = vunpack.c.l.b16 %v642
    %v1100 = vunpack.c.l.b16 %v643
    %v1101 = vunpack.c.l.b16 %v644
    %v1102 = vunpack.c.l.b16 %v645
    %v1103 = vunpack.c.l.b16 %v646
    %v1104 = vunpack.c.l.b16 %v647
    %v1105 = vunpack.c.l.b16 %v648
    %v1106 = vunpack.c.l.b16 %v649
    %v1107 = vunpack.c.l.b16 %v650
    %v1108 = vunpack.c.l.b16 %v651
    %v1109 = vunpack.c.l.b16 %v652
    %v1110 = vunpack.c.l.b16 %v653
    %v1111 = vunpack.c.l.b16 %v654
    %v1112 = vunpack.c.l.b16 %v655
    %v1113 = vunpack.c.l.b16 %v656
    %v1114 = vunpack.c.l.b16 %v657
    %v1115 = vunpack.c.l.b16 %v658
    %v1116 = vunpack.c.l.b16 %v659
    %v1117 = vunpack.c.l.b16 %v660
    %v1118 = vunpack.c.l.b16 %v661
    %v1119 = vunpack.c.l.b16 %v662
    %v1120 = vunpack.c.l.b16 %v663
    %v1121 = vunpack.c.l.b16 %v664
    %v1122 = vunpack.c.l.b16 %v665
    %v1123 = vunpack.c.l.b16 %v666
    %v1124 = vunpack.c.l.b16 %v667
    %v1125 = vunpack.c.l.b16 %v668
    %v1126 = vunpack.c.l.b16 %v669
    %v1127 = vunpack.c.l.b16 %v670
    %v1128 = vunpack.c.l.b16 %v671
    %v1129 = vunpack.c.l.b16 %v672
    %v1130 = vunpack.c.l.b16 %v673
    %v1131 = vunpack.c.l.b16 %v674
    %v1132 = vunpack.c.l.b16 %v675
    %v1133 = vunpack.c.l.b16 %v676
    %v1134 = vunpack.c.l.b16 %v677
    %v1135 = vunpack.c.l.b16 %v678
    %v1136 = vunpack.c.l.b16 %v679
    %v1137 = vunpack.c.l.b16 %v680
    %v1138 = vunpack.c.l.b16 %v681
    %v1139 = vunpack.c.l.b16 %v682
    %v1140 = vunpack.c.l.b16 %v683
    %v1141 = vunpack.c.l.b16 %v684
    %v1142 = vunpack.c.l.b16 %v685
    %v1143 = vunpack.c.l.b16 %v686
    %v1144 = vunpack.c.l.b16 %v687
    %v1145 = vunpack.c.l.b16 %v688
    %v1146 = vunpack.c.l.b16 %v689
    %v1147 = vunpack.c.l.b16 %v690
    %v1148 = vunpack.c.l.b16 %v691
    %v1149 = vunpack.c.l.b16 %v692
    %v1150 = vunpack.c.l.b16 %v693
    %v1151 = vunpack.c.l.b16 %v694
    %v1152 = vunpack.c.l.b16 %v695
    %v1153 = vunpack.c.l.b16 %v696
    %v1154 = vunpack.c.l.b16 %v697
    %v1155 = vunpack.c.l.b16 %v698
    %v1156 = vunpack.c.l.b16 %v699
    %v1157 = vunpack.c.l.b16 %v700
    %v1158 = vunpack.c.l.b16 %v701
    %v1159 = vunpack.c.l.b16 %v702
    %v1160 = vunpack.c.l.b16 %v703
    %v1161 = vunpack.c.l.b16 %v704
    %v1162 = vunpack.c.l.b16 %v705
    %v1163 = vunpack.c.l.b16 %v706
    %v1164 = vunpack.c.l.b16 %v707
    %v1165 = vunpack.c.l.b16 %v708
    %v1166 = vunpack.c.l.b16 %v709
    %v1167 = vunpack.c.l.b16 %v710
    %v1168 = vunpack.c.l.b16 %v711
    %v1169 = vunpack.c.l.b16 %v712
    %v1170 = vunpack.c.l.b16 %v713
    %v1171 = vunpack.c.l.b16 %v714
    %v1172 = vunpack.c.l.b16 %v715
    %v1173 = vunpack.c.l.b16 %v716
    %v1174 = vunpack.c.l.b16 %v717
    %v1175 = vunpack.c.l.b16 %v718
    %v1176 = vunpack.c.l.b16 %v719
    %v1177 = vunpack.c.l.b16 %v720
    %v1178 = vunpack.c.l.b16 %v721
    %v1179 = vunpack.c.l.b16 %v722
    %v1180 = vunpack.c.l.b16 %v723
    %v1181 = vunpack.c.l.b16 %v724
    %v1182 = vunpack.c.l.b16 %v725
    %v1183 = vunpack.c.l.b16 %v726
    %v1184 = vunpack.c.l.b16 %v727
    %v1185 = vunpack.c.l.b16 %v728
    %v1186 = vunpack.c.l.b16 %v729
    %v1187 = vunpack.c.l.b16 %v730
    %v1188 = vunpack.c.l.b16 %v731
    %v1189 = vunpack.c.l.b16 %v732
    %v1190 = vunpack.c.l.b16 %v733
    %v1191 = vunpack.c.l.b16 %v734
    %v1192 = vunpack.c.l.b16 %v735
    %v1193 = vunpack.c.l.b16 %v736
    %v1194 = vunpack.c.l.b16 %v737
    %v1195 = vunpack.c.l.b16 %v738
    %v1196 = vunpack.c.l.b16 %v739
    %v1197 = vunpack.c.l.b16 %v740
    %v1198 = vunpack.c.l.b16 %v741
    %v1199 = vunpack.c.l.b16 %v742
    %v1200 = vunpack.c.l.b16 %v743
    %v1201 = vunpack.c.l.b16 %v744
    %v1202 = vunpack.c.l.b16 %v745
    %v1203 = vunpack.c.l.b16 %v746
    %v1204 = vunpack.c.l.b16 %v747
    %v1205 = vunpack.c.l.b16 %v748
    %v1206 = vunpack.c.l.b16 %v749
    %v1207 = vunpack.c.l.b16 %v750
    %v1208 = vunpack.c.l.b16 %v751
    %v1209 = vunpack.c.l.b16 %v752
    %v1210 = vunpack.c.l.b16 %v753
    %v1211 = vunpack.c.l.b16 %v754
    %v1212 = vunpack.c.l.b16 %v755
    %v1213 = vunpack.c.l.b16 %v756
    %v1214 = vunpack.c.l.b16 %v757
    %v1215 = vunpack.c.l.b16 %v758
    %v1216 = vunpack.c.l.b16 %v759
    %v1217 = vunpack.c.l.b16 %v760
    %v1218 = vunpack.c.l.b16 %v761
    %v1219 = vunpack.c.l.b16 %v762
    %v1220 = vunpack.c.l.b16 %v763
    %v1221 = vunpack.c.l.b16 %v764
    %v1222 = vunpack.c.l.b16 %v765
    %v1223 = vunpack.c.l.b16 %v766
    %v1224 = vunpack.c.l.b16 %v767
    %v1225 = vunpack.c.l.b16 %v768
    %v1226 = vunpack.c.l.b16 %v769
    %v1227 = vunpack.c.l.b16 %v770
    %v1228 = vunpack.c.l.b16 %v771
    %v1229 = vunpack.c.l.b16 %v772
    %v1230 = vunpack.c.l.b16 %v773
    %v1231 = vunpack.c.l.b16 %v774
    %v1232 = vunpack.c.l.b16 %v775
    %v1233 = vunpack.c.l.b16 %v776
    %v1234 = vunpack.c.l.b16 %v777
    %v1235 = vunpack.c.l.b16 %v778
    %v1236 = vunpack.c.l.b16 %v779
    %v1237 = vunpack.c.l.b16 %v780
    %v1238 = vunpack.c.l.b16 %v781
    %v1239 = vunpack.c.l.b16 %v782
    %v1240 = vunpack.c.l.b16 %v783
    %v1241 = vunpack.c.l.b16 %v784
    %v1242 = vunpack.c.l.b16 %v785
    %v1243 = vunpack.c.l.b16 %v786
    %v1244 = vpack.c.b16 %v1053, %v1052
    %v1245 = vpack.c.b16 %v1055, %v1054
    %v1246 = vpack.c.b16 %v1057, %v1056
    %v1247 = vpack.c.b16 %v1059, %v1058
    %v1248 = vpack.c.b16 %v1061, %v1060
    %v1249 = vpack.c.b16 %v1063, %v1062
    %v1250 = vpack.c.b16 %v1065, %v1064
    %v1251 = vpack.c.b16 %v1067, %v1066
    %v1252 = vpack.c.b16 %v1069, %v1068
    %v1253 = vpack.c.b16 %v1071, %v1070
    %v1254 = vpack.c.b16 %v1073, %v1072
    %v1255 = vpack.c.b16 %v1075, %v1074
    %v1256 = vpack.c.b16 %v1077, %v1076
    %v1257 = vpack.c.b16 %v1079, %v1078
    %v1258 = vpack.c.b16 %v1081, %v1080
    %v1259 = vpack.c.b16 %v1083, %v1082
    %v1260 = vpack.c.b16 %v1085, %v1084
    %v1261 = vpack.c.b16 %v1087, %v1086
    %v1262 = vpack.c.b16 %v1089, %v1088
    %v1263 = vpack.c.b16 %v1091, %v1090
    %v1264 = vpack.c.b16 %v1093, %v1092
    %v1265 = vpack.c.b16 %v1095, %v1094
    %v1266 = vpack.c.b16 %v1097, %v1096
    %v1267 = vpack.c.b16 %v1099, %v1098
    %v1268 = vpack.c.b16 %v1101, %v1100
    %v1269 = vpack.c.b16 %v1103, %v1102
    %v1270 = vpack.c.b16 %v1105, %v1104
    %v1271 = vpack.c.b16 %v1107, %v1106
    %v1272 = vpack.c.b16 %v1109, %v1108
    %v1273 = vpack.c.b16 %v1111, %v1110
    %v1274 = vpack.c.b16 %v1113, %v1112
    %v1275 = vpack.c.b16 %v1115, %v1114
    %v1276 = vpack.c.b16 %v1117, %v1116
    %v1277 = vpack.c.b16 %v1119, %v1118
    %v1278 = vpack.c.b16 %v1121, %v1120
    %v1279 = vpack.c.b16 %v1123, %v1122
    %v1280 = vpack.c.b16 %v1125, %v1124
    %v1281 = vpack.c.b16 %v1127, %v1126
    %v1282 = vpack.c.b16 %v1129, %v1128
    %v1283 = vpack.c.b16 %v1131, %v1130
    %v1284 = vpack.c.b16 %v1133, %v1132
    %v1285 = vpack.c.b16 %v1135, %v1134
    %v1286 = vpack.c.b16 %v1137, %v1136
    %v1287 = vpack.c.b16 %v1139, %v1138
    %v1288 = vpack.c.b16 %v1141, %v1140
    %v1289 = vpack.c.b16 %v1143, %v1142
    %v1290 = vpack.c.b16 %v1145, %v1144
    %v1291 = vpack.c.b16 %v1147, %v1146
    %v1292 = vpack.c.b16 %v1149, %v1148
    %v1293 = vpack.c.b16 %v1151, %v1150
    %v1294 = vpack.c.b16 %v1153, %v1152
    %v1295 = vpack.c.b16 %v1155, %v1154
    %v1296 = vpack.c.b16 %v1157, %v1156
    %v1297 = vpack.c.b16 %v1159, %v1158
    %v1298 = vpack.c.b16 %v1161, %v1160
    %v1299 = vpack.c.b16 %v1163, %v1162
    %v1300 = vpack.c.b16 %v1165, %v1164
    %v1301 = vpack.c.b16 %v1167, %v1166
    %v1302 = vpack.c.b16 %v1169, %v1168
    %v1303 = vpack.c.b16 %v1171, %v1170
    %v1304 = vpack.c.b16 %v1173, %v1172
    %v1305 = vpack.c.b16 %v1175, %v1174
    %v1306 = vpack.c.b16 %v1177, %v1176
    %v1307 = vpack.c.b16 %v1179, %v1178
    %v1308 = vpack.c.b16 %v1181, %v1180
    %v1309 = vpack.c.b16 %v1183, %v1182
    %v1310 = vpack.c.b16 %v1185, %v1184
    %v1311 = vpack.c.b16 %v1187, %v1186
    %v1312 = vpack.c.b16 %v1189, %v1188
    %v1313 = vpack.c.b16 %v1191, %v1190
    %v1314 = vpack.c.b16 %v1193, %v1192
    %v1315 = vpack.c.b16 %v1195, %v1194
    %v1316 = vpack.c.b16 %v1197, %v1196
    %v1317 = vpack.c.b16 %v1199, %v1198
    %v1318 = vpack.c.b16 %v1201, %v1200
    %v1319 = vpack.c.b16 %v1203, %v1202
    %v1320 = vpack.c.b16 %v1205, %v1204
    %v1321 = vpack.c.b16 %v1207, %v1206
    %v1322 = vpack.c.b16 %v1209, %v1208
    %v1323 = vpack.c.b16 %v1211, %v1210
    %v1324 = vpack.c.b16 %v1213, %v1212
    %v1325 = vpack.c.b16 %v1215, %v1214
    %v1326 = vpack.c.b16 %v1217, %v1216
    %v1327 = vpack.c.b16 %v1219, %v1218
    %v1328 = vpack.c.b16 %v1221, %v1220
    %v1329 = vpack.c.b16 %v1223, %v1222
    %v1330 = vpack.c.b16 %v1225, %v1224
    %v1331 = vpack.c.b16 %v1227, %v1226
    %v1332 = vpack.c.b16 %v1229, %v1228
    %v1333 = vpack.c.b16 %v1231, %v1230
    %v1334 = vpack.c.b16 %v1233, %v1232
    %v1335 = vpack.c.b16 %v1235, %v1234
    %v1336 = vpack.c.b16 %v1237, %v1236
    %v1337 = vpack.c.b16 %v1239, %v1238
    %v1338 = vpack.c.b16 %v1241, %v1240
    %v1339 = vpack.c.b16 %v1243, %v1242
    %1436 = vmatprep.subr.bf16.mxu0 0
    %1437 = vmatpush1.bf16.msra.mxu0 %v1251
    %1438 = vmatprep.subr.bf16.mxu0 0
    %1439 = vmatpush1.bf16.msra.mxu0 %v1250
    %1440 = vmatprep.subr.bf16.mxu0 0
    %1441 = vmatpush1.bf16.msra.mxu0 %v1249
    %1442 = vmatprep.subr.bf16.mxu0 0
    %1443 = vmatpush1.bf16.msra.mxu0 %v1248
    %1444 = vmatprep.subr.bf16.mxu0 0
    %1445 = vmatpush1.bf16.msra.mxu0 %v1247
    %1446 = vmatprep.subr.bf16.mxu0 0
    %1447 = vmatpush1.bf16.msra.mxu0 %v1246
    %1448 = vmatprep.subr.bf16.mxu0 0
    %1449 = vmatpush1.bf16.msra.mxu0 %v1245
    %1450 = vmatprep.subr.bf16.mxu0 0
    %1451 = vmatpush1.bf16.msra.mxu0 %v1244
    %1452 = vmatprep.subr.bf16.mxu0 0
    %1453 = vmatpush2.bf16.msra.mxu0 %v1259
    %1454 = vmatprep.subr.bf16.mxu0 0
    %1455 = vmatpush2.bf16.msra.mxu0 %v1258
    %1456 = vmatprep.subr.bf16.mxu0 0
    %1457 = vmatpush2.bf16.msra.mxu0 %v1257
    %1458 = vmatprep.subr.bf16.mxu0 0
    %1459 = vmatpush2.bf16.msra.mxu0 %v1256
    %1460 = vmatprep.subr.bf16.mxu0 0
    %1461 = vmatpush2.bf16.msra.mxu0 %v1255
    %1462 = vmatprep.subr.bf16.mxu0 0
    %1463 = vmatpush2.bf16.msra.mxu0 %v1254
    %1464 = vmatprep.subr.bf16.mxu0 0
    %1465 = vmatpush2.bf16.msra.mxu0 %v1253
    %1466 = vmatprep.subr.bf16.mxu0 0
    %1467 = vmatpush2.bf16.msra.mxu0 %v1252
    %1468 = vmatprep.mubr.bf16.mxu0 %v812
    %1469 = vmatmul.mubr.bf16.gmra.mxu0 %v804
    %v1470 = vpop.f32.mrf.mxu0
    %v1471 = vadd.f32 %v792, %v1470
    %v1472 = vpop.f32.mrf.mxu0
    %v1473 = vpop.f32.mrf.mxu0
    %v1474 = vpop.f32.mrf.mxu0
    %1475 = vdwg.mxu0
    %1476 = vmatprep.subr.bf16.mxu0 0
    %1477 = vmatpush1.bf16.msra.mxu0 %v1267
    %1478 = vmatprep.subr.bf16.mxu0 0
    %1479 = vmatpush1.bf16.msra.mxu0 %v1266
    %1480 = vmatprep.subr.bf16.mxu0 0
    %1481 = vmatpush1.bf16.msra.mxu0 %v1265
    %1482 = vmatprep.subr.bf16.mxu0 0
    %1483 = vmatpush1.bf16.msra.mxu0 %v1264
    %1484 = vmatprep.subr.bf16.mxu0 0
    %1485 = vmatpush1.bf16.msra.mxu0 %v1263
    %1486 = vmatprep.subr.bf16.mxu0 0
    %1487 = vmatpush1.bf16.msra.mxu0 %v1262
    %1488 = vmatprep.subr.bf16.mxu0 0
    %1489 = vmatpush1.bf16.msra.mxu0 %v1261
    %1490 = vmatprep.subr.bf16.mxu0 0
    %1491 = vmatpush1.bf16.msra.mxu0 %v1260
    %1492 = vmatprep.subr.bf16.mxu0 0
    %1493 = vmatpush2.bf16.msra.mxu0 %v1275
    %1494 = vmatprep.subr.bf16.mxu0 0
    %1495 = vmatpush2.bf16.msra.mxu0 %v1274
    %1496 = vmatprep.subr.bf16.mxu0 0
    %1497 = vmatpush2.bf16.msra.mxu0 %v1273
    %1498 = vmatprep.subr.bf16.mxu0 0
    %1499 = vmatpush2.bf16.msra.mxu0 %v1272
    %1500 = vmatprep.subr.bf16.mxu0 0
    %1501 = vmatpush2.bf16.msra.mxu0 %v1271
    %1502 = vmatprep.subr.bf16.mxu0 0
    %1503 = vmatpush2.bf16.msra.mxu0 %v1270
    %1504 = vmatprep.subr.bf16.mxu0 0
    %1505 = vmatpush2.bf16.msra.mxu0 %v1269
    %1506 = vmatprep.subr.bf16.mxu0 0
    %1507 = vmatpush2.bf16.msra.mxu0 %v1268
    %1508 = vmatprep.mubr.bf16.mxu0 %v813
    %1509 = vmatmul.mubr.bf16.gmra.mxu0 %v811
    %v1510 = vpop.f32.mrf.mxu0
    %v1511 = vadd.f32 %v1471, %v1510
    %v1512 = vpop.f32.mrf.mxu0
    %v1513 = vpop.f32.mrf.mxu0
    %v1514 = vpop.f32.mrf.mxu0
    %1515 = vdwg.mxu0
    %1516 = vmatprep.subr.bf16.mxu0 0
    %1517 = vmatpush1.bf16.msra.mxu0 %v1283
    %1518 = vmatprep.subr.bf16.mxu0 0
    %1519 = vmatpush1.bf16.msra.mxu0 %v1282
    %1520 = vmatprep.subr.bf16.mxu0 0
    %1521 = vmatpush1.bf16.msra.mxu0 %v1281
    %1522 = vmatprep.subr.bf16.mxu0 0
    %1523 = vmatpush1.bf16.msra.mxu0 %v1280
    %1524 = vmatprep.subr.bf16.mxu0 0
    %1525 = vmatpush1.bf16.msra.mxu0 %v1279
    %1526 = vmatprep.subr.bf16.mxu0 0
    %1527 = vmatpush1.bf16.msra.mxu0 %v1278
    %1528 = vmatprep.subr.bf16.mxu0 0
    %1529 = vmatpush1.bf16.msra.mxu0 %v1277
    %1530 = vmatprep.subr.bf16.mxu0 0
    %1531 = vmatpush1.bf16.msra.mxu0 %v1276
    %1532 = vmatprep.subr.bf16.mxu0 0
    %1533 = vmatpush2.bf16.msra.mxu0 %v1291
    %1534 = vmatprep.subr.bf16.mxu0 0
    %1535 = vmatpush2.bf16.msra.mxu0 %v1290
    %1536 = vmatprep.subr.bf16.mxu0 0
    %1537 = vmatpush2.bf16.msra.mxu0 %v1289
    %1538 = vmatprep.subr.bf16.mxu0 0
    %1539 = vmatpush2.bf16.msra.mxu0 %v1288
    %1540 = vmatprep.subr.bf16.mxu0 0
    %1541 = vmatpush2.bf16.msra.mxu0 %v1287
    %1542 = vmatprep.subr.bf16.mxu0 0
    %1543 = vmatpush2.bf16.msra.mxu0 %v1286
    %1544 = vmatprep.subr.bf16.mxu0 0
    %1545 = vmatpush2.bf16.msra.mxu0 %v1285
    %1546 = vmatprep.subr.bf16.mxu0 0
    %1547 = vmatpush2.bf16.msra.mxu0 %v1284
    %1548 = vmatprep.mubr.bf16.mxu0 %v829
    %1549 = vmatmul.mubr.bf16.gmra.mxu0 %v821
    %v1550 = vpop.f32.mrf.mxu0
    %v1551 = vadd.f32 %v1511, %v1550
    %v1552 = vpop.f32.mrf.mxu0
    %v1553 = vpop.f32.mrf.mxu0
    %v1554 = vpop.f32.mrf.mxu0
    %1555 = vdwg.mxu0
    %1556 = vmatprep.subr.bf16.mxu0 0
    %1557 = vmatpush1.bf16.msra.mxu0 %v1299
    %1558 = vmatprep.subr.bf16.mxu0 0
    %1559 = vmatpush1.bf16.msra.mxu0 %v1298
    %1560 = vmatprep.subr.bf16.mxu0 0
    %1561 = vmatpush1.bf16.msra.mxu0 %v1297
    %1562 = vmatprep.subr.bf16.mxu0 0
    %1563 = vmatpush1.bf16.msra.mxu0 %v1296
    %1564 = vmatprep.subr.bf16.mxu0 0
    %1565 = vmatpush1.bf16.msra.mxu0 %v1295
    %1566 = vmatprep.subr.bf16.mxu0 0
    %1567 = vmatpush1.bf16.msra.mxu0 %v1294
    %1568 = vmatprep.subr.bf16.mxu0 0
    %1569 = vmatpush1.bf16.msra.mxu0 %v1293
    %1570 = vmatprep.subr.bf16.mxu0 0
    %1571 = vmatpush1.bf16.msra.mxu0 %v1292
    %1572 = vmatprep.subr.bf16.mxu0 0
    %1573 = vmatpush2.bf16.msra.mxu0 %v1307
    %1574 = vmatprep.subr.bf16.mxu0 0
    %1575 = vmatpush2.bf16.msra.mxu0 %v1306
    %1576 = vmatprep.subr.bf16.mxu0 0
    %1577 = vmatpush2.bf16.msra.mxu0 %v1305
    %1578 = vmatprep.subr.bf16.mxu0 0
    %1579 = vmatpush2.bf16.msra.mxu0 %v1304
    %1580 = vmatprep.subr.bf16.mxu0 0
    %1581 = vmatpush2.bf16.msra.mxu0 %v1303
    %1582 = vmatprep.subr.bf16.mxu0 0
    %1583 = vmatpush2.bf16.msra.mxu0 %v1302
    %1584 = vmatprep.subr.bf16.mxu0 0
    %1585 = vmatpush2.bf16.msra.mxu0 %v1301
    %1586 = vmatprep.subr.bf16.mxu0 0
    %1587 = vmatpush2.bf16.msra.mxu0 %v1300
    %1588 = vmatprep.mubr.bf16.mxu0 %v830
    %1589 = vmatmul.mubr.bf16.gmra.mxu0 %v828
    %v1590 = vpop.f32.mrf.mxu0
    %v1591 = vadd.f32 %v1551, %v1590
    %v1592 = vpop.f32.mrf.mxu0
    %v1593 = vpop.f32.mrf.mxu0
    %v1594 = vpop.f32.mrf.mxu0
    %1595 = vdwg.mxu0
    %1596 = vmatprep.subr.bf16.mxu0 0
    %1597 = vmatpush1.bf16.msra.mxu0 %v1315
    %1598 = vmatprep.subr.bf16.mxu0 0
    %1599 = vmatpush1.bf16.msra.mxu0 %v1314
    %1600 = vmatprep.subr.bf16.mxu0 0
    %1601 = vmatpush1.bf16.msra.mxu0 %v1313
    %1602 = vmatprep.subr.bf16.mxu0 0
    %1603 = vmatpush1.bf16.msra.mxu0 %v1312
    %1604 = vmatprep.subr.bf16.mxu0 0
    %1605 = vmatpush1.bf16.msra.mxu0 %v1311
    %1606 = vmatprep.subr.bf16.mxu0 0
    %1607 = vmatpush1.bf16.msra.mxu0 %v1310
    %1608 = vmatprep.subr.bf16.mxu0 0
    %1609 = vmatpush1.bf16.msra.mxu0 %v1309
    %1610 = vmatprep.subr.bf16.mxu0 0
    %1611 = vmatpush1.bf16.msra.mxu0 %v1308
    %1612 = vmatprep.subr.bf16.mxu0 0
    %1613 = vmatpush2.bf16.msra.mxu0 %v1323
    %1614 = vmatprep.subr.bf16.mxu0 0
    %1615 = vmatpush2.bf16.msra.mxu0 %v1322
    %1616 = vmatprep.subr.bf16.mxu0 0
    %1617 = vmatpush2.bf16.msra.mxu0 %v1321
    %1618 = vmatprep.subr.bf16.mxu0 0
    %1619 = vmatpush2.bf16.msra.mxu0 %v1320
    %1620 = vmatprep.subr.bf16.mxu0 0
    %1621 = vmatpush2.bf16.msra.mxu0 %v1319
    %1622 = vmatprep.subr.bf16.mxu0 0
    %1623 = vmatpush2.bf16.msra.mxu0 %v1318
    %1624 = vmatprep.subr.bf16.mxu0 0
    %1625 = vmatpush2.bf16.msra.mxu0 %v1317
    %1626 = vmatprep.subr.bf16.mxu0 0
    %1627 = vmatpush2.bf16.msra.mxu0 %v1316
    %1628 = vmatprep.mubr.bf16.mxu0 %v846
    %1629 = vmatmul.mubr.bf16.gmra.mxu0 %v838
    %v1630 = vpop.f32.mrf.mxu0
    %v1631 = vadd.f32 %v1591, %v1630
    %v1632 = vpop.f32.mrf.mxu0
    %v1633 = vpop.f32.mrf.mxu0
    %v1634 = vpop.f32.mrf.mxu0
    %1635 = vdwg.mxu0
    %1636 = vmatprep.subr.bf16.mxu0 0
    %1637 = vmatpush1.bf16.msra.mxu0 %v1331
    %1638 = vmatprep.subr.bf16.mxu0 0
    %1639 = vmatpush1.bf16.msra.mxu0 %v1330
    %1640 = vmatprep.subr.bf16.mxu0 0
    %1641 = vmatpush1.bf16.msra.mxu0 %v1329
    %1642 = vmatprep.subr.bf16.mxu0 0
    %1643 = vmatpush1.bf16.msra.mxu0 %v1328
    %1644 = vmatprep.subr.bf16.mxu0 0
    %1645 = vmatpush1.bf16.msra.mxu0 %v1327
    %1646 = vmatprep.subr.bf16.mxu0 0
    %1647 = vmatpush1.bf16.msra.mxu0 %v1326
    %1648 = vmatprep.subr.bf16.mxu0 0
    %1649 = vmatpush1.bf16.msra.mxu0 %v1325
    %1650 = vmatprep.subr.bf16.mxu0 0
    %1651 = vmatpush1.bf16.msra.mxu0 %v1324
    %1652 = vmatprep.subr.bf16.mxu0 0
    %1653 = vmatpush2.bf16.msra.mxu0 %v1339
    %1654 = vmatprep.subr.bf16.mxu0 0
    %1655 = vmatpush2.bf16.msra.mxu0 %v1338
    %1656 = vmatprep.subr.bf16.mxu0 0
    %1657 = vmatpush2.bf16.msra.mxu0 %v1337
    %1658 = vmatprep.subr.bf16.mxu0 0
    %1659 = vmatpush2.bf16.msra.mxu0 %v1336
    %1660 = vmatprep.subr.bf16.mxu0 0
    %1661 = vmatpush2.bf16.msra.mxu0 %v1335
    %1662 = vmatprep.subr.bf16.mxu0 0
    %1663 = vmatpush2.bf16.msra.mxu0 %v1334
    %1664 = vmatprep.subr.bf16.mxu0 0
    %1665 = vmatpush2.bf16.msra.mxu0 %v1333
    %1666 = vmatprep.subr.bf16.mxu0 0
    %1667 = vmatpush2.bf16.msra.mxu0 %v1332
    %1668 = vmatprep.mubr.bf16.mxu0 %v847
    %1669 = vmatmul.mubr.bf16.gmra.mxu0 %v845
    %v1670 = vpop.f32.mrf.mxu0
    %v1671 = vadd.f32 %v1631, %v1670
    %v1672 = vpop.f32.mrf.mxu0
    %v1673 = vpop.f32.mrf.mxu0
    %v1674 = vpop.f32.mrf.mxu0
    %1675 = vdwg.mxu0
    %v1676 = vmax.f32 %v1671, 0.0
    %v1677 = vadd.f32 %v591, %v1676
    %v1678 = vpack.c.bf16 %v1677, %v1677
    %v1679 = vld [vmem:[%s6] sm:$0xf]
    %v1680 = vld [vmem:[%s6 + $0x4] sm:$0xf]
    %v1681 = vld [vmem:[%s6 + $0x8] sm:$0xf]
    %v1682 = vld [vmem:[%s6 + $0xc] sm:$0xf]
    %v1683 = vld [vmem:[%s7] sm:$0x1]
    %v1685 = vlaneseq
    %v1686 = vshrl.u32 %v1685, 7
    %v1687 = vsub.s32 0, %v1686
    %v1688 = vrot.slane %v1683, %v1687
    %v1694 = vunpack.c.l.b16 %v1679
    %v1695 = vunpack.c.l.b16 %v1680
    %v1696 = vunpack.c.l.b16 %v1681
    %v1697 = vunpack.c.l.b16 %v1682
    %v1698 = vpack.c.b16 %v1695, %v1694
    %v1699 = vpack.c.b16 %v1697, %v1696
    %vm1702 = vcmask 261120
    %v1704 = vsel %vm1702, %v1678, 0
    %1706 = vmatprep.subr.bf16.mxu0 0
    %1707 = vmatpush1.bf16.msra.mxu0 0
    %1708 = vmatprep.subr.bf16.mxu0 0
    %1709 = vmatpush1.bf16.msra.mxu0 0
    %1710 = vmatprep.subr.bf16.mxu0 0
    %1711 = vmatpush1.bf16.msra.mxu0 0
    %1712 = vmatprep.subr.bf16.mxu0 0
    %1713 = vmatpush1.bf16.msra.mxu0 0
    %1714 = vmatprep.subr.bf16.mxu0 0
    %1715 = vmatpush1.bf16.msra.mxu0 0
    %1716 = vmatprep.subr.bf16.mxu0 0
    %1717 = vmatpush1.bf16.msra.mxu0 0
    %1718 = vmatprep.subr.bf16.mxu0 0
    %1719 = vmatpush1.bf16.msra.mxu0 %v1699
    %1720 = vmatprep.subr.bf16.mxu0 0
    %1721 = vmatpush1.bf16.msra.mxu0 %v1698
    %1722 = vmatprep.subr.bf16.mxu0 0
    %1723 = vmatpush2.bf16.msra.mxu0 0
    %1724 = vmatprep.subr.bf16.mxu0 0
    %1725 = vmatpush2.bf16.msra.mxu0 0
    %1726 = vmatprep.subr.bf16.mxu0 0
    %1727 = vmatpush2.bf16.msra.mxu0 0
    %1728 = vmatprep.subr.bf16.mxu0 0
    %1729 = vmatpush2.bf16.msra.mxu0 0
    %1730 = vmatprep.subr.bf16.mxu0 0
    %1731 = vmatpush2.bf16.msra.mxu0 0
    %1732 = vmatprep.subr.bf16.mxu0 0
    %1733 = vmatpush2.bf16.msra.mxu0 0
    %1734 = vmatprep.subr.bf16.mxu0 0
    %1735 = vmatpush2.bf16.msra.mxu0 0
    %1736 = vmatprep.subr.bf16.mxu0 0
    %1737 = vmatpush2.bf16.msra.mxu0 0
    %1738 = vmatprep.mubr.bf16.mxu0 0
    %1739 = vmatmul.mubr.bf16.gmra.mxu0 %v1704
    %v1740 = vpop.f32.mrf.mxu0
    %v1741 = vadd.f32 %v1688, %v1740
    %v1742 = vpop.f32.mrf.mxu0
    %v1743 = vpop.f32.mrf.mxu0
    %v1744 = vpop.f32.mrf.mxu0
    %1745 = vdwg.mxu0
    %v1746 = vmax.f32 %v1741, 0.0
    %v1747 = vpack.c.bf16 %v1746, %v1746
    %v1748 = vld [vmem:[%s8] sm:$0xf]
    %v1749 = vld [vmem:[%s8 + $0x4] sm:$0xf]
    %v1750 = vld [vmem:[%s8 + $0x8] sm:$0xf]
    %v1751 = vld [vmem:[%s8 + $0xc] sm:$0xf]
    %v1752 = vld [vmem:[%s9] sm:$0x1]
    %v1754 = vlaneseq
    %v1755 = vshrl.u32 %v1754, 7
    %v1756 = vsub.s32 0, %v1755
    %v1757 = vrot.slane %v1752, %v1756
    %v1763 = vunpack.c.l.b16 %v1748
    %v1764 = vunpack.c.l.b16 %v1749
    %v1765 = vunpack.c.l.b16 %v1750
    %v1766 = vunpack.c.l.b16 %v1751
    %v1767 = vpack.c.b16 %v1764, %v1763
    %v1768 = vpack.c.b16 %v1766, %v1765
    %v1772 = vsel %vm1702, %v1747, 0
    %1774 = vmatprep.subr.bf16.mxu0 0
    %1775 = vmatpush1.bf16.msra.mxu0 0
    %1776 = vmatprep.subr.bf16.mxu0 0
    %1777 = vmatpush1.bf16.msra.mxu0 0
    %1778 = vmatprep.subr.bf16.mxu0 0
    %1779 = vmatpush1.bf16.msra.mxu0 0
    %1780 = vmatprep.subr.bf16.mxu0 0
    %1781 = vmatpush1.bf16.msra.mxu0 0
    %1782 = vmatprep.subr.bf16.mxu0 0
    %1783 = vmatpush1.bf16.msra.mxu0 0
    %1784 = vmatprep.subr.bf16.mxu0 0
    %1785 = vmatpush1.bf16.msra.mxu0 0
    %1786 = vmatprep.subr.bf16.mxu0 0
    %1787 = vmatpush1.bf16.msra.mxu0 %v1768
    %1788 = vmatprep.subr.bf16.mxu0 0
    %1789 = vmatpush1.bf16.msra.mxu0 %v1767
    %1790 = vmatprep.subr.bf16.mxu0 0
    %1791 = vmatpush2.bf16.msra.mxu0 0
    %1792 = vmatprep.subr.bf16.mxu0 0
    %1793 = vmatpush2.bf16.msra.mxu0 0
    %1794 = vmatprep.subr.bf16.mxu0 0
    %1795 = vmatpush2.bf16.msra.mxu0 0
    %1796 = vmatprep.subr.bf16.mxu0 0
    %1797 = vmatpush2.bf16.msra.mxu0 0
    %1798 = vmatprep.subr.bf16.mxu0 0
    %1799 = vmatpush2.bf16.msra.mxu0 0
    %1800 = vmatprep.subr.bf16.mxu0 0
    %1801 = vmatpush2.bf16.msra.mxu0 0
    %1802 = vmatprep.subr.bf16.mxu0 0
    %1803 = vmatpush2.bf16.msra.mxu0 0
    %1804 = vmatprep.subr.bf16.mxu0 0
    %1805 = vmatpush2.bf16.msra.mxu0 0
    %1806 = vmatprep.mubr.bf16.mxu0 0
    %1807 = vmatmul.mubr.bf16.gmra.mxu0 %v1772
    %v1808 = vpop.f32.mrf.mxu0
    %v1809 = vadd.f32 %v1757, %v1808
    %v1810 = vpop.f32.mrf.mxu0
    %v1811 = vpop.f32.mrf.mxu0
    %v1812 = vpop.f32.mrf.mxu0
    %1813 = vdwg.mxu0
    %v1814 = vmax.f32 %v1809, 0.0
    %v1815 = vpack.c.bf16 %v1814, %v1814
    %v1816 = vld [vmem:[%s10] sm:$0xf]
    %v1817 = vld [vmem:[%s10 + $0x4] sm:$0xf]
    %v1818 = vld [vmem:[%s10 + $0x8] sm:$0xf]
    %v1819 = vld [vmem:[%s10 + $0xc] sm:$0xf]
    %v1820 = vld [vmem:[#allocation2] sm:$0x1]
    %v1822 = vlaneseq
    %v1823 = vshrl.u32 %v1822, 7
    %v1824 = vsub.s32 0, %v1823
    %v1825 = vrot.slane %v1820, %v1824
    %v1831 = vunpack.c.l.b16 %v1816
    %v1832 = vunpack.c.l.b16 %v1817
    %v1833 = vunpack.c.l.b16 %v1818
    %v1834 = vunpack.c.l.b16 %v1819
    %v1835 = vpack.c.b16 %v1832, %v1831
    %v1836 = vpack.c.b16 %v1834, %v1833
    %v1840 = vsel %vm1702, %v1815, 0
    %1842 = vmatprep.subr.bf16.mxu0 0
    %1843 = vmatpush1.bf16.msra.mxu0 0
    %1844 = vmatprep.subr.bf16.mxu0 0
    %1845 = vmatpush1.bf16.msra.mxu0 0
    %1846 = vmatprep.subr.bf16.mxu0 0
    %1847 = vmatpush1.bf16.msra.mxu0 0
    %1848 = vmatprep.subr.bf16.mxu0 0
    %1849 = vmatpush1.bf16.msra.mxu0 0
    %1850 = vmatprep.subr.bf16.mxu0 0
    %1851 = vmatpush1.bf16.msra.mxu0 0
    %1852 = vmatprep.subr.bf16.mxu0 0
    %1853 = vmatpush1.bf16.msra.mxu0 0
    %1854 = vmatprep.subr.bf16.mxu0 0
    %1855 = vmatpush1.bf16.msra.mxu0 %v1836
    %1856 = vmatprep.subr.bf16.mxu0 0
    %1857 = vmatpush1.bf16.msra.mxu0 %v1835
    %1858 = vmatprep.subr.bf16.mxu0 0
    %1859 = vmatpush2.bf16.msra.mxu0 0
    %1860 = vmatprep.subr.bf16.mxu0 0
    %1861 = vmatpush2.bf16.msra.mxu0 0
    %1862 = vmatprep.subr.bf16.mxu0 0
    %1863 = vmatpush2.bf16.msra.mxu0 0
    %1864 = vmatprep.subr.bf16.mxu0 0
    %1865 = vmatpush2.bf16.msra.mxu0 0
    %1866 = vmatprep.subr.bf16.mxu0 0
    %1867 = vmatpush2.bf16.msra.mxu0 0
    %1868 = vmatprep.subr.bf16.mxu0 0
    %1869 = vmatpush2.bf16.msra.mxu0 0
    %1870 = vmatprep.subr.bf16.mxu0 0
    %1871 = vmatpush2.bf16.msra.mxu0 0
    %1872 = vmatprep.subr.bf16.mxu0 0
    %1873 = vmatpush2.bf16.msra.mxu0 0
    %1874 = vmatprep.mubr.bf16.mxu0 0
    %1875 = vmatmul.mubr.bf16.gmra.mxu0 %v1840
    %v1876 = vpop.f32.mrf.mxu0
    %v1877 = vadd.f32 %v1825, %v1876
    %v1878 = vpop.f32.mrf.mxu0
    %v1879 = vpop.f32.mrf.mxu0
    %v1880 = vpop.f32.mrf.mxu0
    %1881 = vdwg.mxu0
    %v1882 = vsub.f32 0.5, %v1877
    %v1884 = vrot.slane %v1877, 2
    %v1886 = vadd.f32 %v1882, %v1884
    %v1887 = vmax.f32 %v1886, 1e-06
    %vm1888 = vcmask 1024
    %v1889 = vsel %vm1888, %v1887, 0.0
    %1890 = vadd.xlane.f32.xlu0 %v1889
    %v1891 = vpop.xlane.xlu0 %1890
    %v1892 = vrot.slane %v1891, 4
    %v1893 = vadd.f32 %v1891, %v1892
    %v1894 = vrot.slane %v1893, 2
    %v1895 = vadd.f32 %v1893, %v1894
    %v1896 = vrot.slane %v1895, 1
    %v1897 = vadd.f32 %v1895, %v1896
    %s1898 = vtos %v1897
    %v1899 = vstv %s1898
    %v1900 = vrcp.pop 2.0
    %v1901 = vmul.f32 %v1899, %v1900
    %vm1902 = vcmask 0
    %1903 = vst.msk [vmem:[#allocation3] sm:$0x1] %vm1902, %v1901
    // Predicated region
    $region50: #{cqil_forward.11} parent=1 // pred_check
      _
    $region51: #{cqil_forward.11} parent=1 // pred_check_branch
      %1905 = sbr.rel (0) target = $region53
    $region52: #{cqil_forward.11} parent=1 // pred_region
      %s1907 = ssub.s32 16, 16
      %1908 = vsyncadd [#allocation4], %s1907
      %s1910 = sshll.u32 [#allocation3], 4
      %s1911 = int_to_ptr.vmem [resolvable:$true] %s1910
      %1913 = dma.vmem_to_hbm [thread:$0]  %s1911, 16, %s12, [#allocation4]
    $region53: #{cqil_forward.11} parent=1 // pred_fallthru
      _
    // Predicated region
    $region54: #{cqil_forward.11} parent=1 // pred_check
      _
    $region55: #{cqil_forward.11} parent=1 // pred_check_branch
      %1915 = sbr.rel (0) target = $region57
    $region56: #{cqil_forward.11} parent=1 // pred_region
      %1916 = dma.done [#allocation4], 16
    $region57: #{cqil_forward.11} parent=1 // pred_fallthru
      _
    %1917 = vsyncpa [#allocation4], 1

</llo_original>
